<compile_context>
chip_gen: v6e
topology: v6e:2x2x1
jax: 0.10.0
libtpu: 0.0.40
codegen_flags: <defaults>
</compile_context>

<pallas_src>
import functools
import numpy as np
import jax
import jax.numpy as jnp
from jax.experimental import pallas as pl
from jax.experimental.pallas import tpu as pltpu

BM_MAX = 512                       # row tile for large matmuls (tiled path)
BN_MAX = 256                       # col tile (tiled path)
BK_MAX = 512                       # K <= BK_MAX drops the k grid axis entirely
SINGLE_STEP_BYTES = 4 * 1024 * 1024  # collapse to 1 grid step below this footprint
VMEM_LIMIT = 48 * 1024 * 1024      # leaves headroom on v7x (64 MiB); ample elsewhere


def _rup(x, m):
    return (x + m - 1) // m * m


# ---------------------------------------------------------------------------
# Pallas kernel 1: matmul with fused per-column affine (scale/shift) + ReLU.
# Single-grid-step path for the tiny problems in this model; tiled / K-split
# paths kept for generality.  bf16 on the MXU, f32 accumulate + f32 epilogue.
# ---------------------------------------------------------------------------
def _mm_single_kernel(x_ref, w_ref, s_ref, b_ref, o_ref, *, relu):
    y = jnp.dot(x_ref[...], w_ref[...], preferred_element_type=jnp.float32)
    y = y * s_ref[...] + b_ref[...]
    if relu:
        y = jnp.maximum(y, 0.0)
    o_ref[...] = y.astype(o_ref.dtype)


def _mm_acc_kernel(x_ref, w_ref, s_ref, b_ref, o_ref, acc_ref, *, relu):
    # K-split accumulation path (never triggers at these sizes).  Note: the
    # scale/shift index_maps ignore k so their blocks stay resident across the
    # reduction axis (no per-k re-DMA).
    k = pl.program_id(2)

    @pl.when(k == 0)
    def _():
        acc_ref[...] = jnp.zeros_like(acc_ref)

    acc_ref[...] += jnp.dot(x_ref[...], w_ref[...], preferred_element_type=jnp.float32)

    @pl.when(k == pl.num_programs(2) - 1)
    def _():
        y = acc_ref[...] * s_ref[...] + b_ref[...]
        if relu:
            y = jnp.maximum(y, 0.0)
        o_ref[...] = y.astype(o_ref.dtype)


def pallas_matmul(x, w, scale=None, shift=None, relu=False, out_dtype=jnp.float32):
    """y = maybe_relu((x @ w) * scale + shift); scale/shift broadcast over rows."""
    M, K = x.shape
    Kw, N = w.shape
    assert K == Kw
    x = x.astype(jnp.bfloat16)
    w = w.astype(jnp.bfloat16)
    s = (jnp.ones((1, N), jnp.float32) if scale is None
         else scale.reshape(1, N).astype(jnp.float32))
    b = (jnp.zeros((1, N), jnp.float32) if shift is None
         else shift.reshape(1, N).astype(jnp.float32))

    out_isz = np.dtype(out_dtype).itemsize
    footprint = 2 * (M * K * 2 + K * N * 2 + M * N * out_isz) + 4 * N * 4

    if footprint <= SINGLE_STEP_BYTES:
        # One grid step, full-extent blocks (legal regardless of the (8,128)
        # rule since block == full array); no padding, no pipeline-step overhead.
        return pl.pallas_call(
            functools.partial(_mm_single_kernel, relu=relu),
            out_shape=jax.ShapeDtypeStruct((M, N), out_dtype),
            grid_spec=pltpu.PrefetchScalarGridSpec(
                num_scalar_prefetch=0,
                grid=(1,),
                in_specs=[
                    pl.BlockSpec((M, K), lambda i: (0, 0)),
                    pl.BlockSpec((K, N), lambda i: (0, 0)),
                    pl.BlockSpec((1, N), lambda i: (0, 0)),
                    pl.BlockSpec((1, N), lambda i: (0, 0)),
                ],
                out_specs=pl.BlockSpec((M, N), lambda i: (0, 0)),
            ),
            compiler_params=pltpu.CompilerParams(
                dimension_semantics=("arbitrary",),
                vmem_limit_bytes=VMEM_LIMIT),
        )(x, w, s, b)

    # ----- tiled path (generality only; not hit at the toy sizes) -----
    bm = M if M <= BM_MAX else BM_MAX
    bn = N if N <= BN_MAX else BN_MAX
    bk = K if K <= BK_MAX else BK_MAX
    Mp, Np, Kp = _rup(M, bm), _rup(N, bn), _rup(K, bk)
    if (Mp, Kp) != (M, K):
        x = jnp.pad(x, ((0, Mp - M), (0, Kp - K)))
    if (Kp, Np) != (K, N):
        w = jnp.pad(w, ((0, Kp - K), (0, Np - N)))
    if Np != N:
        s = jnp.pad(s, ((0, 0), (0, Np - N)))
        b = jnp.pad(b, ((0, 0), (0, Np - N)))
    gm, gn, gk = Mp // bm, Np // bn, Kp // bk

    if gk == 1:
        out = pl.pallas_call(
            functools.partial(_mm_single_kernel, relu=relu),
            out_shape=jax.ShapeDtypeStruct((Mp, Np), out_dtype),
            grid_spec=pltpu.PrefetchScalarGridSpec(
                num_scalar_prefetch=0,
                grid=(gm, gn),
                in_specs=[
                    pl.BlockSpec((bm, Kp), lambda i, j: (i, 0)),
                    pl.BlockSpec((Kp, bn), lambda i, j: (0, j)),
                    pl.BlockSpec((1, bn), lambda i, j: (0, j)),
                    pl.BlockSpec((1, bn), lambda i, j: (0, j)),
                ],
                out_specs=pl.BlockSpec((bm, bn), lambda i, j: (i, j)),
            ),
            compiler_params=pltpu.CompilerParams(
                dimension_semantics=("parallel", "parallel"),
                vmem_limit_bytes=VMEM_LIMIT),
        )(x, w, s, b)
    else:
        out = pl.pallas_call(
            functools.partial(_mm_acc_kernel, relu=relu),
            out_shape=jax.ShapeDtypeStruct((Mp, Np), out_dtype),
            grid_spec=pltpu.PrefetchScalarGridSpec(
                num_scalar_prefetch=0,
                grid=(gm, gn, gk),
                in_specs=[
                    pl.BlockSpec((bm, bk), lambda i, j, k: (i, k)),
                    pl.BlockSpec((bk, bn), lambda i, j, k: (k, j)),
                    pl.BlockSpec((1, bn), lambda i, j, k: (0, j)),
                    pl.BlockSpec((1, bn), lambda i, j, k: (0, j)),
                ],
                out_specs=pl.BlockSpec((bm, bn), lambda i, j, k: (i, j)),
                scratch_shapes=[pltpu.VMEM((bm, bn), jnp.float32)],
            ),
            compiler_params=pltpu.CompilerParams(
                dimension_semantics=("parallel", "parallel", "arbitrary"),
                vmem_limit_bytes=VMEM_LIMIT),
        )(x, w, s, b)

    if (Mp, Np) != (M, N):
        out = out[:M, :N]
    return out


# ---------------------------------------------------------------------------
# Pallas kernel 2: fused MLP projection + bilinear resize for one stage.
# One pallas_call, one grid step; per sample b (B small, unrolled):
#     y_b   = x_b @ lin_w + lin_b                (h*w, E)
#     out_b = kron(Ah, Aw) @ y_b                 (H1*W1, E)
# The projection intermediate never leaves VMEM/registers.
# ---------------------------------------------------------------------------
def _lin_resize_kernel(x_ref, w_ref, b_ref, a_ref, o_ref):
    w = w_ref[...]
    bias = b_ref[...]
    a = a_ref[...]
    for s in range(x_ref.shape[0]):                       # B is static -> unrolled
        y = jnp.dot(x_ref[s], w, preferred_element_type=jnp.float32) + bias
        o_ref[s] = jnp.dot(a, y.astype(jnp.bfloat16),
                           preferred_element_type=jnp.float32).astype(o_ref.dtype)


def pallas_lin_resize(x, lin_w, lin_b, a_kron):
    """x: (B, h*w, C_in) -> (B, H1*W1, E)."""
    B, HW, Cin = x.shape
    E = lin_w.shape[1]
    T1 = a_kron.shape[0]
    return pl.pallas_call(
        _lin_resize_kernel,
        out_shape=jax.ShapeDtypeStruct((B, T1, E), jnp.bfloat16),
        grid_spec=pltpu.PrefetchScalarGridSpec(
            num_scalar_prefetch=0,
            grid=(1,),
            in_specs=[
                pl.BlockSpec((B, HW, Cin), lambda i: (0, 0, 0)),
                pl.BlockSpec((Cin, E), lambda i: (0, 0)),
                pl.BlockSpec((1, E), lambda i: (0, 0)),
                pl.BlockSpec((T1, HW), lambda i: (0, 0)),
            ],
            out_specs=pl.BlockSpec((B, T1, E), lambda i: (0, 0, 0)),
        ),
        compiler_params=pltpu.CompilerParams(
            dimension_semantics=("arbitrary",),
            vmem_limit_bytes=VMEM_LIMIT),
    )(x.astype(jnp.bfloat16), lin_w.astype(jnp.bfloat16),
      lin_b.astype(jnp.float32), a_kron.astype(jnp.bfloat16))


# ---------------------------------------------------------------------------
# Pallas kernel 3: fused linear_fuse (1x1 conv + BN + ReLU) + linear_pred.
#     y      = relu((x @ Wf) * bn_scale + bn_shift)      # kept in VMEM/registers
#     logits = y @ Wp + bp                                # Wp padded to 128 lanes
# Output slab is lane-dense f32 (128 classes incl. padding), tiled over rows.
# ---------------------------------------------------------------------------
def _fuse_pred_kernel(x_ref, wf_ref, s_ref, b_ref, wp_ref, bp_ref, o_ref):
    y = jnp.dot(x_ref[...], wf_ref[...], preferred_element_type=jnp.float32)
    y = jnp.maximum(y * s_ref[...] + b_ref[...], 0.0)
    # Dropout2d(p=0.1) is identity in eval mode.
    o_ref[...] = (jnp.dot(y.astype(jnp.bfloat16), wp_ref[...],
                          preferred_element_type=jnp.float32)
                  + bp_ref[...]).astype(o_ref.dtype)


def pallas_fuse_pred(x, fuse_w, bn_scale, bn_shift, pred_w, pred_b, block_m=512):
    # block_m=512 -> gm=2 "parallel" so both v7x TensorCores get work; on
    # single-TC v5e/v6e pass block_m=1024 to collapse to one grid step.
    M, K = x.shape
    E = fuse_w.shape[1]
    NCP = pred_w.shape[1]
    bm = min(M, block_m)
    Mp = _rup(M, bm)
    if Mp != M:
        x = jnp.pad(x, ((0, Mp - M), (0, 0)))
    out = pl.pallas_call(
        _fuse_pred_kernel,
        out_shape=jax.ShapeDtypeStruct((Mp, NCP), jnp.float32),
        grid_spec=pltpu.PrefetchScalarGridSpec(
            num_scalar_prefetch=0,
            grid=(Mp // bm,),
            in_specs=[
                pl.BlockSpec((bm, K), lambda i: (i, 0)),
                pl.BlockSpec((K, E), lambda i: (0, 0)),
                pl.BlockSpec((1, E), lambda i: (0, 0)),
                pl.BlockSpec((1, E), lambda i: (0, 0)),
                pl.BlockSpec((E, NCP), lambda i: (0, 0)),
                pl.BlockSpec((1, NCP), lambda i: (0, 0)),
            ],
            out_specs=pl.BlockSpec((bm, NCP), lambda i: (i, 0)),
        ),
        compiler_params=pltpu.CompilerParams(
            dimension_semantics=("parallel",),
            vmem_limit_bytes=VMEM_LIMIT),
    )(x.astype(jnp.bfloat16), fuse_w.astype(jnp.bfloat16),
      bn_scale.astype(jnp.float32), bn_shift.astype(jnp.float32),
      pred_w.astype(jnp.bfloat16), pred_b.astype(jnp.float32))
    return out[:M] if Mp != M else out


# ---------------------------------------------------------------------------
# 1-D bilinear (align_corners=False) interpolation matrix (PyTorch semantics).
# ---------------------------------------------------------------------------
def _interp_matrix(out_size, in_size):
    A = np.zeros((out_size, in_size), dtype=np.float32)
    if in_size == 1:
        A[:, 0] = 1.0
        return A
    scale = in_size / out_size
    for d in range(out_size):
        src = max((d + 0.5) * scale - 0.5, 0.0)
        x0 = int(np.floor(src))
        x1 = min(x0 + 1, in_size - 1)
        l1 = src - x0
        A[d, x0] += 1.0 - l1
        A[d, x1] += l1
    return A


# ---------------------------------------------------------------------------
# Model pieces (glue is plain JAX; the hot path runs in the Pallas kernels above)
# ---------------------------------------------------------------------------
def encoder_stub(params, x):
    """Deterministic replacement for the (unprovided) mix_transformer backbone.

    Returns, per stride, (h, w, tokens) with tokens (B*h*w, C_i) in bf16,
    sample-major row order (row = b*h*w + hi*w + wi), channel last.
    """
    B, C, H, W = x.shape
    cin_pad = params["cin_pad"]
    feats = []
    for i, s in enumerate(params["strides"]):
        h, w = H // s, W // s
        pooled = x.reshape(B, C, h, s, w, s).mean(axis=(3, 5))             # (B,3,h,w)
        t = jnp.transpose(pooled, (0, 2, 3, 1)).reshape(B * h * w, C)      # sample-major
        t = jnp.pad(t, ((0, 0), (0, cin_pad - C)))                         # K: 3 -> 8
        y = pallas_matmul(t, params["enc_w"][i], shift=params["enc_b"][i],
                          out_dtype=jnp.bfloat16)                          # (B*h*w, C_i)
        feats.append((h, w, y))
    return feats


def segformer_head(params, feats, B):
    """SegFormerHead.forward on stacked-stream tokens -> (B*H1*W1, NC_PAD) f32."""
    h1, w1, _ = feats[0]
    E = params["embedding_dim"]
    toks = []
    for idx in (3, 2, 1, 0):                     # concat order: [_c4, _c3, _c2, _c1]
        h, w, x = feats[idx]
        if idx == 0:
            y = pallas_matmul(x, params["lin_w"][0], shift=params["lin_b"][0],
                              out_dtype=jnp.bfloat16)                      # (B*h1*w1, E)
        else:
            # Fused MLP projection + bilinear resize (one launch, one grid step).
            x3 = x.reshape(B, h * w, x.shape[-1])
            y3 = pallas_lin_resize(x3, params["lin_w"][idx], params["lin_b"][idx],
                                   params["interp_a"][idx])                # (B, h1*w1, E)
            y = y3.reshape(B * h1 * w1, E)
        toks.append(y)
    _c = jnp.concatenate(toks, axis=-1)                                    # (B*h1*w1, 4E)
    # linear_fuse (1x1 conv + BN-eval + ReLU) and linear_pred fused in one kernel,
    # pred output padded to 128 lanes (sliced back to num_classes by the caller).
    logits = pallas_fuse_pred(_c, params["fuse_w"], params["bn_scale"],
                              params["bn_shift"], params["pred_w"], params["pred_b"])
    return logits


def wetr_forward(params, input1, input2):
    N = input1.shape[0]
    # Encoder and decoder weights are shared -> stack both streams along the batch;
    # streams become contiguous row blocks in the sample-major token layout.
    x_all = jnp.concatenate([input1, input2], axis=0)                      # (2N,3,H,W)
    feats = encoder_stub(params, x_all)
    logits = segformer_head(params, feats, 2 * N)                          # (2N*h1*w1, NC_PAD)
    h1, w1, _ = feats[0]
    nc = params["num_classes"]
    L = logits.reshape(2 * N, h1, w1, -1)[..., :nc]                        # drop class padding
    L = jnp.transpose(L, (0, 3, 1, 2))                                     # NCHW
    x1, x2 = L[:N], L[N:]
    # Tiny axpy on ~80 KiB: left to XLA per review (dispatch cost > compute).
    alpha_soft = jax.nn.softmax(params["alpha"], axis=0)
    ens = (alpha_soft[0] * jax.lax.stop_gradient(x1)
           + alpha_soft[1] * jax.lax.stop_gradient(x2))                    # .detach()
    return [x1, x2, ens]


# ---------------------------------------------------------------------------
# Deterministic parameter construction (weights pre-cast/pre-shaped/padded once).
# ---------------------------------------------------------------------------
def init_params(key, H, W, in_channels, E, num_classes):
    strides = [4, 8, 16, 32]
    CIN_PAD = 8                                  # patch-embed contraction 3 -> 8
    NC_PAD = _rup(max(num_classes, 1), 128)      # lane-dense pred/ensemble slab
    keys = iter(jax.random.split(key, 32))
    p = dict(strides=strides, in_channels=in_channels, embedding_dim=E,
             num_classes=num_classes, cin_pad=CIN_PAD, nc_pad=NC_PAD)

    enc_w = []
    for c in in_channels:
        w3 = jax.random.normal(next(keys), (3, c)) * 0.2
        enc_w.append(jnp.pad(w3, ((0, CIN_PAD - 3), (0, 0))).astype(jnp.bfloat16))
    p["enc_w"] = enc_w
    p["enc_b"] = [jax.random.normal(next(keys), (1, c)) * 0.02 for c in in_channels]

    p["lin_w"] = [(jax.random.normal(next(keys), (c, E)) / np.sqrt(c)).astype(jnp.bfloat16)
                  for c in in_channels]
    p["lin_b"] = [jax.random.normal(next(keys), (1, E)) * 0.02 for _ in in_channels]

    p["fuse_w"] = (jax.random.normal(next(keys), (4 * E, E)) / np.sqrt(4 * E)).astype(jnp.bfloat16)
    gamma = jax.random.uniform(next(keys), (E,), minval=0.5, maxval=1.5)
    beta = jax.random.normal(next(keys), (E,)) * 0.05
    rmean = jax.random.normal(next(keys), (E,)) * 0.05
    rvar = jax.random.uniform(next(keys), (E,), minval=0.5, maxval=1.5)
    scale = gamma / jnp.sqrt(rvar + 1e-5)
    p["bn_scale"] = scale.reshape(1, E)
    p["bn_shift"] = (beta - rmean * scale).reshape(1, E)

    pw = jax.random.normal(next(keys), (E, num_classes)) / np.sqrt(E)
    pb = jax.random.normal(next(keys), (1, num_classes)) * 0.02
    p["pred_w"] = jnp.pad(pw, ((0, 0), (0, NC_PAD - num_classes))).astype(jnp.bfloat16)
    p["pred_b"] = jnp.pad(pb, ((0, 0), (0, NC_PAD - num_classes))).astype(jnp.float32)

    p["alpha"] = jnp.ones((2,), jnp.float32)     # nn.Parameter(torch.ones(2))

    # Precomputed bilinear-resize matrices: kron(Ah, Aw) per resized stage
    # (<= 256x64 at these sizes; trivially small).
    H1, W1 = H // strides[0], W // strides[0]
    interp_a = [None]
    for s in strides[1:]:
        Ah = _interp_matrix(H1, H // s)
        Aw = _interp_matrix(W1, W // s)
        interp_a.append(jnp.asarray(np.kron(Ah, Aw), jnp.bfloat16))
    p["interp_a"] = interp_a
    return p


if __name__ == "__main__":
    key = jax.random.PRNGKey(0)
    kp, k1, k2 = jax.random.split(key, 3)
    N, H, W = 2, 64, 64
    in_channels = [16, 32, 64, 128]
    E, num_classes = 32, 20

    params = init_params(kp, H, W, in_channels, E, num_classes)
    input1 = jax.random.normal(k1, (N, 3, H, W), jnp.float32)
    input2 = jax.random.normal(k2, (N, 3, H, W), jnp.float32)

    fwd = jax.jit(lambda a, b: wetr_forward(params, a, b))
    x1, x2, ens = fwd(input1, input2)
    jax.block_until_ready((x1, x2, ens))

    assert x1.shape == (N, num_classes, H // 4, W // 4)
    assert x2.shape == x1.shape and ens.shape == x1.shape
    assert bool(jnp.all(jnp.isfinite(x1))) and bool(jnp.all(jnp.isfinite(ens)))
    print("KERNEL_OK")
</pallas_src>

<mosaic_0001>
module attributes {stable_mosaic.version = 11 : i64} {
  func.func @_mm_single_kernel(%arg0: i32, %arg1: memref<1024x16xbf16, #tpu.memory_space<vmem>>, %arg2: memref<16x32xbf16, #tpu.memory_space<vmem>>, %arg3: memref<1x32xf32, #tpu.memory_space<vmem>>, %arg4: memref<1x32xf32, #tpu.memory_space<vmem>>, %arg5: memref<1024x32xbf16, #tpu.memory_space<vmem>>) attributes {dimension_semantics = [#tpu.dimension_semantics<arbitrary>], iteration_bounds = array<i64: 1>, scalar_prefetch = 0 : i64, scratch_operands = 0 : i64, tpu.core_type = #tpu.core_type<tc>, window_params = [{pipeline_mode = #tpu.pipeline_mode<synchronous>, transform_indices = @transform_0, window_bounds = array<i64: 1024, 16>}, {pipeline_mode = #tpu.pipeline_mode<synchronous>, transform_indices = @transform_1, window_bounds = array<i64: 16, 32>}, {pipeline_mode = #tpu.pipeline_mode<synchronous>, transform_indices = @transform_2, window_bounds = array<i64: 1, 32>}, {pipeline_mode = #tpu.pipeline_mode<synchronous>, transform_indices = @transform_3, window_bounds = array<i64: 1, 32>}, {pipeline_mode = #tpu.pipeline_mode<synchronous>, transform_indices = @transform_4, window_bounds = array<i64: 1024, 32>}]} {
    %c0 = arith.constant 0 : index
    %c0_0 = arith.constant 0 : index
    %0 = vector.load %arg1[%c0, %c0_0] : memref<1024x16xbf16, #tpu.memory_space<vmem>>, vector<1024x16xbf16>
    %c0_1 = arith.constant 0 : index
    %c0_2 = arith.constant 0 : index
    %1 = vector.load %arg2[%c0_1, %c0_2] : memref<16x32xbf16, #tpu.memory_space<vmem>>, vector<16x32xbf16>
    %cst = arith.constant dense<0.000000e+00> : vector<1024x32xf32>
    %2 = tpu.matmul %0, %1, %cst {dimension_numbers = #tpu.dot_dimension_numbers<[1], [0], [0], [1], [0, 0, 1, 1], [], []>} : vector<1024x16xbf16>, vector<16x32xbf16>, vector<1024x32xf32> -> vector<1024x32xf32>
    %c0_3 = arith.constant 0 : index
    %c0_4 = arith.constant 0 : index
    %3 = vector.load %arg3[%c0_3, %c0_4] : memref<1x32xf32, #tpu.memory_space<vmem>>, vector<1x32xf32>
    %4 = vector.broadcast %3 : vector<1x32xf32> to vector<1024x32xf32>
    %5 = arith.mulf %2, %4 : vector<1024x32xf32>
    %c0_5 = arith.constant 0 : index
    %c0_6 = arith.constant 0 : index
    %6 = vector.load %arg4[%c0_5, %c0_6] : memref<1x32xf32, #tpu.memory_space<vmem>>, vector<1x32xf32>
    %7 = vector.broadcast %6 : vector<1x32xf32> to vector<1024x32xf32>
    %8 = arith.addf %5, %7 : vector<1024x32xf32>
    %9 = arith.truncf %8 : vector<1024x32xf32> to vector<1024x32xbf16>
    %c0_7 = arith.constant 0 : index
    %c0_8 = arith.constant 0 : index
    %10 = vector.load %arg5[%c0_7, %c0_8] : memref<1024x32xbf16, #tpu.memory_space<vmem>>, vector<1024x32xbf16>
    tpu.vector_store %arg5[%c0_7, %c0_8], %9 {strides = array<i32>} : memref<1024x32xbf16, #tpu.memory_space<vmem>>, vector<1024x32xbf16>,
    return
  }
  func.func @transform_0(%arg0: i32) -> (i32, i32) {
    %c0_i32 = arith.constant 0 : i32
    %c0_i32_0 = arith.constant 0 : i32
    %c0_i32_1 = arith.constant 0 : i32
    return %c0_i32, %c0_i32_0 : i32, i32
  }
  func.func @transform_1(%arg0: i32) -> (i32, i32) {
    %c0_i32 = arith.constant 0 : i32
    %c0_i32_0 = arith.constant 0 : i32
    %c0_i32_1 = arith.constant 0 : i32
    return %c0_i32, %c0_i32_0 : i32, i32
  }
  func.func @transform_2(%arg0: i32) -> (i32, i32) {
    %c0_i32 = arith.constant 0 : i32
    %c0_i32_0 = arith.constant 0 : i32
    %c0_i32_1 = arith.constant 0 : i32
    return %c0_i32, %c0_i32_0 : i32, i32
  }
  func.func @transform_3(%arg0: i32) -> (i32, i32) {
    %c0_i32 = arith.constant 0 : i32
    %c0_i32_0 = arith.constant 0 : i32
    %c0_i32_1 = arith.constant 0 : i32
    return %c0_i32, %c0_i32_0 : i32, i32
  }
  func.func @transform_4(%arg0: i32) -> (i32, i32) {
    %c0_i32 = arith.constant 0 : i32
    %c0_i32_0 = arith.constant 0 : i32
    %c0_i32_1 = arith.constant 0 : i32
    return %c0_i32, %c0_i32_0 : i32, i32
  }
}

module attributes {stable_mosaic.version = 11 : i64} {
  func.func @_mm_single_kernel(%arg0: i32, %arg1: memref<1024x8xbf16, #tpu.memory_space<vmem>>, %arg2: memref<8x16xbf16, #tpu.memory_space<vmem>>, %arg3: memref<1x16xf32, #tpu.memory_space<vmem>>, %arg4: memref<1x16xf32, #tpu.memory_space<vmem>>, %arg5: memref<1024x16xbf16, #tpu.memory_space<vmem>>) attributes {dimension_semantics = [#tpu.dimension_semantics<arbitrary>], iteration_bounds = array<i64: 1>, scalar_prefetch = 0 : i64, scratch_operands = 0 : i64, tpu.core_type = #tpu.core_type<tc>, window_params = [{pipeline_mode = #tpu.pipeline_mode<synchronous>, transform_indices = @transform_0, window_bounds = array<i64: 1024, 8>}, {pipeline_mode = #tpu.pipeline_mode<synchronous>, transform_indices = @transform_1, window_bounds = array<i64: 8, 16>}, {pipeline_mode = #tpu.pipeline_mode<synchronous>, transform_indices = @transform_2, window_bounds = array<i64: 1, 16>}, {pipeline_mode = #tpu.pipeline_mode<synchronous>, transform_indices = @transform_3, window_bounds = array<i64: 1, 16>}, {pipeline_mode = #tpu.pipeline_mode<synchronous>, transform_indices = @transform_4, window_bounds = array<i64: 1024, 16>}]} {
    %c0 = arith.constant 0 : index
    %c0_0 = arith.constant 0 : index
    %0 = vector.load %arg1[%c0, %c0_0] : memref<1024x8xbf16, #tpu.memory_space<vmem>>, vector<1024x8xbf16>
    %c0_1 = arith.constant 0 : index
    %c0_2 = arith.constant 0 : index
    %1 = vector.load %arg2[%c0_1, %c0_2] : memref<8x16xbf16, #tpu.memory_space<vmem>>, vector<8x16xbf16>
    %cst = arith.constant dense<0.000000e+00> : vector<1024x16xf32>
    %2 = tpu.matmul %0, %1, %cst {dimension_numbers = #tpu.dot_dimension_numbers<[1], [0], [0], [1], [0, 0, 1, 1], [], []>} : vector<1024x8xbf16>, vector<8x16xbf16>, vector<1024x16xf32> -> vector<1024x16xf32>
    %c0_3 = arith.constant 0 : index
    %c0_4 = arith.constant 0 : index
    %3 = vector.load %arg3[%c0_3, %c0_4] : memref<1x16xf32, #tpu.memory_space<vmem>>, vector<1x16xf32>
    %4 = vector.broadcast %3 : vector<1x16xf32> to vector<1024x16xf32>
    %5 = arith.mulf %2, %4 : vector<1024x16xf32>
    %c0_5 = arith.constant 0 : index
    %c0_6 = arith.constant 0 : index
    %6 = vector.load %arg4[%c0_5, %c0_6] : memref<1x16xf32, #tpu.memory_space<vmem>>, vector<1x16xf32>
    %7 = vector.broadcast %6 : vector<1x16xf32> to vector<1024x16xf32>
    %8 = arith.addf %5, %7 : vector<1024x16xf32>
    %9 = arith.truncf %8 : vector<1024x16xf32> to vector<1024x16xbf16>
    %c0_7 = arith.constant 0 : index
    %c0_8 = arith.constant 0 : index
    %10 = vector.load %arg5[%c0_7, %c0_8] : memref<1024x16xbf16, #tpu.memory_space<vmem>>, vector<1024x16xbf16>
    tpu.vector_store %arg5[%c0_7, %c0_8], %9 {strides = array<i32>} : memref<1024x16xbf16, #tpu.memory_space<vmem>>, vector<1024x16xbf16>,
    return
  }
  func.func @transform_0(%arg0: i32) -> (i32, i32) {
    %c0_i32 = arith.constant 0 : i32
    %c0_i32_0 = arith.constant 0 : i32
    %c0_i32_1 = arith.constant 0 : i32
    return %c0_i32, %c0_i32_0 : i32, i32
  }
  func.func @transform_1(%arg0: i32) -> (i32, i32) {
    %c0_i32 = arith.constant 0 : i32
    %c0_i32_0 = arith.constant 0 : i32
    %c0_i32_1 = arith.constant 0 : i32
    return %c0_i32, %c0_i32_0 : i32, i32
  }
  func.func @transform_2(%arg0: i32) -> (i32, i32) {
    %c0_i32 = arith.constant 0 : i32
    %c0_i32_0 = arith.constant 0 : i32
    %c0_i32_1 = arith.constant 0 : i32
    return %c0_i32, %c0_i32_0 : i32, i32
  }
  func.func @transform_3(%arg0: i32) -> (i32, i32) {
    %c0_i32 = arith.constant 0 : i32
    %c0_i32_0 = arith.constant 0 : i32
    %c0_i32_1 = arith.constant 0 : i32
    return %c0_i32, %c0_i32_0 : i32, i32
  }
  func.func @transform_4(%arg0: i32) -> (i32, i32) {
    %c0_i32 = arith.constant 0 : i32
    %c0_i32_0 = arith.constant 0 : i32
    %c0_i32_1 = arith.constant 0 : i32
    return %c0_i32, %c0_i32_0 : i32, i32
  }
}

module attributes {stable_mosaic.version = 11 : i64} {
  func.func @_mm_single_kernel(%arg0: i32, %arg1: memref<256x8xbf16, #tpu.memory_space<vmem>>, %arg2: memref<8x32xbf16, #tpu.memory_space<vmem>>, %arg3: memref<1x32xf32, #tpu.memory_space<vmem>>, %arg4: memref<1x32xf32, #tpu.memory_space<vmem>>, %arg5: memref<256x32xbf16, #tpu.memory_space<vmem>>) attributes {dimension_semantics = [#tpu.dimension_semantics<arbitrary>], iteration_bounds = array<i64: 1>, scalar_prefetch = 0 : i64, scratch_operands = 0 : i64, tpu.core_type = #tpu.core_type<tc>, window_params = [{pipeline_mode = #tpu.pipeline_mode<synchronous>, transform_indices = @transform_0, window_bounds = array<i64: 256, 8>}, {pipeline_mode = #tpu.pipeline_mode<synchronous>, transform_indices = @transform_1, window_bounds = array<i64: 8, 32>}, {pipeline_mode = #tpu.pipeline_mode<synchronous>, transform_indices = @transform_2, window_bounds = array<i64: 1, 32>}, {pipeline_mode = #tpu.pipeline_mode<synchronous>, transform_indices = @transform_3, window_bounds = array<i64: 1, 32>}, {pipeline_mode = #tpu.pipeline_mode<synchronous>, transform_indices = @transform_4, window_bounds = array<i64: 256, 32>}]} {
    %c0 = arith.constant 0 : index
    %c0_0 = arith.constant 0 : index
    %0 = vector.load %arg1[%c0, %c0_0] : memref<256x8xbf16, #tpu.memory_space<vmem>>, vector<256x8xbf16>
    %c0_1 = arith.constant 0 : index
    %c0_2 = arith.constant 0 : index
    %1 = vector.load %arg2[%c0_1, %c0_2] : memref<8x32xbf16, #tpu.memory_space<vmem>>, vector<8x32xbf16>
    %cst = arith.constant dense<0.000000e+00> : vector<256x32xf32>
    %2 = tpu.matmul %0, %1, %cst {dimension_numbers = #tpu.dot_dimension_numbers<[1], [0], [0], [1], [0, 0, 1, 1], [], []>} : vector<256x8xbf16>, vector<8x32xbf16>, vector<256x32xf32> -> vector<256x32xf32>
    %c0_3 = arith.constant 0 : index
    %c0_4 = arith.constant 0 : index
    %3 = vector.load %arg3[%c0_3, %c0_4] : memref<1x32xf32, #tpu.memory_space<vmem>>, vector<1x32xf32>
    %4 = vector.broadcast %3 : vector<1x32xf32> to vector<256x32xf32>
    %5 = arith.mulf %2, %4 : vector<256x32xf32>
    %c0_5 = arith.constant 0 : index
    %c0_6 = arith.constant 0 : index
    %6 = vector.load %arg4[%c0_5, %c0_6] : memref<1x32xf32, #tpu.memory_space<vmem>>, vector<1x32xf32>
    %7 = vector.broadcast %6 : vector<1x32xf32> to vector<256x32xf32>
    %8 = arith.addf %5, %7 : vector<256x32xf32>
    %9 = arith.truncf %8 : vector<256x32xf32> to vector<256x32xbf16>
    %c0_7 = arith.constant 0 : index
    %c0_8 = arith.constant 0 : index
    %10 = vector.load %arg5[%c0_7, %c0_8] : memref<256x32xbf16, #tpu.memory_space<vmem>>, vector<256x32xbf16>
    tpu.vector_store %arg5[%c0_7, %c0_8], %9 {strides = array<i32>} : memref<256x32xbf16, #tpu.memory_space<vmem>>, vector<256x32xbf16>,
    return
  }
  func.func @transform_0(%arg0: i32) -> (i32, i32) {
    %c0_i32 = arith.constant 0 : i32
    %c0_i32_0 = arith.constant 0 : i32
    %c0_i32_1 = arith.constant 0 : i32
    return %c0_i32, %c0_i32_0 : i32, i32
  }
  func.func @transform_1(%arg0: i32) -> (i32, i32) {
    %c0_i32 = arith.constant 0 : i32
    %c0_i32_0 = arith.constant 0 : i32
    %c0_i32_1 = arith.constant 0 : i32
    return %c0_i32, %c0_i32_0 : i32, i32
  }
  func.func @transform_2(%arg0: i32) -> (i32, i32) {
    %c0_i32 = arith.constant 0 : i32
    %c0_i32_0 = arith.constant 0 : i32
    %c0_i32_1 = arith.constant 0 : i32
    return %c0_i32, %c0_i32_0 : i32, i32
  }
  func.func @transform_3(%arg0: i32) -> (i32, i32) {
    %c0_i32 = arith.constant 0 : i32
    %c0_i32_0 = arith.constant 0 : i32
    %c0_i32_1 = arith.constant 0 : i32
    return %c0_i32, %c0_i32_0 : i32, i32
  }
  func.func @transform_4(%arg0: i32) -> (i32, i32) {
    %c0_i32 = arith.constant 0 : i32
    %c0_i32_0 = arith.constant 0 : i32
    %c0_i32_1 = arith.constant 0 : i32
    return %c0_i32, %c0_i32_0 : i32, i32
  }
}

module attributes {stable_mosaic.version = 11 : i64} {
  func.func @_lin_resize_kernel(%arg0: i32, %arg1: memref<4x64x32xbf16, #tpu.memory_space<vmem>>, %arg2: memref<32x32xbf16, #tpu.memory_space<vmem>>, %arg3: memref<1x32xf32, #tpu.memory_space<vmem>>, %arg4: memref<256x64xbf16, #tpu.memory_space<vmem>>, %arg5: memref<4x256x32xbf16, #tpu.memory_space<vmem>>) attributes {dimension_semantics = [#tpu.dimension_semantics<arbitrary>], iteration_bounds = array<i64: 1>, scalar_prefetch = 0 : i64, scratch_operands = 0 : i64, tpu.core_type = #tpu.core_type<tc>, window_params = [{pipeline_mode = #tpu.pipeline_mode<synchronous>, transform_indices = @transform_0, window_bounds = array<i64: 4, 64, 32>}, {pipeline_mode = #tpu.pipeline_mode<synchronous>, transform_indices = @transform_1, window_bounds = array<i64: 32, 32>}, {pipeline_mode = #tpu.pipeline_mode<synchronous>, transform_indices = @transform_2, window_bounds = array<i64: 1, 32>}, {pipeline_mode = #tpu.pipeline_mode<synchronous>, transform_indices = @transform_3, window_bounds = array<i64: 256, 64>}, {pipeline_mode = #tpu.pipeline_mode<synchronous>, transform_indices = @transform_4, window_bounds = array<i64: 4, 256, 32>}]} {
    %c0 = arith.constant 0 : index
    %c0_0 = arith.constant 0 : index
    %0 = vector.load %arg2[%c0, %c0_0] : memref<32x32xbf16, #tpu.memory_space<vmem>>, vector<32x32xbf16>
    %c0_1 = arith.constant 0 : index
    %c0_2 = arith.constant 0 : index
    %1 = vector.load %arg3[%c0_1, %c0_2] : memref<1x32xf32, #tpu.memory_space<vmem>>, vector<1x32xf32>
    %c0_3 = arith.constant 0 : index
    %c0_4 = arith.constant 0 : index
    %2 = vector.load %arg4[%c0_3, %c0_4] : memref<256x64xbf16, #tpu.memory_space<vmem>>, vector<256x64xbf16>
    %c0_5 = arith.constant 0 : index
    %c0_6 = arith.constant 0 : index
    %c0_7 = arith.constant 0 : index
    %3 = vector.load %arg1[%c0_5, %c0_6, %c0_7] : memref<4x64x32xbf16, #tpu.memory_space<vmem>>, vector<1x64x32xbf16>
    %4 = vector.shape_cast %3 : vector<1x64x32xbf16> to vector<64x32xbf16>
    %cst = arith.constant dense<0.000000e+00> : vector<64x32xf32>
    %5 = tpu.matmul %4, %0, %cst {dimension_numbers = #tpu.dot_dimension_numbers<[1], [0], [0], [1], [0, 0, 1, 1], [], []>} : vector<64x32xbf16>, vector<32x32xbf16>, vector<64x32xf32> -> vector<64x32xf32>
    %6 = vector.broadcast %1 : vector<1x32xf32> to vector<64x32xf32>
    %7 = arith.addf %5, %6 : vector<64x32xf32>
    %8 = arith.truncf %7 : vector<64x32xf32> to vector<64x32xbf16>
    %cst_8 = arith.constant dense<0.000000e+00> : vector<256x32xf32>
    %9 = tpu.matmul %2, %8, %cst_8 {dimension_numbers = #tpu.dot_dimension_numbers<[1], [0], [0], [1], [0, 0, 1, 1], [], []>} : vector<256x64xbf16>, vector<64x32xbf16>, vector<256x32xf32> -> vector<256x32xf32>
    %10 = arith.truncf %9 : vector<256x32xf32> to vector<256x32xbf16>
    %c0_9 = arith.constant 0 : index
    %c0_10 = arith.constant 0 : index
    %c0_11 = arith.constant 0 : index
    %11 = vector.load %arg5[%c0_9, %c0_10, %c0_11] : memref<4x256x32xbf16, #tpu.memory_space<vmem>>, vector<1x256x32xbf16>
    %12 = vector.shape_cast %11 : vector<1x256x32xbf16> to vector<256x32xbf16>
    %13 = vector.shape_cast %10 : vector<256x32xbf16> to vector<1x256x32xbf16>
    tpu.vector_store %arg5[%c0_9, %c0_10, %c0_11], %13 {strides = array<i32>} : memref<4x256x32xbf16, #tpu.memory_space<vmem>>, vector<1x256x32xbf16>,
    %c1 = arith.constant 1 : index
    %c0_12 = arith.constant 0 : index
    %c0_13 = arith.constant 0 : index
    %14 = vector.load %arg1[%c1, %c0_12, %c0_13] : memref<4x64x32xbf16, #tpu.memory_space<vmem>>, vector<1x64x32xbf16>
    %15 = vector.shape_cast %14 : vector<1x64x32xbf16> to vector<64x32xbf16>
    %cst_14 = arith.constant dense<0.000000e+00> : vector<64x32xf32>
    %16 = tpu.matmul %15, %0, %cst_14 {dimension_numbers = #tpu.dot_dimension_numbers<[1], [0], [0], [1], [0, 0, 1, 1], [], []>} : vector<64x32xbf16>, vector<32x32xbf16>, vector<64x32xf32> -> vector<64x32xf32>
    %17 = vector.broadcast %1 : vector<1x32xf32> to vector<64x32xf32>
    %18 = arith.addf %16, %17 : vector<64x32xf32>
    %19 = arith.truncf %18 : vector<64x32xf32> to vector<64x32xbf16>
    %cst_15 = arith.constant dense<0.000000e+00> : vector<256x32xf32>
    %20 = tpu.matmul %2, %19, %cst_15 {dimension_numbers = #tpu.dot_dimension_numbers<[1], [0], [0], [1], [0, 0, 1, 1], [], []>} : vector<256x64xbf16>, vector<64x32xbf16>, vector<256x32xf32> -> vector<256x32xf32>
    %21 = arith.truncf %20 : vector<256x32xf32> to vector<256x32xbf16>
    %c1_16 = arith.constant 1 : index
    %c0_17 = arith.constant 0 : index
    %c0_18 = arith.constant 0 : index
    %22 = vector.load %arg5[%c1_16, %c0_17, %c0_18] : memref<4x256x32xbf16, #tpu.memory_space<vmem>>, vector<1x256x32xbf16>
    %23 = vector.shape_cast %22 : vector<1x256x32xbf16> to vector<256x32xbf16>
    %24 = vector.shape_cast %21 : vector<256x32xbf16> to vector<1x256x32xbf16>
    tpu.vector_store %arg5[%c1_16, %c0_17, %c0_18], %24 {strides = array<i32>} : memref<4x256x32xbf16, #tpu.memory_space<vmem>>, vector<1x256x32xbf16>,
    %c2 = arith.constant 2 : index
    %c0_19 = arith.constant 0 : index
    %c0_20 = arith.constant 0 : index
    %25 = vector.load %arg1[%c2, %c0_19, %c0_20] : memref<4x64x32xbf16, #tpu.memory_space<vmem>>, vector<1x64x32xbf16>
    %26 = vector.shape_cast %25 : vector<1x64x32xbf16> to vector<64x32xbf16>
    %cst_21 = arith.constant dense<0.000000e+00> : vector<64x32xf32>
    %27 = tpu.matmul %26, %0, %cst_21 {dimension_numbers = #tpu.dot_dimension_numbers<[1], [0], [0], [1], [0, 0, 1, 1], [], []>} : vector<64x32xbf16>, vector<32x32xbf16>, vector<64x32xf32> -> vector<64x32xf32>
    %28 = vector.broadcast %1 : vector<1x32xf32> to vector<64x32xf32>
    %29 = arith.addf %27, %28 : vector<64x32xf32>
    %30 = arith.truncf %29 : vector<64x32xf32> to vector<64x32xbf16>
    %cst_22 = arith.constant dense<0.000000e+00> : vector<256x32xf32>
    %31 = tpu.matmul %2, %30, %cst_22 {dimension_numbers = #tpu.dot_dimension_numbers<[1], [0], [0], [1], [0, 0, 1, 1], [], []>} : vector<256x64xbf16>, vector<64x32xbf16>, vector<256x32xf32> -> vector<256x32xf32>
    %32 = arith.truncf %31 : vector<256x32xf32> to vector<256x32xbf16>
    %c2_23 = arith.constant 2 : index
    %c0_24 = arith.constant 0 : index
    %c0_25 = arith.constant 0 : index
    %33 = vector.load %arg5[%c2_23, %c0_24, %c0_25] : memref<4x256x32xbf16, #tpu.memory_space<vmem>>, vector<1x256x32xbf16>
    %34 = vector.shape_cast %33 : vector<1x256x32xbf16> to vector<256x32xbf16>
    %35 = vector.shape_cast %32 : vector<256x32xbf16> to vector<1x256x32xbf16>
    tpu.vector_store %arg5[%c2_23, %c0_24, %c0_25], %35 {strides = array<i32>} : memref<4x256x32xbf16, #tpu.memory_space<vmem>>, vector<1x256x32xbf16>,
    %c3 = arith.constant 3 : index
    %c0_26 = arith.constant 0 : index
    %c0_27 = arith.constant 0 : index
    %36 = vector.load %arg1[%c3, %c0_26, %c0_27] : memref<4x64x32xbf16, #tpu.memory_space<vmem>>, vector<1x64x32xbf16>
    %37 = vector.shape_cast %36 : vector<1x64x32xbf16> to vector<64x32xbf16>
    %cst_28 = arith.constant dense<0.000000e+00> : vector<64x32xf32>
    %38 = tpu.matmul %37, %0, %cst_28 {dimension_numbers = #tpu.dot_dimension_numbers<[1], [0], [0], [1], [0, 0, 1, 1], [], []>} : vector<64x32xbf16>, vector<32x32xbf16>, vector<64x32xf32> -> vector<64x32xf32>
    %39 = vector.broadcast %1 : vector<1x32xf32> to vector<64x32xf32>
    %40 = arith.addf %38, %39 : vector<64x32xf32>
    %41 = arith.truncf %40 : vector<64x32xf32> to vector<64x32xbf16>
    %cst_29 = arith.constant dense<0.000000e+00> : vector<256x32xf32>
    %42 = tpu.matmul %2, %41, %cst_29 {dimension_numbers = #tpu.dot_dimension_numbers<[1], [0], [0], [1], [0, 0, 1, 1], [], []>} : vector<256x64xbf16>, vector<64x32xbf16>, vector<256x32xf32> -> vector<256x32xf32>
    %43 = arith.truncf %42 : vector<256x32xf32> to vector<256x32xbf16>
    %c3_30 = arith.constant 3 : index
    %c0_31 = arith.constant 0 : index
    %c0_32 = arith.constant 0 : index
    %44 = vector.load %arg5[%c3_30, %c0_31, %c0_32] : memref<4x256x32xbf16, #tpu.memory_space<vmem>>, vector<1x256x32xbf16>
    %45 = vector.shape_cast %44 : vector<1x256x32xbf16> to vector<256x32xbf16>
    %46 = vector.shape_cast %43 : vector<256x32xbf16> to vector<1x256x32xbf16>
    tpu.vector_store %arg5[%c3_30, %c0_31, %c0_32], %46 {strides = array<i32>} : memref<4x256x32xbf16, #tpu.memory_space<vmem>>, vector<1x256x32xbf16>,
    return
  }
  func.func @transform_0(%arg0: i32) -> (i32, i32, i32) {
    %c0_i32 = arith.constant 0 : i32
    %c0_i32_0 = arith.constant 0 : i32
    %c0_i32_1 = arith.constant 0 : i32
    %c0_i32_2 = arith.constant 0 : i32
    return %c0_i32, %c0_i32_0, %c0_i32_1 : i32, i32, i32
  }
  func.func @transform_1(%arg0: i32) -> (i32, i32) {
    %c0_i32 = arith.constant 0 : i32
    %c0_i32_0 = arith.constant 0 : i32
    %c0_i32_1 = arith.constant 0 : i32
    return %c0_i32, %c0_i32_0 : i32, i32
  }
  func.func @transform_2(%arg0: i32) -> (i32, i32) {
    %c0_i32 = arith.constant 0 : i32
    %c0_i32_0 = arith.constant 0 : i32
    %c0_i32_1 = arith.constant 0 : i32
    return %c0_i32, %c0_i32_0 : i32, i32
  }
  func.func @transform_3(%arg0: i32) -> (i32, i32) {
    %c0_i32 = arith.constant 0 : i32
    %c0_i32_0 = arith.constant 0 : i32
    %c0_i32_1 = arith.constant 0 : i32
    return %c0_i32, %c0_i32_0 : i32, i32
  }
  func.func @transform_4(%arg0: i32) -> (i32, i32, i32) {
    %c0_i32 = arith.constant 0 : i32
    %c0_i32_0 = arith.constant 0 : i32
    %c0_i32_1 = arith.constant 0 : i32
    %c0_i32_2 = arith.constant 0 : i32
    return %c0_i32, %c0_i32_0, %c0_i32_1 : i32, i32, i32
  }
}

module attributes {stable_mosaic.version = 11 : i64} {
  func.func @_mm_single_kernel(%arg0: i32, %arg1: memref<64x8xbf16, #tpu.memory_space<vmem>>, %arg2: memref<8x64xbf16, #tpu.memory_space<vmem>>, %arg3: memref<1x64xf32, #tpu.memory_space<vmem>>, %arg4: memref<1x64xf32, #tpu.memory_space<vmem>>, %arg5: memref<64x64xbf16, #tpu.memory_space<vmem>>) attributes {dimension_semantics = [#tpu.dimension_semantics<arbitrary>], iteration_bounds = array<i64: 1>, scalar_prefetch = 0 : i64, scratch_operands = 0 : i64, tpu.core_type = #tpu.core_type<tc>, window_params = [{pipeline_mode = #tpu.pipeline_mode<synchronous>, transform_indices = @transform_0, window_bounds = array<i64: 64, 8>}, {pipeline_mode = #tpu.pipeline_mode<synchronous>, transform_indices = @transform_1, window_bounds = array<i64: 8, 64>}, {pipeline_mode = #tpu.pipeline_mode<synchronous>, transform_indices = @transform_2, window_bounds = array<i64: 1, 64>}, {pipeline_mode = #tpu.pipeline_mode<synchronous>, transform_indices = @transform_3, window_bounds = array<i64: 1, 64>}, {pipeline_mode = #tpu.pipeline_mode<synchronous>, transform_indices = @transform_4, window_bounds = array<i64: 64, 64>}]} {
    %c0 = arith.constant 0 : index
    %c0_0 = arith.constant 0 : index
    %0 = vector.load %arg1[%c0, %c0_0] : memref<64x8xbf16, #tpu.memory_space<vmem>>, vector<64x8xbf16>
    %c0_1 = arith.constant 0 : index
    %c0_2 = arith.constant 0 : index
    %1 = vector.load %arg2[%c0_1, %c0_2] : memref<8x64xbf16, #tpu.memory_space<vmem>>, vector<8x64xbf16>
    %cst = arith.constant dense<0.000000e+00> : vector<64x64xf32>
    %2 = tpu.matmul %0, %1, %cst {dimension_numbers = #tpu.dot_dimension_numbers<[1], [0], [0], [1], [0, 0, 1, 1], [], []>} : vector<64x8xbf16>, vector<8x64xbf16>, vector<64x64xf32> -> vector<64x64xf32>
    %c0_3 = arith.constant 0 : index
    %c0_4 = arith.constant 0 : index
    %3 = vector.load %arg3[%c0_3, %c0_4] : memref<1x64xf32, #tpu.memory_space<vmem>>, vector<1x64xf32>
    %4 = vector.broadcast %3 : vector<1x64xf32> to vector<64x64xf32>
    %5 = arith.mulf %2, %4 : vector<64x64xf32>
    %c0_5 = arith.constant 0 : index
    %c0_6 = arith.constant 0 : index
    %6 = vector.load %arg4[%c0_5, %c0_6] : memref<1x64xf32, #tpu.memory_space<vmem>>, vector<1x64xf32>
    %7 = vector.broadcast %6 : vector<1x64xf32> to vector<64x64xf32>
    %8 = arith.addf %5, %7 : vector<64x64xf32>
    %9 = arith.truncf %8 : vector<64x64xf32> to vector<64x64xbf16>
    %c0_7 = arith.constant 0 : index
    %c0_8 = arith.constant 0 : index
    %10 = vector.load %arg5[%c0_7, %c0_8] : memref<64x64xbf16, #tpu.memory_space<vmem>>, vector<64x64xbf16>
    tpu.vector_store %arg5[%c0_7, %c0_8], %9 {strides = array<i32>} : memref<64x64xbf16, #tpu.memory_space<vmem>>, vector<64x64xbf16>,
    return
  }
  func.func @transform_0(%arg0: i32) -> (i32, i32) {
    %c0_i32 = arith.constant 0 : i32
    %c0_i32_0 = arith.constant 0 : i32
    %c0_i32_1 = arith.constant 0 : i32
    return %c0_i32, %c0_i32_0 : i32, i32
  }
  func.func @transform_1(%arg0: i32) -> (i32, i32) {
    %c0_i32 = arith.constant 0 : i32
    %c0_i32_0 = arith.constant 0 : i32
    %c0_i32_1 = arith.constant 0 : i32
    return %c0_i32, %c0_i32_0 : i32, i32
  }
  func.func @transform_2(%arg0: i32) -> (i32, i32) {
    %c0_i32 = arith.constant 0 : i32
    %c0_i32_0 = arith.constant 0 : i32
    %c0_i32_1 = arith.constant 0 : i32
    return %c0_i32, %c0_i32_0 : i32, i32
  }
  func.func @transform_3(%arg0: i32) -> (i32, i32) {
    %c0_i32 = arith.constant 0 : i32
    %c0_i32_0 = arith.constant 0 : i32
    %c0_i32_1 = arith.constant 0 : i32
    return %c0_i32, %c0_i32_0 : i32, i32
  }
  func.func @transform_4(%arg0: i32) -> (i32, i32) {
    %c0_i32 = arith.constant 0 : i32
    %c0_i32_0 = arith.constant 0 : i32
    %c0_i32_1 = arith.constant 0 : i32
    return %c0_i32, %c0_i32_0 : i32, i32
  }
}

module attributes {stable_mosaic.version = 11 : i64} {
  func.func @_lin_resize_kernel(%arg0: i32, %arg1: memref<4x16x64xbf16, #tpu.memory_space<vmem>>, %arg2: memref<64x32xbf16, #tpu.memory_space<vmem>>, %arg3: memref<1x32xf32, #tpu.memory_space<vmem>>, %arg4: memref<256x16xbf16, #tpu.memory_space<vmem>>, %arg5: memref<4x256x32xbf16, #tpu.memory_space<vmem>>) attributes {dimension_semantics = [#tpu.dimension_semantics<arbitrary>], iteration_bounds = array<i64: 1>, scalar_prefetch = 0 : i64, scratch_operands = 0 : i64, tpu.core_type = #tpu.core_type<tc>, window_params = [{pipeline_mode = #tpu.pipeline_mode<synchronous>, transform_indices = @transform_0, window_bounds = array<i64: 4, 16, 64>}, {pipeline_mode = #tpu.pipeline_mode<synchronous>, transform_indices = @transform_1, window_bounds = array<i64: 64, 32>}, {pipeline_mode = #tpu.pipeline_mode<synchronous>, transform_indices = @transform_2, window_bounds = array<i64: 1, 32>}, {pipeline_mode = #tpu.pipeline_mode<synchronous>, transform_indices = @transform_3, window_bounds = array<i64: 256, 16>}, {pipeline_mode = #tpu.pipeline_mode<synchronous>, transform_indices = @transform_4, window_bounds = array<i64: 4, 256, 32>}]} {
    %c0 = arith.constant 0 : index
    %c0_0 = arith.constant 0 : index
    %0 = vector.load %arg2[%c0, %c0_0] : memref<64x32xbf16, #tpu.memory_space<vmem>>, vector<64x32xbf16>
    %c0_1 = arith.constant 0 : index
    %c0_2 = arith.constant 0 : index
    %1 = vector.load %arg3[%c0_1, %c0_2] : memref<1x32xf32, #tpu.memory_space<vmem>>, vector<1x32xf32>
    %c0_3 = arith.constant 0 : index
    %c0_4 = arith.constant 0 : index
    %2 = vector.load %arg4[%c0_3, %c0_4] : memref<256x16xbf16, #tpu.memory_space<vmem>>, vector<256x16xbf16>
    %c0_5 = arith.constant 0 : index
    %c0_6 = arith.constant 0 : index
    %c0_7 = arith.constant 0 : index
    %3 = vector.load %arg1[%c0_5, %c0_6, %c0_7] : memref<4x16x64xbf16, #tpu.memory_space<vmem>>, vector<1x16x64xbf16>
    %4 = vector.shape_cast %3 : vector<1x16x64xbf16> to vector<16x64xbf16>
    %cst = arith.constant dense<0.000000e+00> : vector<16x32xf32>
    %5 = tpu.matmul %4, %0, %cst {dimension_numbers = #tpu.dot_dimension_numbers<[1], [0], [0], [1], [0, 0, 1, 1], [], []>} : vector<16x64xbf16>, vector<64x32xbf16>, vector<16x32xf32> -> vector<16x32xf32>
    %6 = vector.broadcast %1 : vector<1x32xf32> to vector<16x32xf32>
    %7 = arith.addf %5, %6 : vector<16x32xf32>
    %8 = arith.truncf %7 : vector<16x32xf32> to vector<16x32xbf16>
    %cst_8 = arith.constant dense<0.000000e+00> : vector<256x32xf32>
    %9 = tpu.matmul %2, %8, %cst_8 {dimension_numbers = #tpu.dot_dimension_numbers<[1], [0], [0], [1], [0, 0, 1, 1], [], []>} : vector<256x16xbf16>, vector<16x32xbf16>, vector<256x32xf32> -> vector<256x32xf32>
    %10 = arith.truncf %9 : vector<256x32xf32> to vector<256x32xbf16>
    %c0_9 = arith.constant 0 : index
    %c0_10 = arith.constant 0 : index
    %c0_11 = arith.constant 0 : index
    %11 = vector.load %arg5[%c0_9, %c0_10, %c0_11] : memref<4x256x32xbf16, #tpu.memory_space<vmem>>, vector<1x256x32xbf16>
    %12 = vector.shape_cast %11 : vector<1x256x32xbf16> to vector<256x32xbf16>
    %13 = vector.shape_cast %10 : vector<256x32xbf16> to vector<1x256x32xbf16>
    tpu.vector_store %arg5[%c0_9, %c0_10, %c0_11], %13 {strides = array<i32>} : memref<4x256x32xbf16, #tpu.memory_space<vmem>>, vector<1x256x32xbf16>,
    %c1 = arith.constant 1 : index
    %c0_12 = arith.constant 0 : index
    %c0_13 = arith.constant 0 : index
    %14 = vector.load %arg1[%c1, %c0_12, %c0_13] : memref<4x16x64xbf16, #tpu.memory_space<vmem>>, vector<1x16x64xbf16>
    %15 = vector.shape_cast %14 : vector<1x16x64xbf16> to vector<16x64xbf16>
    %cst_14 = arith.constant dense<0.000000e+00> : vector<16x32xf32>
    %16 = tpu.matmul %15, %0, %cst_14 {dimension_numbers = #tpu.dot_dimension_numbers<[1], [0], [0], [1], [0, 0, 1, 1], [], []>} : vector<16x64xbf16>, vector<64x32xbf16>, vector<16x32xf32> -> vector<16x32xf32>
    %17 = vector.broadcast %1 : vector<1x32xf32> to vector<16x32xf32>
    %18 = arith.addf %16, %17 : vector<16x32xf32>
    %19 = arith.truncf %18 : vector<16x32xf32> to vector<16x32xbf16>
    %cst_15 = arith.constant dense<0.000000e+00> : vector<256x32xf32>
    %20 = tpu.matmul %2, %19, %cst_15 {dimension_numbers = #tpu.dot_dimension_numbers<[1], [0], [0], [1], [0, 0, 1, 1], [], []>} : vector<256x16xbf16>, vector<16x32xbf16>, vector<256x32xf32> -> vector<256x32xf32>
    %21 = arith.truncf %20 : vector<256x32xf32> to vector<256x32xbf16>
    %c1_16 = arith.constant 1 : index
    %c0_17 = arith.constant 0 : index
    %c0_18 = arith.constant 0 : index
    %22 = vector.load %arg5[%c1_16, %c0_17, %c0_18] : memref<4x256x32xbf16, #tpu.memory_space<vmem>>, vector<1x256x32xbf16>
    %23 = vector.shape_cast %22 : vector<1x256x32xbf16> to vector<256x32xbf16>
    %24 = vector.shape_cast %21 : vector<256x32xbf16> to vector<1x256x32xbf16>
    tpu.vector_store %arg5[%c1_16, %c0_17, %c0_18], %24 {strides = array<i32>} : memref<4x256x32xbf16, #tpu.memory_space<vmem>>, vector<1x256x32xbf16>,
    %c2 = arith.constant 2 : index
    %c0_19 = arith.constant 0 : index
    %c0_20 = arith.constant 0 : index
    %25 = vector.load %arg1[%c2, %c0_19, %c0_20] : memref<4x16x64xbf16, #tpu.memory_space<vmem>>, vector<1x16x64xbf16>
    %26 = vector.shape_cast %25 : vector<1x16x64xbf16> to vector<16x64xbf16>
    %cst_21 = arith.constant dense<0.000000e+00> : vector<16x32xf32>
    %27 = tpu.matmul %26, %0, %cst_21 {dimension_numbers = #tpu.dot_dimension_numbers<[1], [0], [0], [1], [0, 0, 1, 1], [], []>} : vector<16x64xbf16>, vector<64x32xbf16>, vector<16x32xf32> -> vector<16x32xf32>
    %28 = vector.broadcast %1 : vector<1x32xf32> to vector<16x32xf32>
    %29 = arith.addf %27, %28 : vector<16x32xf32>
    %30 = arith.truncf %29 : vector<16x32xf32> to vector<16x32xbf16>
    %cst_22 = arith.constant dense<0.000000e+00> : vector<256x32xf32>
    %31 = tpu.matmul %2, %30, %cst_22 {dimension_numbers = #tpu.dot_dimension_numbers<[1], [0], [0], [1], [0, 0, 1, 1], [], []>} : vector<256x16xbf16>, vector<16x32xbf16>, vector<256x32xf32> -> vector<256x32xf32>
    %32 = arith.truncf %31 : vector<256x32xf32> to vector<256x32xbf16>
    %c2_23 = arith.constant 2 : index
    %c0_24 = arith.constant 0 : index
    %c0_25 = arith.constant 0 : index
    %33 = vector.load %arg5[%c2_23, %c0_24, %c0_25] : memref<4x256x32xbf16, #tpu.memory_space<vmem>>, vector<1x256x32xbf16>
    %34 = vector.shape_cast %33 : vector<1x256x32xbf16> to vector<256x32xbf16>
    %35 = vector.shape_cast %32 : vector<256x32xbf16> to vector<1x256x32xbf16>
    tpu.vector_store %arg5[%c2_23, %c0_24, %c0_25], %35 {strides = array<i32>} : memref<4x256x32xbf16, #tpu.memory_space<vmem>>, vector<1x256x32xbf16>,
    %c3 = arith.constant 3 : index
    %c0_26 = arith.constant 0 : index
    %c0_27 = arith.constant 0 : index
    %36 = vector.load %arg1[%c3, %c0_26, %c0_27] : memref<4x16x64xbf16, #tpu.memory_space<vmem>>, vector<1x16x64xbf16>
    %37 = vector.shape_cast %36 : vector<1x16x64xbf16> to vector<16x64xbf16>
    %cst_28 = arith.constant dense<0.000000e+00> : vector<16x32xf32>
    %38 = tpu.matmul %37, %0, %cst_28 {dimension_numbers = #tpu.dot_dimension_numbers<[1], [0], [0], [1], [0, 0, 1, 1], [], []>} : vector<16x64xbf16>, vector<64x32xbf16>, vector<16x32xf32> -> vector<16x32xf32>
    %39 = vector.broadcast %1 : vector<1x32xf32> to vector<16x32xf32>
    %40 = arith.addf %38, %39 : vector<16x32xf32>
    %41 = arith.truncf %40 : vector<16x32xf32> to vector<16x32xbf16>
    %cst_29 = arith.constant dense<0.000000e+00> : vector<256x32xf32>
    %42 = tpu.matmul %2, %41, %cst_29 {dimension_numbers = #tpu.dot_dimension_numbers<[1], [0], [0], [1], [0, 0, 1, 1], [], []>} : vector<256x16xbf16>, vector<16x32xbf16>, vector<256x32xf32> -> vector<256x32xf32>
    %43 = arith.truncf %42 : vector<256x32xf32> to vector<256x32xbf16>
    %c3_30 = arith.constant 3 : index
    %c0_31 = arith.constant 0 : index
    %c0_32 = arith.constant 0 : index
    %44 = vector.load %arg5[%c3_30, %c0_31, %c0_32] : memref<4x256x32xbf16, #tpu.memory_space<vmem>>, vector<1x256x32xbf16>
    %45 = vector.shape_cast %44 : vector<1x256x32xbf16> to vector<256x32xbf16>
    %46 = vector.shape_cast %43 : vector<256x32xbf16> to vector<1x256x32xbf16>
    tpu.vector_store %arg5[%c3_30, %c0_31, %c0_32], %46 {strides = array<i32>} : memref<4x256x32xbf16, #tpu.memory_space<vmem>>, vector<1x256x32xbf16>,
    return
  }
  func.func @transform_0(%arg0: i32) -> (i32, i32, i32) {
    %c0_i32 = arith.constant 0 : i32
    %c0_i32_0 = arith.constant 0 : i32
    %c0_i32_1 = arith.constant 0 : i32
    %c0_i32_2 = arith.constant 0 : i32
    return %c0_i32, %c0_i32_0, %c0_i32_1 : i32, i32, i32
  }
  func.func @transform_1(%arg0: i32) -> (i32, i32) {
    %c0_i32 = arith.constant 0 : i32
    %c0_i32_0 = arith.constant 0 : i32
    %c0_i32_1 = arith.constant 0 : i32
    return %c0_i32, %c0_i32_0 : i32, i32
  }
  func.func @transform_2(%arg0: i32) -> (i32, i32) {
    %c0_i32 = arith.constant 0 : i32
    %c0_i32_0 = arith.constant 0 : i32
    %c0_i32_1 = arith.constant 0 : i32
    return %c0_i32, %c0_i32_0 : i32, i32
  }
  func.func @transform_3(%arg0: i32) -> (i32, i32) {
    %c0_i32 = arith.constant 0 : i32
    %c0_i32_0 = arith.constant 0 : i32
    %c0_i32_1 = arith.constant 0 : i32
    return %c0_i32, %c0_i32_0 : i32, i32
  }
  func.func @transform_4(%arg0: i32) -> (i32, i32, i32) {
    %c0_i32 = arith.constant 0 : i32
    %c0_i32_0 = arith.constant 0 : i32
    %c0_i32_1 = arith.constant 0 : i32
    %c0_i32_2 = arith.constant 0 : i32
    return %c0_i32, %c0_i32_0, %c0_i32_1 : i32, i32, i32
  }
}

module attributes {stable_mosaic.version = 11 : i64} {
  func.func @_mm_single_kernel(%arg0: i32, %arg1: memref<16x8xbf16, #tpu.memory_space<vmem>>, %arg2: memref<8x128xbf16, #tpu.memory_space<vmem>>, %arg3: memref<1x128xf32, #tpu.memory_space<vmem>>, %arg4: memref<1x128xf32, #tpu.memory_space<vmem>>, %arg5: memref<16x128xbf16, #tpu.memory_space<vmem>>) attributes {dimension_semantics = [#tpu.dimension_semantics<arbitrary>], iteration_bounds = array<i64: 1>, scalar_prefetch = 0 : i64, scratch_operands = 0 : i64, tpu.core_type = #tpu.core_type<tc>, window_params = [{pipeline_mode = #tpu.pipeline_mode<synchronous>, transform_indices = @transform_0, window_bounds = array<i64: 16, 8>}, {pipeline_mode = #tpu.pipeline_mode<synchronous>, transform_indices = @transform_1, window_bounds = array<i64: 8, 128>}, {pipeline_mode = #tpu.pipeline_mode<synchronous>, transform_indices = @transform_2, window_bounds = array<i64: 1, 128>}, {pipeline_mode = #tpu.pipeline_mode<synchronous>, transform_indices = @transform_3, window_bounds = array<i64: 1, 128>}, {pipeline_mode = #tpu.pipeline_mode<synchronous>, transform_indices = @transform_4, window_bounds = array<i64: 16, 128>}]} {
    %c0 = arith.constant 0 : index
    %c0_0 = arith.constant 0 : index
    %0 = vector.load %arg1[%c0, %c0_0] : memref<16x8xbf16, #tpu.memory_space<vmem>>, vector<16x8xbf16>
    %c0_1 = arith.constant 0 : index
    %c0_2 = arith.constant 0 : index
    %1 = vector.load %arg2[%c0_1, %c0_2] : memref<8x128xbf16, #tpu.memory_space<vmem>>, vector<8x128xbf16>
    %cst = arith.constant dense<0.000000e+00> : vector<16x128xf32>
    %2 = tpu.matmul %0, %1, %cst {dimension_numbers = #tpu.dot_dimension_numbers<[1], [0], [0], [1], [0, 0, 1, 1], [], []>} : vector<16x8xbf16>, vector<8x128xbf16>, vector<16x128xf32> -> vector<16x128xf32>
    %c0_3 = arith.constant 0 : index
    %c0_4 = arith.constant 0 : index
    %3 = vector.load %arg3[%c0_3, %c0_4] : memref<1x128xf32, #tpu.memory_space<vmem>>, vector<1x128xf32>
    %4 = vector.broadcast %3 : vector<1x128xf32> to vector<16x128xf32>
    %5 = arith.mulf %2, %4 : vector<16x128xf32>
    %c0_5 = arith.constant 0 : index
    %c0_6 = arith.constant 0 : index
    %6 = vector.load %arg4[%c0_5, %c0_6] : memref<1x128xf32, #tpu.memory_space<vmem>>, vector<1x128xf32>
    %7 = vector.broadcast %6 : vector<1x128xf32> to vector<16x128xf32>
    %8 = arith.addf %5, %7 : vector<16x128xf32>
    %9 = arith.truncf %8 : vector<16x128xf32> to vector<16x128xbf16>
    %c0_7 = arith.constant 0 : index
    %c0_8 = arith.constant 0 : index
    %10 = vector.load %arg5[%c0_7, %c0_8] : memref<16x128xbf16, #tpu.memory_space<vmem>>, vector<16x128xbf16>
    tpu.vector_store %arg5[%c0_7, %c0_8], %9 {strides = array<i32>} : memref<16x128xbf16, #tpu.memory_space<vmem>>, vector<16x128xbf16>,
    return
  }
  func.func @transform_0(%arg0: i32) -> (i32, i32) {
    %c0_i32 = arith.constant 0 : i32
    %c0_i32_0 = arith.constant 0 : i32
    %c0_i32_1 = arith.constant 0 : i32
    return %c0_i32, %c0_i32_0 : i32, i32
  }
  func.func @transform_1(%arg0: i32) -> (i32, i32) {
    %c0_i32 = arith.constant 0 : i32
    %c0_i32_0 = arith.constant 0 : i32
    %c0_i32_1 = arith.constant 0 : i32
    return %c0_i32, %c0_i32_0 : i32, i32
  }
  func.func @transform_2(%arg0: i32) -> (i32, i32) {
    %c0_i32 = arith.constant 0 : i32
    %c0_i32_0 = arith.constant 0 : i32
    %c0_i32_1 = arith.constant 0 : i32
    return %c0_i32, %c0_i32_0 : i32, i32
  }
  func.func @transform_3(%arg0: i32) -> (i32, i32) {
    %c0_i32 = arith.constant 0 : i32
    %c0_i32_0 = arith.constant 0 : i32
    %c0_i32_1 = arith.constant 0 : i32
    return %c0_i32, %c0_i32_0 : i32, i32
  }
  func.func @transform_4(%arg0: i32) -> (i32, i32) {
    %c0_i32 = arith.constant 0 : i32
    %c0_i32_0 = arith.constant 0 : i32
    %c0_i32_1 = arith.constant 0 : i32
    return %c0_i32, %c0_i32_0 : i32, i32
  }
}

module attributes {stable_mosaic.version = 11 : i64} {
  func.func @_lin_resize_kernel(%arg0: i32, %arg1: memref<4x4x128xbf16, #tpu.memory_space<vmem>>, %arg2: memref<128x32xbf16, #tpu.memory_space<vmem>>, %arg3: memref<1x32xf32, #tpu.memory_space<vmem>>, %arg4: memref<256x4xbf16, #tpu.memory_space<vmem>>, %arg5: memref<4x256x32xbf16, #tpu.memory_space<vmem>>) attributes {dimension_semantics = [#tpu.dimension_semantics<arbitrary>], iteration_bounds = array<i64: 1>, scalar_prefetch = 0 : i64, scratch_operands = 0 : i64, tpu.core_type = #tpu.core_type<tc>, window_params = [{pipeline_mode = #tpu.pipeline_mode<synchronous>, transform_indices = @transform_0, window_bounds = array<i64: 4, 4, 128>}, {pipeline_mode = #tpu.pipeline_mode<synchronous>, transform_indices = @transform_1, window_bounds = array<i64: 128, 32>}, {pipeline_mode = #tpu.pipeline_mode<synchronous>, transform_indices = @transform_2, window_bounds = array<i64: 1, 32>}, {pipeline_mode = #tpu.pipeline_mode<synchronous>, transform_indices = @transform_3, window_bounds = array<i64: 256, 4>}, {pipeline_mode = #tpu.pipeline_mode<synchronous>, transform_indices = @transform_4, window_bounds = array<i64: 4, 256, 32>}]} {
    %c0 = arith.constant 0 : index
    %c0_0 = arith.constant 0 : index
    %0 = vector.load %arg2[%c0, %c0_0] : memref<128x32xbf16, #tpu.memory_space<vmem>>, vector<128x32xbf16>
    %c0_1 = arith.constant 0 : index
    %c0_2 = arith.constant 0 : index
    %1 = vector.load %arg3[%c0_1, %c0_2] : memref<1x32xf32, #tpu.memory_space<vmem>>, vector<1x32xf32>
    %c0_3 = arith.constant 0 : index
    %c0_4 = arith.constant 0 : index
    %2 = vector.load %arg4[%c0_3, %c0_4] : memref<256x4xbf16, #tpu.memory_space<vmem>>, vector<256x4xbf16>
    %c0_5 = arith.constant 0 : index
    %c0_6 = arith.constant 0 : index
    %c0_7 = arith.constant 0 : index
    %3 = vector.load %arg1[%c0_5, %c0_6, %c0_7] : memref<4x4x128xbf16, #tpu.memory_space<vmem>>, vector<1x4x128xbf16>
    %4 = vector.shape_cast %3 : vector<1x4x128xbf16> to vector<4x128xbf16>
    %cst = arith.constant dense<0.000000e+00> : vector<4x32xf32>
    %5 = tpu.matmul %4, %0, %cst {dimension_numbers = #tpu.dot_dimension_numbers<[1], [0], [0], [1], [0, 0, 1, 1], [], []>} : vector<4x128xbf16>, vector<128x32xbf16>, vector<4x32xf32> -> vector<4x32xf32>
    %6 = vector.broadcast %1 : vector<1x32xf32> to vector<4x32xf32>
    %7 = arith.addf %5, %6 : vector<4x32xf32>
    %8 = arith.truncf %7 : vector<4x32xf32> to vector<4x32xbf16>
    %cst_8 = arith.constant dense<0.000000e+00> : vector<256x32xf32>
    %9 = tpu.matmul %2, %8, %cst_8 {dimension_numbers = #tpu.dot_dimension_numbers<[1], [0], [0], [1], [0, 0, 1, 1], [], []>} : vector<256x4xbf16>, vector<4x32xbf16>, vector<256x32xf32> -> vector<256x32xf32>
    %10 = arith.truncf %9 : vector<256x32xf32> to vector<256x32xbf16>
    %c0_9 = arith.constant 0 : index
    %c0_10 = arith.constant 0 : index
    %c0_11 = arith.constant 0 : index
    %11 = vector.load %arg5[%c0_9, %c0_10, %c0_11] : memref<4x256x32xbf16, #tpu.memory_space<vmem>>, vector<1x256x32xbf16>
    %12 = vector.shape_cast %11 : vector<1x256x32xbf16> to vector<256x32xbf16>
    %13 = vector.shape_cast %10 : vector<256x32xbf16> to vector<1x256x32xbf16>
    tpu.vector_store %arg5[%c0_9, %c0_10, %c0_11], %13 {strides = array<i32>} : memref<4x256x32xbf16, #tpu.memory_space<vmem>>, vector<1x256x32xbf16>,
    %c1 = arith.constant 1 : index
    %c0_12 = arith.constant 0 : index
    %c0_13 = arith.constant 0 : index
    %14 = vector.load %arg1[%c1, %c0_12, %c0_13] : memref<4x4x128xbf16, #tpu.memory_space<vmem>>, vector<1x4x128xbf16>
    %15 = vector.shape_cast %14 : vector<1x4x128xbf16> to vector<4x128xbf16>
    %cst_14 = arith.constant dense<0.000000e+00> : vector<4x32xf32>
    %16 = tpu.matmul %15, %0, %cst_14 {dimension_numbers = #tpu.dot_dimension_numbers<[1], [0], [0], [1], [0, 0, 1, 1], [], []>} : vector<4x128xbf16>, vector<128x32xbf16>, vector<4x32xf32> -> vector<4x32xf32>
    %17 = vector.broadcast %1 : vector<1x32xf32> to vector<4x32xf32>
    %18 = arith.addf %16, %17 : vector<4x32xf32>
    %19 = arith.truncf %18 : vector<4x32xf32> to vector<4x32xbf16>
    %cst_15 = arith.constant dense<0.000000e+00> : vector<256x32xf32>
    %20 = tpu.matmul %2, %19, %cst_15 {dimension_numbers = #tpu.dot_dimension_numbers<[1], [0], [0], [1], [0, 0, 1, 1], [], []>} : vector<256x4xbf16>, vector<4x32xbf16>, vector<256x32xf32> -> vector<256x32xf32>
    %21 = arith.truncf %20 : vector<256x32xf32> to vector<256x32xbf16>
    %c1_16 = arith.constant 1 : index
    %c0_17 = arith.constant 0 : index
    %c0_18 = arith.constant 0 : index
    %22 = vector.load %arg5[%c1_16, %c0_17, %c0_18] : memref<4x256x32xbf16, #tpu.memory_space<vmem>>, vector<1x256x32xbf16>
    %23 = vector.shape_cast %22 : vector<1x256x32xbf16> to vector<256x32xbf16>
    %24 = vector.shape_cast %21 : vector<256x32xbf16> to vector<1x256x32xbf16>
    tpu.vector_store %arg5[%c1_16, %c0_17, %c0_18], %24 {strides = array<i32>} : memref<4x256x32xbf16, #tpu.memory_space<vmem>>, vector<1x256x32xbf16>,
    %c2 = arith.constant 2 : index
    %c0_19 = arith.constant 0 : index
    %c0_20 = arith.constant 0 : index
    %25 = vector.load %arg1[%c2, %c0_19, %c0_20] : memref<4x4x128xbf16, #tpu.memory_space<vmem>>, vector<1x4x128xbf16>
    %26 = vector.shape_cast %25 : vector<1x4x128xbf16> to vector<4x128xbf16>
    %cst_21 = arith.constant dense<0.000000e+00> : vector<4x32xf32>
    %27 = tpu.matmul %26, %0, %cst_21 {dimension_numbers = #tpu.dot_dimension_numbers<[1], [0], [0], [1], [0, 0, 1, 1], [], []>} : vector<4x128xbf16>, vector<128x32xbf16>, vector<4x32xf32> -> vector<4x32xf32>
    %28 = vector.broadcast %1 : vector<1x32xf32> to vector<4x32xf32>
    %29 = arith.addf %27, %28 : vector<4x32xf32>
    %30 = arith.truncf %29 : vector<4x32xf32> to vector<4x32xbf16>
    %cst_22 = arith.constant dense<0.000000e+00> : vector<256x32xf32>
    %31 = tpu.matmul %2, %30, %cst_22 {dimension_numbers = #tpu.dot_dimension_numbers<[1], [0], [0], [1], [0, 0, 1, 1], [], []>} : vector<256x4xbf16>, vector<4x32xbf16>, vector<256x32xf32> -> vector<256x32xf32>
    %32 = arith.truncf %31 : vector<256x32xf32> to vector<256x32xbf16>
    %c2_23 = arith.constant 2 : index
    %c0_24 = arith.constant 0 : index
    %c0_25 = arith.constant 0 : index
    %33 = vector.load %arg5[%c2_23, %c0_24, %c0_25] : memref<4x256x32xbf16, #tpu.memory_space<vmem>>, vector<1x256x32xbf16>
    %34 = vector.shape_cast %33 : vector<1x256x32xbf16> to vector<256x32xbf16>
    %35 = vector.shape_cast %32 : vector<256x32xbf16> to vector<1x256x32xbf16>
    tpu.vector_store %arg5[%c2_23, %c0_24, %c0_25], %35 {strides = array<i32>} : memref<4x256x32xbf16, #tpu.memory_space<vmem>>, vector<1x256x32xbf16>,
    %c3 = arith.constant 3 : index
    %c0_26 = arith.constant 0 : index
    %c0_27 = arith.constant 0 : index
    %36 = vector.load %arg1[%c3, %c0_26, %c0_27] : memref<4x4x128xbf16, #tpu.memory_space<vmem>>, vector<1x4x128xbf16>
    %37 = vector.shape_cast %36 : vector<1x4x128xbf16> to vector<4x128xbf16>
    %cst_28 = arith.constant dense<0.000000e+00> : vector<4x32xf32>
    %38 = tpu.matmul %37, %0, %cst_28 {dimension_numbers = #tpu.dot_dimension_numbers<[1], [0], [0], [1], [0, 0, 1, 1], [], []>} : vector<4x128xbf16>, vector<128x32xbf16>, vector<4x32xf32> -> vector<4x32xf32>
    %39 = vector.broadcast %1 : vector<1x32xf32> to vector<4x32xf32>
    %40 = arith.addf %38, %39 : vector<4x32xf32>
    %41 = arith.truncf %40 : vector<4x32xf32> to vector<4x32xbf16>
    %cst_29 = arith.constant dense<0.000000e+00> : vector<256x32xf32>
    %42 = tpu.matmul %2, %41, %cst_29 {dimension_numbers = #tpu.dot_dimension_numbers<[1], [0], [0], [1], [0, 0, 1, 1], [], []>} : vector<256x4xbf16>, vector<4x32xbf16>, vector<256x32xf32> -> vector<256x32xf32>
    %43 = arith.truncf %42 : vector<256x32xf32> to vector<256x32xbf16>
    %c3_30 = arith.constant 3 : index
    %c0_31 = arith.constant 0 : index
    %c0_32 = arith.constant 0 : index
    %44 = vector.load %arg5[%c3_30, %c0_31, %c0_32] : memref<4x256x32xbf16, #tpu.memory_space<vmem>>, vector<1x256x32xbf16>
    %45 = vector.shape_cast %44 : vector<1x256x32xbf16> to vector<256x32xbf16>
    %46 = vector.shape_cast %43 : vector<256x32xbf16> to vector<1x256x32xbf16>
    tpu.vector_store %arg5[%c3_30, %c0_31, %c0_32], %46 {strides = array<i32>} : memref<4x256x32xbf16, #tpu.memory_space<vmem>>, vector<1x256x32xbf16>,
    return
  }
  func.func @transform_0(%arg0: i32) -> (i32, i32, i32) {
    %c0_i32 = arith.constant 0 : i32
    %c0_i32_0 = arith.constant 0 : i32
    %c0_i32_1 = arith.constant 0 : i32
    %c0_i32_2 = arith.constant 0 : i32
    return %c0_i32, %c0_i32_0, %c0_i32_1 : i32, i32, i32
  }
  func.func @transform_1(%arg0: i32) -> (i32, i32) {
    %c0_i32 = arith.constant 0 : i32
    %c0_i32_0 = arith.constant 0 : i32
    %c0_i32_1 = arith.constant 0 : i32
    return %c0_i32, %c0_i32_0 : i32, i32
  }
  func.func @transform_2(%arg0: i32) -> (i32, i32) {
    %c0_i32 = arith.constant 0 : i32
    %c0_i32_0 = arith.constant 0 : i32
    %c0_i32_1 = arith.constant 0 : i32
    return %c0_i32, %c0_i32_0 : i32, i32
  }
  func.func @transform_3(%arg0: i32) -> (i32, i32) {
    %c0_i32 = arith.constant 0 : i32
    %c0_i32_0 = arith.constant 0 : i32
    %c0_i32_1 = arith.constant 0 : i32
    return %c0_i32, %c0_i32_0 : i32, i32
  }
  func.func @transform_4(%arg0: i32) -> (i32, i32, i32) {
    %c0_i32 = arith.constant 0 : i32
    %c0_i32_0 = arith.constant 0 : i32
    %c0_i32_1 = arith.constant 0 : i32
    %c0_i32_2 = arith.constant 0 : i32
    return %c0_i32, %c0_i32_0, %c0_i32_1 : i32, i32, i32
  }
}

module attributes {stable_mosaic.version = 11 : i64} {
  func.func @_fuse_pred_kernel(%arg0: i32, %arg1: memref<512x128xbf16, #tpu.memory_space<vmem>>, %arg2: memref<128x32xbf16, #tpu.memory_space<vmem>>, %arg3: memref<1x32xf32, #tpu.memory_space<vmem>>, %arg4: memref<1x32xf32, #tpu.memory_space<vmem>>, %arg5: memref<32x128xbf16, #tpu.memory_space<vmem>>, %arg6: memref<1x128xf32, #tpu.memory_space<vmem>>, %arg7: memref<512x128xf32, #tpu.memory_space<vmem>>) attributes {dimension_semantics = [#tpu.dimension_semantics<parallel>], iteration_bounds = array<i64: 2>, scalar_prefetch = 0 : i64, scratch_operands = 0 : i64, tpu.core_type = #tpu.core_type<tc>, window_params = [{transform_indices = @transform_0, window_bounds = array<i64: 512, 128>}, {pipeline_mode = #tpu.pipeline_mode<synchronous>, transform_indices = @transform_1, window_bounds = array<i64: 128, 32>}, {pipeline_mode = #tpu.pipeline_mode<synchronous>, transform_indices = @transform_2, window_bounds = array<i64: 1, 32>}, {pipeline_mode = #tpu.pipeline_mode<synchronous>, transform_indices = @transform_3, window_bounds = array<i64: 1, 32>}, {pipeline_mode = #tpu.pipeline_mode<synchronous>, transform_indices = @transform_4, window_bounds = array<i64: 32, 128>}, {pipeline_mode = #tpu.pipeline_mode<synchronous>, transform_indices = @transform_5, window_bounds = array<i64: 1, 128>}, {transform_indices = @transform_6, window_bounds = array<i64: 512, 128>}]} {
    %c0 = arith.constant 0 : index
    %c0_0 = arith.constant 0 : index
    %0 = vector.load %arg1[%c0, %c0_0] : memref<512x128xbf16, #tpu.memory_space<vmem>>, vector<512x128xbf16>
    %c0_1 = arith.constant 0 : index
    %c0_2 = arith.constant 0 : index
    %1 = vector.load %arg2[%c0_1, %c0_2] : memref<128x32xbf16, #tpu.memory_space<vmem>>, vector<128x32xbf16>
    %cst = arith.constant dense<0.000000e+00> : vector<512x32xf32>
    %2 = tpu.matmul %0, %1, %cst {dimension_numbers = #tpu.dot_dimension_numbers<[1], [0], [0], [1], [0, 0, 1, 1], [], []>} : vector<512x128xbf16>, vector<128x32xbf16>, vector<512x32xf32> -> vector<512x32xf32>
    %c0_3 = arith.constant 0 : index
    %c0_4 = arith.constant 0 : index
    %3 = vector.load %arg3[%c0_3, %c0_4] : memref<1x32xf32, #tpu.memory_space<vmem>>, vector<1x32xf32>
    %4 = vector.broadcast %3 : vector<1x32xf32> to vector<512x32xf32>
    %5 = arith.mulf %2, %4 : vector<512x32xf32>
    %c0_5 = arith.constant 0 : index
    %c0_6 = arith.constant 0 : index
    %6 = vector.load %arg4[%c0_5, %c0_6] : memref<1x32xf32, #tpu.memory_space<vmem>>, vector<1x32xf32>
    %7 = vector.broadcast %6 : vector<1x32xf32> to vector<512x32xf32>
    %8 = arith.addf %5, %7 : vector<512x32xf32>
    %cst_7 = arith.constant 0.000000e+00 : f32
    %9 = vector.broadcast %cst_7 : f32 to vector<512x32xf32>
    %10 = arith.maximumf %8, %9 : vector<512x32xf32>
    %11 = arith.truncf %10 : vector<512x32xf32> to vector<512x32xbf16>
    %c0_8 = arith.constant 0 : index
    %c0_9 = arith.constant 0 : index
    %12 = vector.load %arg5[%c0_8, %c0_9] : memref<32x128xbf16, #tpu.memory_space<vmem>>, vector<32x128xbf16>
    %cst_10 = arith.constant dense<0.000000e+00> : vector<512x128xf32>
    %13 = tpu.matmul %11, %12, %cst_10 {dimension_numbers = #tpu.dot_dimension_numbers<[1], [0], [0], [1], [0, 0, 1, 1], [], []>} : vector<512x32xbf16>, vector<32x128xbf16>, vector<512x128xf32> -> vector<512x128xf32>
    %c0_11 = arith.constant 0 : index
    %c0_12 = arith.constant 0 : index
    %14 = vector.load %arg6[%c0_11, %c0_12] : memref<1x128xf32, #tpu.memory_space<vmem>>, vector<1x128xf32>
    %15 = vector.broadcast %14 : vector<1x128xf32> to vector<512x128xf32>
    %16 = arith.addf %13, %15 : vector<512x128xf32>
    %c0_13 = arith.constant 0 : index
    %c0_14 = arith.constant 0 : index
    %17 = vector.load %arg7[%c0_13, %c0_14] : memref<512x128xf32, #tpu.memory_space<vmem>>, vector<512x128xf32>
    tpu.vector_store %arg7[%c0_13, %c0_14], %16 {strides = array<i32>} : memref<512x128xf32, #tpu.memory_space<vmem>>, vector<512x128xf32>,
    return
  }
  func.func @transform_0(%arg0: i32) -> (i32, i32) {
    %c0_i32 = arith.constant 0 : i32
    %c0_i32_0 = arith.constant 0 : i32
    return %arg0, %c0_i32 : i32, i32
  }
  func.func @transform_1(%arg0: i32) -> (i32, i32) {
    %c0_i32 = arith.constant 0 : i32
    %c0_i32_0 = arith.constant 0 : i32
    %c0_i32_1 = arith.constant 0 : i32
    return %c0_i32, %c0_i32_0 : i32, i32
  }
  func.func @transform_2(%arg0: i32) -> (i32, i32) {
    %c0_i32 = arith.constant 0 : i32
    %c0_i32_0 = arith.constant 0 : i32
    %c0_i32_1 = arith.constant 0 : i32
    return %c0_i32, %c0_i32_0 : i32, i32
  }
  func.func @transform_3(%arg0: i32) -> (i32, i32) {
    %c0_i32 = arith.constant 0 : i32
    %c0_i32_0 = arith.constant 0 : i32
    %c0_i32_1 = arith.constant 0 : i32
    return %c0_i32, %c0_i32_0 : i32, i32
  }
  func.func @transform_4(%arg0: i32) -> (i32, i32) {
    %c0_i32 = arith.constant 0 : i32
    %c0_i32_0 = arith.constant 0 : i32
    %c0_i32_1 = arith.constant 0 : i32
    return %c0_i32, %c0_i32_0 : i32, i32
  }
  func.func @transform_5(%arg0: i32) -> (i32, i32) {
    %c0_i32 = arith.constant 0 : i32
    %c0_i32_0 = arith.constant 0 : i32
    %c0_i32_1 = arith.constant 0 : i32
    return %c0_i32, %c0_i32_0 : i32, i32
  }
  func.func @transform_6(%arg0: i32) -> (i32, i32) {
    %c0_i32 = arith.constant 0 : i32
    %c0_i32_0 = arith.constant 0 : i32
    return %arg0, %c0_i32 : i32, i32
  }
}

</mosaic_0001>

<llo_original>
// kernel: _lambda_.16
$region0: #{_lambda_.16}
  #allocation0 [shape = 'u32[]', space=smem, size = 0x4, offset = 0x4, fixed_abs, tag = 'smem constant byte address 0x4 - core index']
  #allocation1 [shape = 'u32[144,128]{1,0:T(1,128)}', space=vmem, size = 0x12000, scoped, tag = 'internal scratch']
  %s0 = inlined_call_operand.vmem [shape: bf16[1024,16], index: 0, kind: input, shape index: {}]
  %s1 = inlined_call_operand.vmem [shape: bf16[16,32], index: 1, kind: input, shape index: {}]
  %s2 = inlined_call_operand.vmem [shape: f32[1,32], index: 2, kind: input, shape index: {}]
  %s3 = inlined_call_operand.vmem [shape: f32[1,32], index: 3, kind: input, shape index: {}]
  %s4 = inlined_call_operand.vmem [shape: bf16[1024,32], index: 4, kind: output, shape index: {}]
  %s5 = sld [smem:[#allocation0]]
  $region26: #{_lambda_.16} parent=0
    _
  %s7 = ssub.s32 1, %s5
  %s8 = scalar_select 0, %s7, %s5
  // Predicated region
  $region2: #{_lambda_.16} parent=0 // pred_check
    _
  $region3: #{_lambda_.16} parent=0 // pred_check_branch
    %10 = sbr.rel (0) target = $region5
  $region4: #{_lambda_.16} parent=0 // pred_region
    _
  $region5: #{_lambda_.16} parent=0 // pred_fallthru
    _
  // Predicated region
  $region6: #{_lambda_.16} parent=0 // pred_check
    _
  $region7: #{_lambda_.16} parent=0 // pred_check_branch
    %12 = sbr.rel (0) target = $region9
  $region8: #{_lambda_.16} parent=0 // pred_region
    _
  $region9: #{_lambda_.16} parent=0 // pred_fallthru
    _
  // Predicated region
  $region10: #{_lambda_.16} parent=0 // pred_check
    _
  $region11: #{_lambda_.16} parent=0 // pred_check_branch
    %14 = sbr.rel (0) target = $region13
  $region12: #{_lambda_.16} parent=0 // pred_region
    _
  $region13: #{_lambda_.16} parent=0 // pred_fallthru
    _
  // Predicated region
  $region14: #{_lambda_.16} parent=0 // pred_check
    _
  $region15: #{_lambda_.16} parent=0 // pred_check_branch
    %16 = sbr.rel (0) target = $region17
  $region16: #{_lambda_.16} parent=0 // pred_region
    _
  $region17: #{_lambda_.16} parent=0 // pred_fallthru
    _
  %v18 = vld [vmem:[%s0] sm:$0xf]
  %v19 = vld [vmem:[%s0 + $0x4] sm:$0xf]
  %v20 = vld [vmem:[%s0 + $0x8] sm:$0xf]
  %v21 = vld [vmem:[%s0 + $0xc] sm:$0xf]
  %v22 = vld [vmem:[%s0 + $0x10] sm:$0xf]
  %v23 = vld [vmem:[%s0 + $0x14] sm:$0xf]
  %v24 = vld [vmem:[%s0 + $0x18] sm:$0xf]
  %v25 = vld [vmem:[%s0 + $0x1c] sm:$0xf]
  %v26 = vld [vmem:[%s0 + $0x20] sm:$0xf]
  %v27 = vld [vmem:[%s0 + $0x24] sm:$0xf]
  %v28 = vld [vmem:[%s0 + $0x28] sm:$0xf]
  %v29 = vld [vmem:[%s0 + $0x2c] sm:$0xf]
  %v30 = vld [vmem:[%s0 + $0x30] sm:$0xf]
  %v31 = vld [vmem:[%s0 + $0x34] sm:$0xf]
  %v32 = vld [vmem:[%s0 + $0x38] sm:$0xf]
  %v33 = vld [vmem:[%s0 + $0x3c] sm:$0xf]
  %v34 = vld [vmem:[%s0 + $0x40] sm:$0xf]
  %v35 = vld [vmem:[%s0 + $0x44] sm:$0xf]
  %v36 = vld [vmem:[%s0 + $0x48] sm:$0xf]
  %v37 = vld [vmem:[%s0 + $0x4c] sm:$0xf]
  %v38 = vld [vmem:[%s0 + $0x50] sm:$0xf]
  %v39 = vld [vmem:[%s0 + $0x54] sm:$0xf]
  %v40 = vld [vmem:[%s0 + $0x58] sm:$0xf]
  %v41 = vld [vmem:[%s0 + $0x5c] sm:$0xf]
  %v42 = vld [vmem:[%s0 + $0x60] sm:$0xf]
  %v43 = vld [vmem:[%s0 + $0x64] sm:$0xf]
  %v44 = vld [vmem:[%s0 + $0x68] sm:$0xf]
  %v45 = vld [vmem:[%s0 + $0x6c] sm:$0xf]
  %v46 = vld [vmem:[%s0 + $0x70] sm:$0xf]
  %v47 = vld [vmem:[%s0 + $0x74] sm:$0xf]
  %v48 = vld [vmem:[%s0 + $0x78] sm:$0xf]
  %v49 = vld [vmem:[%s0 + $0x7c] sm:$0xf]
  %v50 = vld [vmem:[%s0 + $0x80] sm:$0xf]
  %v51 = vld [vmem:[%s0 + $0x84] sm:$0xf]
  %v52 = vld [vmem:[%s0 + $0x88] sm:$0xf]
  %v53 = vld [vmem:[%s0 + $0x8c] sm:$0xf]
  %v54 = vld [vmem:[%s0 + $0x90] sm:$0xf]
  %v55 = vld [vmem:[%s0 + $0x94] sm:$0xf]
  %v56 = vld [vmem:[%s0 + $0x98] sm:$0xf]
  %v57 = vld [vmem:[%s0 + $0x9c] sm:$0xf]
  %v58 = vld [vmem:[%s0 + $0xa0] sm:$0xf]
  %v59 = vld [vmem:[%s0 + $0xa4] sm:$0xf]
  %v60 = vld [vmem:[%s0 + $0xa8] sm:$0xf]
  %v61 = vld [vmem:[%s0 + $0xac] sm:$0xf]
  %v62 = vld [vmem:[%s0 + $0xb0] sm:$0xf]
  %v63 = vld [vmem:[%s0 + $0xb4] sm:$0xf]
  %v64 = vld [vmem:[%s0 + $0xb8] sm:$0xf]
  %v65 = vld [vmem:[%s0 + $0xbc] sm:$0xf]
  %v66 = vld [vmem:[%s0 + $0xc0] sm:$0xf]
  %v67 = vld [vmem:[%s0 + $0xc4] sm:$0xf]
  %v68 = vld [vmem:[%s0 + $0xc8] sm:$0xf]
  %v69 = vld [vmem:[%s0 + $0xcc] sm:$0xf]
  %v70 = vld [vmem:[%s0 + $0xd0] sm:$0xf]
  %v71 = vld [vmem:[%s0 + $0xd4] sm:$0xf]
  %v72 = vld [vmem:[%s0 + $0xd8] sm:$0xf]
  %v73 = vld [vmem:[%s0 + $0xdc] sm:$0xf]
  %v74 = vld [vmem:[%s0 + $0xe0] sm:$0xf]
  %v75 = vld [vmem:[%s0 + $0xe4] sm:$0xf]
  %v76 = vld [vmem:[%s0 + $0xe8] sm:$0xf]
  %v77 = vld [vmem:[%s0 + $0xec] sm:$0xf]
  %v78 = vld [vmem:[%s0 + $0xf0] sm:$0xf]
  %v79 = vld [vmem:[%s0 + $0xf4] sm:$0xf]
  %v80 = vld [vmem:[%s0 + $0xf8] sm:$0xf]
  %v81 = vld [vmem:[%s0 + $0xfc] sm:$0xf]
  %v82 = vld [vmem:[%s0 + $0x100] sm:$0xf]
  %v83 = vld [vmem:[%s0 + $0x104] sm:$0xf]
  %v84 = vld [vmem:[%s0 + $0x108] sm:$0xf]
  %v85 = vld [vmem:[%s0 + $0x10c] sm:$0xf]
  %v86 = vld [vmem:[%s0 + $0x110] sm:$0xf]
  %v87 = vld [vmem:[%s0 + $0x114] sm:$0xf]
  %v88 = vld [vmem:[%s0 + $0x118] sm:$0xf]
  %v89 = vld [vmem:[%s0 + $0x11c] sm:$0xf]
  %v90 = vld [vmem:[%s0 + $0x120] sm:$0xf]
  %v91 = vld [vmem:[%s0 + $0x124] sm:$0xf]
  %v92 = vld [vmem:[%s0 + $0x128] sm:$0xf]
  %v93 = vld [vmem:[%s0 + $0x12c] sm:$0xf]
  %v94 = vld [vmem:[%s0 + $0x130] sm:$0xf]
  %v95 = vld [vmem:[%s0 + $0x134] sm:$0xf]
  %v96 = vld [vmem:[%s0 + $0x138] sm:$0xf]
  %v97 = vld [vmem:[%s0 + $0x13c] sm:$0xf]
  %v98 = vld [vmem:[%s0 + $0x140] sm:$0xf]
  %v99 = vld [vmem:[%s0 + $0x144] sm:$0xf]
  %v100 = vld [vmem:[%s0 + $0x148] sm:$0xf]
  %v101 = vld [vmem:[%s0 + $0x14c] sm:$0xf]
  %v102 = vld [vmem:[%s0 + $0x150] sm:$0xf]
  %v103 = vld [vmem:[%s0 + $0x154] sm:$0xf]
  %v104 = vld [vmem:[%s0 + $0x158] sm:$0xf]
  %v105 = vld [vmem:[%s0 + $0x15c] sm:$0xf]
  %v106 = vld [vmem:[%s0 + $0x160] sm:$0xf]
  %v107 = vld [vmem:[%s0 + $0x164] sm:$0xf]
  %v108 = vld [vmem:[%s0 + $0x168] sm:$0xf]
  %v109 = vld [vmem:[%s0 + $0x16c] sm:$0xf]
  %v110 = vld [vmem:[%s0 + $0x170] sm:$0xf]
  %v111 = vld [vmem:[%s0 + $0x174] sm:$0xf]
  %v112 = vld [vmem:[%s0 + $0x178] sm:$0xf]
  %v113 = vld [vmem:[%s0 + $0x17c] sm:$0xf]
  %v114 = vld [vmem:[%s0 + $0x180] sm:$0xf]
  %v115 = vld [vmem:[%s0 + $0x184] sm:$0xf]
  %v116 = vld [vmem:[%s0 + $0x188] sm:$0xf]
  %v117 = vld [vmem:[%s0 + $0x18c] sm:$0xf]
  %v118 = vld [vmem:[%s0 + $0x190] sm:$0xf]
  %v119 = vld [vmem:[%s0 + $0x194] sm:$0xf]
  %v120 = vld [vmem:[%s0 + $0x198] sm:$0xf]
  %v121 = vld [vmem:[%s0 + $0x19c] sm:$0xf]
  %v122 = vld [vmem:[%s0 + $0x1a0] sm:$0xf]
  %v123 = vld [vmem:[%s0 + $0x1a4] sm:$0xf]
  %v124 = vld [vmem:[%s0 + $0x1a8] sm:$0xf]
  %v125 = vld [vmem:[%s0 + $0x1ac] sm:$0xf]
  %v126 = vld [vmem:[%s0 + $0x1b0] sm:$0xf]
  %v127 = vld [vmem:[%s0 + $0x1b4] sm:$0xf]
  %v128 = vld [vmem:[%s0 + $0x1b8] sm:$0xf]
  %v129 = vld [vmem:[%s0 + $0x1bc] sm:$0xf]
  %v130 = vld [vmem:[%s0 + $0x1c0] sm:$0xf]
  %v131 = vld [vmem:[%s0 + $0x1c4] sm:$0xf]
  %v132 = vld [vmem:[%s0 + $0x1c8] sm:$0xf]
  %v133 = vld [vmem:[%s0 + $0x1cc] sm:$0xf]
  %v134 = vld [vmem:[%s0 + $0x1d0] sm:$0xf]
  %v135 = vld [vmem:[%s0 + $0x1d4] sm:$0xf]
  %v136 = vld [vmem:[%s0 + $0x1d8] sm:$0xf]
  %v137 = vld [vmem:[%s0 + $0x1dc] sm:$0xf]
  %v138 = vld [vmem:[%s0 + $0x1e0] sm:$0xf]
  %v139 = vld [vmem:[%s0 + $0x1e4] sm:$0xf]
  %v140 = vld [vmem:[%s0 + $0x1e8] sm:$0xf]
  %v141 = vld [vmem:[%s0 + $0x1ec] sm:$0xf]
  %v142 = vld [vmem:[%s0 + $0x1f0] sm:$0xf]
  %v143 = vld [vmem:[%s0 + $0x1f4] sm:$0xf]
  %v144 = vld [vmem:[%s0 + $0x1f8] sm:$0xf]
  %v145 = vld [vmem:[%s0 + $0x1fc] sm:$0xf]
  %v146 = vld [vmem:[%s1] sm:$0xf]
  %v147 = vld [vmem:[%s1 + $0x4] sm:$0xf]
  %v276 = vunpack.c.l.b16 %v18
  %v277 = vunpack.c.l.b16 %v19
  %v278 = vunpack.c.l.b16 %v20
  %v279 = vunpack.c.l.b16 %v21
  %v280 = vunpack.c.l.b16 %v22
  %v281 = vunpack.c.l.b16 %v23
  %v282 = vunpack.c.l.b16 %v24
  %v283 = vunpack.c.l.b16 %v25
  %v284 = vunpack.c.l.b16 %v26
  %v285 = vunpack.c.l.b16 %v27
  %v286 = vunpack.c.l.b16 %v28
  %v287 = vunpack.c.l.b16 %v29
  %v288 = vunpack.c.l.b16 %v30
  %v289 = vunpack.c.l.b16 %v31
  %v290 = vunpack.c.l.b16 %v32
  %v291 = vunpack.c.l.b16 %v33
  %v292 = vunpack.c.l.b16 %v34
  %v293 = vunpack.c.l.b16 %v35
  %v294 = vunpack.c.l.b16 %v36
  %v295 = vunpack.c.l.b16 %v37
  %v296 = vunpack.c.l.b16 %v38
  %v297 = vunpack.c.l.b16 %v39
  %v298 = vunpack.c.l.b16 %v40
  %v299 = vunpack.c.l.b16 %v41
  %v300 = vunpack.c.l.b16 %v42
  %v301 = vunpack.c.l.b16 %v43
  %v302 = vunpack.c.l.b16 %v44
  %v303 = vunpack.c.l.b16 %v45
  %v304 = vunpack.c.l.b16 %v46
  %v305 = vunpack.c.l.b16 %v47
  %v306 = vunpack.c.l.b16 %v48
  %v307 = vunpack.c.l.b16 %v49
  %v308 = vunpack.c.l.b16 %v50
  %v309 = vunpack.c.l.b16 %v51
  %v310 = vunpack.c.l.b16 %v52
  %v311 = vunpack.c.l.b16 %v53
  %v312 = vunpack.c.l.b16 %v54
  %v313 = vunpack.c.l.b16 %v55
  %v314 = vunpack.c.l.b16 %v56
  %v315 = vunpack.c.l.b16 %v57
  %v316 = vunpack.c.l.b16 %v58
  %v317 = vunpack.c.l.b16 %v59
  %v318 = vunpack.c.l.b16 %v60
  %v319 = vunpack.c.l.b16 %v61
  %v320 = vunpack.c.l.b16 %v62
  %v321 = vunpack.c.l.b16 %v63
  %v322 = vunpack.c.l.b16 %v64
  %v323 = vunpack.c.l.b16 %v65
  %v324 = vunpack.c.l.b16 %v66
  %v325 = vunpack.c.l.b16 %v67
  %v326 = vunpack.c.l.b16 %v68
  %v327 = vunpack.c.l.b16 %v69
  %v328 = vunpack.c.l.b16 %v70
  %v329 = vunpack.c.l.b16 %v71
  %v330 = vunpack.c.l.b16 %v72
  %v331 = vunpack.c.l.b16 %v73
  %v332 = vunpack.c.l.b16 %v74
  %v333 = vunpack.c.l.b16 %v75
  %v334 = vunpack.c.l.b16 %v76
  %v335 = vunpack.c.l.b16 %v77
  %v336 = vunpack.c.l.b16 %v78
  %v337 = vunpack.c.l.b16 %v79
  %v338 = vunpack.c.l.b16 %v80
  %v339 = vunpack.c.l.b16 %v81
  %v340 = vunpack.c.l.b16 %v82
  %v341 = vunpack.c.l.b16 %v83
  %v342 = vunpack.c.l.b16 %v84
  %v343 = vunpack.c.l.b16 %v85
  %v344 = vunpack.c.l.b16 %v86
  %v345 = vunpack.c.l.b16 %v87
  %v346 = vunpack.c.l.b16 %v88
  %v347 = vunpack.c.l.b16 %v89
  %v348 = vunpack.c.l.b16 %v90
  %v349 = vunpack.c.l.b16 %v91
  %v350 = vunpack.c.l.b16 %v92
  %v351 = vunpack.c.l.b16 %v93
  %v352 = vunpack.c.l.b16 %v94
  %v353 = vunpack.c.l.b16 %v95
  %v354 = vunpack.c.l.b16 %v96
  %v355 = vunpack.c.l.b16 %v97
  %v356 = vunpack.c.l.b16 %v98
  %v357 = vunpack.c.l.b16 %v99
  %v358 = vunpack.c.l.b16 %v100
  %v359 = vunpack.c.l.b16 %v101
  %v360 = vunpack.c.l.b16 %v102
  %v361 = vunpack.c.l.b16 %v103
  %v362 = vunpack.c.l.b16 %v104
  %v363 = vunpack.c.l.b16 %v105
  %v364 = vunpack.c.l.b16 %v106
  %v365 = vunpack.c.l.b16 %v107
  %v366 = vunpack.c.l.b16 %v108
  %v367 = vunpack.c.l.b16 %v109
  %v368 = vunpack.c.l.b16 %v110
  %v369 = vunpack.c.l.b16 %v111
  %v370 = vunpack.c.l.b16 %v112
  %v371 = vunpack.c.l.b16 %v113
  %v372 = vunpack.c.l.b16 %v114
  %v373 = vunpack.c.l.b16 %v115
  %v374 = vunpack.c.l.b16 %v116
  %v375 = vunpack.c.l.b16 %v117
  %v376 = vunpack.c.l.b16 %v118
  %v377 = vunpack.c.l.b16 %v119
  %v378 = vunpack.c.l.b16 %v120
  %v379 = vunpack.c.l.b16 %v121
  %v380 = vunpack.c.l.b16 %v122
  %v381 = vunpack.c.l.b16 %v123
  %v382 = vunpack.c.l.b16 %v124
  %v383 = vunpack.c.l.b16 %v125
  %v384 = vunpack.c.l.b16 %v126
  %v385 = vunpack.c.l.b16 %v127
  %v386 = vunpack.c.l.b16 %v128
  %v387 = vunpack.c.l.b16 %v129
  %v388 = vunpack.c.l.b16 %v130
  %v389 = vunpack.c.l.b16 %v131
  %v390 = vunpack.c.l.b16 %v132
  %v391 = vunpack.c.l.b16 %v133
  %v392 = vunpack.c.l.b16 %v134
  %v393 = vunpack.c.l.b16 %v135
  %v394 = vunpack.c.l.b16 %v136
  %v395 = vunpack.c.l.b16 %v137
  %v396 = vunpack.c.l.b16 %v138
  %v397 = vunpack.c.l.b16 %v139
  %v398 = vunpack.c.l.b16 %v140
  %v399 = vunpack.c.l.b16 %v141
  %v400 = vunpack.c.l.b16 %v142
  %v401 = vunpack.c.l.b16 %v143
  %v402 = vunpack.c.l.b16 %v144
  %v403 = vunpack.c.l.b16 %v145
  %v404 = vpack.c.b16 %v277, %v276
  %v405 = vpack.c.b16 %v279, %v278
  %v406 = vpack.c.b16 %v281, %v280
  %v407 = vpack.c.b16 %v283, %v282
  %v408 = vpack.c.b16 %v285, %v284
  %v409 = vpack.c.b16 %v287, %v286
  %v410 = vpack.c.b16 %v289, %v288
  %v411 = vpack.c.b16 %v291, %v290
  %v412 = vpack.c.b16 %v293, %v292
  %v413 = vpack.c.b16 %v295, %v294
  %v414 = vpack.c.b16 %v297, %v296
  %v415 = vpack.c.b16 %v299, %v298
  %v416 = vpack.c.b16 %v301, %v300
  %v417 = vpack.c.b16 %v303, %v302
  %v418 = vpack.c.b16 %v305, %v304
  %v419 = vpack.c.b16 %v307, %v306
  %v420 = vpack.c.b16 %v309, %v308
  %v421 = vpack.c.b16 %v311, %v310
  %v422 = vpack.c.b16 %v313, %v312
  %v423 = vpack.c.b16 %v315, %v314
  %v424 = vpack.c.b16 %v317, %v316
  %v425 = vpack.c.b16 %v319, %v318
  %v426 = vpack.c.b16 %v321, %v320
  %v427 = vpack.c.b16 %v323, %v322
  %v428 = vpack.c.b16 %v325, %v324
  %v429 = vpack.c.b16 %v327, %v326
  %v430 = vpack.c.b16 %v329, %v328
  %v431 = vpack.c.b16 %v331, %v330
  %v432 = vpack.c.b16 %v333, %v332
  %v433 = vpack.c.b16 %v335, %v334
  %v434 = vpack.c.b16 %v337, %v336
  %v435 = vpack.c.b16 %v339, %v338
  %v436 = vpack.c.b16 %v341, %v340
  %v437 = vpack.c.b16 %v343, %v342
  %v438 = vpack.c.b16 %v345, %v344
  %v439 = vpack.c.b16 %v347, %v346
  %v440 = vpack.c.b16 %v349, %v348
  %v441 = vpack.c.b16 %v351, %v350
  %v442 = vpack.c.b16 %v353, %v352
  %v443 = vpack.c.b16 %v355, %v354
  %v444 = vpack.c.b16 %v357, %v356
  %v445 = vpack.c.b16 %v359, %v358
  %v446 = vpack.c.b16 %v361, %v360
  %v447 = vpack.c.b16 %v363, %v362
  %v448 = vpack.c.b16 %v365, %v364
  %v449 = vpack.c.b16 %v367, %v366
  %v450 = vpack.c.b16 %v369, %v368
  %v451 = vpack.c.b16 %v371, %v370
  %v452 = vpack.c.b16 %v373, %v372
  %v453 = vpack.c.b16 %v375, %v374
  %v454 = vpack.c.b16 %v377, %v376
  %v455 = vpack.c.b16 %v379, %v378
  %v456 = vpack.c.b16 %v381, %v380
  %v457 = vpack.c.b16 %v383, %v382
  %v458 = vpack.c.b16 %v385, %v384
  %v459 = vpack.c.b16 %v387, %v386
  %v460 = vpack.c.b16 %v389, %v388
  %v461 = vpack.c.b16 %v391, %v390
  %v462 = vpack.c.b16 %v393, %v392
  %v463 = vpack.c.b16 %v395, %v394
  %v464 = vpack.c.b16 %v397, %v396
  %v465 = vpack.c.b16 %v399, %v398
  %v466 = vpack.c.b16 %v401, %v400
  %v467 = vpack.c.b16 %v403, %v402
  %v470 = vunpack.c.l.b16 %v146
  %v471 = vunpack.c.l.b16 %v147
  %v472 = vpack.c.b16 %v471, %v470
  %vm474 = vcmask 130048
  %v476 = vsel %vm474, %v404, 0
  %v479 = vsel %vm474, %v405, 0
  %v482 = vsel %vm474, %v406, 0
  %v485 = vsel %vm474, %v407, 0
  %v488 = vsel %vm474, %v408, 0
  %v491 = vsel %vm474, %v409, 0
  %v494 = vsel %vm474, %v410, 0
  %v497 = vsel %vm474, %v411, 0
  %v500 = vsel %vm474, %v412, 0
  %v503 = vsel %vm474, %v413, 0
  %v506 = vsel %vm474, %v414, 0
  %v509 = vsel %vm474, %v415, 0
  %v512 = vsel %vm474, %v416, 0
  %v515 = vsel %vm474, %v417, 0
  %v518 = vsel %vm474, %v418, 0
  %v521 = vsel %vm474, %v419, 0
  %v524 = vsel %vm474, %v420, 0
  %v527 = vsel %vm474, %v421, 0
  %v530 = vsel %vm474, %v422, 0
  %v533 = vsel %vm474, %v423, 0
  %v536 = vsel %vm474, %v424, 0
  %v539 = vsel %vm474, %v425, 0
  %v542 = vsel %vm474, %v426, 0
  %v545 = vsel %vm474, %v427, 0
  %v548 = vsel %vm474, %v428, 0
  %v551 = vsel %vm474, %v429, 0
  %v554 = vsel %vm474, %v430, 0
  %v557 = vsel %vm474, %v431, 0
  %v560 = vsel %vm474, %v432, 0
  %v563 = vsel %vm474, %v433, 0
  %v566 = vsel %vm474, %v434, 0
  %v569 = vsel %vm474, %v435, 0
  %v572 = vsel %vm474, %v436, 0
  %v575 = vsel %vm474, %v437, 0
  %v578 = vsel %vm474, %v438, 0
  %v581 = vsel %vm474, %v439, 0
  %v584 = vsel %vm474, %v440, 0
  %v587 = vsel %vm474, %v441, 0
  %v590 = vsel %vm474, %v442, 0
  %v593 = vsel %vm474, %v443, 0
  %v596 = vsel %vm474, %v444, 0
  %v599 = vsel %vm474, %v445, 0
  %v602 = vsel %vm474, %v446, 0
  %v605 = vsel %vm474, %v447, 0
  %v608 = vsel %vm474, %v448, 0
  %v611 = vsel %vm474, %v449, 0
  %v614 = vsel %vm474, %v450, 0
  %v617 = vsel %vm474, %v451, 0
  %v620 = vsel %vm474, %v452, 0
  %v623 = vsel %vm474, %v453, 0
  %v626 = vsel %vm474, %v454, 0
  %v629 = vsel %vm474, %v455, 0
  %v632 = vsel %vm474, %v456, 0
  %v635 = vsel %vm474, %v457, 0
  %v638 = vsel %vm474, %v458, 0
  %v641 = vsel %vm474, %v459, 0
  %v644 = vsel %vm474, %v460, 0
  %v647 = vsel %vm474, %v461, 0
  %v650 = vsel %vm474, %v462, 0
  %v653 = vsel %vm474, %v463, 0
  %v656 = vsel %vm474, %v464, 0
  %v659 = vsel %vm474, %v465, 0
  %v662 = vsel %vm474, %v466, 0
  %v665 = vsel %vm474, %v467, 0
  %667 = vmatprep.subr.bf16.mxu0 0
  %668 = vmatpush1.bf16.msra.mxu0 0
  %669 = vmatprep.subr.bf16.mxu0 0
  %670 = vmatpush1.bf16.msra.mxu0 0
  %671 = vmatprep.subr.bf16.mxu0 0
  %672 = vmatpush1.bf16.msra.mxu0 0
  %673 = vmatprep.subr.bf16.mxu0 0
  %674 = vmatpush1.bf16.msra.mxu0 0
  %675 = vmatprep.subr.bf16.mxu0 0
  %676 = vmatpush1.bf16.msra.mxu0 0
  %677 = vmatprep.subr.bf16.mxu0 0
  %678 = vmatpush1.bf16.msra.mxu0 0
  %679 = vmatprep.subr.bf16.mxu0 0
  %680 = vmatpush1.bf16.msra.mxu0 0
  %681 = vmatprep.subr.bf16.mxu0 0
  %682 = vmatpush1.bf16.msra.mxu0 %v472
  %683 = vmatprep.subr.bf16.mxu0 0
  %684 = vmatpush2.bf16.msra.mxu0 0
  %685 = vmatprep.subr.bf16.mxu0 0
  %686 = vmatpush2.bf16.msra.mxu0 0
  %687 = vmatprep.subr.bf16.mxu0 0
  %688 = vmatpush2.bf16.msra.mxu0 0
  %689 = vmatprep.subr.bf16.mxu0 0
  %690 = vmatpush2.bf16.msra.mxu0 0
  %691 = vmatprep.subr.bf16.mxu0 0
  %692 = vmatpush2.bf16.msra.mxu0 0
  %693 = vmatprep.subr.bf16.mxu0 0
  %694 = vmatpush2.bf16.msra.mxu0 0
  %695 = vmatprep.subr.bf16.mxu0 0
  %696 = vmatpush2.bf16.msra.mxu0 0
  %697 = vmatprep.subr.bf16.mxu0 0
  %698 = vmatpush2.bf16.msra.mxu0 0
  %699 = vmatprep.mubr.bf16.mxu0 0
  %700 = vmatmul.mubr.bf16.gmra.mxu0 %v476
  %v701 = vpop.f32.mrf.mxu0
  %v702 = vadd.f32 0.0, %v701
  %v703 = vpop.f32.mrf.mxu0
  %v704 = vpop.f32.mrf.mxu0
  %v705 = vadd.f32 0.0, %v704
  %v706 = vpop.f32.mrf.mxu0
  %707 = vmatprep.mubr.bf16.mxu0 0
  %708 = vmatmul.mubr.bf16.gmra.mxu0 %v479
  %v709 = vpop.f32.mrf.mxu0
  %v710 = vadd.f32 0.0, %v709
  %v711 = vpop.f32.mrf.mxu0
  %v712 = vpop.f32.mrf.mxu0
  %v713 = vadd.f32 0.0, %v712
  %v714 = vpop.f32.mrf.mxu0
  %715 = vmatprep.mubr.bf16.mxu0 0
  %716 = vmatmul.mubr.bf16.gmra.mxu0 %v482
  %v717 = vpop.f32.mrf.mxu0
  %v718 = vadd.f32 0.0, %v717
  %v719 = vpop.f32.mrf.mxu0
  %v720 = vpop.f32.mrf.mxu0
  %v721 = vadd.f32 0.0, %v720
  %v722 = vpop.f32.mrf.mxu0
  %723 = vmatprep.mubr.bf16.mxu0 0
  %724 = vmatmul.mubr.bf16.gmra.mxu0 %v485
  %v725 = vpop.f32.mrf.mxu0
  %v726 = vadd.f32 0.0, %v725
  %v727 = vpop.f32.mrf.mxu0
  %v728 = vpop.f32.mrf.mxu0
  %v729 = vadd.f32 0.0, %v728
  %v730 = vpop.f32.mrf.mxu0
  %731 = vmatprep.mubr.bf16.mxu0 0
  %732 = vmatmul.mubr.bf16.gmra.mxu0 %v488
  %v733 = vpop.f32.mrf.mxu0
  %v734 = vadd.f32 0.0, %v733
  %v735 = vpop.f32.mrf.mxu0
  %v736 = vpop.f32.mrf.mxu0
  %v737 = vadd.f32 0.0, %v736
  %v738 = vpop.f32.mrf.mxu0
  %739 = vmatprep.mubr.bf16.mxu0 0
  %740 = vmatmul.mubr.bf16.gmra.mxu0 %v491
  %v741 = vpop.f32.mrf.mxu0
  %v742 = vadd.f32 0.0, %v741
  %v743 = vpop.f32.mrf.mxu0
  %v744 = vpop.f32.mrf.mxu0
  %v745 = vadd.f32 0.0, %v744
  %v746 = vpop.f32.mrf.mxu0
  %747 = vmatprep.mubr.bf16.mxu0 0
  %748 = vmatmul.mubr.bf16.gmra.mxu0 %v494
  %v749 = vpop.f32.mrf.mxu0
  %v750 = vadd.f32 0.0, %v749
  %v751 = vpop.f32.mrf.mxu0
  %v752 = vpop.f32.mrf.mxu0
  %v753 = vadd.f32 0.0, %v752
  %v754 = vpop.f32.mrf.mxu0
  %755 = vmatprep.mubr.bf16.mxu0 0
  %756 = vmatmul.mubr.bf16.gmra.mxu0 %v497
  %v757 = vpop.f32.mrf.mxu0
  %v758 = vadd.f32 0.0, %v757
  %v759 = vpop.f32.mrf.mxu0
  %v760 = vpop.f32.mrf.mxu0
  %v761 = vadd.f32 0.0, %v760
  %v762 = vpop.f32.mrf.mxu0
  %763 = vmatprep.mubr.bf16.mxu0 0
  %764 = vmatmul.mubr.bf16.gmra.mxu0 %v500
  %v765 = vpop.f32.mrf.mxu0
  %v766 = vadd.f32 0.0, %v765
  %v767 = vpop.f32.mrf.mxu0
  %v768 = vpop.f32.mrf.mxu0
  %v769 = vadd.f32 0.0, %v768
  %v770 = vpop.f32.mrf.mxu0
  %771 = vmatprep.mubr.bf16.mxu0 0
  %772 = vmatmul.mubr.bf16.gmra.mxu0 %v503
  %v773 = vpop.f32.mrf.mxu0
  %v774 = vadd.f32 0.0, %v773
  %v775 = vpop.f32.mrf.mxu0
  %v776 = vpop.f32.mrf.mxu0
  %v777 = vadd.f32 0.0, %v776
  %v778 = vpop.f32.mrf.mxu0
  %779 = vmatprep.mubr.bf16.mxu0 0
  %780 = vmatmul.mubr.bf16.gmra.mxu0 %v506
  %v781 = vpop.f32.mrf.mxu0
  %v782 = vadd.f32 0.0, %v781
  %v783 = vpop.f32.mrf.mxu0
  %v784 = vpop.f32.mrf.mxu0
  %v785 = vadd.f32 0.0, %v784
  %v786 = vpop.f32.mrf.mxu0
  %787 = vmatprep.mubr.bf16.mxu0 0
  %788 = vmatmul.mubr.bf16.gmra.mxu0 %v509
  %v789 = vpop.f32.mrf.mxu0
  %v790 = vadd.f32 0.0, %v789
  %v791 = vpop.f32.mrf.mxu0
  %v792 = vpop.f32.mrf.mxu0
  %v793 = vadd.f32 0.0, %v792
  %v794 = vpop.f32.mrf.mxu0
  %795 = vmatprep.mubr.bf16.mxu0 0
  %796 = vmatmul.mubr.bf16.gmra.mxu0 %v512
  %v797 = vpop.f32.mrf.mxu0
  %v798 = vadd.f32 0.0, %v797
  %v799 = vpop.f32.mrf.mxu0
  %v800 = vpop.f32.mrf.mxu0
  %v801 = vadd.f32 0.0, %v800
  %v802 = vpop.f32.mrf.mxu0
  %803 = vmatprep.mubr.bf16.mxu0 0
  %804 = vmatmul.mubr.bf16.gmra.mxu0 %v515
  %v805 = vpop.f32.mrf.mxu0
  %v806 = vadd.f32 0.0, %v805
  %v807 = vpop.f32.mrf.mxu0
  %v808 = vpop.f32.mrf.mxu0
  %v809 = vadd.f32 0.0, %v808
  %v810 = vpop.f32.mrf.mxu0
  %811 = vmatprep.mubr.bf16.mxu0 0
  %812 = vmatmul.mubr.bf16.gmra.mxu0 %v518
  %v813 = vpop.f32.mrf.mxu0
  %v814 = vadd.f32 0.0, %v813
  %v815 = vpop.f32.mrf.mxu0
  %v816 = vpop.f32.mrf.mxu0
  %v817 = vadd.f32 0.0, %v816
  %v818 = vpop.f32.mrf.mxu0
  %819 = vmatprep.mubr.bf16.mxu0 0
  %820 = vmatmul.mubr.bf16.gmra.mxu0 %v521
  %v821 = vpop.f32.mrf.mxu0
  %v822 = vadd.f32 0.0, %v821
  %v823 = vpop.f32.mrf.mxu0
  %v824 = vpop.f32.mrf.mxu0
  %v825 = vadd.f32 0.0, %v824
  %v826 = vpop.f32.mrf.mxu0
  %827 = vmatprep.mubr.bf16.mxu0 0
  %828 = vmatmul.mubr.bf16.gmra.mxu0 %v524
  %v829 = vpop.f32.mrf.mxu0
  %v830 = vadd.f32 0.0, %v829
  %v831 = vpop.f32.mrf.mxu0
  %v832 = vpop.f32.mrf.mxu0
  %v833 = vadd.f32 0.0, %v832
  %v834 = vpop.f32.mrf.mxu0
  %835 = vmatprep.mubr.bf16.mxu0 0
  %836 = vmatmul.mubr.bf16.gmra.mxu0 %v527
  %v837 = vpop.f32.mrf.mxu0
  %v838 = vadd.f32 0.0, %v837
  %v839 = vpop.f32.mrf.mxu0
  %v840 = vpop.f32.mrf.mxu0
  %v841 = vadd.f32 0.0, %v840
  %v842 = vpop.f32.mrf.mxu0
  %843 = vmatprep.mubr.bf16.mxu0 0
  %844 = vmatmul.mubr.bf16.gmra.mxu0 %v530
  %v845 = vpop.f32.mrf.mxu0
  %v846 = vadd.f32 0.0, %v845
  %v847 = vpop.f32.mrf.mxu0
  %v848 = vpop.f32.mrf.mxu0
  %v849 = vadd.f32 0.0, %v848
  %v850 = vpop.f32.mrf.mxu0
  %851 = vmatprep.mubr.bf16.mxu0 0
  %852 = vmatmul.mubr.bf16.gmra.mxu0 %v533
  %v853 = vpop.f32.mrf.mxu0
  %v854 = vadd.f32 0.0, %v853
  %v855 = vpop.f32.mrf.mxu0
  %v856 = vpop.f32.mrf.mxu0
  %v857 = vadd.f32 0.0, %v856
  %v858 = vpop.f32.mrf.mxu0
  %859 = vmatprep.mubr.bf16.mxu0 0
  %860 = vmatmul.mubr.bf16.gmra.mxu0 %v536
  %v861 = vpop.f32.mrf.mxu0
  %v862 = vadd.f32 0.0, %v861
  %v863 = vpop.f32.mrf.mxu0
  %v864 = vpop.f32.mrf.mxu0
  %v865 = vadd.f32 0.0, %v864
  %v866 = vpop.f32.mrf.mxu0
  %867 = vmatprep.mubr.bf16.mxu0 0
  %868 = vmatmul.mubr.bf16.gmra.mxu0 %v539
  %v869 = vpop.f32.mrf.mxu0
  %v870 = vadd.f32 0.0, %v869
  %v871 = vpop.f32.mrf.mxu0
  %v872 = vpop.f32.mrf.mxu0
  %v873 = vadd.f32 0.0, %v872
  %v874 = vpop.f32.mrf.mxu0
  %875 = vmatprep.mubr.bf16.mxu0 0
  %876 = vmatmul.mubr.bf16.gmra.mxu0 %v542
  %v877 = vpop.f32.mrf.mxu0
  %v878 = vadd.f32 0.0, %v877
  %v879 = vpop.f32.mrf.mxu0
  %v880 = vpop.f32.mrf.mxu0
  %v881 = vadd.f32 0.0, %v880
  %v882 = vpop.f32.mrf.mxu0
  %883 = vmatprep.mubr.bf16.mxu0 0
  %884 = vmatmul.mubr.bf16.gmra.mxu0 %v545
  %v885 = vpop.f32.mrf.mxu0
  %v886 = vadd.f32 0.0, %v885
  %v887 = vpop.f32.mrf.mxu0
  %v888 = vpop.f32.mrf.mxu0
  %v889 = vadd.f32 0.0, %v888
  %v890 = vpop.f32.mrf.mxu0
  %891 = vmatprep.mubr.bf16.mxu0 0
  %892 = vmatmul.mubr.bf16.gmra.mxu0 %v548
  %v893 = vpop.f32.mrf.mxu0
  %v894 = vadd.f32 0.0, %v893
  %v895 = vpop.f32.mrf.mxu0
  %v896 = vpop.f32.mrf.mxu0
  %v897 = vadd.f32 0.0, %v896
  %v898 = vpop.f32.mrf.mxu0
  %899 = vmatprep.mubr.bf16.mxu0 0
  %900 = vmatmul.mubr.bf16.gmra.mxu0 %v551
  %v901 = vpop.f32.mrf.mxu0
  %v902 = vadd.f32 0.0, %v901
  %v903 = vpop.f32.mrf.mxu0
  %v904 = vpop.f32.mrf.mxu0
  %v905 = vadd.f32 0.0, %v904
  %v906 = vpop.f32.mrf.mxu0
  %907 = vmatprep.mubr.bf16.mxu0 0
  %908 = vmatmul.mubr.bf16.gmra.mxu0 %v554
  %v909 = vpop.f32.mrf.mxu0
  %v910 = vadd.f32 0.0, %v909
  %v911 = vpop.f32.mrf.mxu0
  %v912 = vpop.f32.mrf.mxu0
  %v913 = vadd.f32 0.0, %v912
  %v914 = vpop.f32.mrf.mxu0
  %915 = vmatprep.mubr.bf16.mxu0 0
  %916 = vmatmul.mubr.bf16.gmra.mxu0 %v557
  %v917 = vpop.f32.mrf.mxu0
  %v918 = vadd.f32 0.0, %v917
  %v919 = vpop.f32.mrf.mxu0
  %v920 = vpop.f32.mrf.mxu0
  %v921 = vadd.f32 0.0, %v920
  %v922 = vpop.f32.mrf.mxu0
  %923 = vmatprep.mubr.bf16.mxu0 0
  %924 = vmatmul.mubr.bf16.gmra.mxu0 %v560
  %v925 = vpop.f32.mrf.mxu0
  %v926 = vadd.f32 0.0, %v925
  %v927 = vpop.f32.mrf.mxu0
  %v928 = vpop.f32.mrf.mxu0
  %v929 = vadd.f32 0.0, %v928
  %v930 = vpop.f32.mrf.mxu0
  %931 = vmatprep.mubr.bf16.mxu0 0
  %932 = vmatmul.mubr.bf16.gmra.mxu0 %v563
  %v933 = vpop.f32.mrf.mxu0
  %v934 = vadd.f32 0.0, %v933
  %v935 = vpop.f32.mrf.mxu0
  %v936 = vpop.f32.mrf.mxu0
  %v937 = vadd.f32 0.0, %v936
  %v938 = vpop.f32.mrf.mxu0
  %939 = vmatprep.mubr.bf16.mxu0 0
  %940 = vmatmul.mubr.bf16.gmra.mxu0 %v566
  %v941 = vpop.f32.mrf.mxu0
  %v942 = vadd.f32 0.0, %v941
  %v943 = vpop.f32.mrf.mxu0
  %v944 = vpop.f32.mrf.mxu0
  %v945 = vadd.f32 0.0, %v944
  %v946 = vpop.f32.mrf.mxu0
  %947 = vmatprep.mubr.bf16.mxu0 0
  %948 = vmatmul.mubr.bf16.gmra.mxu0 %v569
  %v949 = vpop.f32.mrf.mxu0
  %v950 = vadd.f32 0.0, %v949
  %v951 = vpop.f32.mrf.mxu0
  %v952 = vpop.f32.mrf.mxu0
  %v953 = vadd.f32 0.0, %v952
  %v954 = vpop.f32.mrf.mxu0
  %955 = vmatprep.mubr.bf16.mxu0 0
  %956 = vmatmul.mubr.bf16.gmra.mxu0 %v572
  %v957 = vpop.f32.mrf.mxu0
  %v958 = vadd.f32 0.0, %v957
  %v959 = vpop.f32.mrf.mxu0
  %v960 = vpop.f32.mrf.mxu0
  %v961 = vadd.f32 0.0, %v960
  %v962 = vpop.f32.mrf.mxu0
  %963 = vmatprep.mubr.bf16.mxu0 0
  %964 = vmatmul.mubr.bf16.gmra.mxu0 %v575
  %v965 = vpop.f32.mrf.mxu0
  %v966 = vadd.f32 0.0, %v965
  %v967 = vpop.f32.mrf.mxu0
  %v968 = vpop.f32.mrf.mxu0
  %v969 = vadd.f32 0.0, %v968
  %v970 = vpop.f32.mrf.mxu0
  %971 = vmatprep.mubr.bf16.mxu0 0
  %972 = vmatmul.mubr.bf16.gmra.mxu0 %v578
  %v973 = vpop.f32.mrf.mxu0
  %v974 = vadd.f32 0.0, %v973
  %v975 = vpop.f32.mrf.mxu0
  %v976 = vpop.f32.mrf.mxu0
  %v977 = vadd.f32 0.0, %v976
  %v978 = vpop.f32.mrf.mxu0
  %979 = vmatprep.mubr.bf16.mxu0 0
  %980 = vmatmul.mubr.bf16.gmra.mxu0 %v581
  %v981 = vpop.f32.mrf.mxu0
  %v982 = vadd.f32 0.0, %v981
  %v983 = vpop.f32.mrf.mxu0
  %v984 = vpop.f32.mrf.mxu0
  %v985 = vadd.f32 0.0, %v984
  %v986 = vpop.f32.mrf.mxu0
  %987 = vmatprep.mubr.bf16.mxu0 0
  %988 = vmatmul.mubr.bf16.gmra.mxu0 %v584
  %v989 = vpop.f32.mrf.mxu0
  %v990 = vadd.f32 0.0, %v989
  %v991 = vpop.f32.mrf.mxu0
  %v992 = vpop.f32.mrf.mxu0
  %v993 = vadd.f32 0.0, %v992
  %v994 = vpop.f32.mrf.mxu0
  %995 = vmatprep.mubr.bf16.mxu0 0
  %996 = vmatmul.mubr.bf16.gmra.mxu0 %v587
  %v997 = vpop.f32.mrf.mxu0
  %v998 = vadd.f32 0.0, %v997
  %v999 = vpop.f32.mrf.mxu0
  %v1000 = vpop.f32.mrf.mxu0
  %v1001 = vadd.f32 0.0, %v1000
  %v1002 = vpop.f32.mrf.mxu0
  %1003 = vmatprep.mubr.bf16.mxu0 0
  %1004 = vmatmul.mubr.bf16.gmra.mxu0 %v590
  %v1005 = vpop.f32.mrf.mxu0
  %v1006 = vadd.f32 0.0, %v1005
  %v1007 = vpop.f32.mrf.mxu0
  %v1008 = vpop.f32.mrf.mxu0
  %v1009 = vadd.f32 0.0, %v1008
  %v1010 = vpop.f32.mrf.mxu0
  %1011 = vmatprep.mubr.bf16.mxu0 0
  %1012 = vmatmul.mubr.bf16.gmra.mxu0 %v593
  %v1013 = vpop.f32.mrf.mxu0
  %v1014 = vadd.f32 0.0, %v1013
  %v1015 = vpop.f32.mrf.mxu0
  %v1016 = vpop.f32.mrf.mxu0
  %v1017 = vadd.f32 0.0, %v1016
  %v1018 = vpop.f32.mrf.mxu0
  %1019 = vmatprep.mubr.bf16.mxu0 0
  %1020 = vmatmul.mubr.bf16.gmra.mxu0 %v596
  %v1021 = vpop.f32.mrf.mxu0
  %v1022 = vadd.f32 0.0, %v1021
  %v1023 = vpop.f32.mrf.mxu0
  %v1024 = vpop.f32.mrf.mxu0
  %v1025 = vadd.f32 0.0, %v1024
  %v1026 = vpop.f32.mrf.mxu0
  %1027 = vmatprep.mubr.bf16.mxu0 0
  %1028 = vmatmul.mubr.bf16.gmra.mxu0 %v599
  %v1029 = vpop.f32.mrf.mxu0
  %v1030 = vadd.f32 0.0, %v1029
  %v1031 = vpop.f32.mrf.mxu0
  %v1032 = vpop.f32.mrf.mxu0
  %v1033 = vadd.f32 0.0, %v1032
  %v1034 = vpop.f32.mrf.mxu0
  %1035 = vmatprep.mubr.bf16.mxu0 0
  %1036 = vmatmul.mubr.bf16.gmra.mxu0 %v602
  %v1037 = vpop.f32.mrf.mxu0
  %v1038 = vadd.f32 0.0, %v1037
  %v1039 = vpop.f32.mrf.mxu0
  %v1040 = vpop.f32.mrf.mxu0
  %v1041 = vadd.f32 0.0, %v1040
  %v1042 = vpop.f32.mrf.mxu0
  %1043 = vmatprep.mubr.bf16.mxu0 0
  %1044 = vmatmul.mubr.bf16.gmra.mxu0 %v605
  %v1045 = vpop.f32.mrf.mxu0
  %v1046 = vadd.f32 0.0, %v1045
  %v1047 = vpop.f32.mrf.mxu0
  %v1048 = vpop.f32.mrf.mxu0
  %v1049 = vadd.f32 0.0, %v1048
  %v1050 = vpop.f32.mrf.mxu0
  %1051 = vmatprep.mubr.bf16.mxu0 0
  %1052 = vmatmul.mubr.bf16.gmra.mxu0 %v608
  %v1053 = vpop.f32.mrf.mxu0
  %v1054 = vadd.f32 0.0, %v1053
  %v1055 = vpop.f32.mrf.mxu0
  %v1056 = vpop.f32.mrf.mxu0
  %v1057 = vadd.f32 0.0, %v1056
  %v1058 = vpop.f32.mrf.mxu0
  %1059 = vmatprep.mubr.bf16.mxu0 0
  %1060 = vmatmul.mubr.bf16.gmra.mxu0 %v611
  %v1061 = vpop.f32.mrf.mxu0
  %v1062 = vadd.f32 0.0, %v1061
  %v1063 = vpop.f32.mrf.mxu0
  %v1064 = vpop.f32.mrf.mxu0
  %v1065 = vadd.f32 0.0, %v1064
  %v1066 = vpop.f32.mrf.mxu0
  %1067 = vmatprep.mubr.bf16.mxu0 0
  %1068 = vmatmul.mubr.bf16.gmra.mxu0 %v614
  %v1069 = vpop.f32.mrf.mxu0
  %v1070 = vadd.f32 0.0, %v1069
  %v1071 = vpop.f32.mrf.mxu0
  %v1072 = vpop.f32.mrf.mxu0
  %v1073 = vadd.f32 0.0, %v1072
  %v1074 = vpop.f32.mrf.mxu0
  %1075 = vmatprep.mubr.bf16.mxu0 0
  %1076 = vmatmul.mubr.bf16.gmra.mxu0 %v617
  %v1077 = vpop.f32.mrf.mxu0
  %v1078 = vadd.f32 0.0, %v1077
  %v1079 = vpop.f32.mrf.mxu0
  %v1080 = vpop.f32.mrf.mxu0
  %v1081 = vadd.f32 0.0, %v1080
  %v1082 = vpop.f32.mrf.mxu0
  %1083 = vmatprep.mubr.bf16.mxu0 0
  %1084 = vmatmul.mubr.bf16.gmra.mxu0 %v620
  %v1085 = vpop.f32.mrf.mxu0
  %v1086 = vadd.f32 0.0, %v1085
  %v1087 = vpop.f32.mrf.mxu0
  %v1088 = vpop.f32.mrf.mxu0
  %v1089 = vadd.f32 0.0, %v1088
  %v1090 = vpop.f32.mrf.mxu0
  %1091 = vmatprep.mubr.bf16.mxu0 0
  %1092 = vmatmul.mubr.bf16.gmra.mxu0 %v623
  %v1093 = vpop.f32.mrf.mxu0
  %v1094 = vadd.f32 0.0, %v1093
  %v1095 = vpop.f32.mrf.mxu0
  %v1096 = vpop.f32.mrf.mxu0
  %v1097 = vadd.f32 0.0, %v1096
  %v1098 = vpop.f32.mrf.mxu0
  %1099 = vmatprep.mubr.bf16.mxu0 0
  %1100 = vmatmul.mubr.bf16.gmra.mxu0 %v626
  %v1101 = vpop.f32.mrf.mxu0
  %v1102 = vadd.f32 0.0, %v1101
  %v1103 = vpop.f32.mrf.mxu0
  %v1104 = vpop.f32.mrf.mxu0
  %v1105 = vadd.f32 0.0, %v1104
  %v1106 = vpop.f32.mrf.mxu0
  %1107 = vmatprep.mubr.bf16.mxu0 0
  %1108 = vmatmul.mubr.bf16.gmra.mxu0 %v629
  %v1109 = vpop.f32.mrf.mxu0
  %v1110 = vadd.f32 0.0, %v1109
  %v1111 = vpop.f32.mrf.mxu0
  %v1112 = vpop.f32.mrf.mxu0
  %v1113 = vadd.f32 0.0, %v1112
  %v1114 = vpop.f32.mrf.mxu0
  %1115 = vmatprep.mubr.bf16.mxu0 0
  %1116 = vmatmul.mubr.bf16.gmra.mxu0 %v632
  %v1117 = vpop.f32.mrf.mxu0
  %v1118 = vadd.f32 0.0, %v1117
  %v1119 = vpop.f32.mrf.mxu0
  %v1120 = vpop.f32.mrf.mxu0
  %v1121 = vadd.f32 0.0, %v1120
  %v1122 = vpop.f32.mrf.mxu0
  %1123 = vmatprep.mubr.bf16.mxu0 0
  %1124 = vmatmul.mubr.bf16.gmra.mxu0 %v635
  %v1125 = vpop.f32.mrf.mxu0
  %v1126 = vadd.f32 0.0, %v1125
  %v1127 = vpop.f32.mrf.mxu0
  %v1128 = vpop.f32.mrf.mxu0
  %v1129 = vadd.f32 0.0, %v1128
  %v1130 = vpop.f32.mrf.mxu0
  %1131 = vmatprep.mubr.bf16.mxu0 0
  %1132 = vmatmul.mubr.bf16.gmra.mxu0 %v638
  %v1133 = vpop.f32.mrf.mxu0
  %v1134 = vadd.f32 0.0, %v1133
  %v1135 = vpop.f32.mrf.mxu0
  %v1136 = vpop.f32.mrf.mxu0
  %v1137 = vadd.f32 0.0, %v1136
  %v1138 = vpop.f32.mrf.mxu0
  %1139 = vmatprep.mubr.bf16.mxu0 0
  %1140 = vmatmul.mubr.bf16.gmra.mxu0 %v641
  %v1141 = vpop.f32.mrf.mxu0
  %v1142 = vadd.f32 0.0, %v1141
  %v1143 = vpop.f32.mrf.mxu0
  %v1144 = vpop.f32.mrf.mxu0
  %v1145 = vadd.f32 0.0, %v1144
  %v1146 = vpop.f32.mrf.mxu0
  %1147 = vmatprep.mubr.bf16.mxu0 0
  %1148 = vmatmul.mubr.bf16.gmra.mxu0 %v644
  %v1149 = vpop.f32.mrf.mxu0
  %v1150 = vadd.f32 0.0, %v1149
  %v1151 = vpop.f32.mrf.mxu0
  %v1152 = vpop.f32.mrf.mxu0
  %v1153 = vadd.f32 0.0, %v1152
  %v1154 = vpop.f32.mrf.mxu0
  %1155 = vmatprep.mubr.bf16.mxu0 0
  %1156 = vmatmul.mubr.bf16.gmra.mxu0 %v647
  %v1157 = vpop.f32.mrf.mxu0
  %v1158 = vadd.f32 0.0, %v1157
  %v1159 = vpop.f32.mrf.mxu0
  %v1160 = vpop.f32.mrf.mxu0
  %v1161 = vadd.f32 0.0, %v1160
  %v1162 = vpop.f32.mrf.mxu0
  %1163 = vmatprep.mubr.bf16.mxu0 0
  %1164 = vmatmul.mubr.bf16.gmra.mxu0 %v650
  %v1165 = vpop.f32.mrf.mxu0
  %v1166 = vadd.f32 0.0, %v1165
  %v1167 = vpop.f32.mrf.mxu0
  %v1168 = vpop.f32.mrf.mxu0
  %v1169 = vadd.f32 0.0, %v1168
  %v1170 = vpop.f32.mrf.mxu0
  %1171 = vmatprep.mubr.bf16.mxu0 0
  %1172 = vmatmul.mubr.bf16.gmra.mxu0 %v653
  %v1173 = vpop.f32.mrf.mxu0
  %v1174 = vadd.f32 0.0, %v1173
  %v1175 = vpop.f32.mrf.mxu0
  %v1176 = vpop.f32.mrf.mxu0
  %v1177 = vadd.f32 0.0, %v1176
  %v1178 = vpop.f32.mrf.mxu0
  %1179 = vmatprep.mubr.bf16.mxu0 0
  %1180 = vmatmul.mubr.bf16.gmra.mxu0 %v656
  %v1181 = vpop.f32.mrf.mxu0
  %v1182 = vadd.f32 0.0, %v1181
  %v1183 = vpop.f32.mrf.mxu0
  %v1184 = vpop.f32.mrf.mxu0
  %v1185 = vadd.f32 0.0, %v1184
  %v1186 = vpop.f32.mrf.mxu0
  %1187 = vmatprep.mubr.bf16.mxu0 0
  %1188 = vmatmul.mubr.bf16.gmra.mxu0 %v659
  %v1189 = vpop.f32.mrf.mxu0
  %v1190 = vadd.f32 0.0, %v1189
  %v1191 = vpop.f32.mrf.mxu0
  %v1192 = vpop.f32.mrf.mxu0
  %v1193 = vadd.f32 0.0, %v1192
  %v1194 = vpop.f32.mrf.mxu0
  %1195 = vmatprep.mubr.bf16.mxu0 0
  %1196 = vmatmul.mubr.bf16.gmra.mxu0 %v662
  %v1197 = vpop.f32.mrf.mxu0
  %v1198 = vadd.f32 0.0, %v1197
  %v1199 = vpop.f32.mrf.mxu0
  %v1200 = vpop.f32.mrf.mxu0
  %v1201 = vadd.f32 0.0, %v1200
  %v1202 = vpop.f32.mrf.mxu0
  %1203 = vmatprep.mubr.bf16.mxu0 0
  %1204 = vmatmul.mubr.bf16.gmra.mxu0 %v665
  %v1205 = vpop.f32.mrf.mxu0
  %v1206 = vadd.f32 0.0, %v1205
  %v1207 = vpop.f32.mrf.mxu0
  %v1208 = vpop.f32.mrf.mxu0
  %v1209 = vadd.f32 0.0, %v1208
  %v1210 = vpop.f32.mrf.mxu0
  %1211 = vdwg.mxu0
  %v1212 = vld [vmem:[%s2] sm:$0x1]
  %v1214 = vlaneseq
  %v1215 = vshrl.u32 %v1214, 7
  %v1216 = vsub.s32 0, %v1215
  %v1217 = vrot.slane %v1212, %v1216
  %v1219 = vmul.f32 %v702, %v1217
  %v1220 = vmul.f32 %v705, %v1217
  %v1221 = vmul.f32 %v710, %v1217
  %v1222 = vmul.f32 %v713, %v1217
  %v1223 = vmul.f32 %v718, %v1217
  %v1224 = vmul.f32 %v721, %v1217
  %v1225 = vmul.f32 %v726, %v1217
  %v1226 = vmul.f32 %v729, %v1217
  %v1227 = vmul.f32 %v734, %v1217
  %v1228 = vmul.f32 %v737, %v1217
  %v1229 = vmul.f32 %v742, %v1217
  %v1230 = vmul.f32 %v745, %v1217
  %v1231 = vmul.f32 %v750, %v1217
  %v1232 = vmul.f32 %v753, %v1217
  %v1233 = vmul.f32 %v758, %v1217
  %v1234 = vmul.f32 %v761, %v1217
  %v1235 = vmul.f32 %v766, %v1217
  %v1236 = vmul.f32 %v769, %v1217
  %v1237 = vmul.f32 %v774, %v1217
  %v1238 = vmul.f32 %v777, %v1217
  %v1239 = vmul.f32 %v782, %v1217
  %v1240 = vmul.f32 %v785, %v1217
  %v1241 = vmul.f32 %v790, %v1217
  %v1242 = vmul.f32 %v793, %v1217
  %v1243 = vmul.f32 %v798, %v1217
  %v1244 = vmul.f32 %v801, %v1217
  %v1245 = vmul.f32 %v806, %v1217
  %v1246 = vmul.f32 %v809, %v1217
  %v1247 = vmul.f32 %v814, %v1217
  %v1248 = vmul.f32 %v817, %v1217
  %v1249 = vmul.f32 %v822, %v1217
  %v1250 = vmul.f32 %v825, %v1217
  %v1251 = vmul.f32 %v830, %v1217
  %v1252 = vmul.f32 %v833, %v1217
  %v1253 = vmul.f32 %v838, %v1217
  %v1254 = vmul.f32 %v841, %v1217
  %v1255 = vmul.f32 %v846, %v1217
  %v1256 = vmul.f32 %v849, %v1217
  %v1257 = vmul.f32 %v854, %v1217
  %v1258 = vmul.f32 %v857, %v1217
  %v1259 = vmul.f32 %v862, %v1217
  %v1260 = vmul.f32 %v865, %v1217
  %v1261 = vmul.f32 %v870, %v1217
  %v1262 = vmul.f32 %v873, %v1217
  %v1263 = vmul.f32 %v878, %v1217
  %v1264 = vmul.f32 %v881, %v1217
  %v1265 = vmul.f32 %v886, %v1217
  %v1266 = vmul.f32 %v889, %v1217
  %v1267 = vmul.f32 %v894, %v1217
  %v1268 = vmul.f32 %v897, %v1217
  %v1269 = vmul.f32 %v902, %v1217
  %v1270 = vmul.f32 %v905, %v1217
  %v1271 = vmul.f32 %v910, %v1217
  %v1272 = vmul.f32 %v913, %v1217
  %v1273 = vmul.f32 %v918, %v1217
  %v1274 = vmul.f32 %v921, %v1217
  %v1275 = vmul.f32 %v926, %v1217
  %v1276 = vmul.f32 %v929, %v1217
  %v1277 = vmul.f32 %v934, %v1217
  %v1278 = vmul.f32 %v937, %v1217
  %v1279 = vmul.f32 %v942, %v1217
  %v1280 = vmul.f32 %v945, %v1217
  %v1281 = vmul.f32 %v950, %v1217
  %v1282 = vmul.f32 %v953, %v1217
  %v1283 = vmul.f32 %v958, %v1217
  %v1284 = vmul.f32 %v961, %v1217
  %v1285 = vmul.f32 %v966, %v1217
  %v1286 = vmul.f32 %v969, %v1217
  %v1287 = vmul.f32 %v974, %v1217
  %v1288 = vmul.f32 %v977, %v1217
  %v1289 = vmul.f32 %v982, %v1217
  %v1290 = vmul.f32 %v985, %v1217
  %v1291 = vmul.f32 %v990, %v1217
  %v1292 = vmul.f32 %v993, %v1217
  %v1293 = vmul.f32 %v998, %v1217
  %v1294 = vmul.f32 %v1001, %v1217
  %v1295 = vmul.f32 %v1006, %v1217
  %v1296 = vmul.f32 %v1009, %v1217
  %v1297 = vmul.f32 %v1014, %v1217
  %v1298 = vmul.f32 %v1017, %v1217
  %v1299 = vmul.f32 %v1022, %v1217
  %v1300 = vmul.f32 %v1025, %v1217
  %v1301 = vmul.f32 %v1030, %v1217
  %v1302 = vmul.f32 %v1033, %v1217
  %v1303 = vmul.f32 %v1038, %v1217
  %v1304 = vmul.f32 %v1041, %v1217
  %v1305 = vmul.f32 %v1046, %v1217
  %v1306 = vmul.f32 %v1049, %v1217
  %v1307 = vmul.f32 %v1054, %v1217
  %v1308 = vmul.f32 %v1057, %v1217
  %v1309 = vmul.f32 %v1062, %v1217
  %v1310 = vmul.f32 %v1065, %v1217
  %v1311 = vmul.f32 %v1070, %v1217
  %v1312 = vmul.f32 %v1073, %v1217
  %v1313 = vmul.f32 %v1078, %v1217
  %v1314 = vmul.f32 %v1081, %v1217
  %v1315 = vmul.f32 %v1086, %v1217
  %v1316 = vmul.f32 %v1089, %v1217
  %v1317 = vmul.f32 %v1094, %v1217
  %v1318 = vmul.f32 %v1097, %v1217
  %v1319 = vmul.f32 %v1102, %v1217
  %v1320 = vmul.f32 %v1105, %v1217
  %v1321 = vmul.f32 %v1110, %v1217
  %v1322 = vmul.f32 %v1113, %v1217
  %v1323 = vmul.f32 %v1118, %v1217
  %v1324 = vmul.f32 %v1121, %v1217
  %v1325 = vmul.f32 %v1126, %v1217
  %v1326 = vmul.f32 %v1129, %v1217
  %v1327 = vmul.f32 %v1134, %v1217
  %v1328 = vmul.f32 %v1137, %v1217
  %v1329 = vmul.f32 %v1142, %v1217
  %v1330 = vmul.f32 %v1145, %v1217
  %v1331 = vmul.f32 %v1150, %v1217
  %v1332 = vmul.f32 %v1153, %v1217
  %v1333 = vmul.f32 %v1158, %v1217
  %v1334 = vmul.f32 %v1161, %v1217
  %v1335 = vmul.f32 %v1166, %v1217
  %v1336 = vmul.f32 %v1169, %v1217
  %v1337 = vmul.f32 %v1174, %v1217
  %v1338 = vmul.f32 %v1177, %v1217
  %v1339 = vmul.f32 %v1182, %v1217
  %v1340 = vmul.f32 %v1185, %v1217
  %v1341 = vmul.f32 %v1190, %v1217
  %v1342 = vmul.f32 %v1193, %v1217
  %v1343 = vmul.f32 %v1198, %v1217
  %v1344 = vmul.f32 %v1201, %v1217
  %v1345 = vmul.f32 %v1206, %v1217
  %v1346 = vmul.f32 %v1209, %v1217
  %v1347 = vld [vmem:[%s3] sm:$0x1]
  %v1349 = vlaneseq
  %v1350 = vshrl.u32 %v1349, 7
  %v1351 = vsub.s32 0, %v1350
  %v1352 = vrot.slane %v1347, %v1351
  %v1354 = vadd.f32 %v1219, %v1352
  %v1355 = vadd.f32 %v1220, %v1352
  %v1356 = vadd.f32 %v1221, %v1352
  %v1357 = vadd.f32 %v1222, %v1352
  %v1358 = vadd.f32 %v1223, %v1352
  %v1359 = vadd.f32 %v1224, %v1352
  %v1360 = vadd.f32 %v1225, %v1352
  %v1361 = vadd.f32 %v1226, %v1352
  %v1362 = vadd.f32 %v1227, %v1352
  %v1363 = vadd.f32 %v1228, %v1352
  %v1364 = vadd.f32 %v1229, %v1352
  %v1365 = vadd.f32 %v1230, %v1352
  %v1366 = vadd.f32 %v1231, %v1352
  %v1367 = vadd.f32 %v1232, %v1352
  %v1368 = vadd.f32 %v1233, %v1352
  %v1369 = vadd.f32 %v1234, %v1352
  %v1370 = vadd.f32 %v1235, %v1352
  %v1371 = vadd.f32 %v1236, %v1352
  %v1372 = vadd.f32 %v1237, %v1352
  %v1373 = vadd.f32 %v1238, %v1352
  %v1374 = vadd.f32 %v1239, %v1352
  %v1375 = vadd.f32 %v1240, %v1352
  %v1376 = vadd.f32 %v1241, %v1352
  %v1377 = vadd.f32 %v1242, %v1352
  %v1378 = vadd.f32 %v1243, %v1352
  %v1379 = vadd.f32 %v1244, %v1352
  %v1380 = vadd.f32 %v1245, %v1352
  %v1381 = vadd.f32 %v1246, %v1352
  %v1382 = vadd.f32 %v1247, %v1352
  %v1383 = vadd.f32 %v1248, %v1352
  %v1384 = vadd.f32 %v1249, %v1352
  %v1385 = vadd.f32 %v1250, %v1352
  %v1386 = vadd.f32 %v1251, %v1352
  %v1387 = vadd.f32 %v1252, %v1352
  %v1388 = vadd.f32 %v1253, %v1352
  %v1389 = vadd.f32 %v1254, %v1352
  %v1390 = vadd.f32 %v1255, %v1352
  %v1391 = vadd.f32 %v1256, %v1352
  %v1392 = vadd.f32 %v1257, %v1352
  %v1393 = vadd.f32 %v1258, %v1352
  %v1394 = vadd.f32 %v1259, %v1352
  %v1395 = vadd.f32 %v1260, %v1352
  %v1396 = vadd.f32 %v1261, %v1352
  %v1397 = vadd.f32 %v1262, %v1352
  %v1398 = vadd.f32 %v1263, %v1352
  %v1399 = vadd.f32 %v1264, %v1352
  %v1400 = vadd.f32 %v1265, %v1352
  %v1401 = vadd.f32 %v1266, %v1352
  %v1402 = vadd.f32 %v1267, %v1352
  %v1403 = vadd.f32 %v1268, %v1352
  %v1404 = vadd.f32 %v1269, %v1352
  %v1405 = vadd.f32 %v1270, %v1352
  %v1406 = vadd.f32 %v1271, %v1352
  %v1407 = vadd.f32 %v1272, %v1352
  %v1408 = vadd.f32 %v1273, %v1352
  %v1409 = vadd.f32 %v1274, %v1352
  %v1410 = vadd.f32 %v1275, %v1352
  %v1411 = vadd.f32 %v1276, %v1352
  %v1412 = vadd.f32 %v1277, %v1352
  %v1413 = vadd.f32 %v1278, %v1352
  %v1414 = vadd.f32 %v1279, %v1352
  %v1415 = vadd.f32 %v1280, %v1352
  %v1416 = vadd.f32 %v1281, %v1352
  %v1417 = vadd.f32 %v1282, %v1352
  %v1418 = vadd.f32 %v1283, %v1352
  %v1419 = vadd.f32 %v1284, %v1352
  %v1420 = vadd.f32 %v1285, %v1352
  %v1421 = vadd.f32 %v1286, %v1352
  %v1422 = vadd.f32 %v1287, %v1352
  %v1423 = vadd.f32 %v1288, %v1352
  %v1424 = vadd.f32 %v1289, %v1352
  %v1425 = vadd.f32 %v1290, %v1352
  %v1426 = vadd.f32 %v1291, %v1352
  %v1427 = vadd.f32 %v1292, %v1352
  %v1428 = vadd.f32 %v1293, %v1352
  %v1429 = vadd.f32 %v1294, %v1352
  %v1430 = vadd.f32 %v1295, %v1352
  %v1431 = vadd.f32 %v1296, %v1352
  %v1432 = vadd.f32 %v1297, %v1352
  %v1433 = vadd.f32 %v1298, %v1352
  %v1434 = vadd.f32 %v1299, %v1352
  %v1435 = vadd.f32 %v1300, %v1352
  %v1436 = vadd.f32 %v1301, %v1352
  %v1437 = vadd.f32 %v1302, %v1352
  %v1438 = vadd.f32 %v1303, %v1352
  %v1439 = vadd.f32 %v1304, %v1352
  %v1440 = vadd.f32 %v1305, %v1352
  %v1441 = vadd.f32 %v1306, %v1352
  %v1442 = vadd.f32 %v1307, %v1352
  %v1443 = vadd.f32 %v1308, %v1352
  %v1444 = vadd.f32 %v1309, %v1352
  %v1445 = vadd.f32 %v1310, %v1352
  %v1446 = vadd.f32 %v1311, %v1352
  %v1447 = vadd.f32 %v1312, %v1352
  %v1448 = vadd.f32 %v1313, %v1352
  %v1449 = vadd.f32 %v1314, %v1352
  %v1450 = vadd.f32 %v1315, %v1352
  %v1451 = vadd.f32 %v1316, %v1352
  %v1452 = vadd.f32 %v1317, %v1352
  %v1453 = vadd.f32 %v1318, %v1352
  %v1454 = vadd.f32 %v1319, %v1352
  %v1455 = vadd.f32 %v1320, %v1352
  %v1456 = vadd.f32 %v1321, %v1352
  %v1457 = vadd.f32 %v1322, %v1352
  %v1458 = vadd.f32 %v1323, %v1352
  %v1459 = vadd.f32 %v1324, %v1352
  %v1460 = vadd.f32 %v1325, %v1352
  %v1461 = vadd.f32 %v1326, %v1352
  %v1462 = vadd.f32 %v1327, %v1352
  %v1463 = vadd.f32 %v1328, %v1352
  %v1464 = vadd.f32 %v1329, %v1352
  %v1465 = vadd.f32 %v1330, %v1352
  %v1466 = vadd.f32 %v1331, %v1352
  %v1467 = vadd.f32 %v1332, %v1352
  %v1468 = vadd.f32 %v1333, %v1352
  %v1469 = vadd.f32 %v1334, %v1352
  %v1470 = vadd.f32 %v1335, %v1352
  %v1471 = vadd.f32 %v1336, %v1352
  %v1472 = vadd.f32 %v1337, %v1352
  %v1473 = vadd.f32 %v1338, %v1352
  %v1474 = vadd.f32 %v1339, %v1352
  %v1475 = vadd.f32 %v1340, %v1352
  %v1476 = vadd.f32 %v1341, %v1352
  %v1477 = vadd.f32 %v1342, %v1352
  %v1478 = vadd.f32 %v1343, %v1352
  %v1479 = vadd.f32 %v1344, %v1352
  %v1480 = vadd.f32 %v1345, %v1352
  %v1481 = vadd.f32 %v1346, %v1352
  %v1482 = vpack.c.bf16 %v1355, %v1354
  %v1483 = vpack.c.bf16 %v1357, %v1356
  %v1484 = vpack.c.bf16 %v1359, %v1358
  %v1485 = vpack.c.bf16 %v1361, %v1360
  %v1486 = vpack.c.bf16 %v1363, %v1362
  %v1487 = vpack.c.bf16 %v1365, %v1364
  %v1488 = vpack.c.bf16 %v1367, %v1366
  %v1489 = vpack.c.bf16 %v1369, %v1368
  %v1490 = vpack.c.bf16 %v1371, %v1370
  %v1491 = vpack.c.bf16 %v1373, %v1372
  %v1492 = vpack.c.bf16 %v1375, %v1374
  %v1493 = vpack.c.bf16 %v1377, %v1376
  %v1494 = vpack.c.bf16 %v1379, %v1378
  %v1495 = vpack.c.bf16 %v1381, %v1380
  %v1496 = vpack.c.bf16 %v1383, %v1382
  %v1497 = vpack.c.bf16 %v1385, %v1384
  %v1498 = vpack.c.bf16 %v1387, %v1386
  %v1499 = vpack.c.bf16 %v1389, %v1388
  %v1500 = vpack.c.bf16 %v1391, %v1390
  %v1501 = vpack.c.bf16 %v1393, %v1392
  %v1502 = vpack.c.bf16 %v1395, %v1394
  %v1503 = vpack.c.bf16 %v1397, %v1396
  %v1504 = vpack.c.bf16 %v1399, %v1398
  %v1505 = vpack.c.bf16 %v1401, %v1400
  %v1506 = vpack.c.bf16 %v1403, %v1402
  %v1507 = vpack.c.bf16 %v1405, %v1404
  %v1508 = vpack.c.bf16 %v1407, %v1406
  %v1509 = vpack.c.bf16 %v1409, %v1408
  %v1510 = vpack.c.bf16 %v1411, %v1410
  %v1511 = vpack.c.bf16 %v1413, %v1412
  %v1512 = vpack.c.bf16 %v1415, %v1414
  %v1513 = vpack.c.bf16 %v1417, %v1416
  %v1514 = vpack.c.bf16 %v1419, %v1418
  %v1515 = vpack.c.bf16 %v1421, %v1420
  %v1516 = vpack.c.bf16 %v1423, %v1422
  %v1517 = vpack.c.bf16 %v1425, %v1424
  %v1518 = vpack.c.bf16 %v1427, %v1426
  %v1519 = vpack.c.bf16 %v1429, %v1428
  %v1520 = vpack.c.bf16 %v1431, %v1430
  %v1521 = vpack.c.bf16 %v1433, %v1432
  %v1522 = vpack.c.bf16 %v1435, %v1434
  %v1523 = vpack.c.bf16 %v1437, %v1436
  %v1524 = vpack.c.bf16 %v1439, %v1438
  %v1525 = vpack.c.bf16 %v1441, %v1440
  %v1526 = vpack.c.bf16 %v1443, %v1442
  %v1527 = vpack.c.bf16 %v1445, %v1444
  %v1528 = vpack.c.bf16 %v1447, %v1446
  %v1529 = vpack.c.bf16 %v1449, %v1448
  %v1530 = vpack.c.bf16 %v1451, %v1450
  %v1531 = vpack.c.bf16 %v1453, %v1452
  %v1532 = vpack.c.bf16 %v1455, %v1454
  %v1533 = vpack.c.bf16 %v1457, %v1456
  %v1534 = vpack.c.bf16 %v1459, %v1458
  %v1535 = vpack.c.bf16 %v1461, %v1460
  %v1536 = vpack.c.bf16 %v1463, %v1462
  %v1537 = vpack.c.bf16 %v1465, %v1464
  %v1538 = vpack.c.bf16 %v1467, %v1466
  %v1539 = vpack.c.bf16 %v1469, %v1468
  %v1540 = vpack.c.bf16 %v1471, %v1470
  %v1541 = vpack.c.bf16 %v1473, %v1472
  %v1542 = vpack.c.bf16 %v1475, %v1474
  %v1543 = vpack.c.bf16 %v1477, %v1476
  %v1544 = vpack.c.bf16 %v1479, %v1478
  %v1545 = vpack.c.bf16 %v1481, %v1480
  %v1610 = vunpack.c.l.b16 %v1482
  %v1611 = vunpack.c.h.b16 %v1482
  %v1612 = vunpack.c.l.b16 %v1483
  %v1613 = vunpack.c.h.b16 %v1483
  %v1614 = vunpack.c.l.b16 %v1484
  %v1615 = vunpack.c.h.b16 %v1484
  %v1616 = vunpack.c.l.b16 %v1485
  %v1617 = vunpack.c.h.b16 %v1485
  %v1618 = vunpack.c.l.b16 %v1486
  %v1619 = vunpack.c.h.b16 %v1486
  %v1620 = vunpack.c.l.b16 %v1487
  %v1621 = vunpack.c.h.b16 %v1487
  %v1622 = vunpack.c.l.b16 %v1488
  %v1623 = vunpack.c.h.b16 %v1488
  %v1624 = vunpack.c.l.b16 %v1489
  %v1625 = vunpack.c.h.b16 %v1489
  %v1626 = vunpack.c.l.b16 %v1490
  %v1627 = vunpack.c.h.b16 %v1490
  %v1628 = vunpack.c.l.b16 %v1491
  %v1629 = vunpack.c.h.b16 %v1491
  %v1630 = vunpack.c.l.b16 %v1492
  %v1631 = vunpack.c.h.b16 %v1492
  %v1632 = vunpack.c.l.b16 %v1493
  %v1633 = vunpack.c.h.b16 %v1493
  %v1634 = vunpack.c.l.b16 %v1494
  %v1635 = vunpack.c.h.b16 %v1494
  %v1636 = vunpack.c.l.b16 %v1495
  %v1637 = vunpack.c.h.b16 %v1495
  %v1638 = vunpack.c.l.b16 %v1496
  %v1639 = vunpack.c.h.b16 %v1496
  %v1640 = vunpack.c.l.b16 %v1497
  %v1641 = vunpack.c.h.b16 %v1497
  %v1642 = vunpack.c.l.b16 %v1498
  %v1643 = vunpack.c.h.b16 %v1498
  %v1644 = vunpack.c.l.b16 %v1499
  %v1645 = vunpack.c.h.b16 %v1499
  %v1646 = vunpack.c.l.b16 %v1500
  %v1647 = vunpack.c.h.b16 %v1500
  %v1648 = vunpack.c.l.b16 %v1501
  %v1649 = vunpack.c.h.b16 %v1501
  %v1650 = vunpack.c.l.b16 %v1502
  %v1651 = vunpack.c.h.b16 %v1502
  %v1652 = vunpack.c.l.b16 %v1503
  %v1653 = vunpack.c.h.b16 %v1503
  %v1654 = vunpack.c.l.b16 %v1504
  %v1655 = vunpack.c.h.b16 %v1504
  %v1656 = vunpack.c.l.b16 %v1505
  %v1657 = vunpack.c.h.b16 %v1505
  %v1658 = vunpack.c.l.b16 %v1506
  %v1659 = vunpack.c.h.b16 %v1506
  %v1660 = vunpack.c.l.b16 %v1507
  %v1661 = vunpack.c.h.b16 %v1507
  %v1662 = vunpack.c.l.b16 %v1508
  %v1663 = vunpack.c.h.b16 %v1508
  %v1664 = vunpack.c.l.b16 %v1509
  %v1665 = vunpack.c.h.b16 %v1509
  %v1666 = vunpack.c.l.b16 %v1510
  %v1667 = vunpack.c.h.b16 %v1510
  %v1668 = vunpack.c.l.b16 %v1511
  %v1669 = vunpack.c.h.b16 %v1511
  %v1670 = vunpack.c.l.b16 %v1512
  %v1671 = vunpack.c.h.b16 %v1512
  %v1672 = vunpack.c.l.b16 %v1513
  %v1673 = vunpack.c.h.b16 %v1513
  %v1674 = vunpack.c.l.b16 %v1514
  %v1675 = vunpack.c.h.b16 %v1514
  %v1676 = vunpack.c.l.b16 %v1515
  %v1677 = vunpack.c.h.b16 %v1515
  %v1678 = vunpack.c.l.b16 %v1516
  %v1679 = vunpack.c.h.b16 %v1516
  %v1680 = vunpack.c.l.b16 %v1517
  %v1681 = vunpack.c.h.b16 %v1517
  %v1682 = vunpack.c.l.b16 %v1518
  %v1683 = vunpack.c.h.b16 %v1518
  %v1684 = vunpack.c.l.b16 %v1519
  %v1685 = vunpack.c.h.b16 %v1519
  %v1686 = vunpack.c.l.b16 %v1520
  %v1687 = vunpack.c.h.b16 %v1520
  %v1688 = vunpack.c.l.b16 %v1521
  %v1689 = vunpack.c.h.b16 %v1521
  %v1690 = vunpack.c.l.b16 %v1522
  %v1691 = vunpack.c.h.b16 %v1522
  %v1692 = vunpack.c.l.b16 %v1523
  %v1693 = vunpack.c.h.b16 %v1523
  %v1694 = vunpack.c.l.b16 %v1524
  %v1695 = vunpack.c.h.b16 %v1524
  %v1696 = vunpack.c.l.b16 %v1525
  %v1697 = vunpack.c.h.b16 %v1525
  %v1698 = vunpack.c.l.b16 %v1526
  %v1699 = vunpack.c.h.b16 %v1526
  %v1700 = vunpack.c.l.b16 %v1527
  %v1701 = vunpack.c.h.b16 %v1527
  %v1702 = vunpack.c.l.b16 %v1528
  %v1703 = vunpack.c.h.b16 %v1528
  %v1704 = vunpack.c.l.b16 %v1529
  %v1705 = vunpack.c.h.b16 %v1529
  %v1706 = vunpack.c.l.b16 %v1530
  %v1707 = vunpack.c.h.b16 %v1530
  %v1708 = vunpack.c.l.b16 %v1531
  %v1709 = vunpack.c.h.b16 %v1531
  %v1710 = vunpack.c.l.b16 %v1532
  %v1711 = vunpack.c.h.b16 %v1532
  %v1712 = vunpack.c.l.b16 %v1533
  %v1713 = vunpack.c.h.b16 %v1533
  %v1714 = vunpack.c.l.b16 %v1534
  %v1715 = vunpack.c.h.b16 %v1534
  %v1716 = vunpack.c.l.b16 %v1535
  %v1717 = vunpack.c.h.b16 %v1535
  %v1718 = vunpack.c.l.b16 %v1536
  %v1719 = vunpack.c.h.b16 %v1536
  %v1720 = vunpack.c.l.b16 %v1537
  %v1721 = vunpack.c.h.b16 %v1537
  %v1722 = vunpack.c.l.b16 %v1538
  %v1723 = vunpack.c.h.b16 %v1538
  %v1724 = vunpack.c.l.b16 %v1539
  %v1725 = vunpack.c.h.b16 %v1539
  %v1726 = vunpack.c.l.b16 %v1540
  %v1727 = vunpack.c.h.b16 %v1540
  %v1728 = vunpack.c.l.b16 %v1541
  %v1729 = vunpack.c.h.b16 %v1541
  %v1730 = vunpack.c.l.b16 %v1542
  %v1731 = vunpack.c.h.b16 %v1542
  %v1732 = vunpack.c.l.b16 %v1543
  %v1733 = vunpack.c.h.b16 %v1543
  %v1734 = vunpack.c.l.b16 %v1544
  %v1735 = vunpack.c.h.b16 %v1544
  %v1736 = vunpack.c.l.b16 %v1545
  %v1737 = vunpack.c.h.b16 %v1545
  %v1738 = vpack.c.b16 %v1610, %v1610
  %v1739 = vpack.c.b16 %v1611, %v1611
  %v1740 = vpack.c.b16 %v1612, %v1612
  %v1741 = vpack.c.b16 %v1613, %v1613
  %v1742 = vpack.c.b16 %v1614, %v1614
  %v1743 = vpack.c.b16 %v1615, %v1615
  %v1744 = vpack.c.b16 %v1616, %v1616
  %v1745 = vpack.c.b16 %v1617, %v1617
  %v1746 = vpack.c.b16 %v1618, %v1618
  %v1747 = vpack.c.b16 %v1619, %v1619
  %v1748 = vpack.c.b16 %v1620, %v1620
  %v1749 = vpack.c.b16 %v1621, %v1621
  %v1750 = vpack.c.b16 %v1622, %v1622
  %v1751 = vpack.c.b16 %v1623, %v1623
  %v1752 = vpack.c.b16 %v1624, %v1624
  %v1753 = vpack.c.b16 %v1625, %v1625
  %v1754 = vpack.c.b16 %v1626, %v1626
  %v1755 = vpack.c.b16 %v1627, %v1627
  %v1756 = vpack.c.b16 %v1628, %v1628
  %v1757 = vpack.c.b16 %v1629, %v1629
  %v1758 = vpack.c.b16 %v1630, %v1630
  %v1759 = vpack.c.b16 %v1631, %v1631
  %v1760 = vpack.c.b16 %v1632, %v1632
  %v1761 = vpack.c.b16 %v1633, %v1633
  %v1762 = vpack.c.b16 %v1634, %v1634
  %v1763 = vpack.c.b16 %v1635, %v1635
  %v1764 = vpack.c.b16 %v1636, %v1636
  %v1765 = vpack.c.b16 %v1637, %v1637
  %v1766 = vpack.c.b16 %v1638, %v1638
  %v1767 = vpack.c.b16 %v1639, %v1639
  %v1768 = vpack.c.b16 %v1640, %v1640
  %v1769 = vpack.c.b16 %v1641, %v1641
  %v1770 = vpack.c.b16 %v1642, %v1642
  %v1771 = vpack.c.b16 %v1643, %v1643
  %v1772 = vpack.c.b16 %v1644, %v1644
  %v1773 = vpack.c.b16 %v1645, %v1645
  %v1774 = vpack.c.b16 %v1646, %v1646
  %v1775 = vpack.c.b16 %v1647, %v1647
  %v1776 = vpack.c.b16 %v1648, %v1648
  %v1777 = vpack.c.b16 %v1649, %v1649
  %v1778 = vpack.c.b16 %v1650, %v1650
  %v1779 = vpack.c.b16 %v1651, %v1651
  %v1780 = vpack.c.b16 %v1652, %v1652
  %v1781 = vpack.c.b16 %v1653, %v1653
  %v1782 = vpack.c.b16 %v1654, %v1654
  %v1783 = vpack.c.b16 %v1655, %v1655
  %v1784 = vpack.c.b16 %v1656, %v1656
  %v1785 = vpack.c.b16 %v1657, %v1657
  %v1786 = vpack.c.b16 %v1658, %v1658
  %v1787 = vpack.c.b16 %v1659, %v1659
  %v1788 = vpack.c.b16 %v1660, %v1660
  %v1789 = vpack.c.b16 %v1661, %v1661
  %v1790 = vpack.c.b16 %v1662, %v1662
  %v1791 = vpack.c.b16 %v1663, %v1663
  %v1792 = vpack.c.b16 %v1664, %v1664
  %v1793 = vpack.c.b16 %v1665, %v1665
  %v1794 = vpack.c.b16 %v1666, %v1666
  %v1795 = vpack.c.b16 %v1667, %v1667
  %v1796 = vpack.c.b16 %v1668, %v1668
  %v1797 = vpack.c.b16 %v1669, %v1669
  %v1798 = vpack.c.b16 %v1670, %v1670
  %v1799 = vpack.c.b16 %v1671, %v1671
  %v1800 = vpack.c.b16 %v1672, %v1672
  %v1801 = vpack.c.b16 %v1673, %v1673
  %v1802 = vpack.c.b16 %v1674, %v1674
  %v1803 = vpack.c.b16 %v1675, %v1675
  %v1804 = vpack.c.b16 %v1676, %v1676
  %v1805 = vpack.c.b16 %v1677, %v1677
  %v1806 = vpack.c.b16 %v1678, %v1678
  %v1807 = vpack.c.b16 %v1679, %v1679
  %v1808 = vpack.c.b16 %v1680, %v1680
  %v1809 = vpack.c.b16 %v1681, %v1681
  %v1810 = vpack.c.b16 %v1682, %v1682
  %v1811 = vpack.c.b16 %v1683, %v1683
  %v1812 = vpack.c.b16 %v1684, %v1684
  %v1813 = vpack.c.b16 %v1685, %v1685
  %v1814 = vpack.c.b16 %v1686, %v1686
  %v1815 = vpack.c.b16 %v1687, %v1687
  %v1816 = vpack.c.b16 %v1688, %v1688
  %v1817 = vpack.c.b16 %v1689, %v1689
  %v1818 = vpack.c.b16 %v1690, %v1690
  %v1819 = vpack.c.b16 %v1691, %v1691
  %v1820 = vpack.c.b16 %v1692, %v1692
  %v1821 = vpack.c.b16 %v1693, %v1693
  %v1822 = vpack.c.b16 %v1694, %v1694
  %v1823 = vpack.c.b16 %v1695, %v1695
  %v1824 = vpack.c.b16 %v1696, %v1696
  %v1825 = vpack.c.b16 %v1697, %v1697
  %v1826 = vpack.c.b16 %v1698, %v1698
  %v1827 = vpack.c.b16 %v1699, %v1699
  %v1828 = vpack.c.b16 %v1700, %v1700
  %v1829 = vpack.c.b16 %v1701, %v1701
  %v1830 = vpack.c.b16 %v1702, %v1702
  %v1831 = vpack.c.b16 %v1703, %v1703
  %v1832 = vpack.c.b16 %v1704, %v1704
  %v1833 = vpack.c.b16 %v1705, %v1705
  %v1834 = vpack.c.b16 %v1706, %v1706
  %v1835 = vpack.c.b16 %v1707, %v1707
  %v1836 = vpack.c.b16 %v1708, %v1708
  %v1837 = vpack.c.b16 %v1709, %v1709
  %v1838 = vpack.c.b16 %v1710, %v1710
  %v1839 = vpack.c.b16 %v1711, %v1711
  %v1840 = vpack.c.b16 %v1712, %v1712
  %v1841 = vpack.c.b16 %v1713, %v1713
  %v1842 = vpack.c.b16 %v1714, %v1714
  %v1843 = vpack.c.b16 %v1715, %v1715
  %v1844 = vpack.c.b16 %v1716, %v1716
  %v1845 = vpack.c.b16 %v1717, %v1717
  %v1846 = vpack.c.b16 %v1718, %v1718
  %v1847 = vpack.c.b16 %v1719, %v1719
  %v1848 = vpack.c.b16 %v1720, %v1720
  %v1849 = vpack.c.b16 %v1721, %v1721
  %v1850 = vpack.c.b16 %v1722, %v1722
  %v1851 = vpack.c.b16 %v1723, %v1723
  %v1852 = vpack.c.b16 %v1724, %v1724
  %v1853 = vpack.c.b16 %v1725, %v1725
  %v1854 = vpack.c.b16 %v1726, %v1726
  %v1855 = vpack.c.b16 %v1727, %v1727
  %v1856 = vpack.c.b16 %v1728, %v1728
  %v1857 = vpack.c.b16 %v1729, %v1729
  %v1858 = vpack.c.b16 %v1730, %v1730
  %v1859 = vpack.c.b16 %v1731, %v1731
  %v1860 = vpack.c.b16 %v1732, %v1732
  %v1861 = vpack.c.b16 %v1733, %v1733
  %v1862 = vpack.c.b16 %v1734, %v1734
  %v1863 = vpack.c.b16 %v1735, %v1735
  %v1864 = vpack.c.b16 %v1736, %v1736
  %v1865 = vpack.c.b16 %v1737, %v1737
  %vm1994 = vcmask 257024
  %1995 = vst.msk [vmem:[%s4] sm:$0xf] %vm1994, %v1738
  %1996 = vst.msk [vmem:[%s4 + $0x4] sm:$0xf] %vm1994, %v1739
  %1997 = vst.msk [vmem:[%s4 + $0x8] sm:$0xf] %vm1994, %v1740
  %1998 = vst.msk [vmem:[%s4 + $0xc] sm:$0xf] %vm1994, %v1741
  %1999 = vst.msk [vmem:[%s4 + $0x10] sm:$0xf] %vm1994, %v1742
  %2000 = vst.msk [vmem:[%s4 + $0x14] sm:$0xf] %vm1994, %v1743
  %2001 = vst.msk [vmem:[%s4 + $0x18] sm:$0xf] %vm1994, %v1744
  %2002 = vst.msk [vmem:[%s4 + $0x1c] sm:$0xf] %vm1994, %v1745
  %2003 = vst.msk [vmem:[%s4 + $0x20] sm:$0xf] %vm1994, %v1746
  %2004 = vst.msk [vmem:[%s4 + $0x24] sm:$0xf] %vm1994, %v1747
  %2005 = vst.msk [vmem:[%s4 + $0x28] sm:$0xf] %vm1994, %v1748
  %2006 = vst.msk [vmem:[%s4 + $0x2c] sm:$0xf] %vm1994, %v1749
  %2007 = vst.msk [vmem:[%s4 + $0x30] sm:$0xf] %vm1994, %v1750
  %2008 = vst.msk [vmem:[%s4 + $0x34] sm:$0xf] %vm1994, %v1751
  %2009 = vst.msk [vmem:[%s4 + $0x38] sm:$0xf] %vm1994, %v1752
  %2010 = vst.msk [vmem:[%s4 + $0x3c] sm:$0xf] %vm1994, %v1753
  %2011 = vst.msk [vmem:[%s4 + $0x40] sm:$0xf] %vm1994, %v1754
  %2012 = vst.msk [vmem:[%s4 + $0x44] sm:$0xf] %vm1994, %v1755
  %2013 = vst.msk [vmem:[%s4 + $0x48] sm:$0xf] %vm1994, %v1756
  %2014 = vst.msk [vmem:[%s4 + $0x4c] sm:$0xf] %vm1994, %v1757
  %2015 = vst.msk [vmem:[%s4 + $0x50] sm:$0xf] %vm1994, %v1758
  %2016 = vst.msk [vmem:[%s4 + $0x54] sm:$0xf] %vm1994, %v1759
  %2017 = vst.msk [vmem:[%s4 + $0x58] sm:$0xf] %vm1994, %v1760
  %2018 = vst.msk [vmem:[%s4 + $0x5c] sm:$0xf] %vm1994, %v1761
  %2019 = vst.msk [vmem:[%s4 + $0x60] sm:$0xf] %vm1994, %v1762
  %2020 = vst.msk [vmem:[%s4 + $0x64] sm:$0xf] %vm1994, %v1763
  %2021 = vst.msk [vmem:[%s4 + $0x68] sm:$0xf] %vm1994, %v1764
  %2022 = vst.msk [vmem:[%s4 + $0x6c] sm:$0xf] %vm1994, %v1765
  %2023 = vst.msk [vmem:[%s4 + $0x70] sm:$0xf] %vm1994, %v1766
  %2024 = vst.msk [vmem:[%s4 + $0x74] sm:$0xf] %vm1994, %v1767
  %2025 = vst.msk [vmem:[%s4 + $0x78] sm:$0xf] %vm1994, %v1768
  %2026 = vst.msk [vmem:[%s4 + $0x7c] sm:$0xf] %vm1994, %v1769
  %2027 = vst.msk [vmem:[%s4 + $0x80] sm:$0xf] %vm1994, %v1770
  %2028 = vst.msk [vmem:[%s4 + $0x84] sm:$0xf] %vm1994, %v1771
  %2029 = vst.msk [vmem:[%s4 + $0x88] sm:$0xf] %vm1994, %v1772
  %2030 = vst.msk [vmem:[%s4 + $0x8c] sm:$0xf] %vm1994, %v1773
  %2031 = vst.msk [vmem:[%s4 + $0x90] sm:$0xf] %vm1994, %v1774
  %2032 = vst.msk [vmem:[%s4 + $0x94] sm:$0xf] %vm1994, %v1775
  %2033 = vst.msk [vmem:[%s4 + $0x98] sm:$0xf] %vm1994, %v1776
  %2034 = vst.msk [vmem:[%s4 + $0x9c] sm:$0xf] %vm1994, %v1777
  %2035 = vst.msk [vmem:[%s4 + $0xa0] sm:$0xf] %vm1994, %v1778
  %2036 = vst.msk [vmem:[%s4 + $0xa4] sm:$0xf] %vm1994, %v1779
  %2037 = vst.msk [vmem:[%s4 + $0xa8] sm:$0xf] %vm1994, %v1780
  %2038 = vst.msk [vmem:[%s4 + $0xac] sm:$0xf] %vm1994, %v1781
  %2039 = vst.msk [vmem:[%s4 + $0xb0] sm:$0xf] %vm1994, %v1782
  %2040 = vst.msk [vmem:[%s4 + $0xb4] sm:$0xf] %vm1994, %v1783
  %2041 = vst.msk [vmem:[%s4 + $0xb8] sm:$0xf] %vm1994, %v1784
  %2042 = vst.msk [vmem:[%s4 + $0xbc] sm:$0xf] %vm1994, %v1785
  %2043 = vst.msk [vmem:[%s4 + $0xc0] sm:$0xf] %vm1994, %v1786
  %2044 = vst.msk [vmem:[%s4 + $0xc4] sm:$0xf] %vm1994, %v1787
  %2045 = vst.msk [vmem:[%s4 + $0xc8] sm:$0xf] %vm1994, %v1788
  %2046 = vst.msk [vmem:[%s4 + $0xcc] sm:$0xf] %vm1994, %v1789
  %2047 = vst.msk [vmem:[%s4 + $0xd0] sm:$0xf] %vm1994, %v1790
  %2048 = vst.msk [vmem:[%s4 + $0xd4] sm:$0xf] %vm1994, %v1791
  %2049 = vst.msk [vmem:[%s4 + $0xd8] sm:$0xf] %vm1994, %v1792
  %2050 = vst.msk [vmem:[%s4 + $0xdc] sm:$0xf] %vm1994, %v1793
  %2051 = vst.msk [vmem:[%s4 + $0xe0] sm:$0xf] %vm1994, %v1794
  %2052 = vst.msk [vmem:[%s4 + $0xe4] sm:$0xf] %vm1994, %v1795
  %2053 = vst.msk [vmem:[%s4 + $0xe8] sm:$0xf] %vm1994, %v1796
  %2054 = vst.msk [vmem:[%s4 + $0xec] sm:$0xf] %vm1994, %v1797
  %2055 = vst.msk [vmem:[%s4 + $0xf0] sm:$0xf] %vm1994, %v1798
  %2056 = vst.msk [vmem:[%s4 + $0xf4] sm:$0xf] %vm1994, %v1799
  %2057 = vst.msk [vmem:[%s4 + $0xf8] sm:$0xf] %vm1994, %v1800
  %2058 = vst.msk [vmem:[%s4 + $0xfc] sm:$0xf] %vm1994, %v1801
  %2059 = vst.msk [vmem:[%s4 + $0x100] sm:$0xf] %vm1994, %v1802
  %2060 = vst.msk [vmem:[%s4 + $0x104] sm:$0xf] %vm1994, %v1803
  %2061 = vst.msk [vmem:[%s4 + $0x108] sm:$0xf] %vm1994, %v1804
  %2062 = vst.msk [vmem:[%s4 + $0x10c] sm:$0xf] %vm1994, %v1805
  %2063 = vst.msk [vmem:[%s4 + $0x110] sm:$0xf] %vm1994, %v1806
  %2064 = vst.msk [vmem:[%s4 + $0x114] sm:$0xf] %vm1994, %v1807
  %2065 = vst.msk [vmem:[%s4 + $0x118] sm:$0xf] %vm1994, %v1808
  %2066 = vst.msk [vmem:[%s4 + $0x11c] sm:$0xf] %vm1994, %v1809
  %2067 = vst.msk [vmem:[%s4 + $0x120] sm:$0xf] %vm1994, %v1810
  %2068 = vst.msk [vmem:[%s4 + $0x124] sm:$0xf] %vm1994, %v1811
  %2069 = vst.msk [vmem:[%s4 + $0x128] sm:$0xf] %vm1994, %v1812
  %2070 = vst.msk [vmem:[%s4 + $0x12c] sm:$0xf] %vm1994, %v1813
  %2071 = vst.msk [vmem:[%s4 + $0x130] sm:$0xf] %vm1994, %v1814
  %2072 = vst.msk [vmem:[%s4 + $0x134] sm:$0xf] %vm1994, %v1815
  %2073 = vst.msk [vmem:[%s4 + $0x138] sm:$0xf] %vm1994, %v1816
  %2074 = vst.msk [vmem:[%s4 + $0x13c] sm:$0xf] %vm1994, %v1817
  %2075 = vst.msk [vmem:[%s4 + $0x140] sm:$0xf] %vm1994, %v1818
  %2076 = vst.msk [vmem:[%s4 + $0x144] sm:$0xf] %vm1994, %v1819
  %2077 = vst.msk [vmem:[%s4 + $0x148] sm:$0xf] %vm1994, %v1820
  %2078 = vst.msk [vmem:[%s4 + $0x14c] sm:$0xf] %vm1994, %v1821
  %2079 = vst.msk [vmem:[%s4 + $0x150] sm:$0xf] %vm1994, %v1822
  %2080 = vst.msk [vmem:[%s4 + $0x154] sm:$0xf] %vm1994, %v1823
  %2081 = vst.msk [vmem:[%s4 + $0x158] sm:$0xf] %vm1994, %v1824
  %2082 = vst.msk [vmem:[%s4 + $0x15c] sm:$0xf] %vm1994, %v1825
  %2083 = vst.msk [vmem:[%s4 + $0x160] sm:$0xf] %vm1994, %v1826
  %2084 = vst.msk [vmem:[%s4 + $0x164] sm:$0xf] %vm1994, %v1827
  %2085 = vst.msk [vmem:[%s4 + $0x168] sm:$0xf] %vm1994, %v1828
  %2086 = vst.msk [vmem:[%s4 + $0x16c] sm:$0xf] %vm1994, %v1829
  %2087 = vst.msk [vmem:[%s4 + $0x170] sm:$0xf] %vm1994, %v1830
  %2088 = vst.msk [vmem:[%s4 + $0x174] sm:$0xf] %vm1994, %v1831
  %2089 = vst.msk [vmem:[%s4 + $0x178] sm:$0xf] %vm1994, %v1832
  %2090 = vst.msk [vmem:[%s4 + $0x17c] sm:$0xf] %vm1994, %v1833
  %2091 = vst.msk [vmem:[%s4 + $0x180] sm:$0xf] %vm1994, %v1834
  %2092 = vst.msk [vmem:[%s4 + $0x184] sm:$0xf] %vm1994, %v1835
  %2093 = vst.msk [vmem:[%s4 + $0x188] sm:$0xf] %vm1994, %v1836
  %2094 = vst.msk [vmem:[%s4 + $0x18c] sm:$0xf] %vm1994, %v1837
  %2095 = vst.msk [vmem:[%s4 + $0x190] sm:$0xf] %vm1994, %v1838
  %2096 = vst.msk [vmem:[%s4 + $0x194] sm:$0xf] %vm1994, %v1839
  %2097 = vst.msk [vmem:[%s4 + $0x198] sm:$0xf] %vm1994, %v1840
  %2098 = vst.msk [vmem:[%s4 + $0x19c] sm:$0xf] %vm1994, %v1841
  %2099 = vst.msk [vmem:[%s4 + $0x1a0] sm:$0xf] %vm1994, %v1842
  %2100 = vst.msk [vmem:[%s4 + $0x1a4] sm:$0xf] %vm1994, %v1843
  %2101 = vst.msk [vmem:[%s4 + $0x1a8] sm:$0xf] %vm1994, %v1844
  %2102 = vst.msk [vmem:[%s4 + $0x1ac] sm:$0xf] %vm1994, %v1845
  %2103 = vst.msk [vmem:[%s4 + $0x1b0] sm:$0xf] %vm1994, %v1846
  %2104 = vst.msk [vmem:[%s4 + $0x1b4] sm:$0xf] %vm1994, %v1847
  %2105 = vst.msk [vmem:[%s4 + $0x1b8] sm:$0xf] %vm1994, %v1848
  %2106 = vst.msk [vmem:[%s4 + $0x1bc] sm:$0xf] %vm1994, %v1849
  %2107 = vst.msk [vmem:[%s4 + $0x1c0] sm:$0xf] %vm1994, %v1850
  %2108 = vst.msk [vmem:[%s4 + $0x1c4] sm:$0xf] %vm1994, %v1851
  %2109 = vst.msk [vmem:[%s4 + $0x1c8] sm:$0xf] %vm1994, %v1852
  %2110 = vst.msk [vmem:[%s4 + $0x1cc] sm:$0xf] %vm1994, %v1853
  %2111 = vst.msk [vmem:[%s4 + $0x1d0] sm:$0xf] %vm1994, %v1854
  %2112 = vst.msk [vmem:[%s4 + $0x1d4] sm:$0xf] %vm1994, %v1855
  %2113 = vst.msk [vmem:[%s4 + $0x1d8] sm:$0xf] %vm1994, %v1856
  %2114 = vst.msk [vmem:[%s4 + $0x1dc] sm:$0xf] %vm1994, %v1857
  %2115 = vst.msk [vmem:[%s4 + $0x1e0] sm:$0xf] %vm1994, %v1858
  %2116 = vst.msk [vmem:[%s4 + $0x1e4] sm:$0xf] %vm1994, %v1859
  %2117 = vst.msk [vmem:[%s4 + $0x1e8] sm:$0xf] %vm1994, %v1860
  %2118 = vst.msk [vmem:[%s4 + $0x1ec] sm:$0xf] %vm1994, %v1861
  %2119 = vst.msk [vmem:[%s4 + $0x1f0] sm:$0xf] %vm1994, %v1862
  %2120 = vst.msk [vmem:[%s4 + $0x1f4] sm:$0xf] %vm1994, %v1863
  %2121 = vst.msk [vmem:[%s4 + $0x1f8] sm:$0xf] %vm1994, %v1864
  %2122 = vst.msk [vmem:[%s4 + $0x1fc] sm:$0xf] %vm1994, %v1865
  // Predicated region
  $region18: #{_lambda_.16} parent=0 // pred_check
    _
  $region19: #{_lambda_.16} parent=0 // pred_check_branch
    %2124 = sbr.rel (0) target = $region21
  $region20: #{_lambda_.16} parent=0 // pred_region
    _
  $region21: #{_lambda_.16} parent=0 // pred_fallthru
    _
  // Predicated region
  $region22: #{_lambda_.16} parent=0 // pred_check
    _
  $region23: #{_lambda_.16} parent=0 // pred_check_branch
    %2126 = sbr.rel (0) target = $region25
  $region24: #{_lambda_.16} parent=0 // pred_region
    _
  $region25: #{_lambda_.16} parent=0 // pred_fallthru
    _

// kernel: _lambda_.9
$region0: #{_lambda_.9}
  #allocation0 [shape = 'u32[]', space=smem, size = 0x4, offset = 0x4, fixed_abs, tag = 'smem constant byte address 0x4 - core index']
  #allocation1 [shape = 'u32[144,128]{1,0:T(1,128)}', space=vmem, size = 0x12000, scoped, tag = 'internal scratch']
  %s0 = inlined_call_operand.vmem [shape: bf16[1024,8], index: 0, kind: input, shape index: {}]
  %s1 = inlined_call_operand.vmem [shape: bf16[8,16], index: 1, kind: input, shape index: {}]
  %s2 = inlined_call_operand.vmem [shape: f32[1,16], index: 2, kind: input, shape index: {}]
  %s3 = inlined_call_operand.vmem [shape: f32[1,16], index: 3, kind: input, shape index: {}]
  %s4 = inlined_call_operand.vmem [shape: bf16[1024,16], index: 4, kind: output, shape index: {}]
  %s5 = sld [smem:[#allocation0]]
  $region26: #{_lambda_.9} parent=0
    _
  %s7 = ssub.s32 1, %s5
  %s8 = scalar_select 0, %s7, %s5
  // Predicated region
  $region2: #{_lambda_.9} parent=0 // pred_check
    _
  $region3: #{_lambda_.9} parent=0 // pred_check_branch
    %10 = sbr.rel (0) target = $region5
  $region4: #{_lambda_.9} parent=0 // pred_region
    _
  $region5: #{_lambda_.9} parent=0 // pred_fallthru
    _
  // Predicated region
  $region6: #{_lambda_.9} parent=0 // pred_check
    _
  $region7: #{_lambda_.9} parent=0 // pred_check_branch
    %12 = sbr.rel (0) target = $region9
  $region8: #{_lambda_.9} parent=0 // pred_region
    _
  $region9: #{_lambda_.9} parent=0 // pred_fallthru
    _
  // Predicated region
  $region10: #{_lambda_.9} parent=0 // pred_check
    _
  $region11: #{_lambda_.9} parent=0 // pred_check_branch
    %14 = sbr.rel (0) target = $region13
  $region12: #{_lambda_.9} parent=0 // pred_region
    _
  $region13: #{_lambda_.9} parent=0 // pred_fallthru
    _
  // Predicated region
  $region14: #{_lambda_.9} parent=0 // pred_check
    _
  $region15: #{_lambda_.9} parent=0 // pred_check_branch
    %16 = sbr.rel (0) target = $region17
  $region16: #{_lambda_.9} parent=0 // pred_region
    _
  $region17: #{_lambda_.9} parent=0 // pred_fallthru
    _
  %v18 = vld [vmem:[%s0] sm:$0xf]
  %v19 = vld [vmem:[%s0 + $0x4] sm:$0xf]
  %v20 = vld [vmem:[%s0 + $0x8] sm:$0xf]
  %v21 = vld [vmem:[%s0 + $0xc] sm:$0xf]
  %v22 = vld [vmem:[%s0 + $0x10] sm:$0xf]
  %v23 = vld [vmem:[%s0 + $0x14] sm:$0xf]
  %v24 = vld [vmem:[%s0 + $0x18] sm:$0xf]
  %v25 = vld [vmem:[%s0 + $0x1c] sm:$0xf]
  %v26 = vld [vmem:[%s0 + $0x20] sm:$0xf]
  %v27 = vld [vmem:[%s0 + $0x24] sm:$0xf]
  %v28 = vld [vmem:[%s0 + $0x28] sm:$0xf]
  %v29 = vld [vmem:[%s0 + $0x2c] sm:$0xf]
  %v30 = vld [vmem:[%s0 + $0x30] sm:$0xf]
  %v31 = vld [vmem:[%s0 + $0x34] sm:$0xf]
  %v32 = vld [vmem:[%s0 + $0x38] sm:$0xf]
  %v33 = vld [vmem:[%s0 + $0x3c] sm:$0xf]
  %v34 = vld [vmem:[%s0 + $0x40] sm:$0xf]
  %v35 = vld [vmem:[%s0 + $0x44] sm:$0xf]
  %v36 = vld [vmem:[%s0 + $0x48] sm:$0xf]
  %v37 = vld [vmem:[%s0 + $0x4c] sm:$0xf]
  %v38 = vld [vmem:[%s0 + $0x50] sm:$0xf]
  %v39 = vld [vmem:[%s0 + $0x54] sm:$0xf]
  %v40 = vld [vmem:[%s0 + $0x58] sm:$0xf]
  %v41 = vld [vmem:[%s0 + $0x5c] sm:$0xf]
  %v42 = vld [vmem:[%s0 + $0x60] sm:$0xf]
  %v43 = vld [vmem:[%s0 + $0x64] sm:$0xf]
  %v44 = vld [vmem:[%s0 + $0x68] sm:$0xf]
  %v45 = vld [vmem:[%s0 + $0x6c] sm:$0xf]
  %v46 = vld [vmem:[%s0 + $0x70] sm:$0xf]
  %v47 = vld [vmem:[%s0 + $0x74] sm:$0xf]
  %v48 = vld [vmem:[%s0 + $0x78] sm:$0xf]
  %v49 = vld [vmem:[%s0 + $0x7c] sm:$0xf]
  %v50 = vld [vmem:[%s0 + $0x80] sm:$0xf]
  %v51 = vld [vmem:[%s0 + $0x84] sm:$0xf]
  %v52 = vld [vmem:[%s0 + $0x88] sm:$0xf]
  %v53 = vld [vmem:[%s0 + $0x8c] sm:$0xf]
  %v54 = vld [vmem:[%s0 + $0x90] sm:$0xf]
  %v55 = vld [vmem:[%s0 + $0x94] sm:$0xf]
  %v56 = vld [vmem:[%s0 + $0x98] sm:$0xf]
  %v57 = vld [vmem:[%s0 + $0x9c] sm:$0xf]
  %v58 = vld [vmem:[%s0 + $0xa0] sm:$0xf]
  %v59 = vld [vmem:[%s0 + $0xa4] sm:$0xf]
  %v60 = vld [vmem:[%s0 + $0xa8] sm:$0xf]
  %v61 = vld [vmem:[%s0 + $0xac] sm:$0xf]
  %v62 = vld [vmem:[%s0 + $0xb0] sm:$0xf]
  %v63 = vld [vmem:[%s0 + $0xb4] sm:$0xf]
  %v64 = vld [vmem:[%s0 + $0xb8] sm:$0xf]
  %v65 = vld [vmem:[%s0 + $0xbc] sm:$0xf]
  %v66 = vld [vmem:[%s0 + $0xc0] sm:$0xf]
  %v67 = vld [vmem:[%s0 + $0xc4] sm:$0xf]
  %v68 = vld [vmem:[%s0 + $0xc8] sm:$0xf]
  %v69 = vld [vmem:[%s0 + $0xcc] sm:$0xf]
  %v70 = vld [vmem:[%s0 + $0xd0] sm:$0xf]
  %v71 = vld [vmem:[%s0 + $0xd4] sm:$0xf]
  %v72 = vld [vmem:[%s0 + $0xd8] sm:$0xf]
  %v73 = vld [vmem:[%s0 + $0xdc] sm:$0xf]
  %v74 = vld [vmem:[%s0 + $0xe0] sm:$0xf]
  %v75 = vld [vmem:[%s0 + $0xe4] sm:$0xf]
  %v76 = vld [vmem:[%s0 + $0xe8] sm:$0xf]
  %v77 = vld [vmem:[%s0 + $0xec] sm:$0xf]
  %v78 = vld [vmem:[%s0 + $0xf0] sm:$0xf]
  %v79 = vld [vmem:[%s0 + $0xf4] sm:$0xf]
  %v80 = vld [vmem:[%s0 + $0xf8] sm:$0xf]
  %v81 = vld [vmem:[%s0 + $0xfc] sm:$0xf]
  %v82 = vld [vmem:[%s0 + $0x100] sm:$0xf]
  %v83 = vld [vmem:[%s0 + $0x104] sm:$0xf]
  %v84 = vld [vmem:[%s0 + $0x108] sm:$0xf]
  %v85 = vld [vmem:[%s0 + $0x10c] sm:$0xf]
  %v86 = vld [vmem:[%s0 + $0x110] sm:$0xf]
  %v87 = vld [vmem:[%s0 + $0x114] sm:$0xf]
  %v88 = vld [vmem:[%s0 + $0x118] sm:$0xf]
  %v89 = vld [vmem:[%s0 + $0x11c] sm:$0xf]
  %v90 = vld [vmem:[%s0 + $0x120] sm:$0xf]
  %v91 = vld [vmem:[%s0 + $0x124] sm:$0xf]
  %v92 = vld [vmem:[%s0 + $0x128] sm:$0xf]
  %v93 = vld [vmem:[%s0 + $0x12c] sm:$0xf]
  %v94 = vld [vmem:[%s0 + $0x130] sm:$0xf]
  %v95 = vld [vmem:[%s0 + $0x134] sm:$0xf]
  %v96 = vld [vmem:[%s0 + $0x138] sm:$0xf]
  %v97 = vld [vmem:[%s0 + $0x13c] sm:$0xf]
  %v98 = vld [vmem:[%s0 + $0x140] sm:$0xf]
  %v99 = vld [vmem:[%s0 + $0x144] sm:$0xf]
  %v100 = vld [vmem:[%s0 + $0x148] sm:$0xf]
  %v101 = vld [vmem:[%s0 + $0x14c] sm:$0xf]
  %v102 = vld [vmem:[%s0 + $0x150] sm:$0xf]
  %v103 = vld [vmem:[%s0 + $0x154] sm:$0xf]
  %v104 = vld [vmem:[%s0 + $0x158] sm:$0xf]
  %v105 = vld [vmem:[%s0 + $0x15c] sm:$0xf]
  %v106 = vld [vmem:[%s0 + $0x160] sm:$0xf]
  %v107 = vld [vmem:[%s0 + $0x164] sm:$0xf]
  %v108 = vld [vmem:[%s0 + $0x168] sm:$0xf]
  %v109 = vld [vmem:[%s0 + $0x16c] sm:$0xf]
  %v110 = vld [vmem:[%s0 + $0x170] sm:$0xf]
  %v111 = vld [vmem:[%s0 + $0x174] sm:$0xf]
  %v112 = vld [vmem:[%s0 + $0x178] sm:$0xf]
  %v113 = vld [vmem:[%s0 + $0x17c] sm:$0xf]
  %v114 = vld [vmem:[%s0 + $0x180] sm:$0xf]
  %v115 = vld [vmem:[%s0 + $0x184] sm:$0xf]
  %v116 = vld [vmem:[%s0 + $0x188] sm:$0xf]
  %v117 = vld [vmem:[%s0 + $0x18c] sm:$0xf]
  %v118 = vld [vmem:[%s0 + $0x190] sm:$0xf]
  %v119 = vld [vmem:[%s0 + $0x194] sm:$0xf]
  %v120 = vld [vmem:[%s0 + $0x198] sm:$0xf]
  %v121 = vld [vmem:[%s0 + $0x19c] sm:$0xf]
  %v122 = vld [vmem:[%s0 + $0x1a0] sm:$0xf]
  %v123 = vld [vmem:[%s0 + $0x1a4] sm:$0xf]
  %v124 = vld [vmem:[%s0 + $0x1a8] sm:$0xf]
  %v125 = vld [vmem:[%s0 + $0x1ac] sm:$0xf]
  %v126 = vld [vmem:[%s0 + $0x1b0] sm:$0xf]
  %v127 = vld [vmem:[%s0 + $0x1b4] sm:$0xf]
  %v128 = vld [vmem:[%s0 + $0x1b8] sm:$0xf]
  %v129 = vld [vmem:[%s0 + $0x1bc] sm:$0xf]
  %v130 = vld [vmem:[%s0 + $0x1c0] sm:$0xf]
  %v131 = vld [vmem:[%s0 + $0x1c4] sm:$0xf]
  %v132 = vld [vmem:[%s0 + $0x1c8] sm:$0xf]
  %v133 = vld [vmem:[%s0 + $0x1cc] sm:$0xf]
  %v134 = vld [vmem:[%s0 + $0x1d0] sm:$0xf]
  %v135 = vld [vmem:[%s0 + $0x1d4] sm:$0xf]
  %v136 = vld [vmem:[%s0 + $0x1d8] sm:$0xf]
  %v137 = vld [vmem:[%s0 + $0x1dc] sm:$0xf]
  %v138 = vld [vmem:[%s0 + $0x1e0] sm:$0xf]
  %v139 = vld [vmem:[%s0 + $0x1e4] sm:$0xf]
  %v140 = vld [vmem:[%s0 + $0x1e8] sm:$0xf]
  %v141 = vld [vmem:[%s0 + $0x1ec] sm:$0xf]
  %v142 = vld [vmem:[%s0 + $0x1f0] sm:$0xf]
  %v143 = vld [vmem:[%s0 + $0x1f4] sm:$0xf]
  %v144 = vld [vmem:[%s0 + $0x1f8] sm:$0xf]
  %v145 = vld [vmem:[%s0 + $0x1fc] sm:$0xf]
  %v146 = vld [vmem:[%s1] sm:$0xf]
  %v275 = vunpack.c.l.b16 %v18
  %v276 = vunpack.c.l.b16 %v19
  %v277 = vunpack.c.l.b16 %v20
  %v278 = vunpack.c.l.b16 %v21
  %v279 = vunpack.c.l.b16 %v22
  %v280 = vunpack.c.l.b16 %v23
  %v281 = vunpack.c.l.b16 %v24
  %v282 = vunpack.c.l.b16 %v25
  %v283 = vunpack.c.l.b16 %v26
  %v284 = vunpack.c.l.b16 %v27
  %v285 = vunpack.c.l.b16 %v28
  %v286 = vunpack.c.l.b16 %v29
  %v287 = vunpack.c.l.b16 %v30
  %v288 = vunpack.c.l.b16 %v31
  %v289 = vunpack.c.l.b16 %v32
  %v290 = vunpack.c.l.b16 %v33
  %v291 = vunpack.c.l.b16 %v34
  %v292 = vunpack.c.l.b16 %v35
  %v293 = vunpack.c.l.b16 %v36
  %v294 = vunpack.c.l.b16 %v37
  %v295 = vunpack.c.l.b16 %v38
  %v296 = vunpack.c.l.b16 %v39
  %v297 = vunpack.c.l.b16 %v40
  %v298 = vunpack.c.l.b16 %v41
  %v299 = vunpack.c.l.b16 %v42
  %v300 = vunpack.c.l.b16 %v43
  %v301 = vunpack.c.l.b16 %v44
  %v302 = vunpack.c.l.b16 %v45
  %v303 = vunpack.c.l.b16 %v46
  %v304 = vunpack.c.l.b16 %v47
  %v305 = vunpack.c.l.b16 %v48
  %v306 = vunpack.c.l.b16 %v49
  %v307 = vunpack.c.l.b16 %v50
  %v308 = vunpack.c.l.b16 %v51
  %v309 = vunpack.c.l.b16 %v52
  %v310 = vunpack.c.l.b16 %v53
  %v311 = vunpack.c.l.b16 %v54
  %v312 = vunpack.c.l.b16 %v55
  %v313 = vunpack.c.l.b16 %v56
  %v314 = vunpack.c.l.b16 %v57
  %v315 = vunpack.c.l.b16 %v58
  %v316 = vunpack.c.l.b16 %v59
  %v317 = vunpack.c.l.b16 %v60
  %v318 = vunpack.c.l.b16 %v61
  %v319 = vunpack.c.l.b16 %v62
  %v320 = vunpack.c.l.b16 %v63
  %v321 = vunpack.c.l.b16 %v64
  %v322 = vunpack.c.l.b16 %v65
  %v323 = vunpack.c.l.b16 %v66
  %v324 = vunpack.c.l.b16 %v67
  %v325 = vunpack.c.l.b16 %v68
  %v326 = vunpack.c.l.b16 %v69
  %v327 = vunpack.c.l.b16 %v70
  %v328 = vunpack.c.l.b16 %v71
  %v329 = vunpack.c.l.b16 %v72
  %v330 = vunpack.c.l.b16 %v73
  %v331 = vunpack.c.l.b16 %v74
  %v332 = vunpack.c.l.b16 %v75
  %v333 = vunpack.c.l.b16 %v76
  %v334 = vunpack.c.l.b16 %v77
  %v335 = vunpack.c.l.b16 %v78
  %v336 = vunpack.c.l.b16 %v79
  %v337 = vunpack.c.l.b16 %v80
  %v338 = vunpack.c.l.b16 %v81
  %v339 = vunpack.c.l.b16 %v82
  %v340 = vunpack.c.l.b16 %v83
  %v341 = vunpack.c.l.b16 %v84
  %v342 = vunpack.c.l.b16 %v85
  %v343 = vunpack.c.l.b16 %v86
  %v344 = vunpack.c.l.b16 %v87
  %v345 = vunpack.c.l.b16 %v88
  %v346 = vunpack.c.l.b16 %v89
  %v347 = vunpack.c.l.b16 %v90
  %v348 = vunpack.c.l.b16 %v91
  %v349 = vunpack.c.l.b16 %v92
  %v350 = vunpack.c.l.b16 %v93
  %v351 = vunpack.c.l.b16 %v94
  %v352 = vunpack.c.l.b16 %v95
  %v353 = vunpack.c.l.b16 %v96
  %v354 = vunpack.c.l.b16 %v97
  %v355 = vunpack.c.l.b16 %v98
  %v356 = vunpack.c.l.b16 %v99
  %v357 = vunpack.c.l.b16 %v100
  %v358 = vunpack.c.l.b16 %v101
  %v359 = vunpack.c.l.b16 %v102
  %v360 = vunpack.c.l.b16 %v103
  %v361 = vunpack.c.l.b16 %v104
  %v362 = vunpack.c.l.b16 %v105
  %v363 = vunpack.c.l.b16 %v106
  %v364 = vunpack.c.l.b16 %v107
  %v365 = vunpack.c.l.b16 %v108
  %v366 = vunpack.c.l.b16 %v109
  %v367 = vunpack.c.l.b16 %v110
  %v368 = vunpack.c.l.b16 %v111
  %v369 = vunpack.c.l.b16 %v112
  %v370 = vunpack.c.l.b16 %v113
  %v371 = vunpack.c.l.b16 %v114
  %v372 = vunpack.c.l.b16 %v115
  %v373 = vunpack.c.l.b16 %v116
  %v374 = vunpack.c.l.b16 %v117
  %v375 = vunpack.c.l.b16 %v118
  %v376 = vunpack.c.l.b16 %v119
  %v377 = vunpack.c.l.b16 %v120
  %v378 = vunpack.c.l.b16 %v121
  %v379 = vunpack.c.l.b16 %v122
  %v380 = vunpack.c.l.b16 %v123
  %v381 = vunpack.c.l.b16 %v124
  %v382 = vunpack.c.l.b16 %v125
  %v383 = vunpack.c.l.b16 %v126
  %v384 = vunpack.c.l.b16 %v127
  %v385 = vunpack.c.l.b16 %v128
  %v386 = vunpack.c.l.b16 %v129
  %v387 = vunpack.c.l.b16 %v130
  %v388 = vunpack.c.l.b16 %v131
  %v389 = vunpack.c.l.b16 %v132
  %v390 = vunpack.c.l.b16 %v133
  %v391 = vunpack.c.l.b16 %v134
  %v392 = vunpack.c.l.b16 %v135
  %v393 = vunpack.c.l.b16 %v136
  %v394 = vunpack.c.l.b16 %v137
  %v395 = vunpack.c.l.b16 %v138
  %v396 = vunpack.c.l.b16 %v139
  %v397 = vunpack.c.l.b16 %v140
  %v398 = vunpack.c.l.b16 %v141
  %v399 = vunpack.c.l.b16 %v142
  %v400 = vunpack.c.l.b16 %v143
  %v401 = vunpack.c.l.b16 %v144
  %v402 = vunpack.c.l.b16 %v145
  %v403 = vpack.c.b16 %v276, %v275
  %v404 = vpack.c.b16 %v278, %v277
  %v405 = vpack.c.b16 %v280, %v279
  %v406 = vpack.c.b16 %v282, %v281
  %v407 = vpack.c.b16 %v284, %v283
  %v408 = vpack.c.b16 %v286, %v285
  %v409 = vpack.c.b16 %v288, %v287
  %v410 = vpack.c.b16 %v290, %v289
  %v411 = vpack.c.b16 %v292, %v291
  %v412 = vpack.c.b16 %v294, %v293
  %v413 = vpack.c.b16 %v296, %v295
  %v414 = vpack.c.b16 %v298, %v297
  %v415 = vpack.c.b16 %v300, %v299
  %v416 = vpack.c.b16 %v302, %v301
  %v417 = vpack.c.b16 %v304, %v303
  %v418 = vpack.c.b16 %v306, %v305
  %v419 = vpack.c.b16 %v308, %v307
  %v420 = vpack.c.b16 %v310, %v309
  %v421 = vpack.c.b16 %v312, %v311
  %v422 = vpack.c.b16 %v314, %v313
  %v423 = vpack.c.b16 %v316, %v315
  %v424 = vpack.c.b16 %v318, %v317
  %v425 = vpack.c.b16 %v320, %v319
  %v426 = vpack.c.b16 %v322, %v321
  %v427 = vpack.c.b16 %v324, %v323
  %v428 = vpack.c.b16 %v326, %v325
  %v429 = vpack.c.b16 %v328, %v327
  %v430 = vpack.c.b16 %v330, %v329
  %v431 = vpack.c.b16 %v332, %v331
  %v432 = vpack.c.b16 %v334, %v333
  %v433 = vpack.c.b16 %v336, %v335
  %v434 = vpack.c.b16 %v338, %v337
  %v435 = vpack.c.b16 %v340, %v339
  %v436 = vpack.c.b16 %v342, %v341
  %v437 = vpack.c.b16 %v344, %v343
  %v438 = vpack.c.b16 %v346, %v345
  %v439 = vpack.c.b16 %v348, %v347
  %v440 = vpack.c.b16 %v350, %v349
  %v441 = vpack.c.b16 %v352, %v351
  %v442 = vpack.c.b16 %v354, %v353
  %v443 = vpack.c.b16 %v356, %v355
  %v444 = vpack.c.b16 %v358, %v357
  %v445 = vpack.c.b16 %v360, %v359
  %v446 = vpack.c.b16 %v362, %v361
  %v447 = vpack.c.b16 %v364, %v363
  %v448 = vpack.c.b16 %v366, %v365
  %v449 = vpack.c.b16 %v368, %v367
  %v450 = vpack.c.b16 %v370, %v369
  %v451 = vpack.c.b16 %v372, %v371
  %v452 = vpack.c.b16 %v374, %v373
  %v453 = vpack.c.b16 %v376, %v375
  %v454 = vpack.c.b16 %v378, %v377
  %v455 = vpack.c.b16 %v380, %v379
  %v456 = vpack.c.b16 %v382, %v381
  %v457 = vpack.c.b16 %v384, %v383
  %v458 = vpack.c.b16 %v386, %v385
  %v459 = vpack.c.b16 %v388, %v387
  %v460 = vpack.c.b16 %v390, %v389
  %v461 = vpack.c.b16 %v392, %v391
  %v462 = vpack.c.b16 %v394, %v393
  %v463 = vpack.c.b16 %v396, %v395
  %v464 = vpack.c.b16 %v398, %v397
  %v465 = vpack.c.b16 %v400, %v399
  %v466 = vpack.c.b16 %v402, %v401
  %vm467 = vcmask 64512
  %v469 = vsel %vm467, %v403, 0
  %v472 = vsel %vm467, %v404, 0
  %v475 = vsel %vm467, %v405, 0
  %v478 = vsel %vm467, %v406, 0
  %v481 = vsel %vm467, %v407, 0
  %v484 = vsel %vm467, %v408, 0
  %v487 = vsel %vm467, %v409, 0
  %v490 = vsel %vm467, %v410, 0
  %v493 = vsel %vm467, %v411, 0
  %v496 = vsel %vm467, %v412, 0
  %v499 = vsel %vm467, %v413, 0
  %v502 = vsel %vm467, %v414, 0
  %v505 = vsel %vm467, %v415, 0
  %v508 = vsel %vm467, %v416, 0
  %v511 = vsel %vm467, %v417, 0
  %v514 = vsel %vm467, %v418, 0
  %v517 = vsel %vm467, %v419, 0
  %v520 = vsel %vm467, %v420, 0
  %v523 = vsel %vm467, %v421, 0
  %v526 = vsel %vm467, %v422, 0
  %v529 = vsel %vm467, %v423, 0
  %v532 = vsel %vm467, %v424, 0
  %v535 = vsel %vm467, %v425, 0
  %v538 = vsel %vm467, %v426, 0
  %v541 = vsel %vm467, %v427, 0
  %v544 = vsel %vm467, %v428, 0
  %v547 = vsel %vm467, %v429, 0
  %v550 = vsel %vm467, %v430, 0
  %v553 = vsel %vm467, %v431, 0
  %v556 = vsel %vm467, %v432, 0
  %v559 = vsel %vm467, %v433, 0
  %v562 = vsel %vm467, %v434, 0
  %v565 = vsel %vm467, %v435, 0
  %v568 = vsel %vm467, %v436, 0
  %v571 = vsel %vm467, %v437, 0
  %v574 = vsel %vm467, %v438, 0
  %v577 = vsel %vm467, %v439, 0
  %v580 = vsel %vm467, %v440, 0
  %v583 = vsel %vm467, %v441, 0
  %v586 = vsel %vm467, %v442, 0
  %v589 = vsel %vm467, %v443, 0
  %v592 = vsel %vm467, %v444, 0
  %v595 = vsel %vm467, %v445, 0
  %v598 = vsel %vm467, %v446, 0
  %v601 = vsel %vm467, %v447, 0
  %v604 = vsel %vm467, %v448, 0
  %v607 = vsel %vm467, %v449, 0
  %v610 = vsel %vm467, %v450, 0
  %v613 = vsel %vm467, %v451, 0
  %v616 = vsel %vm467, %v452, 0
  %v619 = vsel %vm467, %v453, 0
  %v622 = vsel %vm467, %v454, 0
  %v625 = vsel %vm467, %v455, 0
  %v628 = vsel %vm467, %v456, 0
  %v631 = vsel %vm467, %v457, 0
  %v634 = vsel %vm467, %v458, 0
  %v637 = vsel %vm467, %v459, 0
  %v640 = vsel %vm467, %v460, 0
  %v643 = vsel %vm467, %v461, 0
  %v646 = vsel %vm467, %v462, 0
  %v649 = vsel %vm467, %v463, 0
  %v652 = vsel %vm467, %v464, 0
  %v655 = vsel %vm467, %v465, 0
  %v658 = vsel %vm467, %v466, 0
  %vm660 = vcmask 1043456
  %v662 = vsel %vm660, %v146, 0
  %664 = vmatprep.subr.bf16.mxu0 0
  %665 = vmatpush1.bf16.msra.mxu0 0
  %666 = vmatprep.subr.bf16.mxu0 0
  %667 = vmatpush1.bf16.msra.mxu0 0
  %668 = vmatprep.subr.bf16.mxu0 0
  %669 = vmatpush1.bf16.msra.mxu0 0
  %670 = vmatprep.subr.bf16.mxu0 0
  %671 = vmatpush1.bf16.msra.mxu0 0
  %672 = vmatprep.subr.bf16.mxu0 0
  %673 = vmatpush1.bf16.msra.mxu0 0
  %674 = vmatprep.subr.bf16.mxu0 0
  %675 = vmatpush1.bf16.msra.mxu0 0
  %676 = vmatprep.subr.bf16.mxu0 0
  %677 = vmatpush1.bf16.msra.mxu0 0
  %678 = vmatprep.subr.bf16.mxu0 0
  %679 = vmatpush1.bf16.msra.mxu0 %v662
  %680 = vmatprep.subr.bf16.mxu0 0
  %681 = vmatpush2.bf16.msra.mxu0 0
  %682 = vmatprep.subr.bf16.mxu0 0
  %683 = vmatpush2.bf16.msra.mxu0 0
  %684 = vmatprep.subr.bf16.mxu0 0
  %685 = vmatpush2.bf16.msra.mxu0 0
  %686 = vmatprep.subr.bf16.mxu0 0
  %687 = vmatpush2.bf16.msra.mxu0 0
  %688 = vmatprep.subr.bf16.mxu0 0
  %689 = vmatpush2.bf16.msra.mxu0 0
  %690 = vmatprep.subr.bf16.mxu0 0
  %691 = vmatpush2.bf16.msra.mxu0 0
  %692 = vmatprep.subr.bf16.mxu0 0
  %693 = vmatpush2.bf16.msra.mxu0 0
  %694 = vmatprep.subr.bf16.mxu0 0
  %695 = vmatpush2.bf16.msra.mxu0 0
  %696 = vmatprep.mubr.bf16.mxu0 0
  %697 = vmatmul.mubr.bf16.gmra.mxu0 %v469
  %v698 = vpop.f32.mrf.mxu0
  %v699 = vadd.f32 0.0, %v698
  %v700 = vpop.f32.mrf.mxu0
  %v701 = vpop.f32.mrf.mxu0
  %v702 = vadd.f32 0.0, %v701
  %v703 = vpop.f32.mrf.mxu0
  %704 = vmatprep.mubr.bf16.mxu0 0
  %705 = vmatmul.mubr.bf16.gmra.mxu0 %v472
  %v706 = vpop.f32.mrf.mxu0
  %v707 = vadd.f32 0.0, %v706
  %v708 = vpop.f32.mrf.mxu0
  %v709 = vpop.f32.mrf.mxu0
  %v710 = vadd.f32 0.0, %v709
  %v711 = vpop.f32.mrf.mxu0
  %712 = vmatprep.mubr.bf16.mxu0 0
  %713 = vmatmul.mubr.bf16.gmra.mxu0 %v475
  %v714 = vpop.f32.mrf.mxu0
  %v715 = vadd.f32 0.0, %v714
  %v716 = vpop.f32.mrf.mxu0
  %v717 = vpop.f32.mrf.mxu0
  %v718 = vadd.f32 0.0, %v717
  %v719 = vpop.f32.mrf.mxu0
  %720 = vmatprep.mubr.bf16.mxu0 0
  %721 = vmatmul.mubr.bf16.gmra.mxu0 %v478
  %v722 = vpop.f32.mrf.mxu0
  %v723 = vadd.f32 0.0, %v722
  %v724 = vpop.f32.mrf.mxu0
  %v725 = vpop.f32.mrf.mxu0
  %v726 = vadd.f32 0.0, %v725
  %v727 = vpop.f32.mrf.mxu0
  %728 = vmatprep.mubr.bf16.mxu0 0
  %729 = vmatmul.mubr.bf16.gmra.mxu0 %v481
  %v730 = vpop.f32.mrf.mxu0
  %v731 = vadd.f32 0.0, %v730
  %v732 = vpop.f32.mrf.mxu0
  %v733 = vpop.f32.mrf.mxu0
  %v734 = vadd.f32 0.0, %v733
  %v735 = vpop.f32.mrf.mxu0
  %736 = vmatprep.mubr.bf16.mxu0 0
  %737 = vmatmul.mubr.bf16.gmra.mxu0 %v484
  %v738 = vpop.f32.mrf.mxu0
  %v739 = vadd.f32 0.0, %v738
  %v740 = vpop.f32.mrf.mxu0
  %v741 = vpop.f32.mrf.mxu0
  %v742 = vadd.f32 0.0, %v741
  %v743 = vpop.f32.mrf.mxu0
  %744 = vmatprep.mubr.bf16.mxu0 0
  %745 = vmatmul.mubr.bf16.gmra.mxu0 %v487
  %v746 = vpop.f32.mrf.mxu0
  %v747 = vadd.f32 0.0, %v746
  %v748 = vpop.f32.mrf.mxu0
  %v749 = vpop.f32.mrf.mxu0
  %v750 = vadd.f32 0.0, %v749
  %v751 = vpop.f32.mrf.mxu0
  %752 = vmatprep.mubr.bf16.mxu0 0
  %753 = vmatmul.mubr.bf16.gmra.mxu0 %v490
  %v754 = vpop.f32.mrf.mxu0
  %v755 = vadd.f32 0.0, %v754
  %v756 = vpop.f32.mrf.mxu0
  %v757 = vpop.f32.mrf.mxu0
  %v758 = vadd.f32 0.0, %v757
  %v759 = vpop.f32.mrf.mxu0
  %760 = vmatprep.mubr.bf16.mxu0 0
  %761 = vmatmul.mubr.bf16.gmra.mxu0 %v493
  %v762 = vpop.f32.mrf.mxu0
  %v763 = vadd.f32 0.0, %v762
  %v764 = vpop.f32.mrf.mxu0
  %v765 = vpop.f32.mrf.mxu0
  %v766 = vadd.f32 0.0, %v765
  %v767 = vpop.f32.mrf.mxu0
  %768 = vmatprep.mubr.bf16.mxu0 0
  %769 = vmatmul.mubr.bf16.gmra.mxu0 %v496
  %v770 = vpop.f32.mrf.mxu0
  %v771 = vadd.f32 0.0, %v770
  %v772 = vpop.f32.mrf.mxu0
  %v773 = vpop.f32.mrf.mxu0
  %v774 = vadd.f32 0.0, %v773
  %v775 = vpop.f32.mrf.mxu0
  %776 = vmatprep.mubr.bf16.mxu0 0
  %777 = vmatmul.mubr.bf16.gmra.mxu0 %v499
  %v778 = vpop.f32.mrf.mxu0
  %v779 = vadd.f32 0.0, %v778
  %v780 = vpop.f32.mrf.mxu0
  %v781 = vpop.f32.mrf.mxu0
  %v782 = vadd.f32 0.0, %v781
  %v783 = vpop.f32.mrf.mxu0
  %784 = vmatprep.mubr.bf16.mxu0 0
  %785 = vmatmul.mubr.bf16.gmra.mxu0 %v502
  %v786 = vpop.f32.mrf.mxu0
  %v787 = vadd.f32 0.0, %v786
  %v788 = vpop.f32.mrf.mxu0
  %v789 = vpop.f32.mrf.mxu0
  %v790 = vadd.f32 0.0, %v789
  %v791 = vpop.f32.mrf.mxu0
  %792 = vmatprep.mubr.bf16.mxu0 0
  %793 = vmatmul.mubr.bf16.gmra.mxu0 %v505
  %v794 = vpop.f32.mrf.mxu0
  %v795 = vadd.f32 0.0, %v794
  %v796 = vpop.f32.mrf.mxu0
  %v797 = vpop.f32.mrf.mxu0
  %v798 = vadd.f32 0.0, %v797
  %v799 = vpop.f32.mrf.mxu0
  %800 = vmatprep.mubr.bf16.mxu0 0
  %801 = vmatmul.mubr.bf16.gmra.mxu0 %v508
  %v802 = vpop.f32.mrf.mxu0
  %v803 = vadd.f32 0.0, %v802
  %v804 = vpop.f32.mrf.mxu0
  %v805 = vpop.f32.mrf.mxu0
  %v806 = vadd.f32 0.0, %v805
  %v807 = vpop.f32.mrf.mxu0
  %808 = vmatprep.mubr.bf16.mxu0 0
  %809 = vmatmul.mubr.bf16.gmra.mxu0 %v511
  %v810 = vpop.f32.mrf.mxu0
  %v811 = vadd.f32 0.0, %v810
  %v812 = vpop.f32.mrf.mxu0
  %v813 = vpop.f32.mrf.mxu0
  %v814 = vadd.f32 0.0, %v813
  %v815 = vpop.f32.mrf.mxu0
  %816 = vmatprep.mubr.bf16.mxu0 0
  %817 = vmatmul.mubr.bf16.gmra.mxu0 %v514
  %v818 = vpop.f32.mrf.mxu0
  %v819 = vadd.f32 0.0, %v818
  %v820 = vpop.f32.mrf.mxu0
  %v821 = vpop.f32.mrf.mxu0
  %v822 = vadd.f32 0.0, %v821
  %v823 = vpop.f32.mrf.mxu0
  %824 = vmatprep.mubr.bf16.mxu0 0
  %825 = vmatmul.mubr.bf16.gmra.mxu0 %v517
  %v826 = vpop.f32.mrf.mxu0
  %v827 = vadd.f32 0.0, %v826
  %v828 = vpop.f32.mrf.mxu0
  %v829 = vpop.f32.mrf.mxu0
  %v830 = vadd.f32 0.0, %v829
  %v831 = vpop.f32.mrf.mxu0
  %832 = vmatprep.mubr.bf16.mxu0 0
  %833 = vmatmul.mubr.bf16.gmra.mxu0 %v520
  %v834 = vpop.f32.mrf.mxu0
  %v835 = vadd.f32 0.0, %v834
  %v836 = vpop.f32.mrf.mxu0
  %v837 = vpop.f32.mrf.mxu0
  %v838 = vadd.f32 0.0, %v837
  %v839 = vpop.f32.mrf.mxu0
  %840 = vmatprep.mubr.bf16.mxu0 0
  %841 = vmatmul.mubr.bf16.gmra.mxu0 %v523
  %v842 = vpop.f32.mrf.mxu0
  %v843 = vadd.f32 0.0, %v842
  %v844 = vpop.f32.mrf.mxu0
  %v845 = vpop.f32.mrf.mxu0
  %v846 = vadd.f32 0.0, %v845
  %v847 = vpop.f32.mrf.mxu0
  %848 = vmatprep.mubr.bf16.mxu0 0
  %849 = vmatmul.mubr.bf16.gmra.mxu0 %v526
  %v850 = vpop.f32.mrf.mxu0
  %v851 = vadd.f32 0.0, %v850
  %v852 = vpop.f32.mrf.mxu0
  %v853 = vpop.f32.mrf.mxu0
  %v854 = vadd.f32 0.0, %v853
  %v855 = vpop.f32.mrf.mxu0
  %856 = vmatprep.mubr.bf16.mxu0 0
  %857 = vmatmul.mubr.bf16.gmra.mxu0 %v529
  %v858 = vpop.f32.mrf.mxu0
  %v859 = vadd.f32 0.0, %v858
  %v860 = vpop.f32.mrf.mxu0
  %v861 = vpop.f32.mrf.mxu0
  %v862 = vadd.f32 0.0, %v861
  %v863 = vpop.f32.mrf.mxu0
  %864 = vmatprep.mubr.bf16.mxu0 0
  %865 = vmatmul.mubr.bf16.gmra.mxu0 %v532
  %v866 = vpop.f32.mrf.mxu0
  %v867 = vadd.f32 0.0, %v866
  %v868 = vpop.f32.mrf.mxu0
  %v869 = vpop.f32.mrf.mxu0
  %v870 = vadd.f32 0.0, %v869
  %v871 = vpop.f32.mrf.mxu0
  %872 = vmatprep.mubr.bf16.mxu0 0
  %873 = vmatmul.mubr.bf16.gmra.mxu0 %v535
  %v874 = vpop.f32.mrf.mxu0
  %v875 = vadd.f32 0.0, %v874
  %v876 = vpop.f32.mrf.mxu0
  %v877 = vpop.f32.mrf.mxu0
  %v878 = vadd.f32 0.0, %v877
  %v879 = vpop.f32.mrf.mxu0
  %880 = vmatprep.mubr.bf16.mxu0 0
  %881 = vmatmul.mubr.bf16.gmra.mxu0 %v538
  %v882 = vpop.f32.mrf.mxu0
  %v883 = vadd.f32 0.0, %v882
  %v884 = vpop.f32.mrf.mxu0
  %v885 = vpop.f32.mrf.mxu0
  %v886 = vadd.f32 0.0, %v885
  %v887 = vpop.f32.mrf.mxu0
  %888 = vmatprep.mubr.bf16.mxu0 0
  %889 = vmatmul.mubr.bf16.gmra.mxu0 %v541
  %v890 = vpop.f32.mrf.mxu0
  %v891 = vadd.f32 0.0, %v890
  %v892 = vpop.f32.mrf.mxu0
  %v893 = vpop.f32.mrf.mxu0
  %v894 = vadd.f32 0.0, %v893
  %v895 = vpop.f32.mrf.mxu0
  %896 = vmatprep.mubr.bf16.mxu0 0
  %897 = vmatmul.mubr.bf16.gmra.mxu0 %v544
  %v898 = vpop.f32.mrf.mxu0
  %v899 = vadd.f32 0.0, %v898
  %v900 = vpop.f32.mrf.mxu0
  %v901 = vpop.f32.mrf.mxu0
  %v902 = vadd.f32 0.0, %v901
  %v903 = vpop.f32.mrf.mxu0
  %904 = vmatprep.mubr.bf16.mxu0 0
  %905 = vmatmul.mubr.bf16.gmra.mxu0 %v547
  %v906 = vpop.f32.mrf.mxu0
  %v907 = vadd.f32 0.0, %v906
  %v908 = vpop.f32.mrf.mxu0
  %v909 = vpop.f32.mrf.mxu0
  %v910 = vadd.f32 0.0, %v909
  %v911 = vpop.f32.mrf.mxu0
  %912 = vmatprep.mubr.bf16.mxu0 0
  %913 = vmatmul.mubr.bf16.gmra.mxu0 %v550
  %v914 = vpop.f32.mrf.mxu0
  %v915 = vadd.f32 0.0, %v914
  %v916 = vpop.f32.mrf.mxu0
  %v917 = vpop.f32.mrf.mxu0
  %v918 = vadd.f32 0.0, %v917
  %v919 = vpop.f32.mrf.mxu0
  %920 = vmatprep.mubr.bf16.mxu0 0
  %921 = vmatmul.mubr.bf16.gmra.mxu0 %v553
  %v922 = vpop.f32.mrf.mxu0
  %v923 = vadd.f32 0.0, %v922
  %v924 = vpop.f32.mrf.mxu0
  %v925 = vpop.f32.mrf.mxu0
  %v926 = vadd.f32 0.0, %v925
  %v927 = vpop.f32.mrf.mxu0
  %928 = vmatprep.mubr.bf16.mxu0 0
  %929 = vmatmul.mubr.bf16.gmra.mxu0 %v556
  %v930 = vpop.f32.mrf.mxu0
  %v931 = vadd.f32 0.0, %v930
  %v932 = vpop.f32.mrf.mxu0
  %v933 = vpop.f32.mrf.mxu0
  %v934 = vadd.f32 0.0, %v933
  %v935 = vpop.f32.mrf.mxu0
  %936 = vmatprep.mubr.bf16.mxu0 0
  %937 = vmatmul.mubr.bf16.gmra.mxu0 %v559
  %v938 = vpop.f32.mrf.mxu0
  %v939 = vadd.f32 0.0, %v938
  %v940 = vpop.f32.mrf.mxu0
  %v941 = vpop.f32.mrf.mxu0
  %v942 = vadd.f32 0.0, %v941
  %v943 = vpop.f32.mrf.mxu0
  %944 = vmatprep.mubr.bf16.mxu0 0
  %945 = vmatmul.mubr.bf16.gmra.mxu0 %v562
  %v946 = vpop.f32.mrf.mxu0
  %v947 = vadd.f32 0.0, %v946
  %v948 = vpop.f32.mrf.mxu0
  %v949 = vpop.f32.mrf.mxu0
  %v950 = vadd.f32 0.0, %v949
  %v951 = vpop.f32.mrf.mxu0
  %952 = vmatprep.mubr.bf16.mxu0 0
  %953 = vmatmul.mubr.bf16.gmra.mxu0 %v565
  %v954 = vpop.f32.mrf.mxu0
  %v955 = vadd.f32 0.0, %v954
  %v956 = vpop.f32.mrf.mxu0
  %v957 = vpop.f32.mrf.mxu0
  %v958 = vadd.f32 0.0, %v957
  %v959 = vpop.f32.mrf.mxu0
  %960 = vmatprep.mubr.bf16.mxu0 0
  %961 = vmatmul.mubr.bf16.gmra.mxu0 %v568
  %v962 = vpop.f32.mrf.mxu0
  %v963 = vadd.f32 0.0, %v962
  %v964 = vpop.f32.mrf.mxu0
  %v965 = vpop.f32.mrf.mxu0
  %v966 = vadd.f32 0.0, %v965
  %v967 = vpop.f32.mrf.mxu0
  %968 = vmatprep.mubr.bf16.mxu0 0
  %969 = vmatmul.mubr.bf16.gmra.mxu0 %v571
  %v970 = vpop.f32.mrf.mxu0
  %v971 = vadd.f32 0.0, %v970
  %v972 = vpop.f32.mrf.mxu0
  %v973 = vpop.f32.mrf.mxu0
  %v974 = vadd.f32 0.0, %v973
  %v975 = vpop.f32.mrf.mxu0
  %976 = vmatprep.mubr.bf16.mxu0 0
  %977 = vmatmul.mubr.bf16.gmra.mxu0 %v574
  %v978 = vpop.f32.mrf.mxu0
  %v979 = vadd.f32 0.0, %v978
  %v980 = vpop.f32.mrf.mxu0
  %v981 = vpop.f32.mrf.mxu0
  %v982 = vadd.f32 0.0, %v981
  %v983 = vpop.f32.mrf.mxu0
  %984 = vmatprep.mubr.bf16.mxu0 0
  %985 = vmatmul.mubr.bf16.gmra.mxu0 %v577
  %v986 = vpop.f32.mrf.mxu0
  %v987 = vadd.f32 0.0, %v986
  %v988 = vpop.f32.mrf.mxu0
  %v989 = vpop.f32.mrf.mxu0
  %v990 = vadd.f32 0.0, %v989
  %v991 = vpop.f32.mrf.mxu0
  %992 = vmatprep.mubr.bf16.mxu0 0
  %993 = vmatmul.mubr.bf16.gmra.mxu0 %v580
  %v994 = vpop.f32.mrf.mxu0
  %v995 = vadd.f32 0.0, %v994
  %v996 = vpop.f32.mrf.mxu0
  %v997 = vpop.f32.mrf.mxu0
  %v998 = vadd.f32 0.0, %v997
  %v999 = vpop.f32.mrf.mxu0
  %1000 = vmatprep.mubr.bf16.mxu0 0
  %1001 = vmatmul.mubr.bf16.gmra.mxu0 %v583
  %v1002 = vpop.f32.mrf.mxu0
  %v1003 = vadd.f32 0.0, %v1002
  %v1004 = vpop.f32.mrf.mxu0
  %v1005 = vpop.f32.mrf.mxu0
  %v1006 = vadd.f32 0.0, %v1005
  %v1007 = vpop.f32.mrf.mxu0
  %1008 = vmatprep.mubr.bf16.mxu0 0
  %1009 = vmatmul.mubr.bf16.gmra.mxu0 %v586
  %v1010 = vpop.f32.mrf.mxu0
  %v1011 = vadd.f32 0.0, %v1010
  %v1012 = vpop.f32.mrf.mxu0
  %v1013 = vpop.f32.mrf.mxu0
  %v1014 = vadd.f32 0.0, %v1013
  %v1015 = vpop.f32.mrf.mxu0
  %1016 = vmatprep.mubr.bf16.mxu0 0
  %1017 = vmatmul.mubr.bf16.gmra.mxu0 %v589
  %v1018 = vpop.f32.mrf.mxu0
  %v1019 = vadd.f32 0.0, %v1018
  %v1020 = vpop.f32.mrf.mxu0
  %v1021 = vpop.f32.mrf.mxu0
  %v1022 = vadd.f32 0.0, %v1021
  %v1023 = vpop.f32.mrf.mxu0
  %1024 = vmatprep.mubr.bf16.mxu0 0
  %1025 = vmatmul.mubr.bf16.gmra.mxu0 %v592
  %v1026 = vpop.f32.mrf.mxu0
  %v1027 = vadd.f32 0.0, %v1026
  %v1028 = vpop.f32.mrf.mxu0
  %v1029 = vpop.f32.mrf.mxu0
  %v1030 = vadd.f32 0.0, %v1029
  %v1031 = vpop.f32.mrf.mxu0
  %1032 = vmatprep.mubr.bf16.mxu0 0
  %1033 = vmatmul.mubr.bf16.gmra.mxu0 %v595
  %v1034 = vpop.f32.mrf.mxu0
  %v1035 = vadd.f32 0.0, %v1034
  %v1036 = vpop.f32.mrf.mxu0
  %v1037 = vpop.f32.mrf.mxu0
  %v1038 = vadd.f32 0.0, %v1037
  %v1039 = vpop.f32.mrf.mxu0
  %1040 = vmatprep.mubr.bf16.mxu0 0
  %1041 = vmatmul.mubr.bf16.gmra.mxu0 %v598
  %v1042 = vpop.f32.mrf.mxu0
  %v1043 = vadd.f32 0.0, %v1042
  %v1044 = vpop.f32.mrf.mxu0
  %v1045 = vpop.f32.mrf.mxu0
  %v1046 = vadd.f32 0.0, %v1045
  %v1047 = vpop.f32.mrf.mxu0
  %1048 = vmatprep.mubr.bf16.mxu0 0
  %1049 = vmatmul.mubr.bf16.gmra.mxu0 %v601
  %v1050 = vpop.f32.mrf.mxu0
  %v1051 = vadd.f32 0.0, %v1050
  %v1052 = vpop.f32.mrf.mxu0
  %v1053 = vpop.f32.mrf.mxu0
  %v1054 = vadd.f32 0.0, %v1053
  %v1055 = vpop.f32.mrf.mxu0
  %1056 = vmatprep.mubr.bf16.mxu0 0
  %1057 = vmatmul.mubr.bf16.gmra.mxu0 %v604
  %v1058 = vpop.f32.mrf.mxu0
  %v1059 = vadd.f32 0.0, %v1058
  %v1060 = vpop.f32.mrf.mxu0
  %v1061 = vpop.f32.mrf.mxu0
  %v1062 = vadd.f32 0.0, %v1061
  %v1063 = vpop.f32.mrf.mxu0
  %1064 = vmatprep.mubr.bf16.mxu0 0
  %1065 = vmatmul.mubr.bf16.gmra.mxu0 %v607
  %v1066 = vpop.f32.mrf.mxu0
  %v1067 = vadd.f32 0.0, %v1066
  %v1068 = vpop.f32.mrf.mxu0
  %v1069 = vpop.f32.mrf.mxu0
  %v1070 = vadd.f32 0.0, %v1069
  %v1071 = vpop.f32.mrf.mxu0
  %1072 = vmatprep.mubr.bf16.mxu0 0
  %1073 = vmatmul.mubr.bf16.gmra.mxu0 %v610
  %v1074 = vpop.f32.mrf.mxu0
  %v1075 = vadd.f32 0.0, %v1074
  %v1076 = vpop.f32.mrf.mxu0
  %v1077 = vpop.f32.mrf.mxu0
  %v1078 = vadd.f32 0.0, %v1077
  %v1079 = vpop.f32.mrf.mxu0
  %1080 = vmatprep.mubr.bf16.mxu0 0
  %1081 = vmatmul.mubr.bf16.gmra.mxu0 %v613
  %v1082 = vpop.f32.mrf.mxu0
  %v1083 = vadd.f32 0.0, %v1082
  %v1084 = vpop.f32.mrf.mxu0
  %v1085 = vpop.f32.mrf.mxu0
  %v1086 = vadd.f32 0.0, %v1085
  %v1087 = vpop.f32.mrf.mxu0
  %1088 = vmatprep.mubr.bf16.mxu0 0
  %1089 = vmatmul.mubr.bf16.gmra.mxu0 %v616
  %v1090 = vpop.f32.mrf.mxu0
  %v1091 = vadd.f32 0.0, %v1090
  %v1092 = vpop.f32.mrf.mxu0
  %v1093 = vpop.f32.mrf.mxu0
  %v1094 = vadd.f32 0.0, %v1093
  %v1095 = vpop.f32.mrf.mxu0
  %1096 = vmatprep.mubr.bf16.mxu0 0
  %1097 = vmatmul.mubr.bf16.gmra.mxu0 %v619
  %v1098 = vpop.f32.mrf.mxu0
  %v1099 = vadd.f32 0.0, %v1098
  %v1100 = vpop.f32.mrf.mxu0
  %v1101 = vpop.f32.mrf.mxu0
  %v1102 = vadd.f32 0.0, %v1101
  %v1103 = vpop.f32.mrf.mxu0
  %1104 = vmatprep.mubr.bf16.mxu0 0
  %1105 = vmatmul.mubr.bf16.gmra.mxu0 %v622
  %v1106 = vpop.f32.mrf.mxu0
  %v1107 = vadd.f32 0.0, %v1106
  %v1108 = vpop.f32.mrf.mxu0
  %v1109 = vpop.f32.mrf.mxu0
  %v1110 = vadd.f32 0.0, %v1109
  %v1111 = vpop.f32.mrf.mxu0
  %1112 = vmatprep.mubr.bf16.mxu0 0
  %1113 = vmatmul.mubr.bf16.gmra.mxu0 %v625
  %v1114 = vpop.f32.mrf.mxu0
  %v1115 = vadd.f32 0.0, %v1114
  %v1116 = vpop.f32.mrf.mxu0
  %v1117 = vpop.f32.mrf.mxu0
  %v1118 = vadd.f32 0.0, %v1117
  %v1119 = vpop.f32.mrf.mxu0
  %1120 = vmatprep.mubr.bf16.mxu0 0
  %1121 = vmatmul.mubr.bf16.gmra.mxu0 %v628
  %v1122 = vpop.f32.mrf.mxu0
  %v1123 = vadd.f32 0.0, %v1122
  %v1124 = vpop.f32.mrf.mxu0
  %v1125 = vpop.f32.mrf.mxu0
  %v1126 = vadd.f32 0.0, %v1125
  %v1127 = vpop.f32.mrf.mxu0
  %1128 = vmatprep.mubr.bf16.mxu0 0
  %1129 = vmatmul.mubr.bf16.gmra.mxu0 %v631
  %v1130 = vpop.f32.mrf.mxu0
  %v1131 = vadd.f32 0.0, %v1130
  %v1132 = vpop.f32.mrf.mxu0
  %v1133 = vpop.f32.mrf.mxu0
  %v1134 = vadd.f32 0.0, %v1133
  %v1135 = vpop.f32.mrf.mxu0
  %1136 = vmatprep.mubr.bf16.mxu0 0
  %1137 = vmatmul.mubr.bf16.gmra.mxu0 %v634
  %v1138 = vpop.f32.mrf.mxu0
  %v1139 = vadd.f32 0.0, %v1138
  %v1140 = vpop.f32.mrf.mxu0
  %v1141 = vpop.f32.mrf.mxu0
  %v1142 = vadd.f32 0.0, %v1141
  %v1143 = vpop.f32.mrf.mxu0
  %1144 = vmatprep.mubr.bf16.mxu0 0
  %1145 = vmatmul.mubr.bf16.gmra.mxu0 %v637
  %v1146 = vpop.f32.mrf.mxu0
  %v1147 = vadd.f32 0.0, %v1146
  %v1148 = vpop.f32.mrf.mxu0
  %v1149 = vpop.f32.mrf.mxu0
  %v1150 = vadd.f32 0.0, %v1149
  %v1151 = vpop.f32.mrf.mxu0
  %1152 = vmatprep.mubr.bf16.mxu0 0
  %1153 = vmatmul.mubr.bf16.gmra.mxu0 %v640
  %v1154 = vpop.f32.mrf.mxu0
  %v1155 = vadd.f32 0.0, %v1154
  %v1156 = vpop.f32.mrf.mxu0
  %v1157 = vpop.f32.mrf.mxu0
  %v1158 = vadd.f32 0.0, %v1157
  %v1159 = vpop.f32.mrf.mxu0
  %1160 = vmatprep.mubr.bf16.mxu0 0
  %1161 = vmatmul.mubr.bf16.gmra.mxu0 %v643
  %v1162 = vpop.f32.mrf.mxu0
  %v1163 = vadd.f32 0.0, %v1162
  %v1164 = vpop.f32.mrf.mxu0
  %v1165 = vpop.f32.mrf.mxu0
  %v1166 = vadd.f32 0.0, %v1165
  %v1167 = vpop.f32.mrf.mxu0
  %1168 = vmatprep.mubr.bf16.mxu0 0
  %1169 = vmatmul.mubr.bf16.gmra.mxu0 %v646
  %v1170 = vpop.f32.mrf.mxu0
  %v1171 = vadd.f32 0.0, %v1170
  %v1172 = vpop.f32.mrf.mxu0
  %v1173 = vpop.f32.mrf.mxu0
  %v1174 = vadd.f32 0.0, %v1173
  %v1175 = vpop.f32.mrf.mxu0
  %1176 = vmatprep.mubr.bf16.mxu0 0
  %1177 = vmatmul.mubr.bf16.gmra.mxu0 %v649
  %v1178 = vpop.f32.mrf.mxu0
  %v1179 = vadd.f32 0.0, %v1178
  %v1180 = vpop.f32.mrf.mxu0
  %v1181 = vpop.f32.mrf.mxu0
  %v1182 = vadd.f32 0.0, %v1181
  %v1183 = vpop.f32.mrf.mxu0
  %1184 = vmatprep.mubr.bf16.mxu0 0
  %1185 = vmatmul.mubr.bf16.gmra.mxu0 %v652
  %v1186 = vpop.f32.mrf.mxu0
  %v1187 = vadd.f32 0.0, %v1186
  %v1188 = vpop.f32.mrf.mxu0
  %v1189 = vpop.f32.mrf.mxu0
  %v1190 = vadd.f32 0.0, %v1189
  %v1191 = vpop.f32.mrf.mxu0
  %1192 = vmatprep.mubr.bf16.mxu0 0
  %1193 = vmatmul.mubr.bf16.gmra.mxu0 %v655
  %v1194 = vpop.f32.mrf.mxu0
  %v1195 = vadd.f32 0.0, %v1194
  %v1196 = vpop.f32.mrf.mxu0
  %v1197 = vpop.f32.mrf.mxu0
  %v1198 = vadd.f32 0.0, %v1197
  %v1199 = vpop.f32.mrf.mxu0
  %1200 = vmatprep.mubr.bf16.mxu0 0
  %1201 = vmatmul.mubr.bf16.gmra.mxu0 %v658
  %v1202 = vpop.f32.mrf.mxu0
  %v1203 = vadd.f32 0.0, %v1202
  %v1204 = vpop.f32.mrf.mxu0
  %v1205 = vpop.f32.mrf.mxu0
  %v1206 = vadd.f32 0.0, %v1205
  %v1207 = vpop.f32.mrf.mxu0
  %1208 = vdwg.mxu0
  %v1209 = vld [vmem:[%s2] sm:$0x1]
  %v1211 = vlaneseq
  %v1212 = vshrl.u32 %v1211, 7
  %v1213 = vsub.s32 0, %v1212
  %v1214 = vrot.slane %v1209, %v1213
  %v1216 = vmul.f32 %v699, %v1214
  %v1217 = vmul.f32 %v702, %v1214
  %v1218 = vmul.f32 %v707, %v1214
  %v1219 = vmul.f32 %v710, %v1214
  %v1220 = vmul.f32 %v715, %v1214
  %v1221 = vmul.f32 %v718, %v1214
  %v1222 = vmul.f32 %v723, %v1214
  %v1223 = vmul.f32 %v726, %v1214
  %v1224 = vmul.f32 %v731, %v1214
  %v1225 = vmul.f32 %v734, %v1214
  %v1226 = vmul.f32 %v739, %v1214
  %v1227 = vmul.f32 %v742, %v1214
  %v1228 = vmul.f32 %v747, %v1214
  %v1229 = vmul.f32 %v750, %v1214
  %v1230 = vmul.f32 %v755, %v1214
  %v1231 = vmul.f32 %v758, %v1214
  %v1232 = vmul.f32 %v763, %v1214
  %v1233 = vmul.f32 %v766, %v1214
  %v1234 = vmul.f32 %v771, %v1214
  %v1235 = vmul.f32 %v774, %v1214
  %v1236 = vmul.f32 %v779, %v1214
  %v1237 = vmul.f32 %v782, %v1214
  %v1238 = vmul.f32 %v787, %v1214
  %v1239 = vmul.f32 %v790, %v1214
  %v1240 = vmul.f32 %v795, %v1214
  %v1241 = vmul.f32 %v798, %v1214
  %v1242 = vmul.f32 %v803, %v1214
  %v1243 = vmul.f32 %v806, %v1214
  %v1244 = vmul.f32 %v811, %v1214
  %v1245 = vmul.f32 %v814, %v1214
  %v1246 = vmul.f32 %v819, %v1214
  %v1247 = vmul.f32 %v822, %v1214
  %v1248 = vmul.f32 %v827, %v1214
  %v1249 = vmul.f32 %v830, %v1214
  %v1250 = vmul.f32 %v835, %v1214
  %v1251 = vmul.f32 %v838, %v1214
  %v1252 = vmul.f32 %v843, %v1214
  %v1253 = vmul.f32 %v846, %v1214
  %v1254 = vmul.f32 %v851, %v1214
  %v1255 = vmul.f32 %v854, %v1214
  %v1256 = vmul.f32 %v859, %v1214
  %v1257 = vmul.f32 %v862, %v1214
  %v1258 = vmul.f32 %v867, %v1214
  %v1259 = vmul.f32 %v870, %v1214
  %v1260 = vmul.f32 %v875, %v1214
  %v1261 = vmul.f32 %v878, %v1214
  %v1262 = vmul.f32 %v883, %v1214
  %v1263 = vmul.f32 %v886, %v1214
  %v1264 = vmul.f32 %v891, %v1214
  %v1265 = vmul.f32 %v894, %v1214
  %v1266 = vmul.f32 %v899, %v1214
  %v1267 = vmul.f32 %v902, %v1214
  %v1268 = vmul.f32 %v907, %v1214
  %v1269 = vmul.f32 %v910, %v1214
  %v1270 = vmul.f32 %v915, %v1214
  %v1271 = vmul.f32 %v918, %v1214
  %v1272 = vmul.f32 %v923, %v1214
  %v1273 = vmul.f32 %v926, %v1214
  %v1274 = vmul.f32 %v931, %v1214
  %v1275 = vmul.f32 %v934, %v1214
  %v1276 = vmul.f32 %v939, %v1214
  %v1277 = vmul.f32 %v942, %v1214
  %v1278 = vmul.f32 %v947, %v1214
  %v1279 = vmul.f32 %v950, %v1214
  %v1280 = vmul.f32 %v955, %v1214
  %v1281 = vmul.f32 %v958, %v1214
  %v1282 = vmul.f32 %v963, %v1214
  %v1283 = vmul.f32 %v966, %v1214
  %v1284 = vmul.f32 %v971, %v1214
  %v1285 = vmul.f32 %v974, %v1214
  %v1286 = vmul.f32 %v979, %v1214
  %v1287 = vmul.f32 %v982, %v1214
  %v1288 = vmul.f32 %v987, %v1214
  %v1289 = vmul.f32 %v990, %v1214
  %v1290 = vmul.f32 %v995, %v1214
  %v1291 = vmul.f32 %v998, %v1214
  %v1292 = vmul.f32 %v1003, %v1214
  %v1293 = vmul.f32 %v1006, %v1214
  %v1294 = vmul.f32 %v1011, %v1214
  %v1295 = vmul.f32 %v1014, %v1214
  %v1296 = vmul.f32 %v1019, %v1214
  %v1297 = vmul.f32 %v1022, %v1214
  %v1298 = vmul.f32 %v1027, %v1214
  %v1299 = vmul.f32 %v1030, %v1214
  %v1300 = vmul.f32 %v1035, %v1214
  %v1301 = vmul.f32 %v1038, %v1214
  %v1302 = vmul.f32 %v1043, %v1214
  %v1303 = vmul.f32 %v1046, %v1214
  %v1304 = vmul.f32 %v1051, %v1214
  %v1305 = vmul.f32 %v1054, %v1214
  %v1306 = vmul.f32 %v1059, %v1214
  %v1307 = vmul.f32 %v1062, %v1214
  %v1308 = vmul.f32 %v1067, %v1214
  %v1309 = vmul.f32 %v1070, %v1214
  %v1310 = vmul.f32 %v1075, %v1214
  %v1311 = vmul.f32 %v1078, %v1214
  %v1312 = vmul.f32 %v1083, %v1214
  %v1313 = vmul.f32 %v1086, %v1214
  %v1314 = vmul.f32 %v1091, %v1214
  %v1315 = vmul.f32 %v1094, %v1214
  %v1316 = vmul.f32 %v1099, %v1214
  %v1317 = vmul.f32 %v1102, %v1214
  %v1318 = vmul.f32 %v1107, %v1214
  %v1319 = vmul.f32 %v1110, %v1214
  %v1320 = vmul.f32 %v1115, %v1214
  %v1321 = vmul.f32 %v1118, %v1214
  %v1322 = vmul.f32 %v1123, %v1214
  %v1323 = vmul.f32 %v1126, %v1214
  %v1324 = vmul.f32 %v1131, %v1214
  %v1325 = vmul.f32 %v1134, %v1214
  %v1326 = vmul.f32 %v1139, %v1214
  %v1327 = vmul.f32 %v1142, %v1214
  %v1328 = vmul.f32 %v1147, %v1214
  %v1329 = vmul.f32 %v1150, %v1214
  %v1330 = vmul.f32 %v1155, %v1214
  %v1331 = vmul.f32 %v1158, %v1214
  %v1332 = vmul.f32 %v1163, %v1214
  %v1333 = vmul.f32 %v1166, %v1214
  %v1334 = vmul.f32 %v1171, %v1214
  %v1335 = vmul.f32 %v1174, %v1214
  %v1336 = vmul.f32 %v1179, %v1214
  %v1337 = vmul.f32 %v1182, %v1214
  %v1338 = vmul.f32 %v1187, %v1214
  %v1339 = vmul.f32 %v1190, %v1214
  %v1340 = vmul.f32 %v1195, %v1214
  %v1341 = vmul.f32 %v1198, %v1214
  %v1342 = vmul.f32 %v1203, %v1214
  %v1343 = vmul.f32 %v1206, %v1214
  %v1344 = vld [vmem:[%s3] sm:$0x1]
  %v1346 = vlaneseq
  %v1347 = vshrl.u32 %v1346, 7
  %v1348 = vsub.s32 0, %v1347
  %v1349 = vrot.slane %v1344, %v1348
  %v1351 = vadd.f32 %v1216, %v1349
  %v1352 = vadd.f32 %v1217, %v1349
  %v1353 = vadd.f32 %v1218, %v1349
  %v1354 = vadd.f32 %v1219, %v1349
  %v1355 = vadd.f32 %v1220, %v1349
  %v1356 = vadd.f32 %v1221, %v1349
  %v1357 = vadd.f32 %v1222, %v1349
  %v1358 = vadd.f32 %v1223, %v1349
  %v1359 = vadd.f32 %v1224, %v1349
  %v1360 = vadd.f32 %v1225, %v1349
  %v1361 = vadd.f32 %v1226, %v1349
  %v1362 = vadd.f32 %v1227, %v1349
  %v1363 = vadd.f32 %v1228, %v1349
  %v1364 = vadd.f32 %v1229, %v1349
  %v1365 = vadd.f32 %v1230, %v1349
  %v1366 = vadd.f32 %v1231, %v1349
  %v1367 = vadd.f32 %v1232, %v1349
  %v1368 = vadd.f32 %v1233, %v1349
  %v1369 = vadd.f32 %v1234, %v1349
  %v1370 = vadd.f32 %v1235, %v1349
  %v1371 = vadd.f32 %v1236, %v1349
  %v1372 = vadd.f32 %v1237, %v1349
  %v1373 = vadd.f32 %v1238, %v1349
  %v1374 = vadd.f32 %v1239, %v1349
  %v1375 = vadd.f32 %v1240, %v1349
  %v1376 = vadd.f32 %v1241, %v1349
  %v1377 = vadd.f32 %v1242, %v1349
  %v1378 = vadd.f32 %v1243, %v1349
  %v1379 = vadd.f32 %v1244, %v1349
  %v1380 = vadd.f32 %v1245, %v1349
  %v1381 = vadd.f32 %v1246, %v1349
  %v1382 = vadd.f32 %v1247, %v1349
  %v1383 = vadd.f32 %v1248, %v1349
  %v1384 = vadd.f32 %v1249, %v1349
  %v1385 = vadd.f32 %v1250, %v1349
  %v1386 = vadd.f32 %v1251, %v1349
  %v1387 = vadd.f32 %v1252, %v1349
  %v1388 = vadd.f32 %v1253, %v1349
  %v1389 = vadd.f32 %v1254, %v1349
  %v1390 = vadd.f32 %v1255, %v1349
  %v1391 = vadd.f32 %v1256, %v1349
  %v1392 = vadd.f32 %v1257, %v1349
  %v1393 = vadd.f32 %v1258, %v1349
  %v1394 = vadd.f32 %v1259, %v1349
  %v1395 = vadd.f32 %v1260, %v1349
  %v1396 = vadd.f32 %v1261, %v1349
  %v1397 = vadd.f32 %v1262, %v1349
  %v1398 = vadd.f32 %v1263, %v1349
  %v1399 = vadd.f32 %v1264, %v1349
  %v1400 = vadd.f32 %v1265, %v1349
  %v1401 = vadd.f32 %v1266, %v1349
  %v1402 = vadd.f32 %v1267, %v1349
  %v1403 = vadd.f32 %v1268, %v1349
  %v1404 = vadd.f32 %v1269, %v1349
  %v1405 = vadd.f32 %v1270, %v1349
  %v1406 = vadd.f32 %v1271, %v1349
  %v1407 = vadd.f32 %v1272, %v1349
  %v1408 = vadd.f32 %v1273, %v1349
  %v1409 = vadd.f32 %v1274, %v1349
  %v1410 = vadd.f32 %v1275, %v1349
  %v1411 = vadd.f32 %v1276, %v1349
  %v1412 = vadd.f32 %v1277, %v1349
  %v1413 = vadd.f32 %v1278, %v1349
  %v1414 = vadd.f32 %v1279, %v1349
  %v1415 = vadd.f32 %v1280, %v1349
  %v1416 = vadd.f32 %v1281, %v1349
  %v1417 = vadd.f32 %v1282, %v1349
  %v1418 = vadd.f32 %v1283, %v1349
  %v1419 = vadd.f32 %v1284, %v1349
  %v1420 = vadd.f32 %v1285, %v1349
  %v1421 = vadd.f32 %v1286, %v1349
  %v1422 = vadd.f32 %v1287, %v1349
  %v1423 = vadd.f32 %v1288, %v1349
  %v1424 = vadd.f32 %v1289, %v1349
  %v1425 = vadd.f32 %v1290, %v1349
  %v1426 = vadd.f32 %v1291, %v1349
  %v1427 = vadd.f32 %v1292, %v1349
  %v1428 = vadd.f32 %v1293, %v1349
  %v1429 = vadd.f32 %v1294, %v1349
  %v1430 = vadd.f32 %v1295, %v1349
  %v1431 = vadd.f32 %v1296, %v1349
  %v1432 = vadd.f32 %v1297, %v1349
  %v1433 = vadd.f32 %v1298, %v1349
  %v1434 = vadd.f32 %v1299, %v1349
  %v1435 = vadd.f32 %v1300, %v1349
  %v1436 = vadd.f32 %v1301, %v1349
  %v1437 = vadd.f32 %v1302, %v1349
  %v1438 = vadd.f32 %v1303, %v1349
  %v1439 = vadd.f32 %v1304, %v1349
  %v1440 = vadd.f32 %v1305, %v1349
  %v1441 = vadd.f32 %v1306, %v1349
  %v1442 = vadd.f32 %v1307, %v1349
  %v1443 = vadd.f32 %v1308, %v1349
  %v1444 = vadd.f32 %v1309, %v1349
  %v1445 = vadd.f32 %v1310, %v1349
  %v1446 = vadd.f32 %v1311, %v1349
  %v1447 = vadd.f32 %v1312, %v1349
  %v1448 = vadd.f32 %v1313, %v1349
  %v1449 = vadd.f32 %v1314, %v1349
  %v1450 = vadd.f32 %v1315, %v1349
  %v1451 = vadd.f32 %v1316, %v1349
  %v1452 = vadd.f32 %v1317, %v1349
  %v1453 = vadd.f32 %v1318, %v1349
  %v1454 = vadd.f32 %v1319, %v1349
  %v1455 = vadd.f32 %v1320, %v1349
  %v1456 = vadd.f32 %v1321, %v1349
  %v1457 = vadd.f32 %v1322, %v1349
  %v1458 = vadd.f32 %v1323, %v1349
  %v1459 = vadd.f32 %v1324, %v1349
  %v1460 = vadd.f32 %v1325, %v1349
  %v1461 = vadd.f32 %v1326, %v1349
  %v1462 = vadd.f32 %v1327, %v1349
  %v1463 = vadd.f32 %v1328, %v1349
  %v1464 = vadd.f32 %v1329, %v1349
  %v1465 = vadd.f32 %v1330, %v1349
  %v1466 = vadd.f32 %v1331, %v1349
  %v1467 = vadd.f32 %v1332, %v1349
  %v1468 = vadd.f32 %v1333, %v1349
  %v1469 = vadd.f32 %v1334, %v1349
  %v1470 = vadd.f32 %v1335, %v1349
  %v1471 = vadd.f32 %v1336, %v1349
  %v1472 = vadd.f32 %v1337, %v1349
  %v1473 = vadd.f32 %v1338, %v1349
  %v1474 = vadd.f32 %v1339, %v1349
  %v1475 = vadd.f32 %v1340, %v1349
  %v1476 = vadd.f32 %v1341, %v1349
  %v1477 = vadd.f32 %v1342, %v1349
  %v1478 = vadd.f32 %v1343, %v1349
  %v1479 = vpack.c.bf16 %v1352, %v1351
  %v1480 = vpack.c.bf16 %v1354, %v1353
  %v1481 = vpack.c.bf16 %v1356, %v1355
  %v1482 = vpack.c.bf16 %v1358, %v1357
  %v1483 = vpack.c.bf16 %v1360, %v1359
  %v1484 = vpack.c.bf16 %v1362, %v1361
  %v1485 = vpack.c.bf16 %v1364, %v1363
  %v1486 = vpack.c.bf16 %v1366, %v1365
  %v1487 = vpack.c.bf16 %v1368, %v1367
  %v1488 = vpack.c.bf16 %v1370, %v1369
  %v1489 = vpack.c.bf16 %v1372, %v1371
  %v1490 = vpack.c.bf16 %v1374, %v1373
  %v1491 = vpack.c.bf16 %v1376, %v1375
  %v1492 = vpack.c.bf16 %v1378, %v1377
  %v1493 = vpack.c.bf16 %v1380, %v1379
  %v1494 = vpack.c.bf16 %v1382, %v1381
  %v1495 = vpack.c.bf16 %v1384, %v1383
  %v1496 = vpack.c.bf16 %v1386, %v1385
  %v1497 = vpack.c.bf16 %v1388, %v1387
  %v1498 = vpack.c.bf16 %v1390, %v1389
  %v1499 = vpack.c.bf16 %v1392, %v1391
  %v1500 = vpack.c.bf16 %v1394, %v1393
  %v1501 = vpack.c.bf16 %v1396, %v1395
  %v1502 = vpack.c.bf16 %v1398, %v1397
  %v1503 = vpack.c.bf16 %v1400, %v1399
  %v1504 = vpack.c.bf16 %v1402, %v1401
  %v1505 = vpack.c.bf16 %v1404, %v1403
  %v1506 = vpack.c.bf16 %v1406, %v1405
  %v1507 = vpack.c.bf16 %v1408, %v1407
  %v1508 = vpack.c.bf16 %v1410, %v1409
  %v1509 = vpack.c.bf16 %v1412, %v1411
  %v1510 = vpack.c.bf16 %v1414, %v1413
  %v1511 = vpack.c.bf16 %v1416, %v1415
  %v1512 = vpack.c.bf16 %v1418, %v1417
  %v1513 = vpack.c.bf16 %v1420, %v1419
  %v1514 = vpack.c.bf16 %v1422, %v1421
  %v1515 = vpack.c.bf16 %v1424, %v1423
  %v1516 = vpack.c.bf16 %v1426, %v1425
  %v1517 = vpack.c.bf16 %v1428, %v1427
  %v1518 = vpack.c.bf16 %v1430, %v1429
  %v1519 = vpack.c.bf16 %v1432, %v1431
  %v1520 = vpack.c.bf16 %v1434, %v1433
  %v1521 = vpack.c.bf16 %v1436, %v1435
  %v1522 = vpack.c.bf16 %v1438, %v1437
  %v1523 = vpack.c.bf16 %v1440, %v1439
  %v1524 = vpack.c.bf16 %v1442, %v1441
  %v1525 = vpack.c.bf16 %v1444, %v1443
  %v1526 = vpack.c.bf16 %v1446, %v1445
  %v1527 = vpack.c.bf16 %v1448, %v1447
  %v1528 = vpack.c.bf16 %v1450, %v1449
  %v1529 = vpack.c.bf16 %v1452, %v1451
  %v1530 = vpack.c.bf16 %v1454, %v1453
  %v1531 = vpack.c.bf16 %v1456, %v1455
  %v1532 = vpack.c.bf16 %v1458, %v1457
  %v1533 = vpack.c.bf16 %v1460, %v1459
  %v1534 = vpack.c.bf16 %v1462, %v1461
  %v1535 = vpack.c.bf16 %v1464, %v1463
  %v1536 = vpack.c.bf16 %v1466, %v1465
  %v1537 = vpack.c.bf16 %v1468, %v1467
  %v1538 = vpack.c.bf16 %v1470, %v1469
  %v1539 = vpack.c.bf16 %v1472, %v1471
  %v1540 = vpack.c.bf16 %v1474, %v1473
  %v1541 = vpack.c.bf16 %v1476, %v1475
  %v1542 = vpack.c.bf16 %v1478, %v1477
  %v1607 = vunpack.c.l.b16 %v1479
  %v1608 = vunpack.c.h.b16 %v1479
  %v1609 = vunpack.c.l.b16 %v1480
  %v1610 = vunpack.c.h.b16 %v1480
  %v1611 = vunpack.c.l.b16 %v1481
  %v1612 = vunpack.c.h.b16 %v1481
  %v1613 = vunpack.c.l.b16 %v1482
  %v1614 = vunpack.c.h.b16 %v1482
  %v1615 = vunpack.c.l.b16 %v1483
  %v1616 = vunpack.c.h.b16 %v1483
  %v1617 = vunpack.c.l.b16 %v1484
  %v1618 = vunpack.c.h.b16 %v1484
  %v1619 = vunpack.c.l.b16 %v1485
  %v1620 = vunpack.c.h.b16 %v1485
  %v1621 = vunpack.c.l.b16 %v1486
  %v1622 = vunpack.c.h.b16 %v1486
  %v1623 = vunpack.c.l.b16 %v1487
  %v1624 = vunpack.c.h.b16 %v1487
  %v1625 = vunpack.c.l.b16 %v1488
  %v1626 = vunpack.c.h.b16 %v1488
  %v1627 = vunpack.c.l.b16 %v1489
  %v1628 = vunpack.c.h.b16 %v1489
  %v1629 = vunpack.c.l.b16 %v1490
  %v1630 = vunpack.c.h.b16 %v1490
  %v1631 = vunpack.c.l.b16 %v1491
  %v1632 = vunpack.c.h.b16 %v1491
  %v1633 = vunpack.c.l.b16 %v1492
  %v1634 = vunpack.c.h.b16 %v1492
  %v1635 = vunpack.c.l.b16 %v1493
  %v1636 = vunpack.c.h.b16 %v1493
  %v1637 = vunpack.c.l.b16 %v1494
  %v1638 = vunpack.c.h.b16 %v1494
  %v1639 = vunpack.c.l.b16 %v1495
  %v1640 = vunpack.c.h.b16 %v1495
  %v1641 = vunpack.c.l.b16 %v1496
  %v1642 = vunpack.c.h.b16 %v1496
  %v1643 = vunpack.c.l.b16 %v1497
  %v1644 = vunpack.c.h.b16 %v1497
  %v1645 = vunpack.c.l.b16 %v1498
  %v1646 = vunpack.c.h.b16 %v1498
  %v1647 = vunpack.c.l.b16 %v1499
  %v1648 = vunpack.c.h.b16 %v1499
  %v1649 = vunpack.c.l.b16 %v1500
  %v1650 = vunpack.c.h.b16 %v1500
  %v1651 = vunpack.c.l.b16 %v1501
  %v1652 = vunpack.c.h.b16 %v1501
  %v1653 = vunpack.c.l.b16 %v1502
  %v1654 = vunpack.c.h.b16 %v1502
  %v1655 = vunpack.c.l.b16 %v1503
  %v1656 = vunpack.c.h.b16 %v1503
  %v1657 = vunpack.c.l.b16 %v1504
  %v1658 = vunpack.c.h.b16 %v1504
  %v1659 = vunpack.c.l.b16 %v1505
  %v1660 = vunpack.c.h.b16 %v1505
  %v1661 = vunpack.c.l.b16 %v1506
  %v1662 = vunpack.c.h.b16 %v1506
  %v1663 = vunpack.c.l.b16 %v1507
  %v1664 = vunpack.c.h.b16 %v1507
  %v1665 = vunpack.c.l.b16 %v1508
  %v1666 = vunpack.c.h.b16 %v1508
  %v1667 = vunpack.c.l.b16 %v1509
  %v1668 = vunpack.c.h.b16 %v1509
  %v1669 = vunpack.c.l.b16 %v1510
  %v1670 = vunpack.c.h.b16 %v1510
  %v1671 = vunpack.c.l.b16 %v1511
  %v1672 = vunpack.c.h.b16 %v1511
  %v1673 = vunpack.c.l.b16 %v1512
  %v1674 = vunpack.c.h.b16 %v1512
  %v1675 = vunpack.c.l.b16 %v1513
  %v1676 = vunpack.c.h.b16 %v1513
  %v1677 = vunpack.c.l.b16 %v1514
  %v1678 = vunpack.c.h.b16 %v1514
  %v1679 = vunpack.c.l.b16 %v1515
  %v1680 = vunpack.c.h.b16 %v1515
  %v1681 = vunpack.c.l.b16 %v1516
  %v1682 = vunpack.c.h.b16 %v1516
  %v1683 = vunpack.c.l.b16 %v1517
  %v1684 = vunpack.c.h.b16 %v1517
  %v1685 = vunpack.c.l.b16 %v1518
  %v1686 = vunpack.c.h.b16 %v1518
  %v1687 = vunpack.c.l.b16 %v1519
  %v1688 = vunpack.c.h.b16 %v1519
  %v1689 = vunpack.c.l.b16 %v1520
  %v1690 = vunpack.c.h.b16 %v1520
  %v1691 = vunpack.c.l.b16 %v1521
  %v1692 = vunpack.c.h.b16 %v1521
  %v1693 = vunpack.c.l.b16 %v1522
  %v1694 = vunpack.c.h.b16 %v1522
  %v1695 = vunpack.c.l.b16 %v1523
  %v1696 = vunpack.c.h.b16 %v1523
  %v1697 = vunpack.c.l.b16 %v1524
  %v1698 = vunpack.c.h.b16 %v1524
  %v1699 = vunpack.c.l.b16 %v1525
  %v1700 = vunpack.c.h.b16 %v1525
  %v1701 = vunpack.c.l.b16 %v1526
  %v1702 = vunpack.c.h.b16 %v1526
  %v1703 = vunpack.c.l.b16 %v1527
  %v1704 = vunpack.c.h.b16 %v1527
  %v1705 = vunpack.c.l.b16 %v1528
  %v1706 = vunpack.c.h.b16 %v1528
  %v1707 = vunpack.c.l.b16 %v1529
  %v1708 = vunpack.c.h.b16 %v1529
  %v1709 = vunpack.c.l.b16 %v1530
  %v1710 = vunpack.c.h.b16 %v1530
  %v1711 = vunpack.c.l.b16 %v1531
  %v1712 = vunpack.c.h.b16 %v1531
  %v1713 = vunpack.c.l.b16 %v1532
  %v1714 = vunpack.c.h.b16 %v1532
  %v1715 = vunpack.c.l.b16 %v1533
  %v1716 = vunpack.c.h.b16 %v1533
  %v1717 = vunpack.c.l.b16 %v1534
  %v1718 = vunpack.c.h.b16 %v1534
  %v1719 = vunpack.c.l.b16 %v1535
  %v1720 = vunpack.c.h.b16 %v1535
  %v1721 = vunpack.c.l.b16 %v1536
  %v1722 = vunpack.c.h.b16 %v1536
  %v1723 = vunpack.c.l.b16 %v1537
  %v1724 = vunpack.c.h.b16 %v1537
  %v1725 = vunpack.c.l.b16 %v1538
  %v1726 = vunpack.c.h.b16 %v1538
  %v1727 = vunpack.c.l.b16 %v1539
  %v1728 = vunpack.c.h.b16 %v1539
  %v1729 = vunpack.c.l.b16 %v1540
  %v1730 = vunpack.c.h.b16 %v1540
  %v1731 = vunpack.c.l.b16 %v1541
  %v1732 = vunpack.c.h.b16 %v1541
  %v1733 = vunpack.c.l.b16 %v1542
  %v1734 = vunpack.c.h.b16 %v1542
  %v1735 = vpack.c.b16 %v1607, %v1607
  %v1736 = vpack.c.b16 %v1608, %v1608
  %v1737 = vpack.c.b16 %v1609, %v1609
  %v1738 = vpack.c.b16 %v1610, %v1610
  %v1739 = vpack.c.b16 %v1611, %v1611
  %v1740 = vpack.c.b16 %v1612, %v1612
  %v1741 = vpack.c.b16 %v1613, %v1613
  %v1742 = vpack.c.b16 %v1614, %v1614
  %v1743 = vpack.c.b16 %v1615, %v1615
  %v1744 = vpack.c.b16 %v1616, %v1616
  %v1745 = vpack.c.b16 %v1617, %v1617
  %v1746 = vpack.c.b16 %v1618, %v1618
  %v1747 = vpack.c.b16 %v1619, %v1619
  %v1748 = vpack.c.b16 %v1620, %v1620
  %v1749 = vpack.c.b16 %v1621, %v1621
  %v1750 = vpack.c.b16 %v1622, %v1622
  %v1751 = vpack.c.b16 %v1623, %v1623
  %v1752 = vpack.c.b16 %v1624, %v1624
  %v1753 = vpack.c.b16 %v1625, %v1625
  %v1754 = vpack.c.b16 %v1626, %v1626
  %v1755 = vpack.c.b16 %v1627, %v1627
  %v1756 = vpack.c.b16 %v1628, %v1628
  %v1757 = vpack.c.b16 %v1629, %v1629
  %v1758 = vpack.c.b16 %v1630, %v1630
  %v1759 = vpack.c.b16 %v1631, %v1631
  %v1760 = vpack.c.b16 %v1632, %v1632
  %v1761 = vpack.c.b16 %v1633, %v1633
  %v1762 = vpack.c.b16 %v1634, %v1634
  %v1763 = vpack.c.b16 %v1635, %v1635
  %v1764 = vpack.c.b16 %v1636, %v1636
  %v1765 = vpack.c.b16 %v1637, %v1637
  %v1766 = vpack.c.b16 %v1638, %v1638
  %v1767 = vpack.c.b16 %v1639, %v1639
  %v1768 = vpack.c.b16 %v1640, %v1640
  %v1769 = vpack.c.b16 %v1641, %v1641
  %v1770 = vpack.c.b16 %v1642, %v1642
  %v1771 = vpack.c.b16 %v1643, %v1643
  %v1772 = vpack.c.b16 %v1644, %v1644
  %v1773 = vpack.c.b16 %v1645, %v1645
  %v1774 = vpack.c.b16 %v1646, %v1646
  %v1775 = vpack.c.b16 %v1647, %v1647
  %v1776 = vpack.c.b16 %v1648, %v1648
  %v1777 = vpack.c.b16 %v1649, %v1649
  %v1778 = vpack.c.b16 %v1650, %v1650
  %v1779 = vpack.c.b16 %v1651, %v1651
  %v1780 = vpack.c.b16 %v1652, %v1652
  %v1781 = vpack.c.b16 %v1653, %v1653
  %v1782 = vpack.c.b16 %v1654, %v1654
  %v1783 = vpack.c.b16 %v1655, %v1655
  %v1784 = vpack.c.b16 %v1656, %v1656
  %v1785 = vpack.c.b16 %v1657, %v1657
  %v1786 = vpack.c.b16 %v1658, %v1658
  %v1787 = vpack.c.b16 %v1659, %v1659
  %v1788 = vpack.c.b16 %v1660, %v1660
  %v1789 = vpack.c.b16 %v1661, %v1661
  %v1790 = vpack.c.b16 %v1662, %v1662
  %v1791 = vpack.c.b16 %v1663, %v1663
  %v1792 = vpack.c.b16 %v1664, %v1664
  %v1793 = vpack.c.b16 %v1665, %v1665
  %v1794 = vpack.c.b16 %v1666, %v1666
  %v1795 = vpack.c.b16 %v1667, %v1667
  %v1796 = vpack.c.b16 %v1668, %v1668
  %v1797 = vpack.c.b16 %v1669, %v1669
  %v1798 = vpack.c.b16 %v1670, %v1670
  %v1799 = vpack.c.b16 %v1671, %v1671
  %v1800 = vpack.c.b16 %v1672, %v1672
  %v1801 = vpack.c.b16 %v1673, %v1673
  %v1802 = vpack.c.b16 %v1674, %v1674
  %v1803 = vpack.c.b16 %v1675, %v1675
  %v1804 = vpack.c.b16 %v1676, %v1676
  %v1805 = vpack.c.b16 %v1677, %v1677
  %v1806 = vpack.c.b16 %v1678, %v1678
  %v1807 = vpack.c.b16 %v1679, %v1679
  %v1808 = vpack.c.b16 %v1680, %v1680
  %v1809 = vpack.c.b16 %v1681, %v1681
  %v1810 = vpack.c.b16 %v1682, %v1682
  %v1811 = vpack.c.b16 %v1683, %v1683
  %v1812 = vpack.c.b16 %v1684, %v1684
  %v1813 = vpack.c.b16 %v1685, %v1685
  %v1814 = vpack.c.b16 %v1686, %v1686
  %v1815 = vpack.c.b16 %v1687, %v1687
  %v1816 = vpack.c.b16 %v1688, %v1688
  %v1817 = vpack.c.b16 %v1689, %v1689
  %v1818 = vpack.c.b16 %v1690, %v1690
  %v1819 = vpack.c.b16 %v1691, %v1691
  %v1820 = vpack.c.b16 %v1692, %v1692
  %v1821 = vpack.c.b16 %v1693, %v1693
  %v1822 = vpack.c.b16 %v1694, %v1694
  %v1823 = vpack.c.b16 %v1695, %v1695
  %v1824 = vpack.c.b16 %v1696, %v1696
  %v1825 = vpack.c.b16 %v1697, %v1697
  %v1826 = vpack.c.b16 %v1698, %v1698
  %v1827 = vpack.c.b16 %v1699, %v1699
  %v1828 = vpack.c.b16 %v1700, %v1700
  %v1829 = vpack.c.b16 %v1701, %v1701
  %v1830 = vpack.c.b16 %v1702, %v1702
  %v1831 = vpack.c.b16 %v1703, %v1703
  %v1832 = vpack.c.b16 %v1704, %v1704
  %v1833 = vpack.c.b16 %v1705, %v1705
  %v1834 = vpack.c.b16 %v1706, %v1706
  %v1835 = vpack.c.b16 %v1707, %v1707
  %v1836 = vpack.c.b16 %v1708, %v1708
  %v1837 = vpack.c.b16 %v1709, %v1709
  %v1838 = vpack.c.b16 %v1710, %v1710
  %v1839 = vpack.c.b16 %v1711, %v1711
  %v1840 = vpack.c.b16 %v1712, %v1712
  %v1841 = vpack.c.b16 %v1713, %v1713
  %v1842 = vpack.c.b16 %v1714, %v1714
  %v1843 = vpack.c.b16 %v1715, %v1715
  %v1844 = vpack.c.b16 %v1716, %v1716
  %v1845 = vpack.c.b16 %v1717, %v1717
  %v1846 = vpack.c.b16 %v1718, %v1718
  %v1847 = vpack.c.b16 %v1719, %v1719
  %v1848 = vpack.c.b16 %v1720, %v1720
  %v1849 = vpack.c.b16 %v1721, %v1721
  %v1850 = vpack.c.b16 %v1722, %v1722
  %v1851 = vpack.c.b16 %v1723, %v1723
  %v1852 = vpack.c.b16 %v1724, %v1724
  %v1853 = vpack.c.b16 %v1725, %v1725
  %v1854 = vpack.c.b16 %v1726, %v1726
  %v1855 = vpack.c.b16 %v1727, %v1727
  %v1856 = vpack.c.b16 %v1728, %v1728
  %v1857 = vpack.c.b16 %v1729, %v1729
  %v1858 = vpack.c.b16 %v1730, %v1730
  %v1859 = vpack.c.b16 %v1731, %v1731
  %v1860 = vpack.c.b16 %v1732, %v1732
  %v1861 = vpack.c.b16 %v1733, %v1733
  %v1862 = vpack.c.b16 %v1734, %v1734
  %vm1991 = vcmask 125952
  %1992 = vst.msk [vmem:[%s4] sm:$0xf] %vm1991, %v1735
  %1993 = vst.msk [vmem:[%s4 + $0x4] sm:$0xf] %vm1991, %v1736
  %1994 = vst.msk [vmem:[%s4 + $0x8] sm:$0xf] %vm1991, %v1737
  %1995 = vst.msk [vmem:[%s4 + $0xc] sm:$0xf] %vm1991, %v1738
  %1996 = vst.msk [vmem:[%s4 + $0x10] sm:$0xf] %vm1991, %v1739
  %1997 = vst.msk [vmem:[%s4 + $0x14] sm:$0xf] %vm1991, %v1740
  %1998 = vst.msk [vmem:[%s4 + $0x18] sm:$0xf] %vm1991, %v1741
  %1999 = vst.msk [vmem:[%s4 + $0x1c] sm:$0xf] %vm1991, %v1742
  %2000 = vst.msk [vmem:[%s4 + $0x20] sm:$0xf] %vm1991, %v1743
  %2001 = vst.msk [vmem:[%s4 + $0x24] sm:$0xf] %vm1991, %v1744
  %2002 = vst.msk [vmem:[%s4 + $0x28] sm:$0xf] %vm1991, %v1745
  %2003 = vst.msk [vmem:[%s4 + $0x2c] sm:$0xf] %vm1991, %v1746
  %2004 = vst.msk [vmem:[%s4 + $0x30] sm:$0xf] %vm1991, %v1747
  %2005 = vst.msk [vmem:[%s4 + $0x34] sm:$0xf] %vm1991, %v1748
  %2006 = vst.msk [vmem:[%s4 + $0x38] sm:$0xf] %vm1991, %v1749
  %2007 = vst.msk [vmem:[%s4 + $0x3c] sm:$0xf] %vm1991, %v1750
  %2008 = vst.msk [vmem:[%s4 + $0x40] sm:$0xf] %vm1991, %v1751
  %2009 = vst.msk [vmem:[%s4 + $0x44] sm:$0xf] %vm1991, %v1752
  %2010 = vst.msk [vmem:[%s4 + $0x48] sm:$0xf] %vm1991, %v1753
  %2011 = vst.msk [vmem:[%s4 + $0x4c] sm:$0xf] %vm1991, %v1754
  %2012 = vst.msk [vmem:[%s4 + $0x50] sm:$0xf] %vm1991, %v1755
  %2013 = vst.msk [vmem:[%s4 + $0x54] sm:$0xf] %vm1991, %v1756
  %2014 = vst.msk [vmem:[%s4 + $0x58] sm:$0xf] %vm1991, %v1757
  %2015 = vst.msk [vmem:[%s4 + $0x5c] sm:$0xf] %vm1991, %v1758
  %2016 = vst.msk [vmem:[%s4 + $0x60] sm:$0xf] %vm1991, %v1759
  %2017 = vst.msk [vmem:[%s4 + $0x64] sm:$0xf] %vm1991, %v1760
  %2018 = vst.msk [vmem:[%s4 + $0x68] sm:$0xf] %vm1991, %v1761
  %2019 = vst.msk [vmem:[%s4 + $0x6c] sm:$0xf] %vm1991, %v1762
  %2020 = vst.msk [vmem:[%s4 + $0x70] sm:$0xf] %vm1991, %v1763
  %2021 = vst.msk [vmem:[%s4 + $0x74] sm:$0xf] %vm1991, %v1764
  %2022 = vst.msk [vmem:[%s4 + $0x78] sm:$0xf] %vm1991, %v1765
  %2023 = vst.msk [vmem:[%s4 + $0x7c] sm:$0xf] %vm1991, %v1766
  %2024 = vst.msk [vmem:[%s4 + $0x80] sm:$0xf] %vm1991, %v1767
  %2025 = vst.msk [vmem:[%s4 + $0x84] sm:$0xf] %vm1991, %v1768
  %2026 = vst.msk [vmem:[%s4 + $0x88] sm:$0xf] %vm1991, %v1769
  %2027 = vst.msk [vmem:[%s4 + $0x8c] sm:$0xf] %vm1991, %v1770
  %2028 = vst.msk [vmem:[%s4 + $0x90] sm:$0xf] %vm1991, %v1771
  %2029 = vst.msk [vmem:[%s4 + $0x94] sm:$0xf] %vm1991, %v1772
  %2030 = vst.msk [vmem:[%s4 + $0x98] sm:$0xf] %vm1991, %v1773
  %2031 = vst.msk [vmem:[%s4 + $0x9c] sm:$0xf] %vm1991, %v1774
  %2032 = vst.msk [vmem:[%s4 + $0xa0] sm:$0xf] %vm1991, %v1775
  %2033 = vst.msk [vmem:[%s4 + $0xa4] sm:$0xf] %vm1991, %v1776
  %2034 = vst.msk [vmem:[%s4 + $0xa8] sm:$0xf] %vm1991, %v1777
  %2035 = vst.msk [vmem:[%s4 + $0xac] sm:$0xf] %vm1991, %v1778
  %2036 = vst.msk [vmem:[%s4 + $0xb0] sm:$0xf] %vm1991, %v1779
  %2037 = vst.msk [vmem:[%s4 + $0xb4] sm:$0xf] %vm1991, %v1780
  %2038 = vst.msk [vmem:[%s4 + $0xb8] sm:$0xf] %vm1991, %v1781
  %2039 = vst.msk [vmem:[%s4 + $0xbc] sm:$0xf] %vm1991, %v1782
  %2040 = vst.msk [vmem:[%s4 + $0xc0] sm:$0xf] %vm1991, %v1783
  %2041 = vst.msk [vmem:[%s4 + $0xc4] sm:$0xf] %vm1991, %v1784
  %2042 = vst.msk [vmem:[%s4 + $0xc8] sm:$0xf] %vm1991, %v1785
  %2043 = vst.msk [vmem:[%s4 + $0xcc] sm:$0xf] %vm1991, %v1786
  %2044 = vst.msk [vmem:[%s4 + $0xd0] sm:$0xf] %vm1991, %v1787
  %2045 = vst.msk [vmem:[%s4 + $0xd4] sm:$0xf] %vm1991, %v1788
  %2046 = vst.msk [vmem:[%s4 + $0xd8] sm:$0xf] %vm1991, %v1789
  %2047 = vst.msk [vmem:[%s4 + $0xdc] sm:$0xf] %vm1991, %v1790
  %2048 = vst.msk [vmem:[%s4 + $0xe0] sm:$0xf] %vm1991, %v1791
  %2049 = vst.msk [vmem:[%s4 + $0xe4] sm:$0xf] %vm1991, %v1792
  %2050 = vst.msk [vmem:[%s4 + $0xe8] sm:$0xf] %vm1991, %v1793
  %2051 = vst.msk [vmem:[%s4 + $0xec] sm:$0xf] %vm1991, %v1794
  %2052 = vst.msk [vmem:[%s4 + $0xf0] sm:$0xf] %vm1991, %v1795
  %2053 = vst.msk [vmem:[%s4 + $0xf4] sm:$0xf] %vm1991, %v1796
  %2054 = vst.msk [vmem:[%s4 + $0xf8] sm:$0xf] %vm1991, %v1797
  %2055 = vst.msk [vmem:[%s4 + $0xfc] sm:$0xf] %vm1991, %v1798
  %2056 = vst.msk [vmem:[%s4 + $0x100] sm:$0xf] %vm1991, %v1799
  %2057 = vst.msk [vmem:[%s4 + $0x104] sm:$0xf] %vm1991, %v1800
  %2058 = vst.msk [vmem:[%s4 + $0x108] sm:$0xf] %vm1991, %v1801
  %2059 = vst.msk [vmem:[%s4 + $0x10c] sm:$0xf] %vm1991, %v1802
  %2060 = vst.msk [vmem:[%s4 + $0x110] sm:$0xf] %vm1991, %v1803
  %2061 = vst.msk [vmem:[%s4 + $0x114] sm:$0xf] %vm1991, %v1804
  %2062 = vst.msk [vmem:[%s4 + $0x118] sm:$0xf] %vm1991, %v1805
  %2063 = vst.msk [vmem:[%s4 + $0x11c] sm:$0xf] %vm1991, %v1806
  %2064 = vst.msk [vmem:[%s4 + $0x120] sm:$0xf] %vm1991, %v1807
  %2065 = vst.msk [vmem:[%s4 + $0x124] sm:$0xf] %vm1991, %v1808
  %2066 = vst.msk [vmem:[%s4 + $0x128] sm:$0xf] %vm1991, %v1809
  %2067 = vst.msk [vmem:[%s4 + $0x12c] sm:$0xf] %vm1991, %v1810
  %2068 = vst.msk [vmem:[%s4 + $0x130] sm:$0xf] %vm1991, %v1811
  %2069 = vst.msk [vmem:[%s4 + $0x134] sm:$0xf] %vm1991, %v1812
  %2070 = vst.msk [vmem:[%s4 + $0x138] sm:$0xf] %vm1991, %v1813
  %2071 = vst.msk [vmem:[%s4 + $0x13c] sm:$0xf] %vm1991, %v1814
  %2072 = vst.msk [vmem:[%s4 + $0x140] sm:$0xf] %vm1991, %v1815
  %2073 = vst.msk [vmem:[%s4 + $0x144] sm:$0xf] %vm1991, %v1816
  %2074 = vst.msk [vmem:[%s4 + $0x148] sm:$0xf] %vm1991, %v1817
  %2075 = vst.msk [vmem:[%s4 + $0x14c] sm:$0xf] %vm1991, %v1818
  %2076 = vst.msk [vmem:[%s4 + $0x150] sm:$0xf] %vm1991, %v1819
  %2077 = vst.msk [vmem:[%s4 + $0x154] sm:$0xf] %vm1991, %v1820
  %2078 = vst.msk [vmem:[%s4 + $0x158] sm:$0xf] %vm1991, %v1821
  %2079 = vst.msk [vmem:[%s4 + $0x15c] sm:$0xf] %vm1991, %v1822
  %2080 = vst.msk [vmem:[%s4 + $0x160] sm:$0xf] %vm1991, %v1823
  %2081 = vst.msk [vmem:[%s4 + $0x164] sm:$0xf] %vm1991, %v1824
  %2082 = vst.msk [vmem:[%s4 + $0x168] sm:$0xf] %vm1991, %v1825
  %2083 = vst.msk [vmem:[%s4 + $0x16c] sm:$0xf] %vm1991, %v1826
  %2084 = vst.msk [vmem:[%s4 + $0x170] sm:$0xf] %vm1991, %v1827
  %2085 = vst.msk [vmem:[%s4 + $0x174] sm:$0xf] %vm1991, %v1828
  %2086 = vst.msk [vmem:[%s4 + $0x178] sm:$0xf] %vm1991, %v1829
  %2087 = vst.msk [vmem:[%s4 + $0x17c] sm:$0xf] %vm1991, %v1830
  %2088 = vst.msk [vmem:[%s4 + $0x180] sm:$0xf] %vm1991, %v1831
  %2089 = vst.msk [vmem:[%s4 + $0x184] sm:$0xf] %vm1991, %v1832
  %2090 = vst.msk [vmem:[%s4 + $0x188] sm:$0xf] %vm1991, %v1833
  %2091 = vst.msk [vmem:[%s4 + $0x18c] sm:$0xf] %vm1991, %v1834
  %2092 = vst.msk [vmem:[%s4 + $0x190] sm:$0xf] %vm1991, %v1835
  %2093 = vst.msk [vmem:[%s4 + $0x194] sm:$0xf] %vm1991, %v1836
  %2094 = vst.msk [vmem:[%s4 + $0x198] sm:$0xf] %vm1991, %v1837
  %2095 = vst.msk [vmem:[%s4 + $0x19c] sm:$0xf] %vm1991, %v1838
  %2096 = vst.msk [vmem:[%s4 + $0x1a0] sm:$0xf] %vm1991, %v1839
  %2097 = vst.msk [vmem:[%s4 + $0x1a4] sm:$0xf] %vm1991, %v1840
  %2098 = vst.msk [vmem:[%s4 + $0x1a8] sm:$0xf] %vm1991, %v1841
  %2099 = vst.msk [vmem:[%s4 + $0x1ac] sm:$0xf] %vm1991, %v1842
  %2100 = vst.msk [vmem:[%s4 + $0x1b0] sm:$0xf] %vm1991, %v1843
  %2101 = vst.msk [vmem:[%s4 + $0x1b4] sm:$0xf] %vm1991, %v1844
  %2102 = vst.msk [vmem:[%s4 + $0x1b8] sm:$0xf] %vm1991, %v1845
  %2103 = vst.msk [vmem:[%s4 + $0x1bc] sm:$0xf] %vm1991, %v1846
  %2104 = vst.msk [vmem:[%s4 + $0x1c0] sm:$0xf] %vm1991, %v1847
  %2105 = vst.msk [vmem:[%s4 + $0x1c4] sm:$0xf] %vm1991, %v1848
  %2106 = vst.msk [vmem:[%s4 + $0x1c8] sm:$0xf] %vm1991, %v1849
  %2107 = vst.msk [vmem:[%s4 + $0x1cc] sm:$0xf] %vm1991, %v1850
  %2108 = vst.msk [vmem:[%s4 + $0x1d0] sm:$0xf] %vm1991, %v1851
  %2109 = vst.msk [vmem:[%s4 + $0x1d4] sm:$0xf] %vm1991, %v1852
  %2110 = vst.msk [vmem:[%s4 + $0x1d8] sm:$0xf] %vm1991, %v1853
  %2111 = vst.msk [vmem:[%s4 + $0x1dc] sm:$0xf] %vm1991, %v1854
  %2112 = vst.msk [vmem:[%s4 + $0x1e0] sm:$0xf] %vm1991, %v1855
  %2113 = vst.msk [vmem:[%s4 + $0x1e4] sm:$0xf] %vm1991, %v1856
  %2114 = vst.msk [vmem:[%s4 + $0x1e8] sm:$0xf] %vm1991, %v1857
  %2115 = vst.msk [vmem:[%s4 + $0x1ec] sm:$0xf] %vm1991, %v1858
  %2116 = vst.msk [vmem:[%s4 + $0x1f0] sm:$0xf] %vm1991, %v1859
  %2117 = vst.msk [vmem:[%s4 + $0x1f4] sm:$0xf] %vm1991, %v1860
  %2118 = vst.msk [vmem:[%s4 + $0x1f8] sm:$0xf] %vm1991, %v1861
  %2119 = vst.msk [vmem:[%s4 + $0x1fc] sm:$0xf] %vm1991, %v1862
  // Predicated region
  $region18: #{_lambda_.9} parent=0 // pred_check
    _
  $region19: #{_lambda_.9} parent=0 // pred_check_branch
    %2121 = sbr.rel (0) target = $region21
  $region20: #{_lambda_.9} parent=0 // pred_region
    _
  $region21: #{_lambda_.9} parent=0 // pred_fallthru
    _
  // Predicated region
  $region22: #{_lambda_.9} parent=0 // pred_check
    _
  $region23: #{_lambda_.9} parent=0 // pred_check_branch
    %2123 = sbr.rel (0) target = $region25
  $region24: #{_lambda_.9} parent=0 // pred_region
    _
  $region25: #{_lambda_.9} parent=0 // pred_fallthru
    _

// kernel: _lambda_.10
$region0: #{_lambda_.10}
  #allocation0 [shape = 'u32[]', space=smem, size = 0x4, offset = 0x4, fixed_abs, tag = 'smem constant byte address 0x4 - core index']
  #allocation1 [shape = 'u32[144,128]{1,0:T(1,128)}', space=vmem, size = 0x12000, scoped, tag = 'internal scratch']
  %s0 = inlined_call_operand.vmem [shape: bf16[256,8], index: 0, kind: input, shape index: {}]
  %s1 = inlined_call_operand.vmem [shape: bf16[8,32], index: 1, kind: input, shape index: {}]
  %s2 = inlined_call_operand.vmem [shape: f32[1,32], index: 2, kind: input, shape index: {}]
  %s3 = inlined_call_operand.vmem [shape: f32[1,32], index: 3, kind: input, shape index: {}]
  %s4 = inlined_call_operand.vmem [shape: bf16[256,32], index: 4, kind: output, shape index: {}]
  %s5 = sld [smem:[#allocation0]]
  $region26: #{_lambda_.10} parent=0
    _
  %s7 = ssub.s32 1, %s5
  %s8 = scalar_select 0, %s7, %s5
  // Predicated region
  $region2: #{_lambda_.10} parent=0 // pred_check
    _
  $region3: #{_lambda_.10} parent=0 // pred_check_branch
    %10 = sbr.rel (0) target = $region5
  $region4: #{_lambda_.10} parent=0 // pred_region
    _
  $region5: #{_lambda_.10} parent=0 // pred_fallthru
    _
  // Predicated region
  $region6: #{_lambda_.10} parent=0 // pred_check
    _
  $region7: #{_lambda_.10} parent=0 // pred_check_branch
    %12 = sbr.rel (0) target = $region9
  $region8: #{_lambda_.10} parent=0 // pred_region
    _
  $region9: #{_lambda_.10} parent=0 // pred_fallthru
    _
  // Predicated region
  $region10: #{_lambda_.10} parent=0 // pred_check
    _
  $region11: #{_lambda_.10} parent=0 // pred_check_branch
    %14 = sbr.rel (0) target = $region13
  $region12: #{_lambda_.10} parent=0 // pred_region
    _
  $region13: #{_lambda_.10} parent=0 // pred_fallthru
    _
  // Predicated region
  $region14: #{_lambda_.10} parent=0 // pred_check
    _
  $region15: #{_lambda_.10} parent=0 // pred_check_branch
    %16 = sbr.rel (0) target = $region17
  $region16: #{_lambda_.10} parent=0 // pred_region
    _
  $region17: #{_lambda_.10} parent=0 // pred_fallthru
    _
  %v18 = vld [vmem:[%s0] sm:$0xf]
  %v19 = vld [vmem:[%s0 + $0x4] sm:$0xf]
  %v20 = vld [vmem:[%s0 + $0x8] sm:$0xf]
  %v21 = vld [vmem:[%s0 + $0xc] sm:$0xf]
  %v22 = vld [vmem:[%s0 + $0x10] sm:$0xf]
  %v23 = vld [vmem:[%s0 + $0x14] sm:$0xf]
  %v24 = vld [vmem:[%s0 + $0x18] sm:$0xf]
  %v25 = vld [vmem:[%s0 + $0x1c] sm:$0xf]
  %v26 = vld [vmem:[%s0 + $0x20] sm:$0xf]
  %v27 = vld [vmem:[%s0 + $0x24] sm:$0xf]
  %v28 = vld [vmem:[%s0 + $0x28] sm:$0xf]
  %v29 = vld [vmem:[%s0 + $0x2c] sm:$0xf]
  %v30 = vld [vmem:[%s0 + $0x30] sm:$0xf]
  %v31 = vld [vmem:[%s0 + $0x34] sm:$0xf]
  %v32 = vld [vmem:[%s0 + $0x38] sm:$0xf]
  %v33 = vld [vmem:[%s0 + $0x3c] sm:$0xf]
  %v34 = vld [vmem:[%s0 + $0x40] sm:$0xf]
  %v35 = vld [vmem:[%s0 + $0x44] sm:$0xf]
  %v36 = vld [vmem:[%s0 + $0x48] sm:$0xf]
  %v37 = vld [vmem:[%s0 + $0x4c] sm:$0xf]
  %v38 = vld [vmem:[%s0 + $0x50] sm:$0xf]
  %v39 = vld [vmem:[%s0 + $0x54] sm:$0xf]
  %v40 = vld [vmem:[%s0 + $0x58] sm:$0xf]
  %v41 = vld [vmem:[%s0 + $0x5c] sm:$0xf]
  %v42 = vld [vmem:[%s0 + $0x60] sm:$0xf]
  %v43 = vld [vmem:[%s0 + $0x64] sm:$0xf]
  %v44 = vld [vmem:[%s0 + $0x68] sm:$0xf]
  %v45 = vld [vmem:[%s0 + $0x6c] sm:$0xf]
  %v46 = vld [vmem:[%s0 + $0x70] sm:$0xf]
  %v47 = vld [vmem:[%s0 + $0x74] sm:$0xf]
  %v48 = vld [vmem:[%s0 + $0x78] sm:$0xf]
  %v49 = vld [vmem:[%s0 + $0x7c] sm:$0xf]
  %v50 = vld [vmem:[%s1] sm:$0xf]
  %v83 = vunpack.c.l.b16 %v18
  %v84 = vunpack.c.l.b16 %v19
  %v85 = vunpack.c.l.b16 %v20
  %v86 = vunpack.c.l.b16 %v21
  %v87 = vunpack.c.l.b16 %v22
  %v88 = vunpack.c.l.b16 %v23
  %v89 = vunpack.c.l.b16 %v24
  %v90 = vunpack.c.l.b16 %v25
  %v91 = vunpack.c.l.b16 %v26
  %v92 = vunpack.c.l.b16 %v27
  %v93 = vunpack.c.l.b16 %v28
  %v94 = vunpack.c.l.b16 %v29
  %v95 = vunpack.c.l.b16 %v30
  %v96 = vunpack.c.l.b16 %v31
  %v97 = vunpack.c.l.b16 %v32
  %v98 = vunpack.c.l.b16 %v33
  %v99 = vunpack.c.l.b16 %v34
  %v100 = vunpack.c.l.b16 %v35
  %v101 = vunpack.c.l.b16 %v36
  %v102 = vunpack.c.l.b16 %v37
  %v103 = vunpack.c.l.b16 %v38
  %v104 = vunpack.c.l.b16 %v39
  %v105 = vunpack.c.l.b16 %v40
  %v106 = vunpack.c.l.b16 %v41
  %v107 = vunpack.c.l.b16 %v42
  %v108 = vunpack.c.l.b16 %v43
  %v109 = vunpack.c.l.b16 %v44
  %v110 = vunpack.c.l.b16 %v45
  %v111 = vunpack.c.l.b16 %v46
  %v112 = vunpack.c.l.b16 %v47
  %v113 = vunpack.c.l.b16 %v48
  %v114 = vunpack.c.l.b16 %v49
  %v115 = vpack.c.b16 %v84, %v83
  %v116 = vpack.c.b16 %v86, %v85
  %v117 = vpack.c.b16 %v88, %v87
  %v118 = vpack.c.b16 %v90, %v89
  %v119 = vpack.c.b16 %v92, %v91
  %v120 = vpack.c.b16 %v94, %v93
  %v121 = vpack.c.b16 %v96, %v95
  %v122 = vpack.c.b16 %v98, %v97
  %v123 = vpack.c.b16 %v100, %v99
  %v124 = vpack.c.b16 %v102, %v101
  %v125 = vpack.c.b16 %v104, %v103
  %v126 = vpack.c.b16 %v106, %v105
  %v127 = vpack.c.b16 %v108, %v107
  %v128 = vpack.c.b16 %v110, %v109
  %v129 = vpack.c.b16 %v112, %v111
  %v130 = vpack.c.b16 %v114, %v113
  %vm131 = vcmask 64512
  %v133 = vsel %vm131, %v115, 0
  %v136 = vsel %vm131, %v116, 0
  %v139 = vsel %vm131, %v117, 0
  %v142 = vsel %vm131, %v118, 0
  %v145 = vsel %vm131, %v119, 0
  %v148 = vsel %vm131, %v120, 0
  %v151 = vsel %vm131, %v121, 0
  %v154 = vsel %vm131, %v122, 0
  %v157 = vsel %vm131, %v123, 0
  %v160 = vsel %vm131, %v124, 0
  %v163 = vsel %vm131, %v125, 0
  %v166 = vsel %vm131, %v126, 0
  %v169 = vsel %vm131, %v127, 0
  %v172 = vsel %vm131, %v128, 0
  %v175 = vsel %vm131, %v129, 0
  %v178 = vsel %vm131, %v130, 0
  %vm180 = vcmask 1043456
  %v182 = vsel %vm180, %v50, 0
  %184 = vmatprep.subr.bf16.mxu0 0
  %185 = vmatpush1.bf16.msra.mxu0 0
  %186 = vmatprep.subr.bf16.mxu0 0
  %187 = vmatpush1.bf16.msra.mxu0 0
  %188 = vmatprep.subr.bf16.mxu0 0
  %189 = vmatpush1.bf16.msra.mxu0 0
  %190 = vmatprep.subr.bf16.mxu0 0
  %191 = vmatpush1.bf16.msra.mxu0 0
  %192 = vmatprep.subr.bf16.mxu0 0
  %193 = vmatpush1.bf16.msra.mxu0 0
  %194 = vmatprep.subr.bf16.mxu0 0
  %195 = vmatpush1.bf16.msra.mxu0 0
  %196 = vmatprep.subr.bf16.mxu0 0
  %197 = vmatpush1.bf16.msra.mxu0 0
  %198 = vmatprep.subr.bf16.mxu0 0
  %199 = vmatpush1.bf16.msra.mxu0 %v182
  %200 = vmatprep.subr.bf16.mxu0 0
  %201 = vmatpush2.bf16.msra.mxu0 0
  %202 = vmatprep.subr.bf16.mxu0 0
  %203 = vmatpush2.bf16.msra.mxu0 0
  %204 = vmatprep.subr.bf16.mxu0 0
  %205 = vmatpush2.bf16.msra.mxu0 0
  %206 = vmatprep.subr.bf16.mxu0 0
  %207 = vmatpush2.bf16.msra.mxu0 0
  %208 = vmatprep.subr.bf16.mxu0 0
  %209 = vmatpush2.bf16.msra.mxu0 0
  %210 = vmatprep.subr.bf16.mxu0 0
  %211 = vmatpush2.bf16.msra.mxu0 0
  %212 = vmatprep.subr.bf16.mxu0 0
  %213 = vmatpush2.bf16.msra.mxu0 0
  %214 = vmatprep.subr.bf16.mxu0 0
  %215 = vmatpush2.bf16.msra.mxu0 0
  %216 = vmatprep.mubr.bf16.mxu0 0
  %217 = vmatmul.mubr.bf16.gmra.mxu0 %v133
  %v218 = vpop.f32.mrf.mxu0
  %v219 = vadd.f32 0.0, %v218
  %v220 = vpop.f32.mrf.mxu0
  %v221 = vpop.f32.mrf.mxu0
  %v222 = vadd.f32 0.0, %v221
  %v223 = vpop.f32.mrf.mxu0
  %224 = vmatprep.mubr.bf16.mxu0 0
  %225 = vmatmul.mubr.bf16.gmra.mxu0 %v136
  %v226 = vpop.f32.mrf.mxu0
  %v227 = vadd.f32 0.0, %v226
  %v228 = vpop.f32.mrf.mxu0
  %v229 = vpop.f32.mrf.mxu0
  %v230 = vadd.f32 0.0, %v229
  %v231 = vpop.f32.mrf.mxu0
  %232 = vmatprep.mubr.bf16.mxu0 0
  %233 = vmatmul.mubr.bf16.gmra.mxu0 %v139
  %v234 = vpop.f32.mrf.mxu0
  %v235 = vadd.f32 0.0, %v234
  %v236 = vpop.f32.mrf.mxu0
  %v237 = vpop.f32.mrf.mxu0
  %v238 = vadd.f32 0.0, %v237
  %v239 = vpop.f32.mrf.mxu0
  %240 = vmatprep.mubr.bf16.mxu0 0
  %241 = vmatmul.mubr.bf16.gmra.mxu0 %v142
  %v242 = vpop.f32.mrf.mxu0
  %v243 = vadd.f32 0.0, %v242
  %v244 = vpop.f32.mrf.mxu0
  %v245 = vpop.f32.mrf.mxu0
  %v246 = vadd.f32 0.0, %v245
  %v247 = vpop.f32.mrf.mxu0
  %248 = vmatprep.mubr.bf16.mxu0 0
  %249 = vmatmul.mubr.bf16.gmra.mxu0 %v145
  %v250 = vpop.f32.mrf.mxu0
  %v251 = vadd.f32 0.0, %v250
  %v252 = vpop.f32.mrf.mxu0
  %v253 = vpop.f32.mrf.mxu0
  %v254 = vadd.f32 0.0, %v253
  %v255 = vpop.f32.mrf.mxu0
  %256 = vmatprep.mubr.bf16.mxu0 0
  %257 = vmatmul.mubr.bf16.gmra.mxu0 %v148
  %v258 = vpop.f32.mrf.mxu0
  %v259 = vadd.f32 0.0, %v258
  %v260 = vpop.f32.mrf.mxu0
  %v261 = vpop.f32.mrf.mxu0
  %v262 = vadd.f32 0.0, %v261
  %v263 = vpop.f32.mrf.mxu0
  %264 = vmatprep.mubr.bf16.mxu0 0
  %265 = vmatmul.mubr.bf16.gmra.mxu0 %v151
  %v266 = vpop.f32.mrf.mxu0
  %v267 = vadd.f32 0.0, %v266
  %v268 = vpop.f32.mrf.mxu0
  %v269 = vpop.f32.mrf.mxu0
  %v270 = vadd.f32 0.0, %v269
  %v271 = vpop.f32.mrf.mxu0
  %272 = vmatprep.mubr.bf16.mxu0 0
  %273 = vmatmul.mubr.bf16.gmra.mxu0 %v154
  %v274 = vpop.f32.mrf.mxu0
  %v275 = vadd.f32 0.0, %v274
  %v276 = vpop.f32.mrf.mxu0
  %v277 = vpop.f32.mrf.mxu0
  %v278 = vadd.f32 0.0, %v277
  %v279 = vpop.f32.mrf.mxu0
  %280 = vmatprep.mubr.bf16.mxu0 0
  %281 = vmatmul.mubr.bf16.gmra.mxu0 %v157
  %v282 = vpop.f32.mrf.mxu0
  %v283 = vadd.f32 0.0, %v282
  %v284 = vpop.f32.mrf.mxu0
  %v285 = vpop.f32.mrf.mxu0
  %v286 = vadd.f32 0.0, %v285
  %v287 = vpop.f32.mrf.mxu0
  %288 = vmatprep.mubr.bf16.mxu0 0
  %289 = vmatmul.mubr.bf16.gmra.mxu0 %v160
  %v290 = vpop.f32.mrf.mxu0
  %v291 = vadd.f32 0.0, %v290
  %v292 = vpop.f32.mrf.mxu0
  %v293 = vpop.f32.mrf.mxu0
  %v294 = vadd.f32 0.0, %v293
  %v295 = vpop.f32.mrf.mxu0
  %296 = vmatprep.mubr.bf16.mxu0 0
  %297 = vmatmul.mubr.bf16.gmra.mxu0 %v163
  %v298 = vpop.f32.mrf.mxu0
  %v299 = vadd.f32 0.0, %v298
  %v300 = vpop.f32.mrf.mxu0
  %v301 = vpop.f32.mrf.mxu0
  %v302 = vadd.f32 0.0, %v301
  %v303 = vpop.f32.mrf.mxu0
  %304 = vmatprep.mubr.bf16.mxu0 0
  %305 = vmatmul.mubr.bf16.gmra.mxu0 %v166
  %v306 = vpop.f32.mrf.mxu0
  %v307 = vadd.f32 0.0, %v306
  %v308 = vpop.f32.mrf.mxu0
  %v309 = vpop.f32.mrf.mxu0
  %v310 = vadd.f32 0.0, %v309
  %v311 = vpop.f32.mrf.mxu0
  %312 = vmatprep.mubr.bf16.mxu0 0
  %313 = vmatmul.mubr.bf16.gmra.mxu0 %v169
  %v314 = vpop.f32.mrf.mxu0
  %v315 = vadd.f32 0.0, %v314
  %v316 = vpop.f32.mrf.mxu0
  %v317 = vpop.f32.mrf.mxu0
  %v318 = vadd.f32 0.0, %v317
  %v319 = vpop.f32.mrf.mxu0
  %320 = vmatprep.mubr.bf16.mxu0 0
  %321 = vmatmul.mubr.bf16.gmra.mxu0 %v172
  %v322 = vpop.f32.mrf.mxu0
  %v323 = vadd.f32 0.0, %v322
  %v324 = vpop.f32.mrf.mxu0
  %v325 = vpop.f32.mrf.mxu0
  %v326 = vadd.f32 0.0, %v325
  %v327 = vpop.f32.mrf.mxu0
  %328 = vmatprep.mubr.bf16.mxu0 0
  %329 = vmatmul.mubr.bf16.gmra.mxu0 %v175
  %v330 = vpop.f32.mrf.mxu0
  %v331 = vadd.f32 0.0, %v330
  %v332 = vpop.f32.mrf.mxu0
  %v333 = vpop.f32.mrf.mxu0
  %v334 = vadd.f32 0.0, %v333
  %v335 = vpop.f32.mrf.mxu0
  %336 = vmatprep.mubr.bf16.mxu0 0
  %337 = vmatmul.mubr.bf16.gmra.mxu0 %v178
  %v338 = vpop.f32.mrf.mxu0
  %v339 = vadd.f32 0.0, %v338
  %v340 = vpop.f32.mrf.mxu0
  %v341 = vpop.f32.mrf.mxu0
  %v342 = vadd.f32 0.0, %v341
  %v343 = vpop.f32.mrf.mxu0
  %344 = vdwg.mxu0
  %v345 = vld [vmem:[%s2] sm:$0x1]
  %v347 = vlaneseq
  %v348 = vshrl.u32 %v347, 7
  %v349 = vsub.s32 0, %v348
  %v350 = vrot.slane %v345, %v349
  %v352 = vmul.f32 %v219, %v350
  %v353 = vmul.f32 %v222, %v350
  %v354 = vmul.f32 %v227, %v350
  %v355 = vmul.f32 %v230, %v350
  %v356 = vmul.f32 %v235, %v350
  %v357 = vmul.f32 %v238, %v350
  %v358 = vmul.f32 %v243, %v350
  %v359 = vmul.f32 %v246, %v350
  %v360 = vmul.f32 %v251, %v350
  %v361 = vmul.f32 %v254, %v350
  %v362 = vmul.f32 %v259, %v350
  %v363 = vmul.f32 %v262, %v350
  %v364 = vmul.f32 %v267, %v350
  %v365 = vmul.f32 %v270, %v350
  %v366 = vmul.f32 %v275, %v350
  %v367 = vmul.f32 %v278, %v350
  %v368 = vmul.f32 %v283, %v350
  %v369 = vmul.f32 %v286, %v350
  %v370 = vmul.f32 %v291, %v350
  %v371 = vmul.f32 %v294, %v350
  %v372 = vmul.f32 %v299, %v350
  %v373 = vmul.f32 %v302, %v350
  %v374 = vmul.f32 %v307, %v350
  %v375 = vmul.f32 %v310, %v350
  %v376 = vmul.f32 %v315, %v350
  %v377 = vmul.f32 %v318, %v350
  %v378 = vmul.f32 %v323, %v350
  %v379 = vmul.f32 %v326, %v350
  %v380 = vmul.f32 %v331, %v350
  %v381 = vmul.f32 %v334, %v350
  %v382 = vmul.f32 %v339, %v350
  %v383 = vmul.f32 %v342, %v350
  %v384 = vld [vmem:[%s3] sm:$0x1]
  %v386 = vlaneseq
  %v387 = vshrl.u32 %v386, 7
  %v388 = vsub.s32 0, %v387
  %v389 = vrot.slane %v384, %v388
  %v391 = vadd.f32 %v352, %v389
  %v392 = vadd.f32 %v353, %v389
  %v393 = vadd.f32 %v354, %v389
  %v394 = vadd.f32 %v355, %v389
  %v395 = vadd.f32 %v356, %v389
  %v396 = vadd.f32 %v357, %v389
  %v397 = vadd.f32 %v358, %v389
  %v398 = vadd.f32 %v359, %v389
  %v399 = vadd.f32 %v360, %v389
  %v400 = vadd.f32 %v361, %v389
  %v401 = vadd.f32 %v362, %v389
  %v402 = vadd.f32 %v363, %v389
  %v403 = vadd.f32 %v364, %v389
  %v404 = vadd.f32 %v365, %v389
  %v405 = vadd.f32 %v366, %v389
  %v406 = vadd.f32 %v367, %v389
  %v407 = vadd.f32 %v368, %v389
  %v408 = vadd.f32 %v369, %v389
  %v409 = vadd.f32 %v370, %v389
  %v410 = vadd.f32 %v371, %v389
  %v411 = vadd.f32 %v372, %v389
  %v412 = vadd.f32 %v373, %v389
  %v413 = vadd.f32 %v374, %v389
  %v414 = vadd.f32 %v375, %v389
  %v415 = vadd.f32 %v376, %v389
  %v416 = vadd.f32 %v377, %v389
  %v417 = vadd.f32 %v378, %v389
  %v418 = vadd.f32 %v379, %v389
  %v419 = vadd.f32 %v380, %v389
  %v420 = vadd.f32 %v381, %v389
  %v421 = vadd.f32 %v382, %v389
  %v422 = vadd.f32 %v383, %v389
  %v423 = vpack.c.bf16 %v392, %v391
  %v424 = vpack.c.bf16 %v394, %v393
  %v425 = vpack.c.bf16 %v396, %v395
  %v426 = vpack.c.bf16 %v398, %v397
  %v427 = vpack.c.bf16 %v400, %v399
  %v428 = vpack.c.bf16 %v402, %v401
  %v429 = vpack.c.bf16 %v404, %v403
  %v430 = vpack.c.bf16 %v406, %v405
  %v431 = vpack.c.bf16 %v408, %v407
  %v432 = vpack.c.bf16 %v410, %v409
  %v433 = vpack.c.bf16 %v412, %v411
  %v434 = vpack.c.bf16 %v414, %v413
  %v435 = vpack.c.bf16 %v416, %v415
  %v436 = vpack.c.bf16 %v418, %v417
  %v437 = vpack.c.bf16 %v420, %v419
  %v438 = vpack.c.bf16 %v422, %v421
  %v455 = vunpack.c.l.b16 %v423
  %v456 = vunpack.c.h.b16 %v423
  %v457 = vunpack.c.l.b16 %v424
  %v458 = vunpack.c.h.b16 %v424
  %v459 = vunpack.c.l.b16 %v425
  %v460 = vunpack.c.h.b16 %v425
  %v461 = vunpack.c.l.b16 %v426
  %v462 = vunpack.c.h.b16 %v426
  %v463 = vunpack.c.l.b16 %v427
  %v464 = vunpack.c.h.b16 %v427
  %v465 = vunpack.c.l.b16 %v428
  %v466 = vunpack.c.h.b16 %v428
  %v467 = vunpack.c.l.b16 %v429
  %v468 = vunpack.c.h.b16 %v429
  %v469 = vunpack.c.l.b16 %v430
  %v470 = vunpack.c.h.b16 %v430
  %v471 = vunpack.c.l.b16 %v431
  %v472 = vunpack.c.h.b16 %v431
  %v473 = vunpack.c.l.b16 %v432
  %v474 = vunpack.c.h.b16 %v432
  %v475 = vunpack.c.l.b16 %v433
  %v476 = vunpack.c.h.b16 %v433
  %v477 = vunpack.c.l.b16 %v434
  %v478 = vunpack.c.h.b16 %v434
  %v479 = vunpack.c.l.b16 %v435
  %v480 = vunpack.c.h.b16 %v435
  %v481 = vunpack.c.l.b16 %v436
  %v482 = vunpack.c.h.b16 %v436
  %v483 = vunpack.c.l.b16 %v437
  %v484 = vunpack.c.h.b16 %v437
  %v485 = vunpack.c.l.b16 %v438
  %v486 = vunpack.c.h.b16 %v438
  %v487 = vpack.c.b16 %v455, %v455
  %v488 = vpack.c.b16 %v456, %v456
  %v489 = vpack.c.b16 %v457, %v457
  %v490 = vpack.c.b16 %v458, %v458
  %v491 = vpack.c.b16 %v459, %v459
  %v492 = vpack.c.b16 %v460, %v460
  %v493 = vpack.c.b16 %v461, %v461
  %v494 = vpack.c.b16 %v462, %v462
  %v495 = vpack.c.b16 %v463, %v463
  %v496 = vpack.c.b16 %v464, %v464
  %v497 = vpack.c.b16 %v465, %v465
  %v498 = vpack.c.b16 %v466, %v466
  %v499 = vpack.c.b16 %v467, %v467
  %v500 = vpack.c.b16 %v468, %v468
  %v501 = vpack.c.b16 %v469, %v469
  %v502 = vpack.c.b16 %v470, %v470
  %v503 = vpack.c.b16 %v471, %v471
  %v504 = vpack.c.b16 %v472, %v472
  %v505 = vpack.c.b16 %v473, %v473
  %v506 = vpack.c.b16 %v474, %v474
  %v507 = vpack.c.b16 %v475, %v475
  %v508 = vpack.c.b16 %v476, %v476
  %v509 = vpack.c.b16 %v477, %v477
  %v510 = vpack.c.b16 %v478, %v478
  %v511 = vpack.c.b16 %v479, %v479
  %v512 = vpack.c.b16 %v480, %v480
  %v513 = vpack.c.b16 %v481, %v481
  %v514 = vpack.c.b16 %v482, %v482
  %v515 = vpack.c.b16 %v483, %v483
  %v516 = vpack.c.b16 %v484, %v484
  %v517 = vpack.c.b16 %v485, %v485
  %v518 = vpack.c.b16 %v486, %v486
  %vm551 = vcmask 257024
  %552 = vst.msk [vmem:[%s4] sm:$0xf] %vm551, %v487
  %553 = vst.msk [vmem:[%s4 + $0x4] sm:$0xf] %vm551, %v488
  %554 = vst.msk [vmem:[%s4 + $0x8] sm:$0xf] %vm551, %v489
  %555 = vst.msk [vmem:[%s4 + $0xc] sm:$0xf] %vm551, %v490
  %556 = vst.msk [vmem:[%s4 + $0x10] sm:$0xf] %vm551, %v491
  %557 = vst.msk [vmem:[%s4 + $0x14] sm:$0xf] %vm551, %v492
  %558 = vst.msk [vmem:[%s4 + $0x18] sm:$0xf] %vm551, %v493
  %559 = vst.msk [vmem:[%s4 + $0x1c] sm:$0xf] %vm551, %v494
  %560 = vst.msk [vmem:[%s4 + $0x20] sm:$0xf] %vm551, %v495
  %561 = vst.msk [vmem:[%s4 + $0x24] sm:$0xf] %vm551, %v496
  %562 = vst.msk [vmem:[%s4 + $0x28] sm:$0xf] %vm551, %v497
  %563 = vst.msk [vmem:[%s4 + $0x2c] sm:$0xf] %vm551, %v498
  %564 = vst.msk [vmem:[%s4 + $0x30] sm:$0xf] %vm551, %v499
  %565 = vst.msk [vmem:[%s4 + $0x34] sm:$0xf] %vm551, %v500
  %566 = vst.msk [vmem:[%s4 + $0x38] sm:$0xf] %vm551, %v501
  %567 = vst.msk [vmem:[%s4 + $0x3c] sm:$0xf] %vm551, %v502
  %568 = vst.msk [vmem:[%s4 + $0x40] sm:$0xf] %vm551, %v503
  %569 = vst.msk [vmem:[%s4 + $0x44] sm:$0xf] %vm551, %v504
  %570 = vst.msk [vmem:[%s4 + $0x48] sm:$0xf] %vm551, %v505
  %571 = vst.msk [vmem:[%s4 + $0x4c] sm:$0xf] %vm551, %v506
  %572 = vst.msk [vmem:[%s4 + $0x50] sm:$0xf] %vm551, %v507
  %573 = vst.msk [vmem:[%s4 + $0x54] sm:$0xf] %vm551, %v508
  %574 = vst.msk [vmem:[%s4 + $0x58] sm:$0xf] %vm551, %v509
  %575 = vst.msk [vmem:[%s4 + $0x5c] sm:$0xf] %vm551, %v510
  %576 = vst.msk [vmem:[%s4 + $0x60] sm:$0xf] %vm551, %v511
  %577 = vst.msk [vmem:[%s4 + $0x64] sm:$0xf] %vm551, %v512
  %578 = vst.msk [vmem:[%s4 + $0x68] sm:$0xf] %vm551, %v513
  %579 = vst.msk [vmem:[%s4 + $0x6c] sm:$0xf] %vm551, %v514
  %580 = vst.msk [vmem:[%s4 + $0x70] sm:$0xf] %vm551, %v515
  %581 = vst.msk [vmem:[%s4 + $0x74] sm:$0xf] %vm551, %v516
  %582 = vst.msk [vmem:[%s4 + $0x78] sm:$0xf] %vm551, %v517
  %583 = vst.msk [vmem:[%s4 + $0x7c] sm:$0xf] %vm551, %v518
  // Predicated region
  $region18: #{_lambda_.10} parent=0 // pred_check
    _
  $region19: #{_lambda_.10} parent=0 // pred_check_branch
    %585 = sbr.rel (0) target = $region21
  $region20: #{_lambda_.10} parent=0 // pred_region
    _
  $region21: #{_lambda_.10} parent=0 // pred_fallthru
    _
  // Predicated region
  $region22: #{_lambda_.10} parent=0 // pred_check
    _
  $region23: #{_lambda_.10} parent=0 // pred_check_branch
    %587 = sbr.rel (0) target = $region25
  $region24: #{_lambda_.10} parent=0 // pred_region
    _
  $region25: #{_lambda_.10} parent=0 // pred_fallthru
    _

// kernel: _lambda_.15
$region0: #{_lambda_.15}
  #allocation0 [shape = 'u32[]', space=smem, size = 0x4, offset = 0x4, fixed_abs, tag = 'smem constant byte address 0x4 - core index']
  #allocation1 [shape = 'u32[144,128]{1,0:T(1,128)}', space=vmem, size = 0x12000, scoped, tag = 'internal scratch']
  %s0 = inlined_call_operand.vmem [shape: bf16[4,64,32], index: 0, kind: input, shape index: {}]
  %s1 = inlined_call_operand.vmem [shape: bf16[32,32], index: 1, kind: input, shape index: {}]
  %s2 = inlined_call_operand.vmem [shape: f32[1,32], index: 2, kind: input, shape index: {}]
  %s3 = inlined_call_operand.vmem [shape: bf16[256,64], index: 3, kind: input, shape index: {}]
  %s4 = inlined_call_operand.vmem [shape: bf16[4,256,32], index: 4, kind: output, shape index: {}]
  %s5 = sld [smem:[#allocation0]]
  $region26: #{_lambda_.15} parent=0
    _
  %s7 = ssub.s32 1, %s5
  %s8 = scalar_select 0, %s7, %s5
  // Predicated region
  $region2: #{_lambda_.15} parent=0 // pred_check
    _
  $region3: #{_lambda_.15} parent=0 // pred_check_branch
    %10 = sbr.rel (0) target = $region5
  $region4: #{_lambda_.15} parent=0 // pred_region
    _
  $region5: #{_lambda_.15} parent=0 // pred_fallthru
    _
  // Predicated region
  $region6: #{_lambda_.15} parent=0 // pred_check
    _
  $region7: #{_lambda_.15} parent=0 // pred_check_branch
    %12 = sbr.rel (0) target = $region9
  $region8: #{_lambda_.15} parent=0 // pred_region
    _
  $region9: #{_lambda_.15} parent=0 // pred_fallthru
    _
  // Predicated region
  $region10: #{_lambda_.15} parent=0 // pred_check
    _
  $region11: #{_lambda_.15} parent=0 // pred_check_branch
    %14 = sbr.rel (0) target = $region13
  $region12: #{_lambda_.15} parent=0 // pred_region
    _
  $region13: #{_lambda_.15} parent=0 // pred_fallthru
    _
  // Predicated region
  $region14: #{_lambda_.15} parent=0 // pred_check
    _
  $region15: #{_lambda_.15} parent=0 // pred_check_branch
    %16 = sbr.rel (0) target = $region17
  $region16: #{_lambda_.15} parent=0 // pred_region
    _
  $region17: #{_lambda_.15} parent=0 // pred_fallthru
    _
  %v18 = vld [vmem:[%s1] sm:$0xf]
  %v19 = vld [vmem:[%s1 + $0x4] sm:$0xf]
  %v20 = vld [vmem:[%s1 + $0x8] sm:$0xf]
  %v21 = vld [vmem:[%s1 + $0xc] sm:$0xf]
  %v22 = vld [vmem:[%s2] sm:$0x1]
  %v23 = vld [vmem:[%s3] sm:$0xf]
  %v24 = vld [vmem:[%s3 + $0x4] sm:$0xf]
  %v25 = vld [vmem:[%s3 + $0x8] sm:$0xf]
  %v26 = vld [vmem:[%s3 + $0xc] sm:$0xf]
  %v27 = vld [vmem:[%s3 + $0x10] sm:$0xf]
  %v28 = vld [vmem:[%s3 + $0x14] sm:$0xf]
  %v29 = vld [vmem:[%s3 + $0x18] sm:$0xf]
  %v30 = vld [vmem:[%s3 + $0x1c] sm:$0xf]
  %v31 = vld [vmem:[%s3 + $0x20] sm:$0xf]
  %v32 = vld [vmem:[%s3 + $0x24] sm:$0xf]
  %v33 = vld [vmem:[%s3 + $0x28] sm:$0xf]
  %v34 = vld [vmem:[%s3 + $0x2c] sm:$0xf]
  %v35 = vld [vmem:[%s3 + $0x30] sm:$0xf]
  %v36 = vld [vmem:[%s3 + $0x34] sm:$0xf]
  %v37 = vld [vmem:[%s3 + $0x38] sm:$0xf]
  %v38 = vld [vmem:[%s3 + $0x3c] sm:$0xf]
  %v39 = vld [vmem:[%s3 + $0x40] sm:$0xf]
  %v40 = vld [vmem:[%s3 + $0x44] sm:$0xf]
  %v41 = vld [vmem:[%s3 + $0x48] sm:$0xf]
  %v42 = vld [vmem:[%s3 + $0x4c] sm:$0xf]
  %v43 = vld [vmem:[%s3 + $0x50] sm:$0xf]
  %v44 = vld [vmem:[%s3 + $0x54] sm:$0xf]
  %v45 = vld [vmem:[%s3 + $0x58] sm:$0xf]
  %v46 = vld [vmem:[%s3 + $0x5c] sm:$0xf]
  %v47 = vld [vmem:[%s3 + $0x60] sm:$0xf]
  %v48 = vld [vmem:[%s3 + $0x64] sm:$0xf]
  %v49 = vld [vmem:[%s3 + $0x68] sm:$0xf]
  %v50 = vld [vmem:[%s3 + $0x6c] sm:$0xf]
  %v51 = vld [vmem:[%s3 + $0x70] sm:$0xf]
  %v52 = vld [vmem:[%s3 + $0x74] sm:$0xf]
  %v53 = vld [vmem:[%s3 + $0x78] sm:$0xf]
  %v54 = vld [vmem:[%s3 + $0x7c] sm:$0xf]
  %v55 = vld [vmem:[%s0] sm:$0xf]
  %v56 = vld [vmem:[%s0 + $0x4] sm:$0xf]
  %v57 = vld [vmem:[%s0 + $0x8] sm:$0xf]
  %v58 = vld [vmem:[%s0 + $0xc] sm:$0xf]
  %v59 = vld [vmem:[%s0 + $0x10] sm:$0xf]
  %v60 = vld [vmem:[%s0 + $0x14] sm:$0xf]
  %v61 = vld [vmem:[%s0 + $0x18] sm:$0xf]
  %v62 = vld [vmem:[%s0 + $0x1c] sm:$0xf]
  %v64 = vlaneseq
  %v65 = vshrl.u32 %v64, 7
  %v66 = vsub.s32 0, %v65
  %v67 = vrot.slane %v22, %v66
  %v77 = vunpack.c.l.b16 %v55
  %v78 = vunpack.c.l.b16 %v56
  %v79 = vunpack.c.l.b16 %v57
  %v80 = vunpack.c.l.b16 %v58
  %v81 = vunpack.c.l.b16 %v59
  %v82 = vunpack.c.l.b16 %v60
  %v83 = vunpack.c.l.b16 %v61
  %v84 = vunpack.c.l.b16 %v62
  %v85 = vpack.c.b16 %v78, %v77
  %v86 = vpack.c.b16 %v80, %v79
  %v87 = vpack.c.b16 %v82, %v81
  %v88 = vpack.c.b16 %v84, %v83
  %v93 = vunpack.c.l.b16 %v18
  %v94 = vunpack.c.l.b16 %v19
  %v95 = vunpack.c.l.b16 %v20
  %v96 = vunpack.c.l.b16 %v21
  %v97 = vpack.c.b16 %v94, %v93
  %v98 = vpack.c.b16 %v96, %v95
  %vm101 = vcmask 261120
  %v103 = vsel %vm101, %v85, 0
  %v106 = vsel %vm101, %v86, 0
  %v109 = vsel %vm101, %v87, 0
  %v112 = vsel %vm101, %v88, 0
  %114 = vmatprep.subr.bf16.mxu0 0
  %115 = vmatpush1.bf16.msra.mxu0 0
  %116 = vmatprep.subr.bf16.mxu0 0
  %117 = vmatpush1.bf16.msra.mxu0 0
  %118 = vmatprep.subr.bf16.mxu0 0
  %119 = vmatpush1.bf16.msra.mxu0 0
  %120 = vmatprep.subr.bf16.mxu0 0
  %121 = vmatpush1.bf16.msra.mxu0 0
  %122 = vmatprep.subr.bf16.mxu0 0
  %123 = vmatpush1.bf16.msra.mxu0 0
  %124 = vmatprep.subr.bf16.mxu0 0
  %125 = vmatpush1.bf16.msra.mxu0 0
  %126 = vmatprep.subr.bf16.mxu0 0
  %127 = vmatpush1.bf16.msra.mxu0 %v98
  %128 = vmatprep.subr.bf16.mxu0 0
  %129 = vmatpush1.bf16.msra.mxu0 %v97
  %130 = vmatprep.subr.bf16.mxu0 0
  %131 = vmatpush2.bf16.msra.mxu0 0
  %132 = vmatprep.subr.bf16.mxu0 0
  %133 = vmatpush2.bf16.msra.mxu0 0
  %134 = vmatprep.subr.bf16.mxu0 0
  %135 = vmatpush2.bf16.msra.mxu0 0
  %136 = vmatprep.subr.bf16.mxu0 0
  %137 = vmatpush2.bf16.msra.mxu0 0
  %138 = vmatprep.subr.bf16.mxu0 0
  %139 = vmatpush2.bf16.msra.mxu0 0
  %140 = vmatprep.subr.bf16.mxu0 0
  %141 = vmatpush2.bf16.msra.mxu0 0
  %142 = vmatprep.subr.bf16.mxu0 0
  %143 = vmatpush2.bf16.msra.mxu0 0
  %144 = vmatprep.subr.bf16.mxu0 0
  %145 = vmatpush2.bf16.msra.mxu0 0
  %146 = vmatprep.mubr.bf16.mxu0 0
  %147 = vmatmul.mubr.bf16.gmra.mxu0 %v103
  %v148 = vpop.f32.mrf.mxu0
  %v149 = vadd.f32 %v67, %v148
  %v150 = vpop.f32.mrf.mxu0
  %v151 = vpop.f32.mrf.mxu0
  %v152 = vadd.f32 %v67, %v151
  %v153 = vpop.f32.mrf.mxu0
  %154 = vmatprep.mubr.bf16.mxu0 0
  %155 = vmatmul.mubr.bf16.gmra.mxu0 %v106
  %v156 = vpop.f32.mrf.mxu0
  %v157 = vadd.f32 %v67, %v156
  %v158 = vpop.f32.mrf.mxu0
  %v159 = vpop.f32.mrf.mxu0
  %v160 = vadd.f32 %v67, %v159
  %v161 = vpop.f32.mrf.mxu0
  %162 = vmatprep.mubr.bf16.mxu0 0
  %163 = vmatmul.mubr.bf16.gmra.mxu0 %v109
  %v164 = vpop.f32.mrf.mxu0
  %v165 = vadd.f32 %v67, %v164
  %v166 = vpop.f32.mrf.mxu0
  %v167 = vpop.f32.mrf.mxu0
  %v168 = vadd.f32 %v67, %v167
  %v169 = vpop.f32.mrf.mxu0
  %170 = vmatprep.mubr.bf16.mxu0 0
  %171 = vmatmul.mubr.bf16.gmra.mxu0 %v112
  %v172 = vpop.f32.mrf.mxu0
  %v173 = vadd.f32 %v67, %v172
  %v174 = vpop.f32.mrf.mxu0
  %v175 = vpop.f32.mrf.mxu0
  %v176 = vadd.f32 %v67, %v175
  %v177 = vpop.f32.mrf.mxu0
  %178 = vdwg.mxu0
  %v179 = vpack.c.bf16 %v152, %v149
  %v180 = vpack.c.bf16 %v160, %v157
  %v181 = vpack.c.bf16 %v168, %v165
  %v182 = vpack.c.bf16 %v176, %v173
  %v215 = vunpack.c.l.b16 %v23
  %v216 = vunpack.c.l.b16 %v24
  %v217 = vunpack.c.l.b16 %v25
  %v218 = vunpack.c.l.b16 %v26
  %v219 = vunpack.c.l.b16 %v27
  %v220 = vunpack.c.l.b16 %v28
  %v221 = vunpack.c.l.b16 %v29
  %v222 = vunpack.c.l.b16 %v30
  %v223 = vunpack.c.l.b16 %v31
  %v224 = vunpack.c.l.b16 %v32
  %v225 = vunpack.c.l.b16 %v33
  %v226 = vunpack.c.l.b16 %v34
  %v227 = vunpack.c.l.b16 %v35
  %v228 = vunpack.c.l.b16 %v36
  %v229 = vunpack.c.l.b16 %v37
  %v230 = vunpack.c.l.b16 %v38
  %v231 = vunpack.c.l.b16 %v39
  %v232 = vunpack.c.l.b16 %v40
  %v233 = vunpack.c.l.b16 %v41
  %v234 = vunpack.c.l.b16 %v42
  %v235 = vunpack.c.l.b16 %v43
  %v236 = vunpack.c.l.b16 %v44
  %v237 = vunpack.c.l.b16 %v45
  %v238 = vunpack.c.l.b16 %v46
  %v239 = vunpack.c.l.b16 %v47
  %v240 = vunpack.c.l.b16 %v48
  %v241 = vunpack.c.l.b16 %v49
  %v242 = vunpack.c.l.b16 %v50
  %v243 = vunpack.c.l.b16 %v51
  %v244 = vunpack.c.l.b16 %v52
  %v245 = vunpack.c.l.b16 %v53
  %v246 = vunpack.c.l.b16 %v54
  %v247 = vpack.c.b16 %v216, %v215
  %v248 = vpack.c.b16 %v218, %v217
  %v249 = vpack.c.b16 %v220, %v219
  %v250 = vpack.c.b16 %v222, %v221
  %v251 = vpack.c.b16 %v224, %v223
  %v252 = vpack.c.b16 %v226, %v225
  %v253 = vpack.c.b16 %v228, %v227
  %v254 = vpack.c.b16 %v230, %v229
  %v255 = vpack.c.b16 %v232, %v231
  %v256 = vpack.c.b16 %v234, %v233
  %v257 = vpack.c.b16 %v236, %v235
  %v258 = vpack.c.b16 %v238, %v237
  %v259 = vpack.c.b16 %v240, %v239
  %v260 = vpack.c.b16 %v242, %v241
  %v261 = vpack.c.b16 %v244, %v243
  %v262 = vpack.c.b16 %v246, %v245
  %vm263 = vcmask 523264
  %v265 = vsel %vm263, %v247, 0
  %v268 = vsel %vm263, %v248, 0
  %v271 = vsel %vm263, %v249, 0
  %v274 = vsel %vm263, %v250, 0
  %v277 = vsel %vm263, %v251, 0
  %v280 = vsel %vm263, %v252, 0
  %v283 = vsel %vm263, %v253, 0
  %v286 = vsel %vm263, %v254, 0
  %v289 = vsel %vm263, %v255, 0
  %v292 = vsel %vm263, %v256, 0
  %v295 = vsel %vm263, %v257, 0
  %v298 = vsel %vm263, %v258, 0
  %v301 = vsel %vm263, %v259, 0
  %v304 = vsel %vm263, %v260, 0
  %v307 = vsel %vm263, %v261, 0
  %v310 = vsel %vm263, %v262, 0
  %312 = vmatprep.subr.bf16.mxu0 0
  %313 = vmatpush1.bf16.msra.mxu0 0
  %314 = vmatprep.subr.bf16.mxu0 0
  %315 = vmatpush1.bf16.msra.mxu0 0
  %316 = vmatprep.subr.bf16.mxu0 0
  %317 = vmatpush1.bf16.msra.mxu0 0
  %318 = vmatprep.subr.bf16.mxu0 0
  %319 = vmatpush1.bf16.msra.mxu0 0
  %320 = vmatprep.subr.bf16.mxu0 0
  %321 = vmatpush1.bf16.msra.mxu0 %v182
  %322 = vmatprep.subr.bf16.mxu0 0
  %323 = vmatpush1.bf16.msra.mxu0 %v181
  %324 = vmatprep.subr.bf16.mxu0 0
  %325 = vmatpush1.bf16.msra.mxu0 %v180
  %326 = vmatprep.subr.bf16.mxu0 0
  %327 = vmatpush1.bf16.msra.mxu0 %v179
  %328 = vmatprep.subr.bf16.mxu0 0
  %329 = vmatpush2.bf16.msra.mxu0 0
  %330 = vmatprep.subr.bf16.mxu0 0
  %331 = vmatpush2.bf16.msra.mxu0 0
  %332 = vmatprep.subr.bf16.mxu0 0
  %333 = vmatpush2.bf16.msra.mxu0 0
  %334 = vmatprep.subr.bf16.mxu0 0
  %335 = vmatpush2.bf16.msra.mxu0 0
  %336 = vmatprep.subr.bf16.mxu0 0
  %337 = vmatpush2.bf16.msra.mxu0 0
  %338 = vmatprep.subr.bf16.mxu0 0
  %339 = vmatpush2.bf16.msra.mxu0 0
  %340 = vmatprep.subr.bf16.mxu0 0
  %341 = vmatpush2.bf16.msra.mxu0 0
  %342 = vmatprep.subr.bf16.mxu0 0
  %343 = vmatpush2.bf16.msra.mxu0 0
  %344 = vmatprep.mubr.bf16.mxu0 0
  %345 = vmatmul.mubr.bf16.gmra.mxu0 %v265
  %v346 = vpop.f32.mrf.mxu0
  %v347 = vadd.f32 0.0, %v346
  %v348 = vpop.f32.mrf.mxu0
  %v349 = vpop.f32.mrf.mxu0
  %v350 = vadd.f32 0.0, %v349
  %v351 = vpop.f32.mrf.mxu0
  %352 = vmatprep.mubr.bf16.mxu0 0
  %353 = vmatmul.mubr.bf16.gmra.mxu0 %v268
  %v354 = vpop.f32.mrf.mxu0
  %v355 = vadd.f32 0.0, %v354
  %v356 = vpop.f32.mrf.mxu0
  %v357 = vpop.f32.mrf.mxu0
  %v358 = vadd.f32 0.0, %v357
  %v359 = vpop.f32.mrf.mxu0
  %360 = vmatprep.mubr.bf16.mxu0 0
  %361 = vmatmul.mubr.bf16.gmra.mxu0 %v271
  %v362 = vpop.f32.mrf.mxu0
  %v363 = vadd.f32 0.0, %v362
  %v364 = vpop.f32.mrf.mxu0
  %v365 = vpop.f32.mrf.mxu0
  %v366 = vadd.f32 0.0, %v365
  %v367 = vpop.f32.mrf.mxu0
  %368 = vmatprep.mubr.bf16.mxu0 0
  %369 = vmatmul.mubr.bf16.gmra.mxu0 %v274
  %v370 = vpop.f32.mrf.mxu0
  %v371 = vadd.f32 0.0, %v370
  %v372 = vpop.f32.mrf.mxu0
  %v373 = vpop.f32.mrf.mxu0
  %v374 = vadd.f32 0.0, %v373
  %v375 = vpop.f32.mrf.mxu0
  %376 = vmatprep.mubr.bf16.mxu0 0
  %377 = vmatmul.mubr.bf16.gmra.mxu0 %v277
  %v378 = vpop.f32.mrf.mxu0
  %v379 = vadd.f32 0.0, %v378
  %v380 = vpop.f32.mrf.mxu0
  %v381 = vpop.f32.mrf.mxu0
  %v382 = vadd.f32 0.0, %v381
  %v383 = vpop.f32.mrf.mxu0
  %384 = vmatprep.mubr.bf16.mxu0 0
  %385 = vmatmul.mubr.bf16.gmra.mxu0 %v280
  %v386 = vpop.f32.mrf.mxu0
  %v387 = vadd.f32 0.0, %v386
  %v388 = vpop.f32.mrf.mxu0
  %v389 = vpop.f32.mrf.mxu0
  %v390 = vadd.f32 0.0, %v389
  %v391 = vpop.f32.mrf.mxu0
  %392 = vmatprep.mubr.bf16.mxu0 0
  %393 = vmatmul.mubr.bf16.gmra.mxu0 %v283
  %v394 = vpop.f32.mrf.mxu0
  %v395 = vadd.f32 0.0, %v394
  %v396 = vpop.f32.mrf.mxu0
  %v397 = vpop.f32.mrf.mxu0
  %v398 = vadd.f32 0.0, %v397
  %v399 = vpop.f32.mrf.mxu0
  %400 = vmatprep.mubr.bf16.mxu0 0
  %401 = vmatmul.mubr.bf16.gmra.mxu0 %v286
  %v402 = vpop.f32.mrf.mxu0
  %v403 = vadd.f32 0.0, %v402
  %v404 = vpop.f32.mrf.mxu0
  %v405 = vpop.f32.mrf.mxu0
  %v406 = vadd.f32 0.0, %v405
  %v407 = vpop.f32.mrf.mxu0
  %408 = vmatprep.mubr.bf16.mxu0 0
  %409 = vmatmul.mubr.bf16.gmra.mxu0 %v289
  %v410 = vpop.f32.mrf.mxu0
  %v411 = vadd.f32 0.0, %v410
  %v412 = vpop.f32.mrf.mxu0
  %v413 = vpop.f32.mrf.mxu0
  %v414 = vadd.f32 0.0, %v413
  %v415 = vpop.f32.mrf.mxu0
  %416 = vmatprep.mubr.bf16.mxu0 0
  %417 = vmatmul.mubr.bf16.gmra.mxu0 %v292
  %v418 = vpop.f32.mrf.mxu0
  %v419 = vadd.f32 0.0, %v418
  %v420 = vpop.f32.mrf.mxu0
  %v421 = vpop.f32.mrf.mxu0
  %v422 = vadd.f32 0.0, %v421
  %v423 = vpop.f32.mrf.mxu0
  %424 = vmatprep.mubr.bf16.mxu0 0
  %425 = vmatmul.mubr.bf16.gmra.mxu0 %v295
  %v426 = vpop.f32.mrf.mxu0
  %v427 = vadd.f32 0.0, %v426
  %v428 = vpop.f32.mrf.mxu0
  %v429 = vpop.f32.mrf.mxu0
  %v430 = vadd.f32 0.0, %v429
  %v431 = vpop.f32.mrf.mxu0
  %432 = vmatprep.mubr.bf16.mxu0 0
  %433 = vmatmul.mubr.bf16.gmra.mxu0 %v298
  %v434 = vpop.f32.mrf.mxu0
  %v435 = vadd.f32 0.0, %v434
  %v436 = vpop.f32.mrf.mxu0
  %v437 = vpop.f32.mrf.mxu0
  %v438 = vadd.f32 0.0, %v437
  %v439 = vpop.f32.mrf.mxu0
  %440 = vmatprep.mubr.bf16.mxu0 0
  %441 = vmatmul.mubr.bf16.gmra.mxu0 %v301
  %v442 = vpop.f32.mrf.mxu0
  %v443 = vadd.f32 0.0, %v442
  %v444 = vpop.f32.mrf.mxu0
  %v445 = vpop.f32.mrf.mxu0
  %v446 = vadd.f32 0.0, %v445
  %v447 = vpop.f32.mrf.mxu0
  %448 = vmatprep.mubr.bf16.mxu0 0
  %449 = vmatmul.mubr.bf16.gmra.mxu0 %v304
  %v450 = vpop.f32.mrf.mxu0
  %v451 = vadd.f32 0.0, %v450
  %v452 = vpop.f32.mrf.mxu0
  %v453 = vpop.f32.mrf.mxu0
  %v454 = vadd.f32 0.0, %v453
  %v455 = vpop.f32.mrf.mxu0
  %456 = vmatprep.mubr.bf16.mxu0 0
  %457 = vmatmul.mubr.bf16.gmra.mxu0 %v307
  %v458 = vpop.f32.mrf.mxu0
  %v459 = vadd.f32 0.0, %v458
  %v460 = vpop.f32.mrf.mxu0
  %v461 = vpop.f32.mrf.mxu0
  %v462 = vadd.f32 0.0, %v461
  %v463 = vpop.f32.mrf.mxu0
  %464 = vmatprep.mubr.bf16.mxu0 0
  %465 = vmatmul.mubr.bf16.gmra.mxu0 %v310
  %v466 = vpop.f32.mrf.mxu0
  %v467 = vadd.f32 0.0, %v466
  %v468 = vpop.f32.mrf.mxu0
  %v469 = vpop.f32.mrf.mxu0
  %v470 = vadd.f32 0.0, %v469
  %v471 = vpop.f32.mrf.mxu0
  %472 = vdwg.mxu0
  %v473 = vpack.c.bf16 %v350, %v347
  %v474 = vpack.c.bf16 %v358, %v355
  %v475 = vpack.c.bf16 %v366, %v363
  %v476 = vpack.c.bf16 %v374, %v371
  %v477 = vpack.c.bf16 %v382, %v379
  %v478 = vpack.c.bf16 %v390, %v387
  %v479 = vpack.c.bf16 %v398, %v395
  %v480 = vpack.c.bf16 %v406, %v403
  %v481 = vpack.c.bf16 %v414, %v411
  %v482 = vpack.c.bf16 %v422, %v419
  %v483 = vpack.c.bf16 %v430, %v427
  %v484 = vpack.c.bf16 %v438, %v435
  %v485 = vpack.c.bf16 %v446, %v443
  %v486 = vpack.c.bf16 %v454, %v451
  %v487 = vpack.c.bf16 %v462, %v459
  %v488 = vpack.c.bf16 %v470, %v467
  %v505 = vunpack.c.l.b16 %v473
  %v506 = vunpack.c.h.b16 %v473
  %v507 = vunpack.c.l.b16 %v474
  %v508 = vunpack.c.h.b16 %v474
  %v509 = vunpack.c.l.b16 %v475
  %v510 = vunpack.c.h.b16 %v475
  %v511 = vunpack.c.l.b16 %v476
  %v512 = vunpack.c.h.b16 %v476
  %v513 = vunpack.c.l.b16 %v477
  %v514 = vunpack.c.h.b16 %v477
  %v515 = vunpack.c.l.b16 %v478
  %v516 = vunpack.c.h.b16 %v478
  %v517 = vunpack.c.l.b16 %v479
  %v518 = vunpack.c.h.b16 %v479
  %v519 = vunpack.c.l.b16 %v480
  %v520 = vunpack.c.h.b16 %v480
  %v521 = vunpack.c.l.b16 %v481
  %v522 = vunpack.c.h.b16 %v481
  %v523 = vunpack.c.l.b16 %v482
  %v524 = vunpack.c.h.b16 %v482
  %v525 = vunpack.c.l.b16 %v483
  %v526 = vunpack.c.h.b16 %v483
  %v527 = vunpack.c.l.b16 %v484
  %v528 = vunpack.c.h.b16 %v484
  %v529 = vunpack.c.l.b16 %v485
  %v530 = vunpack.c.h.b16 %v485
  %v531 = vunpack.c.l.b16 %v486
  %v532 = vunpack.c.h.b16 %v486
  %v533 = vunpack.c.l.b16 %v487
  %v534 = vunpack.c.h.b16 %v487
  %v535 = vunpack.c.l.b16 %v488
  %v536 = vunpack.c.h.b16 %v488
  %v537 = vpack.c.b16 %v505, %v505
  %v538 = vpack.c.b16 %v506, %v506
  %v539 = vpack.c.b16 %v507, %v507
  %v540 = vpack.c.b16 %v508, %v508
  %v541 = vpack.c.b16 %v509, %v509
  %v542 = vpack.c.b16 %v510, %v510
  %v543 = vpack.c.b16 %v511, %v511
  %v544 = vpack.c.b16 %v512, %v512
  %v545 = vpack.c.b16 %v513, %v513
  %v546 = vpack.c.b16 %v514, %v514
  %v547 = vpack.c.b16 %v515, %v515
  %v548 = vpack.c.b16 %v516, %v516
  %v549 = vpack.c.b16 %v517, %v517
  %v550 = vpack.c.b16 %v518, %v518
  %v551 = vpack.c.b16 %v519, %v519
  %v552 = vpack.c.b16 %v520, %v520
  %v553 = vpack.c.b16 %v521, %v521
  %v554 = vpack.c.b16 %v522, %v522
  %v555 = vpack.c.b16 %v523, %v523
  %v556 = vpack.c.b16 %v524, %v524
  %v557 = vpack.c.b16 %v525, %v525
  %v558 = vpack.c.b16 %v526, %v526
  %v559 = vpack.c.b16 %v527, %v527
  %v560 = vpack.c.b16 %v528, %v528
  %v561 = vpack.c.b16 %v529, %v529
  %v562 = vpack.c.b16 %v530, %v530
  %v563 = vpack.c.b16 %v531, %v531
  %v564 = vpack.c.b16 %v532, %v532
  %v565 = vpack.c.b16 %v533, %v533
  %v566 = vpack.c.b16 %v534, %v534
  %v567 = vpack.c.b16 %v535, %v535
  %v568 = vpack.c.b16 %v536, %v536
  %vm601 = vcmask 257024
  %602 = vst.msk [vmem:[%s4] sm:$0xf] %vm601, %v537
  %603 = vst.msk [vmem:[%s4 + $0x4] sm:$0xf] %vm601, %v538
  %604 = vst.msk [vmem:[%s4 + $0x8] sm:$0xf] %vm601, %v539
  %605 = vst.msk [vmem:[%s4 + $0xc] sm:$0xf] %vm601, %v540
  %606 = vst.msk [vmem:[%s4 + $0x10] sm:$0xf] %vm601, %v541
  %607 = vst.msk [vmem:[%s4 + $0x14] sm:$0xf] %vm601, %v542
  %608 = vst.msk [vmem:[%s4 + $0x18] sm:$0xf] %vm601, %v543
  %609 = vst.msk [vmem:[%s4 + $0x1c] sm:$0xf] %vm601, %v544
  %610 = vst.msk [vmem:[%s4 + $0x20] sm:$0xf] %vm601, %v545
  %611 = vst.msk [vmem:[%s4 + $0x24] sm:$0xf] %vm601, %v546
  %612 = vst.msk [vmem:[%s4 + $0x28] sm:$0xf] %vm601, %v547
  %613 = vst.msk [vmem:[%s4 + $0x2c] sm:$0xf] %vm601, %v548
  %614 = vst.msk [vmem:[%s4 + $0x30] sm:$0xf] %vm601, %v549
  %615 = vst.msk [vmem:[%s4 + $0x34] sm:$0xf] %vm601, %v550
  %616 = vst.msk [vmem:[%s4 + $0x38] sm:$0xf] %vm601, %v551
  %617 = vst.msk [vmem:[%s4 + $0x3c] sm:$0xf] %vm601, %v552
  %618 = vst.msk [vmem:[%s4 + $0x40] sm:$0xf] %vm601, %v553
  %619 = vst.msk [vmem:[%s4 + $0x44] sm:$0xf] %vm601, %v554
  %620 = vst.msk [vmem:[%s4 + $0x48] sm:$0xf] %vm601, %v555
  %621 = vst.msk [vmem:[%s4 + $0x4c] sm:$0xf] %vm601, %v556
  %622 = vst.msk [vmem:[%s4 + $0x50] sm:$0xf] %vm601, %v557
  %623 = vst.msk [vmem:[%s4 + $0x54] sm:$0xf] %vm601, %v558
  %624 = vst.msk [vmem:[%s4 + $0x58] sm:$0xf] %vm601, %v559
  %625 = vst.msk [vmem:[%s4 + $0x5c] sm:$0xf] %vm601, %v560
  %626 = vst.msk [vmem:[%s4 + $0x60] sm:$0xf] %vm601, %v561
  %627 = vst.msk [vmem:[%s4 + $0x64] sm:$0xf] %vm601, %v562
  %628 = vst.msk [vmem:[%s4 + $0x68] sm:$0xf] %vm601, %v563
  %629 = vst.msk [vmem:[%s4 + $0x6c] sm:$0xf] %vm601, %v564
  %630 = vst.msk [vmem:[%s4 + $0x70] sm:$0xf] %vm601, %v565
  %631 = vst.msk [vmem:[%s4 + $0x74] sm:$0xf] %vm601, %v566
  %632 = vst.msk [vmem:[%s4 + $0x78] sm:$0xf] %vm601, %v567
  %633 = vst.msk [vmem:[%s4 + $0x7c] sm:$0xf] %vm601, %v568
  %s634 = scalar_lea.vmem %s0, 32
  %v635 = vld [vmem:[%s634] sm:$0xf]
  %v636 = vld [vmem:[%s634 + $0x4] sm:$0xf]
  %v637 = vld [vmem:[%s634 + $0x8] sm:$0xf]
  %v638 = vld [vmem:[%s634 + $0xc] sm:$0xf]
  %v639 = vld [vmem:[%s634 + $0x10] sm:$0xf]
  %v640 = vld [vmem:[%s634 + $0x14] sm:$0xf]
  %v641 = vld [vmem:[%s634 + $0x18] sm:$0xf]
  %v642 = vld [vmem:[%s634 + $0x1c] sm:$0xf]
  %v651 = vunpack.c.l.b16 %v635
  %v652 = vunpack.c.l.b16 %v636
  %v653 = vunpack.c.l.b16 %v637
  %v654 = vunpack.c.l.b16 %v638
  %v655 = vunpack.c.l.b16 %v639
  %v656 = vunpack.c.l.b16 %v640
  %v657 = vunpack.c.l.b16 %v641
  %v658 = vunpack.c.l.b16 %v642
  %v659 = vpack.c.b16 %v652, %v651
  %v660 = vpack.c.b16 %v654, %v653
  %v661 = vpack.c.b16 %v656, %v655
  %v662 = vpack.c.b16 %v658, %v657
  %v664 = vsel %vm101, %v659, 0
  %v667 = vsel %vm101, %v660, 0
  %v670 = vsel %vm101, %v661, 0
  %v673 = vsel %vm101, %v662, 0
  %675 = vmatprep.subr.bf16.mxu0 0
  %676 = vmatpush1.bf16.msra.mxu0 0
  %677 = vmatprep.subr.bf16.mxu0 0
  %678 = vmatpush1.bf16.msra.mxu0 0
  %679 = vmatprep.subr.bf16.mxu0 0
  %680 = vmatpush1.bf16.msra.mxu0 0
  %681 = vmatprep.subr.bf16.mxu0 0
  %682 = vmatpush1.bf16.msra.mxu0 0
  %683 = vmatprep.subr.bf16.mxu0 0
  %684 = vmatpush1.bf16.msra.mxu0 0
  %685 = vmatprep.subr.bf16.mxu0 0
  %686 = vmatpush1.bf16.msra.mxu0 0
  %687 = vmatprep.subr.bf16.mxu0 0
  %688 = vmatpush1.bf16.msra.mxu0 %v98
  %689 = vmatprep.subr.bf16.mxu0 0
  %690 = vmatpush1.bf16.msra.mxu0 %v97
  %691 = vmatprep.subr.bf16.mxu0 0
  %692 = vmatpush2.bf16.msra.mxu0 0
  %693 = vmatprep.subr.bf16.mxu0 0
  %694 = vmatpush2.bf16.msra.mxu0 0
  %695 = vmatprep.subr.bf16.mxu0 0
  %696 = vmatpush2.bf16.msra.mxu0 0
  %697 = vmatprep.subr.bf16.mxu0 0
  %698 = vmatpush2.bf16.msra.mxu0 0
  %699 = vmatprep.subr.bf16.mxu0 0
  %700 = vmatpush2.bf16.msra.mxu0 0
  %701 = vmatprep.subr.bf16.mxu0 0
  %702 = vmatpush2.bf16.msra.mxu0 0
  %703 = vmatprep.subr.bf16.mxu0 0
  %704 = vmatpush2.bf16.msra.mxu0 0
  %705 = vmatprep.subr.bf16.mxu0 0
  %706 = vmatpush2.bf16.msra.mxu0 0
  %707 = vmatprep.mubr.bf16.mxu0 0
  %708 = vmatmul.mubr.bf16.gmra.mxu0 %v664
  %v709 = vpop.f32.mrf.mxu0
  %v710 = vadd.f32 %v67, %v709
  %v711 = vpop.f32.mrf.mxu0
  %v712 = vpop.f32.mrf.mxu0
  %v713 = vadd.f32 %v67, %v712
  %v714 = vpop.f32.mrf.mxu0
  %715 = vmatprep.mubr.bf16.mxu0 0
  %716 = vmatmul.mubr.bf16.gmra.mxu0 %v667
  %v717 = vpop.f32.mrf.mxu0
  %v718 = vadd.f32 %v67, %v717
  %v719 = vpop.f32.mrf.mxu0
  %v720 = vpop.f32.mrf.mxu0
  %v721 = vadd.f32 %v67, %v720
  %v722 = vpop.f32.mrf.mxu0
  %723 = vmatprep.mubr.bf16.mxu0 0
  %724 = vmatmul.mubr.bf16.gmra.mxu0 %v670
  %v725 = vpop.f32.mrf.mxu0
  %v726 = vadd.f32 %v67, %v725
  %v727 = vpop.f32.mrf.mxu0
  %v728 = vpop.f32.mrf.mxu0
  %v729 = vadd.f32 %v67, %v728
  %v730 = vpop.f32.mrf.mxu0
  %731 = vmatprep.mubr.bf16.mxu0 0
  %732 = vmatmul.mubr.bf16.gmra.mxu0 %v673
  %v733 = vpop.f32.mrf.mxu0
  %v734 = vadd.f32 %v67, %v733
  %v735 = vpop.f32.mrf.mxu0
  %v736 = vpop.f32.mrf.mxu0
  %v737 = vadd.f32 %v67, %v736
  %v738 = vpop.f32.mrf.mxu0
  %739 = vdwg.mxu0
  %v740 = vpack.c.bf16 %v713, %v710
  %v741 = vpack.c.bf16 %v721, %v718
  %v742 = vpack.c.bf16 %v729, %v726
  %v743 = vpack.c.bf16 %v737, %v734
  %744 = vmatprep.subr.bf16.mxu0 0
  %745 = vmatpush1.bf16.msra.mxu0 0
  %746 = vmatprep.subr.bf16.mxu0 0
  %747 = vmatpush1.bf16.msra.mxu0 0
  %748 = vmatprep.subr.bf16.mxu0 0
  %749 = vmatpush1.bf16.msra.mxu0 0
  %750 = vmatprep.subr.bf16.mxu0 0
  %751 = vmatpush1.bf16.msra.mxu0 0
  %752 = vmatprep.subr.bf16.mxu0 0
  %753 = vmatpush1.bf16.msra.mxu0 %v743
  %754 = vmatprep.subr.bf16.mxu0 0
  %755 = vmatpush1.bf16.msra.mxu0 %v742
  %756 = vmatprep.subr.bf16.mxu0 0
  %757 = vmatpush1.bf16.msra.mxu0 %v741
  %758 = vmatprep.subr.bf16.mxu0 0
  %759 = vmatpush1.bf16.msra.mxu0 %v740
  %760 = vmatprep.subr.bf16.mxu0 0
  %761 = vmatpush2.bf16.msra.mxu0 0
  %762 = vmatprep.subr.bf16.mxu0 0
  %763 = vmatpush2.bf16.msra.mxu0 0
  %764 = vmatprep.subr.bf16.mxu0 0
  %765 = vmatpush2.bf16.msra.mxu0 0
  %766 = vmatprep.subr.bf16.mxu0 0
  %767 = vmatpush2.bf16.msra.mxu0 0
  %768 = vmatprep.subr.bf16.mxu0 0
  %769 = vmatpush2.bf16.msra.mxu0 0
  %770 = vmatprep.subr.bf16.mxu0 0
  %771 = vmatpush2.bf16.msra.mxu0 0
  %772 = vmatprep.subr.bf16.mxu0 0
  %773 = vmatpush2.bf16.msra.mxu0 0
  %774 = vmatprep.subr.bf16.mxu0 0
  %775 = vmatpush2.bf16.msra.mxu0 0
  %776 = vmatprep.mubr.bf16.mxu0 0
  %777 = vmatmul.mubr.bf16.gmra.mxu0 %v265
  %v778 = vpop.f32.mrf.mxu0
  %v779 = vadd.f32 0.0, %v778
  %v780 = vpop.f32.mrf.mxu0
  %v781 = vpop.f32.mrf.mxu0
  %v782 = vadd.f32 0.0, %v781
  %v783 = vpop.f32.mrf.mxu0
  %784 = vmatprep.mubr.bf16.mxu0 0
  %785 = vmatmul.mubr.bf16.gmra.mxu0 %v268
  %v786 = vpop.f32.mrf.mxu0
  %v787 = vadd.f32 0.0, %v786
  %v788 = vpop.f32.mrf.mxu0
  %v789 = vpop.f32.mrf.mxu0
  %v790 = vadd.f32 0.0, %v789
  %v791 = vpop.f32.mrf.mxu0
  %792 = vmatprep.mubr.bf16.mxu0 0
  %793 = vmatmul.mubr.bf16.gmra.mxu0 %v271
  %v794 = vpop.f32.mrf.mxu0
  %v795 = vadd.f32 0.0, %v794
  %v796 = vpop.f32.mrf.mxu0
  %v797 = vpop.f32.mrf.mxu0
  %v798 = vadd.f32 0.0, %v797
  %v799 = vpop.f32.mrf.mxu0
  %800 = vmatprep.mubr.bf16.mxu0 0
  %801 = vmatmul.mubr.bf16.gmra.mxu0 %v274
  %v802 = vpop.f32.mrf.mxu0
  %v803 = vadd.f32 0.0, %v802
  %v804 = vpop.f32.mrf.mxu0
  %v805 = vpop.f32.mrf.mxu0
  %v806 = vadd.f32 0.0, %v805
  %v807 = vpop.f32.mrf.mxu0
  %808 = vmatprep.mubr.bf16.mxu0 0
  %809 = vmatmul.mubr.bf16.gmra.mxu0 %v277
  %v810 = vpop.f32.mrf.mxu0
  %v811 = vadd.f32 0.0, %v810
  %v812 = vpop.f32.mrf.mxu0
  %v813 = vpop.f32.mrf.mxu0
  %v814 = vadd.f32 0.0, %v813
  %v815 = vpop.f32.mrf.mxu0
  %816 = vmatprep.mubr.bf16.mxu0 0
  %817 = vmatmul.mubr.bf16.gmra.mxu0 %v280
  %v818 = vpop.f32.mrf.mxu0
  %v819 = vadd.f32 0.0, %v818
  %v820 = vpop.f32.mrf.mxu0
  %v821 = vpop.f32.mrf.mxu0
  %v822 = vadd.f32 0.0, %v821
  %v823 = vpop.f32.mrf.mxu0
  %824 = vmatprep.mubr.bf16.mxu0 0
  %825 = vmatmul.mubr.bf16.gmra.mxu0 %v283
  %v826 = vpop.f32.mrf.mxu0
  %v827 = vadd.f32 0.0, %v826
  %v828 = vpop.f32.mrf.mxu0
  %v829 = vpop.f32.mrf.mxu0
  %v830 = vadd.f32 0.0, %v829
  %v831 = vpop.f32.mrf.mxu0
  %832 = vmatprep.mubr.bf16.mxu0 0
  %833 = vmatmul.mubr.bf16.gmra.mxu0 %v286
  %v834 = vpop.f32.mrf.mxu0
  %v835 = vadd.f32 0.0, %v834
  %v836 = vpop.f32.mrf.mxu0
  %v837 = vpop.f32.mrf.mxu0
  %v838 = vadd.f32 0.0, %v837
  %v839 = vpop.f32.mrf.mxu0
  %840 = vmatprep.mubr.bf16.mxu0 0
  %841 = vmatmul.mubr.bf16.gmra.mxu0 %v289
  %v842 = vpop.f32.mrf.mxu0
  %v843 = vadd.f32 0.0, %v842
  %v844 = vpop.f32.mrf.mxu0
  %v845 = vpop.f32.mrf.mxu0
  %v846 = vadd.f32 0.0, %v845
  %v847 = vpop.f32.mrf.mxu0
  %848 = vmatprep.mubr.bf16.mxu0 0
  %849 = vmatmul.mubr.bf16.gmra.mxu0 %v292
  %v850 = vpop.f32.mrf.mxu0
  %v851 = vadd.f32 0.0, %v850
  %v852 = vpop.f32.mrf.mxu0
  %v853 = vpop.f32.mrf.mxu0
  %v854 = vadd.f32 0.0, %v853
  %v855 = vpop.f32.mrf.mxu0
  %856 = vmatprep.mubr.bf16.mxu0 0
  %857 = vmatmul.mubr.bf16.gmra.mxu0 %v295
  %v858 = vpop.f32.mrf.mxu0
  %v859 = vadd.f32 0.0, %v858
  %v860 = vpop.f32.mrf.mxu0
  %v861 = vpop.f32.mrf.mxu0
  %v862 = vadd.f32 0.0, %v861
  %v863 = vpop.f32.mrf.mxu0
  %864 = vmatprep.mubr.bf16.mxu0 0
  %865 = vmatmul.mubr.bf16.gmra.mxu0 %v298
  %v866 = vpop.f32.mrf.mxu0
  %v867 = vadd.f32 0.0, %v866
  %v868 = vpop.f32.mrf.mxu0
  %v869 = vpop.f32.mrf.mxu0
  %v870 = vadd.f32 0.0, %v869
  %v871 = vpop.f32.mrf.mxu0
  %872 = vmatprep.mubr.bf16.mxu0 0
  %873 = vmatmul.mubr.bf16.gmra.mxu0 %v301
  %v874 = vpop.f32.mrf.mxu0
  %v875 = vadd.f32 0.0, %v874
  %v876 = vpop.f32.mrf.mxu0
  %v877 = vpop.f32.mrf.mxu0
  %v878 = vadd.f32 0.0, %v877
  %v879 = vpop.f32.mrf.mxu0
  %880 = vmatprep.mubr.bf16.mxu0 0
  %881 = vmatmul.mubr.bf16.gmra.mxu0 %v304
  %v882 = vpop.f32.mrf.mxu0
  %v883 = vadd.f32 0.0, %v882
  %v884 = vpop.f32.mrf.mxu0
  %v885 = vpop.f32.mrf.mxu0
  %v886 = vadd.f32 0.0, %v885
  %v887 = vpop.f32.mrf.mxu0
  %888 = vmatprep.mubr.bf16.mxu0 0
  %889 = vmatmul.mubr.bf16.gmra.mxu0 %v307
  %v890 = vpop.f32.mrf.mxu0
  %v891 = vadd.f32 0.0, %v890
  %v892 = vpop.f32.mrf.mxu0
  %v893 = vpop.f32.mrf.mxu0
  %v894 = vadd.f32 0.0, %v893
  %v895 = vpop.f32.mrf.mxu0
  %896 = vmatprep.mubr.bf16.mxu0 0
  %897 = vmatmul.mubr.bf16.gmra.mxu0 %v310
  %v898 = vpop.f32.mrf.mxu0
  %v899 = vadd.f32 0.0, %v898
  %v900 = vpop.f32.mrf.mxu0
  %v901 = vpop.f32.mrf.mxu0
  %v902 = vadd.f32 0.0, %v901
  %v903 = vpop.f32.mrf.mxu0
  %904 = vdwg.mxu0
  %v905 = vpack.c.bf16 %v782, %v779
  %v906 = vpack.c.bf16 %v790, %v787
  %v907 = vpack.c.bf16 %v798, %v795
  %v908 = vpack.c.bf16 %v806, %v803
  %v909 = vpack.c.bf16 %v814, %v811
  %v910 = vpack.c.bf16 %v822, %v819
  %v911 = vpack.c.bf16 %v830, %v827
  %v912 = vpack.c.bf16 %v838, %v835
  %v913 = vpack.c.bf16 %v846, %v843
  %v914 = vpack.c.bf16 %v854, %v851
  %v915 = vpack.c.bf16 %v862, %v859
  %v916 = vpack.c.bf16 %v870, %v867
  %v917 = vpack.c.bf16 %v878, %v875
  %v918 = vpack.c.bf16 %v886, %v883
  %v919 = vpack.c.bf16 %v894, %v891
  %v920 = vpack.c.bf16 %v902, %v899
  %v937 = vunpack.c.l.b16 %v905
  %v938 = vunpack.c.h.b16 %v905
  %v939 = vunpack.c.l.b16 %v906
  %v940 = vunpack.c.h.b16 %v906
  %v941 = vunpack.c.l.b16 %v907
  %v942 = vunpack.c.h.b16 %v907
  %v943 = vunpack.c.l.b16 %v908
  %v944 = vunpack.c.h.b16 %v908
  %v945 = vunpack.c.l.b16 %v909
  %v946 = vunpack.c.h.b16 %v909
  %v947 = vunpack.c.l.b16 %v910
  %v948 = vunpack.c.h.b16 %v910
  %v949 = vunpack.c.l.b16 %v911
  %v950 = vunpack.c.h.b16 %v911
  %v951 = vunpack.c.l.b16 %v912
  %v952 = vunpack.c.h.b16 %v912
  %v953 = vunpack.c.l.b16 %v913
  %v954 = vunpack.c.h.b16 %v913
  %v955 = vunpack.c.l.b16 %v914
  %v956 = vunpack.c.h.b16 %v914
  %v957 = vunpack.c.l.b16 %v915
  %v958 = vunpack.c.h.b16 %v915
  %v959 = vunpack.c.l.b16 %v916
  %v960 = vunpack.c.h.b16 %v916
  %v961 = vunpack.c.l.b16 %v917
  %v962 = vunpack.c.h.b16 %v917
  %v963 = vunpack.c.l.b16 %v918
  %v964 = vunpack.c.h.b16 %v918
  %v965 = vunpack.c.l.b16 %v919
  %v966 = vunpack.c.h.b16 %v919
  %v967 = vunpack.c.l.b16 %v920
  %v968 = vunpack.c.h.b16 %v920
  %v969 = vpack.c.b16 %v937, %v937
  %v970 = vpack.c.b16 %v938, %v938
  %v971 = vpack.c.b16 %v939, %v939
  %v972 = vpack.c.b16 %v940, %v940
  %v973 = vpack.c.b16 %v941, %v941
  %v974 = vpack.c.b16 %v942, %v942
  %v975 = vpack.c.b16 %v943, %v943
  %v976 = vpack.c.b16 %v944, %v944
  %v977 = vpack.c.b16 %v945, %v945
  %v978 = vpack.c.b16 %v946, %v946
  %v979 = vpack.c.b16 %v947, %v947
  %v980 = vpack.c.b16 %v948, %v948
  %v981 = vpack.c.b16 %v949, %v949
  %v982 = vpack.c.b16 %v950, %v950
  %v983 = vpack.c.b16 %v951, %v951
  %v984 = vpack.c.b16 %v952, %v952
  %v985 = vpack.c.b16 %v953, %v953
  %v986 = vpack.c.b16 %v954, %v954
  %v987 = vpack.c.b16 %v955, %v955
  %v988 = vpack.c.b16 %v956, %v956
  %v989 = vpack.c.b16 %v957, %v957
  %v990 = vpack.c.b16 %v958, %v958
  %v991 = vpack.c.b16 %v959, %v959
  %v992 = vpack.c.b16 %v960, %v960
  %v993 = vpack.c.b16 %v961, %v961
  %v994 = vpack.c.b16 %v962, %v962
  %v995 = vpack.c.b16 %v963, %v963
  %v996 = vpack.c.b16 %v964, %v964
  %v997 = vpack.c.b16 %v965, %v965
  %v998 = vpack.c.b16 %v966, %v966
  %v999 = vpack.c.b16 %v967, %v967
  %v1000 = vpack.c.b16 %v968, %v968
  %s1033 = scalar_lea.vmem %s4, 128
  %1034 = vst.msk [vmem:[%s1033] sm:$0xf] %vm601, %v969
  %1035 = vst.msk [vmem:[%s1033 + $0x4] sm:$0xf] %vm601, %v970
  %1036 = vst.msk [vmem:[%s1033 + $0x8] sm:$0xf] %vm601, %v971
  %1037 = vst.msk [vmem:[%s1033 + $0xc] sm:$0xf] %vm601, %v972
  %1038 = vst.msk [vmem:[%s1033 + $0x10] sm:$0xf] %vm601, %v973
  %1039 = vst.msk [vmem:[%s1033 + $0x14] sm:$0xf] %vm601, %v974
  %1040 = vst.msk [vmem:[%s1033 + $0x18] sm:$0xf] %vm601, %v975
  %1041 = vst.msk [vmem:[%s1033 + $0x1c] sm:$0xf] %vm601, %v976
  %1042 = vst.msk [vmem:[%s1033 + $0x20] sm:$0xf] %vm601, %v977
  %1043 = vst.msk [vmem:[%s1033 + $0x24] sm:$0xf] %vm601, %v978
  %1044 = vst.msk [vmem:[%s1033 + $0x28] sm:$0xf] %vm601, %v979
  %1045 = vst.msk [vmem:[%s1033 + $0x2c] sm:$0xf] %vm601, %v980
  %1046 = vst.msk [vmem:[%s1033 + $0x30] sm:$0xf] %vm601, %v981
  %1047 = vst.msk [vmem:[%s1033 + $0x34] sm:$0xf] %vm601, %v982
  %1048 = vst.msk [vmem:[%s1033 + $0x38] sm:$0xf] %vm601, %v983
  %1049 = vst.msk [vmem:[%s1033 + $0x3c] sm:$0xf] %vm601, %v984
  %1050 = vst.msk [vmem:[%s1033 + $0x40] sm:$0xf] %vm601, %v985
  %1051 = vst.msk [vmem:[%s1033 + $0x44] sm:$0xf] %vm601, %v986
  %1052 = vst.msk [vmem:[%s1033 + $0x48] sm:$0xf] %vm601, %v987
  %1053 = vst.msk [vmem:[%s1033 + $0x4c] sm:$0xf] %vm601, %v988
  %1054 = vst.msk [vmem:[%s1033 + $0x50] sm:$0xf] %vm601, %v989
  %1055 = vst.msk [vmem:[%s1033 + $0x54] sm:$0xf] %vm601, %v990
  %1056 = vst.msk [vmem:[%s1033 + $0x58] sm:$0xf] %vm601, %v991
  %1057 = vst.msk [vmem:[%s1033 + $0x5c] sm:$0xf] %vm601, %v992
  %1058 = vst.msk [vmem:[%s1033 + $0x60] sm:$0xf] %vm601, %v993
  %1059 = vst.msk [vmem:[%s1033 + $0x64] sm:$0xf] %vm601, %v994
  %1060 = vst.msk [vmem:[%s1033 + $0x68] sm:$0xf] %vm601, %v995
  %1061 = vst.msk [vmem:[%s1033 + $0x6c] sm:$0xf] %vm601, %v996
  %1062 = vst.msk [vmem:[%s1033 + $0x70] sm:$0xf] %vm601, %v997
  %1063 = vst.msk [vmem:[%s1033 + $0x74] sm:$0xf] %vm601, %v998
  %1064 = vst.msk [vmem:[%s1033 + $0x78] sm:$0xf] %vm601, %v999
  %1065 = vst.msk [vmem:[%s1033 + $0x7c] sm:$0xf] %vm601, %v1000
  %s1066 = scalar_lea.vmem %s0, 64
  %v1067 = vld [vmem:[%s1066] sm:$0xf]
  %v1068 = vld [vmem:[%s1066 + $0x4] sm:$0xf]
  %v1069 = vld [vmem:[%s1066 + $0x8] sm:$0xf]
  %v1070 = vld [vmem:[%s1066 + $0xc] sm:$0xf]
  %v1071 = vld [vmem:[%s1066 + $0x10] sm:$0xf]
  %v1072 = vld [vmem:[%s1066 + $0x14] sm:$0xf]
  %v1073 = vld [vmem:[%s1066 + $0x18] sm:$0xf]
  %v1074 = vld [vmem:[%s1066 + $0x1c] sm:$0xf]
  %v1083 = vunpack.c.l.b16 %v1067
  %v1084 = vunpack.c.l.b16 %v1068
  %v1085 = vunpack.c.l.b16 %v1069
  %v1086 = vunpack.c.l.b16 %v1070
  %v1087 = vunpack.c.l.b16 %v1071
  %v1088 = vunpack.c.l.b16 %v1072
  %v1089 = vunpack.c.l.b16 %v1073
  %v1090 = vunpack.c.l.b16 %v1074
  %v1091 = vpack.c.b16 %v1084, %v1083
  %v1092 = vpack.c.b16 %v1086, %v1085
  %v1093 = vpack.c.b16 %v1088, %v1087
  %v1094 = vpack.c.b16 %v1090, %v1089
  %v1096 = vsel %vm101, %v1091, 0
  %v1099 = vsel %vm101, %v1092, 0
  %v1102 = vsel %vm101, %v1093, 0
  %v1105 = vsel %vm101, %v1094, 0
  %1107 = vmatprep.subr.bf16.mxu0 0
  %1108 = vmatpush1.bf16.msra.mxu0 0
  %1109 = vmatprep.subr.bf16.mxu0 0
  %1110 = vmatpush1.bf16.msra.mxu0 0
  %1111 = vmatprep.subr.bf16.mxu0 0
  %1112 = vmatpush1.bf16.msra.mxu0 0
  %1113 = vmatprep.subr.bf16.mxu0 0
  %1114 = vmatpush1.bf16.msra.mxu0 0
  %1115 = vmatprep.subr.bf16.mxu0 0
  %1116 = vmatpush1.bf16.msra.mxu0 0
  %1117 = vmatprep.subr.bf16.mxu0 0
  %1118 = vmatpush1.bf16.msra.mxu0 0
  %1119 = vmatprep.subr.bf16.mxu0 0
  %1120 = vmatpush1.bf16.msra.mxu0 %v98
  %1121 = vmatprep.subr.bf16.mxu0 0
  %1122 = vmatpush1.bf16.msra.mxu0 %v97
  %1123 = vmatprep.subr.bf16.mxu0 0
  %1124 = vmatpush2.bf16.msra.mxu0 0
  %1125 = vmatprep.subr.bf16.mxu0 0
  %1126 = vmatpush2.bf16.msra.mxu0 0
  %1127 = vmatprep.subr.bf16.mxu0 0
  %1128 = vmatpush2.bf16.msra.mxu0 0
  %1129 = vmatprep.subr.bf16.mxu0 0
  %1130 = vmatpush2.bf16.msra.mxu0 0
  %1131 = vmatprep.subr.bf16.mxu0 0
  %1132 = vmatpush2.bf16.msra.mxu0 0
  %1133 = vmatprep.subr.bf16.mxu0 0
  %1134 = vmatpush2.bf16.msra.mxu0 0
  %1135 = vmatprep.subr.bf16.mxu0 0
  %1136 = vmatpush2.bf16.msra.mxu0 0
  %1137 = vmatprep.subr.bf16.mxu0 0
  %1138 = vmatpush2.bf16.msra.mxu0 0
  %1139 = vmatprep.mubr.bf16.mxu0 0
  %1140 = vmatmul.mubr.bf16.gmra.mxu0 %v1096
  %v1141 = vpop.f32.mrf.mxu0
  %v1142 = vadd.f32 %v67, %v1141
  %v1143 = vpop.f32.mrf.mxu0
  %v1144 = vpop.f32.mrf.mxu0
  %v1145 = vadd.f32 %v67, %v1144
  %v1146 = vpop.f32.mrf.mxu0
  %1147 = vmatprep.mubr.bf16.mxu0 0
  %1148 = vmatmul.mubr.bf16.gmra.mxu0 %v1099
  %v1149 = vpop.f32.mrf.mxu0
  %v1150 = vadd.f32 %v67, %v1149
  %v1151 = vpop.f32.mrf.mxu0
  %v1152 = vpop.f32.mrf.mxu0
  %v1153 = vadd.f32 %v67, %v1152
  %v1154 = vpop.f32.mrf.mxu0
  %1155 = vmatprep.mubr.bf16.mxu0 0
  %1156 = vmatmul.mubr.bf16.gmra.mxu0 %v1102
  %v1157 = vpop.f32.mrf.mxu0
  %v1158 = vadd.f32 %v67, %v1157
  %v1159 = vpop.f32.mrf.mxu0
  %v1160 = vpop.f32.mrf.mxu0
  %v1161 = vadd.f32 %v67, %v1160
  %v1162 = vpop.f32.mrf.mxu0
  %1163 = vmatprep.mubr.bf16.mxu0 0
  %1164 = vmatmul.mubr.bf16.gmra.mxu0 %v1105
  %v1165 = vpop.f32.mrf.mxu0
  %v1166 = vadd.f32 %v67, %v1165
  %v1167 = vpop.f32.mrf.mxu0
  %v1168 = vpop.f32.mrf.mxu0
  %v1169 = vadd.f32 %v67, %v1168
  %v1170 = vpop.f32.mrf.mxu0
  %1171 = vdwg.mxu0
  %v1172 = vpack.c.bf16 %v1145, %v1142
  %v1173 = vpack.c.bf16 %v1153, %v1150
  %v1174 = vpack.c.bf16 %v1161, %v1158
  %v1175 = vpack.c.bf16 %v1169, %v1166
  %1176 = vmatprep.subr.bf16.mxu0 0
  %1177 = vmatpush1.bf16.msra.mxu0 0
  %1178 = vmatprep.subr.bf16.mxu0 0
  %1179 = vmatpush1.bf16.msra.mxu0 0
  %1180 = vmatprep.subr.bf16.mxu0 0
  %1181 = vmatpush1.bf16.msra.mxu0 0
  %1182 = vmatprep.subr.bf16.mxu0 0
  %1183 = vmatpush1.bf16.msra.mxu0 0
  %1184 = vmatprep.subr.bf16.mxu0 0
  %1185 = vmatpush1.bf16.msra.mxu0 %v1175
  %1186 = vmatprep.subr.bf16.mxu0 0
  %1187 = vmatpush1.bf16.msra.mxu0 %v1174
  %1188 = vmatprep.subr.bf16.mxu0 0
  %1189 = vmatpush1.bf16.msra.mxu0 %v1173
  %1190 = vmatprep.subr.bf16.mxu0 0
  %1191 = vmatpush1.bf16.msra.mxu0 %v1172
  %1192 = vmatprep.subr.bf16.mxu0 0
  %1193 = vmatpush2.bf16.msra.mxu0 0
  %1194 = vmatprep.subr.bf16.mxu0 0
  %1195 = vmatpush2.bf16.msra.mxu0 0
  %1196 = vmatprep.subr.bf16.mxu0 0
  %1197 = vmatpush2.bf16.msra.mxu0 0
  %1198 = vmatprep.subr.bf16.mxu0 0
  %1199 = vmatpush2.bf16.msra.mxu0 0
  %1200 = vmatprep.subr.bf16.mxu0 0
  %1201 = vmatpush2.bf16.msra.mxu0 0
  %1202 = vmatprep.subr.bf16.mxu0 0
  %1203 = vmatpush2.bf16.msra.mxu0 0
  %1204 = vmatprep.subr.bf16.mxu0 0
  %1205 = vmatpush2.bf16.msra.mxu0 0
  %1206 = vmatprep.subr.bf16.mxu0 0
  %1207 = vmatpush2.bf16.msra.mxu0 0
  %1208 = vmatprep.mubr.bf16.mxu0 0
  %1209 = vmatmul.mubr.bf16.gmra.mxu0 %v265
  %v1210 = vpop.f32.mrf.mxu0
  %v1211 = vadd.f32 0.0, %v1210
  %v1212 = vpop.f32.mrf.mxu0
  %v1213 = vpop.f32.mrf.mxu0
  %v1214 = vadd.f32 0.0, %v1213
  %v1215 = vpop.f32.mrf.mxu0
  %1216 = vmatprep.mubr.bf16.mxu0 0
  %1217 = vmatmul.mubr.bf16.gmra.mxu0 %v268
  %v1218 = vpop.f32.mrf.mxu0
  %v1219 = vadd.f32 0.0, %v1218
  %v1220 = vpop.f32.mrf.mxu0
  %v1221 = vpop.f32.mrf.mxu0
  %v1222 = vadd.f32 0.0, %v1221
  %v1223 = vpop.f32.mrf.mxu0
  %1224 = vmatprep.mubr.bf16.mxu0 0
  %1225 = vmatmul.mubr.bf16.gmra.mxu0 %v271
  %v1226 = vpop.f32.mrf.mxu0
  %v1227 = vadd.f32 0.0, %v1226
  %v1228 = vpop.f32.mrf.mxu0
  %v1229 = vpop.f32.mrf.mxu0
  %v1230 = vadd.f32 0.0, %v1229
  %v1231 = vpop.f32.mrf.mxu0
  %1232 = vmatprep.mubr.bf16.mxu0 0
  %1233 = vmatmul.mubr.bf16.gmra.mxu0 %v274
  %v1234 = vpop.f32.mrf.mxu0
  %v1235 = vadd.f32 0.0, %v1234
  %v1236 = vpop.f32.mrf.mxu0
  %v1237 = vpop.f32.mrf.mxu0
  %v1238 = vadd.f32 0.0, %v1237
  %v1239 = vpop.f32.mrf.mxu0
  %1240 = vmatprep.mubr.bf16.mxu0 0
  %1241 = vmatmul.mubr.bf16.gmra.mxu0 %v277
  %v1242 = vpop.f32.mrf.mxu0
  %v1243 = vadd.f32 0.0, %v1242
  %v1244 = vpop.f32.mrf.mxu0
  %v1245 = vpop.f32.mrf.mxu0
  %v1246 = vadd.f32 0.0, %v1245
  %v1247 = vpop.f32.mrf.mxu0
  %1248 = vmatprep.mubr.bf16.mxu0 0
  %1249 = vmatmul.mubr.bf16.gmra.mxu0 %v280
  %v1250 = vpop.f32.mrf.mxu0
  %v1251 = vadd.f32 0.0, %v1250
  %v1252 = vpop.f32.mrf.mxu0
  %v1253 = vpop.f32.mrf.mxu0
  %v1254 = vadd.f32 0.0, %v1253
  %v1255 = vpop.f32.mrf.mxu0
  %1256 = vmatprep.mubr.bf16.mxu0 0
  %1257 = vmatmul.mubr.bf16.gmra.mxu0 %v283
  %v1258 = vpop.f32.mrf.mxu0
  %v1259 = vadd.f32 0.0, %v1258
  %v1260 = vpop.f32.mrf.mxu0
  %v1261 = vpop.f32.mrf.mxu0
  %v1262 = vadd.f32 0.0, %v1261
  %v1263 = vpop.f32.mrf.mxu0
  %1264 = vmatprep.mubr.bf16.mxu0 0
  %1265 = vmatmul.mubr.bf16.gmra.mxu0 %v286
  %v1266 = vpop.f32.mrf.mxu0
  %v1267 = vadd.f32 0.0, %v1266
  %v1268 = vpop.f32.mrf.mxu0
  %v1269 = vpop.f32.mrf.mxu0
  %v1270 = vadd.f32 0.0, %v1269
  %v1271 = vpop.f32.mrf.mxu0
  %1272 = vmatprep.mubr.bf16.mxu0 0
  %1273 = vmatmul.mubr.bf16.gmra.mxu0 %v289
  %v1274 = vpop.f32.mrf.mxu0
  %v1275 = vadd.f32 0.0, %v1274
  %v1276 = vpop.f32.mrf.mxu0
  %v1277 = vpop.f32.mrf.mxu0
  %v1278 = vadd.f32 0.0, %v1277
  %v1279 = vpop.f32.mrf.mxu0
  %1280 = vmatprep.mubr.bf16.mxu0 0
  %1281 = vmatmul.mubr.bf16.gmra.mxu0 %v292
  %v1282 = vpop.f32.mrf.mxu0
  %v1283 = vadd.f32 0.0, %v1282
  %v1284 = vpop.f32.mrf.mxu0
  %v1285 = vpop.f32.mrf.mxu0
  %v1286 = vadd.f32 0.0, %v1285
  %v1287 = vpop.f32.mrf.mxu0
  %1288 = vmatprep.mubr.bf16.mxu0 0
  %1289 = vmatmul.mubr.bf16.gmra.mxu0 %v295
  %v1290 = vpop.f32.mrf.mxu0
  %v1291 = vadd.f32 0.0, %v1290
  %v1292 = vpop.f32.mrf.mxu0
  %v1293 = vpop.f32.mrf.mxu0
  %v1294 = vadd.f32 0.0, %v1293
  %v1295 = vpop.f32.mrf.mxu0
  %1296 = vmatprep.mubr.bf16.mxu0 0
  %1297 = vmatmul.mubr.bf16.gmra.mxu0 %v298
  %v1298 = vpop.f32.mrf.mxu0
  %v1299 = vadd.f32 0.0, %v1298
  %v1300 = vpop.f32.mrf.mxu0
  %v1301 = vpop.f32.mrf.mxu0
  %v1302 = vadd.f32 0.0, %v1301
  %v1303 = vpop.f32.mrf.mxu0
  %1304 = vmatprep.mubr.bf16.mxu0 0
  %1305 = vmatmul.mubr.bf16.gmra.mxu0 %v301
  %v1306 = vpop.f32.mrf.mxu0
  %v1307 = vadd.f32 0.0, %v1306
  %v1308 = vpop.f32.mrf.mxu0
  %v1309 = vpop.f32.mrf.mxu0
  %v1310 = vadd.f32 0.0, %v1309
  %v1311 = vpop.f32.mrf.mxu0
  %1312 = vmatprep.mubr.bf16.mxu0 0
  %1313 = vmatmul.mubr.bf16.gmra.mxu0 %v304
  %v1314 = vpop.f32.mrf.mxu0
  %v1315 = vadd.f32 0.0, %v1314
  %v1316 = vpop.f32.mrf.mxu0
  %v1317 = vpop.f32.mrf.mxu0
  %v1318 = vadd.f32 0.0, %v1317
  %v1319 = vpop.f32.mrf.mxu0
  %1320 = vmatprep.mubr.bf16.mxu0 0
  %1321 = vmatmul.mubr.bf16.gmra.mxu0 %v307
  %v1322 = vpop.f32.mrf.mxu0
  %v1323 = vadd.f32 0.0, %v1322
  %v1324 = vpop.f32.mrf.mxu0
  %v1325 = vpop.f32.mrf.mxu0
  %v1326 = vadd.f32 0.0, %v1325
  %v1327 = vpop.f32.mrf.mxu0
  %1328 = vmatprep.mubr.bf16.mxu0 0
  %1329 = vmatmul.mubr.bf16.gmra.mxu0 %v310
  %v1330 = vpop.f32.mrf.mxu0
  %v1331 = vadd.f32 0.0, %v1330
  %v1332 = vpop.f32.mrf.mxu0
  %v1333 = vpop.f32.mrf.mxu0
  %v1334 = vadd.f32 0.0, %v1333
  %v1335 = vpop.f32.mrf.mxu0
  %1336 = vdwg.mxu0
  %v1337 = vpack.c.bf16 %v1214, %v1211
  %v1338 = vpack.c.bf16 %v1222, %v1219
  %v1339 = vpack.c.bf16 %v1230, %v1227
  %v1340 = vpack.c.bf16 %v1238, %v1235
  %v1341 = vpack.c.bf16 %v1246, %v1243
  %v1342 = vpack.c.bf16 %v1254, %v1251
  %v1343 = vpack.c.bf16 %v1262, %v1259
  %v1344 = vpack.c.bf16 %v1270, %v1267
  %v1345 = vpack.c.bf16 %v1278, %v1275
  %v1346 = vpack.c.bf16 %v1286, %v1283
  %v1347 = vpack.c.bf16 %v1294, %v1291
  %v1348 = vpack.c.bf16 %v1302, %v1299
  %v1349 = vpack.c.bf16 %v1310, %v1307
  %v1350 = vpack.c.bf16 %v1318, %v1315
  %v1351 = vpack.c.bf16 %v1326, %v1323
  %v1352 = vpack.c.bf16 %v1334, %v1331
  %v1369 = vunpack.c.l.b16 %v1337
  %v1370 = vunpack.c.h.b16 %v1337
  %v1371 = vunpack.c.l.b16 %v1338
  %v1372 = vunpack.c.h.b16 %v1338
  %v1373 = vunpack.c.l.b16 %v1339
  %v1374 = vunpack.c.h.b16 %v1339
  %v1375 = vunpack.c.l.b16 %v1340
  %v1376 = vunpack.c.h.b16 %v1340
  %v1377 = vunpack.c.l.b16 %v1341
  %v1378 = vunpack.c.h.b16 %v1341
  %v1379 = vunpack.c.l.b16 %v1342
  %v1380 = vunpack.c.h.b16 %v1342
  %v1381 = vunpack.c.l.b16 %v1343
  %v1382 = vunpack.c.h.b16 %v1343
  %v1383 = vunpack.c.l.b16 %v1344
  %v1384 = vunpack.c.h.b16 %v1344
  %v1385 = vunpack.c.l.b16 %v1345
  %v1386 = vunpack.c.h.b16 %v1345
  %v1387 = vunpack.c.l.b16 %v1346
  %v1388 = vunpack.c.h.b16 %v1346
  %v1389 = vunpack.c.l.b16 %v1347
  %v1390 = vunpack.c.h.b16 %v1347
  %v1391 = vunpack.c.l.b16 %v1348
  %v1392 = vunpack.c.h.b16 %v1348
  %v1393 = vunpack.c.l.b16 %v1349
  %v1394 = vunpack.c.h.b16 %v1349
  %v1395 = vunpack.c.l.b16 %v1350
  %v1396 = vunpack.c.h.b16 %v1350
  %v1397 = vunpack.c.l.b16 %v1351
  %v1398 = vunpack.c.h.b16 %v1351
  %v1399 = vunpack.c.l.b16 %v1352
  %v1400 = vunpack.c.h.b16 %v1352
  %v1401 = vpack.c.b16 %v1369, %v1369
  %v1402 = vpack.c.b16 %v1370, %v1370
  %v1403 = vpack.c.b16 %v1371, %v1371
  %v1404 = vpack.c.b16 %v1372, %v1372
  %v1405 = vpack.c.b16 %v1373, %v1373
  %v1406 = vpack.c.b16 %v1374, %v1374
  %v1407 = vpack.c.b16 %v1375, %v1375
  %v1408 = vpack.c.b16 %v1376, %v1376
  %v1409 = vpack.c.b16 %v1377, %v1377
  %v1410 = vpack.c.b16 %v1378, %v1378
  %v1411 = vpack.c.b16 %v1379, %v1379
  %v1412 = vpack.c.b16 %v1380, %v1380
  %v1413 = vpack.c.b16 %v1381, %v1381
  %v1414 = vpack.c.b16 %v1382, %v1382
  %v1415 = vpack.c.b16 %v1383, %v1383
  %v1416 = vpack.c.b16 %v1384, %v1384
  %v1417 = vpack.c.b16 %v1385, %v1385
  %v1418 = vpack.c.b16 %v1386, %v1386
  %v1419 = vpack.c.b16 %v1387, %v1387
  %v1420 = vpack.c.b16 %v1388, %v1388
  %v1421 = vpack.c.b16 %v1389, %v1389
  %v1422 = vpack.c.b16 %v1390, %v1390
  %v1423 = vpack.c.b16 %v1391, %v1391
  %v1424 = vpack.c.b16 %v1392, %v1392
  %v1425 = vpack.c.b16 %v1393, %v1393
  %v1426 = vpack.c.b16 %v1394, %v1394
  %v1427 = vpack.c.b16 %v1395, %v1395
  %v1428 = vpack.c.b16 %v1396, %v1396
  %v1429 = vpack.c.b16 %v1397, %v1397
  %v1430 = vpack.c.b16 %v1398, %v1398
  %v1431 = vpack.c.b16 %v1399, %v1399
  %v1432 = vpack.c.b16 %v1400, %v1400
  %s1465 = scalar_lea.vmem %s4, 256
  %1466 = vst.msk [vmem:[%s1465] sm:$0xf] %vm601, %v1401
  %1467 = vst.msk [vmem:[%s1465 + $0x4] sm:$0xf] %vm601, %v1402
  %1468 = vst.msk [vmem:[%s1465 + $0x8] sm:$0xf] %vm601, %v1403
  %1469 = vst.msk [vmem:[%s1465 + $0xc] sm:$0xf] %vm601, %v1404
  %1470 = vst.msk [vmem:[%s1465 + $0x10] sm:$0xf] %vm601, %v1405
  %1471 = vst.msk [vmem:[%s1465 + $0x14] sm:$0xf] %vm601, %v1406
  %1472 = vst.msk [vmem:[%s1465 + $0x18] sm:$0xf] %vm601, %v1407
  %1473 = vst.msk [vmem:[%s1465 + $0x1c] sm:$0xf] %vm601, %v1408
  %1474 = vst.msk [vmem:[%s1465 + $0x20] sm:$0xf] %vm601, %v1409
  %1475 = vst.msk [vmem:[%s1465 + $0x24] sm:$0xf] %vm601, %v1410
  %1476 = vst.msk [vmem:[%s1465 + $0x28] sm:$0xf] %vm601, %v1411
  %1477 = vst.msk [vmem:[%s1465 + $0x2c] sm:$0xf] %vm601, %v1412
  %1478 = vst.msk [vmem:[%s1465 + $0x30] sm:$0xf] %vm601, %v1413
  %1479 = vst.msk [vmem:[%s1465 + $0x34] sm:$0xf] %vm601, %v1414
  %1480 = vst.msk [vmem:[%s1465 + $0x38] sm:$0xf] %vm601, %v1415
  %1481 = vst.msk [vmem:[%s1465 + $0x3c] sm:$0xf] %vm601, %v1416
  %1482 = vst.msk [vmem:[%s1465 + $0x40] sm:$0xf] %vm601, %v1417
  %1483 = vst.msk [vmem:[%s1465 + $0x44] sm:$0xf] %vm601, %v1418
  %1484 = vst.msk [vmem:[%s1465 + $0x48] sm:$0xf] %vm601, %v1419
  %1485 = vst.msk [vmem:[%s1465 + $0x4c] sm:$0xf] %vm601, %v1420
  %1486 = vst.msk [vmem:[%s1465 + $0x50] sm:$0xf] %vm601, %v1421
  %1487 = vst.msk [vmem:[%s1465 + $0x54] sm:$0xf] %vm601, %v1422
  %1488 = vst.msk [vmem:[%s1465 + $0x58] sm:$0xf] %vm601, %v1423
  %1489 = vst.msk [vmem:[%s1465 + $0x5c] sm:$0xf] %vm601, %v1424
  %1490 = vst.msk [vmem:[%s1465 + $0x60] sm:$0xf] %vm601, %v1425
  %1491 = vst.msk [vmem:[%s1465 + $0x64] sm:$0xf] %vm601, %v1426
  %1492 = vst.msk [vmem:[%s1465 + $0x68] sm:$0xf] %vm601, %v1427
  %1493 = vst.msk [vmem:[%s1465 + $0x6c] sm:$0xf] %vm601, %v1428
  %1494 = vst.msk [vmem:[%s1465 + $0x70] sm:$0xf] %vm601, %v1429
  %1495 = vst.msk [vmem:[%s1465 + $0x74] sm:$0xf] %vm601, %v1430
  %1496 = vst.msk [vmem:[%s1465 + $0x78] sm:$0xf] %vm601, %v1431
  %1497 = vst.msk [vmem:[%s1465 + $0x7c] sm:$0xf] %vm601, %v1432
  %s1498 = scalar_lea.vmem %s0, 96
  %v1499 = vld [vmem:[%s1498] sm:$0xf]
  %v1500 = vld [vmem:[%s1498 + $0x4] sm:$0xf]
  %v1501 = vld [vmem:[%s1498 + $0x8] sm:$0xf]
  %v1502 = vld [vmem:[%s1498 + $0xc] sm:$0xf]
  %v1503 = vld [vmem:[%s1498 + $0x10] sm:$0xf]
  %v1504 = vld [vmem:[%s1498 + $0x14] sm:$0xf]
  %v1505 = vld [vmem:[%s1498 + $0x18] sm:$0xf]
  %v1506 = vld [vmem:[%s1498 + $0x1c] sm:$0xf]
  %v1515 = vunpack.c.l.b16 %v1499
  %v1516 = vunpack.c.l.b16 %v1500
  %v1517 = vunpack.c.l.b16 %v1501
  %v1518 = vunpack.c.l.b16 %v1502
  %v1519 = vunpack.c.l.b16 %v1503
  %v1520 = vunpack.c.l.b16 %v1504
  %v1521 = vunpack.c.l.b16 %v1505
  %v1522 = vunpack.c.l.b16 %v1506
  %v1523 = vpack.c.b16 %v1516, %v1515
  %v1524 = vpack.c.b16 %v1518, %v1517
  %v1525 = vpack.c.b16 %v1520, %v1519
  %v1526 = vpack.c.b16 %v1522, %v1521
  %v1528 = vsel %vm101, %v1523, 0
  %v1531 = vsel %vm101, %v1524, 0
  %v1534 = vsel %vm101, %v1525, 0
  %v1537 = vsel %vm101, %v1526, 0
  %1539 = vmatprep.subr.bf16.mxu0 0
  %1540 = vmatpush1.bf16.msra.mxu0 0
  %1541 = vmatprep.subr.bf16.mxu0 0
  %1542 = vmatpush1.bf16.msra.mxu0 0
  %1543 = vmatprep.subr.bf16.mxu0 0
  %1544 = vmatpush1.bf16.msra.mxu0 0
  %1545 = vmatprep.subr.bf16.mxu0 0
  %1546 = vmatpush1.bf16.msra.mxu0 0
  %1547 = vmatprep.subr.bf16.mxu0 0
  %1548 = vmatpush1.bf16.msra.mxu0 0
  %1549 = vmatprep.subr.bf16.mxu0 0
  %1550 = vmatpush1.bf16.msra.mxu0 0
  %1551 = vmatprep.subr.bf16.mxu0 0
  %1552 = vmatpush1.bf16.msra.mxu0 %v98
  %1553 = vmatprep.subr.bf16.mxu0 0
  %1554 = vmatpush1.bf16.msra.mxu0 %v97
  %1555 = vmatprep.subr.bf16.mxu0 0
  %1556 = vmatpush2.bf16.msra.mxu0 0
  %1557 = vmatprep.subr.bf16.mxu0 0
  %1558 = vmatpush2.bf16.msra.mxu0 0
  %1559 = vmatprep.subr.bf16.mxu0 0
  %1560 = vmatpush2.bf16.msra.mxu0 0
  %1561 = vmatprep.subr.bf16.mxu0 0
  %1562 = vmatpush2.bf16.msra.mxu0 0
  %1563 = vmatprep.subr.bf16.mxu0 0
  %1564 = vmatpush2.bf16.msra.mxu0 0
  %1565 = vmatprep.subr.bf16.mxu0 0
  %1566 = vmatpush2.bf16.msra.mxu0 0
  %1567 = vmatprep.subr.bf16.mxu0 0
  %1568 = vmatpush2.bf16.msra.mxu0 0
  %1569 = vmatprep.subr.bf16.mxu0 0
  %1570 = vmatpush2.bf16.msra.mxu0 0
  %1571 = vmatprep.mubr.bf16.mxu0 0
  %1572 = vmatmul.mubr.bf16.gmra.mxu0 %v1528
  %v1573 = vpop.f32.mrf.mxu0
  %v1574 = vadd.f32 %v67, %v1573
  %v1575 = vpop.f32.mrf.mxu0
  %v1576 = vpop.f32.mrf.mxu0
  %v1577 = vadd.f32 %v67, %v1576
  %v1578 = vpop.f32.mrf.mxu0
  %1579 = vmatprep.mubr.bf16.mxu0 0
  %1580 = vmatmul.mubr.bf16.gmra.mxu0 %v1531
  %v1581 = vpop.f32.mrf.mxu0
  %v1582 = vadd.f32 %v67, %v1581
  %v1583 = vpop.f32.mrf.mxu0
  %v1584 = vpop.f32.mrf.mxu0
  %v1585 = vadd.f32 %v67, %v1584
  %v1586 = vpop.f32.mrf.mxu0
  %1587 = vmatprep.mubr.bf16.mxu0 0
  %1588 = vmatmul.mubr.bf16.gmra.mxu0 %v1534
  %v1589 = vpop.f32.mrf.mxu0
  %v1590 = vadd.f32 %v67, %v1589
  %v1591 = vpop.f32.mrf.mxu0
  %v1592 = vpop.f32.mrf.mxu0
  %v1593 = vadd.f32 %v67, %v1592
  %v1594 = vpop.f32.mrf.mxu0
  %1595 = vmatprep.mubr.bf16.mxu0 0
  %1596 = vmatmul.mubr.bf16.gmra.mxu0 %v1537
  %v1597 = vpop.f32.mrf.mxu0
  %v1598 = vadd.f32 %v67, %v1597
  %v1599 = vpop.f32.mrf.mxu0
  %v1600 = vpop.f32.mrf.mxu0
  %v1601 = vadd.f32 %v67, %v1600
  %v1602 = vpop.f32.mrf.mxu0
  %1603 = vdwg.mxu0
  %v1604 = vpack.c.bf16 %v1577, %v1574
  %v1605 = vpack.c.bf16 %v1585, %v1582
  %v1606 = vpack.c.bf16 %v1593, %v1590
  %v1607 = vpack.c.bf16 %v1601, %v1598
  %1608 = vmatprep.subr.bf16.mxu0 0
  %1609 = vmatpush1.bf16.msra.mxu0 0
  %1610 = vmatprep.subr.bf16.mxu0 0
  %1611 = vmatpush1.bf16.msra.mxu0 0
  %1612 = vmatprep.subr.bf16.mxu0 0
  %1613 = vmatpush1.bf16.msra.mxu0 0
  %1614 = vmatprep.subr.bf16.mxu0 0
  %1615 = vmatpush1.bf16.msra.mxu0 0
  %1616 = vmatprep.subr.bf16.mxu0 0
  %1617 = vmatpush1.bf16.msra.mxu0 %v1607
  %1618 = vmatprep.subr.bf16.mxu0 0
  %1619 = vmatpush1.bf16.msra.mxu0 %v1606
  %1620 = vmatprep.subr.bf16.mxu0 0
  %1621 = vmatpush1.bf16.msra.mxu0 %v1605
  %1622 = vmatprep.subr.bf16.mxu0 0
  %1623 = vmatpush1.bf16.msra.mxu0 %v1604
  %1624 = vmatprep.subr.bf16.mxu0 0
  %1625 = vmatpush2.bf16.msra.mxu0 0
  %1626 = vmatprep.subr.bf16.mxu0 0
  %1627 = vmatpush2.bf16.msra.mxu0 0
  %1628 = vmatprep.subr.bf16.mxu0 0
  %1629 = vmatpush2.bf16.msra.mxu0 0
  %1630 = vmatprep.subr.bf16.mxu0 0
  %1631 = vmatpush2.bf16.msra.mxu0 0
  %1632 = vmatprep.subr.bf16.mxu0 0
  %1633 = vmatpush2.bf16.msra.mxu0 0
  %1634 = vmatprep.subr.bf16.mxu0 0
  %1635 = vmatpush2.bf16.msra.mxu0 0
  %1636 = vmatprep.subr.bf16.mxu0 0
  %1637 = vmatpush2.bf16.msra.mxu0 0
  %1638 = vmatprep.subr.bf16.mxu0 0
  %1639 = vmatpush2.bf16.msra.mxu0 0
  %1640 = vmatprep.mubr.bf16.mxu0 0
  %1641 = vmatmul.mubr.bf16.gmra.mxu0 %v265
  %v1642 = vpop.f32.mrf.mxu0
  %v1643 = vadd.f32 0.0, %v1642
  %v1644 = vpop.f32.mrf.mxu0
  %v1645 = vpop.f32.mrf.mxu0
  %v1646 = vadd.f32 0.0, %v1645
  %v1647 = vpop.f32.mrf.mxu0
  %1648 = vmatprep.mubr.bf16.mxu0 0
  %1649 = vmatmul.mubr.bf16.gmra.mxu0 %v268
  %v1650 = vpop.f32.mrf.mxu0
  %v1651 = vadd.f32 0.0, %v1650
  %v1652 = vpop.f32.mrf.mxu0
  %v1653 = vpop.f32.mrf.mxu0
  %v1654 = vadd.f32 0.0, %v1653
  %v1655 = vpop.f32.mrf.mxu0
  %1656 = vmatprep.mubr.bf16.mxu0 0
  %1657 = vmatmul.mubr.bf16.gmra.mxu0 %v271
  %v1658 = vpop.f32.mrf.mxu0
  %v1659 = vadd.f32 0.0, %v1658
  %v1660 = vpop.f32.mrf.mxu0
  %v1661 = vpop.f32.mrf.mxu0
  %v1662 = vadd.f32 0.0, %v1661
  %v1663 = vpop.f32.mrf.mxu0
  %1664 = vmatprep.mubr.bf16.mxu0 0
  %1665 = vmatmul.mubr.bf16.gmra.mxu0 %v274
  %v1666 = vpop.f32.mrf.mxu0
  %v1667 = vadd.f32 0.0, %v1666
  %v1668 = vpop.f32.mrf.mxu0
  %v1669 = vpop.f32.mrf.mxu0
  %v1670 = vadd.f32 0.0, %v1669
  %v1671 = vpop.f32.mrf.mxu0
  %1672 = vmatprep.mubr.bf16.mxu0 0
  %1673 = vmatmul.mubr.bf16.gmra.mxu0 %v277
  %v1674 = vpop.f32.mrf.mxu0
  %v1675 = vadd.f32 0.0, %v1674
  %v1676 = vpop.f32.mrf.mxu0
  %v1677 = vpop.f32.mrf.mxu0
  %v1678 = vadd.f32 0.0, %v1677
  %v1679 = vpop.f32.mrf.mxu0
  %1680 = vmatprep.mubr.bf16.mxu0 0
  %1681 = vmatmul.mubr.bf16.gmra.mxu0 %v280
  %v1682 = vpop.f32.mrf.mxu0
  %v1683 = vadd.f32 0.0, %v1682
  %v1684 = vpop.f32.mrf.mxu0
  %v1685 = vpop.f32.mrf.mxu0
  %v1686 = vadd.f32 0.0, %v1685
  %v1687 = vpop.f32.mrf.mxu0
  %1688 = vmatprep.mubr.bf16.mxu0 0
  %1689 = vmatmul.mubr.bf16.gmra.mxu0 %v283
  %v1690 = vpop.f32.mrf.mxu0
  %v1691 = vadd.f32 0.0, %v1690
  %v1692 = vpop.f32.mrf.mxu0
  %v1693 = vpop.f32.mrf.mxu0
  %v1694 = vadd.f32 0.0, %v1693
  %v1695 = vpop.f32.mrf.mxu0
  %1696 = vmatprep.mubr.bf16.mxu0 0
  %1697 = vmatmul.mubr.bf16.gmra.mxu0 %v286
  %v1698 = vpop.f32.mrf.mxu0
  %v1699 = vadd.f32 0.0, %v1698
  %v1700 = vpop.f32.mrf.mxu0
  %v1701 = vpop.f32.mrf.mxu0
  %v1702 = vadd.f32 0.0, %v1701
  %v1703 = vpop.f32.mrf.mxu0
  %1704 = vmatprep.mubr.bf16.mxu0 0
  %1705 = vmatmul.mubr.bf16.gmra.mxu0 %v289
  %v1706 = vpop.f32.mrf.mxu0
  %v1707 = vadd.f32 0.0, %v1706
  %v1708 = vpop.f32.mrf.mxu0
  %v1709 = vpop.f32.mrf.mxu0
  %v1710 = vadd.f32 0.0, %v1709
  %v1711 = vpop.f32.mrf.mxu0
  %1712 = vmatprep.mubr.bf16.mxu0 0
  %1713 = vmatmul.mubr.bf16.gmra.mxu0 %v292
  %v1714 = vpop.f32.mrf.mxu0
  %v1715 = vadd.f32 0.0, %v1714
  %v1716 = vpop.f32.mrf.mxu0
  %v1717 = vpop.f32.mrf.mxu0
  %v1718 = vadd.f32 0.0, %v1717
  %v1719 = vpop.f32.mrf.mxu0
  %1720 = vmatprep.mubr.bf16.mxu0 0
  %1721 = vmatmul.mubr.bf16.gmra.mxu0 %v295
  %v1722 = vpop.f32.mrf.mxu0
  %v1723 = vadd.f32 0.0, %v1722
  %v1724 = vpop.f32.mrf.mxu0
  %v1725 = vpop.f32.mrf.mxu0
  %v1726 = vadd.f32 0.0, %v1725
  %v1727 = vpop.f32.mrf.mxu0
  %1728 = vmatprep.mubr.bf16.mxu0 0
  %1729 = vmatmul.mubr.bf16.gmra.mxu0 %v298
  %v1730 = vpop.f32.mrf.mxu0
  %v1731 = vadd.f32 0.0, %v1730
  %v1732 = vpop.f32.mrf.mxu0
  %v1733 = vpop.f32.mrf.mxu0
  %v1734 = vadd.f32 0.0, %v1733
  %v1735 = vpop.f32.mrf.mxu0
  %1736 = vmatprep.mubr.bf16.mxu0 0
  %1737 = vmatmul.mubr.bf16.gmra.mxu0 %v301
  %v1738 = vpop.f32.mrf.mxu0
  %v1739 = vadd.f32 0.0, %v1738
  %v1740 = vpop.f32.mrf.mxu0
  %v1741 = vpop.f32.mrf.mxu0
  %v1742 = vadd.f32 0.0, %v1741
  %v1743 = vpop.f32.mrf.mxu0
  %1744 = vmatprep.mubr.bf16.mxu0 0
  %1745 = vmatmul.mubr.bf16.gmra.mxu0 %v304
  %v1746 = vpop.f32.mrf.mxu0
  %v1747 = vadd.f32 0.0, %v1746
  %v1748 = vpop.f32.mrf.mxu0
  %v1749 = vpop.f32.mrf.mxu0
  %v1750 = vadd.f32 0.0, %v1749
  %v1751 = vpop.f32.mrf.mxu0
  %1752 = vmatprep.mubr.bf16.mxu0 0
  %1753 = vmatmul.mubr.bf16.gmra.mxu0 %v307
  %v1754 = vpop.f32.mrf.mxu0
  %v1755 = vadd.f32 0.0, %v1754
  %v1756 = vpop.f32.mrf.mxu0
  %v1757 = vpop.f32.mrf.mxu0
  %v1758 = vadd.f32 0.0, %v1757
  %v1759 = vpop.f32.mrf.mxu0
  %1760 = vmatprep.mubr.bf16.mxu0 0
  %1761 = vmatmul.mubr.bf16.gmra.mxu0 %v310
  %v1762 = vpop.f32.mrf.mxu0
  %v1763 = vadd.f32 0.0, %v1762
  %v1764 = vpop.f32.mrf.mxu0
  %v1765 = vpop.f32.mrf.mxu0
  %v1766 = vadd.f32 0.0, %v1765
  %v1767 = vpop.f32.mrf.mxu0
  %1768 = vdwg.mxu0
  %v1769 = vpack.c.bf16 %v1646, %v1643
  %v1770 = vpack.c.bf16 %v1654, %v1651
  %v1771 = vpack.c.bf16 %v1662, %v1659
  %v1772 = vpack.c.bf16 %v1670, %v1667
  %v1773 = vpack.c.bf16 %v1678, %v1675
  %v1774 = vpack.c.bf16 %v1686, %v1683
  %v1775 = vpack.c.bf16 %v1694, %v1691
  %v1776 = vpack.c.bf16 %v1702, %v1699
  %v1777 = vpack.c.bf16 %v1710, %v1707
  %v1778 = vpack.c.bf16 %v1718, %v1715
  %v1779 = vpack.c.bf16 %v1726, %v1723
  %v1780 = vpack.c.bf16 %v1734, %v1731
  %v1781 = vpack.c.bf16 %v1742, %v1739
  %v1782 = vpack.c.bf16 %v1750, %v1747
  %v1783 = vpack.c.bf16 %v1758, %v1755
  %v1784 = vpack.c.bf16 %v1766, %v1763
  %v1801 = vunpack.c.l.b16 %v1769
  %v1802 = vunpack.c.h.b16 %v1769
  %v1803 = vunpack.c.l.b16 %v1770
  %v1804 = vunpack.c.h.b16 %v1770
  %v1805 = vunpack.c.l.b16 %v1771
  %v1806 = vunpack.c.h.b16 %v1771
  %v1807 = vunpack.c.l.b16 %v1772
  %v1808 = vunpack.c.h.b16 %v1772
  %v1809 = vunpack.c.l.b16 %v1773
  %v1810 = vunpack.c.h.b16 %v1773
  %v1811 = vunpack.c.l.b16 %v1774
  %v1812 = vunpack.c.h.b16 %v1774
  %v1813 = vunpack.c.l.b16 %v1775
  %v1814 = vunpack.c.h.b16 %v1775
  %v1815 = vunpack.c.l.b16 %v1776
  %v1816 = vunpack.c.h.b16 %v1776
  %v1817 = vunpack.c.l.b16 %v1777
  %v1818 = vunpack.c.h.b16 %v1777
  %v1819 = vunpack.c.l.b16 %v1778
  %v1820 = vunpack.c.h.b16 %v1778
  %v1821 = vunpack.c.l.b16 %v1779
  %v1822 = vunpack.c.h.b16 %v1779
  %v1823 = vunpack.c.l.b16 %v1780
  %v1824 = vunpack.c.h.b16 %v1780
  %v1825 = vunpack.c.l.b16 %v1781
  %v1826 = vunpack.c.h.b16 %v1781
  %v1827 = vunpack.c.l.b16 %v1782
  %v1828 = vunpack.c.h.b16 %v1782
  %v1829 = vunpack.c.l.b16 %v1783
  %v1830 = vunpack.c.h.b16 %v1783
  %v1831 = vunpack.c.l.b16 %v1784
  %v1832 = vunpack.c.h.b16 %v1784
  %v1833 = vpack.c.b16 %v1801, %v1801
  %v1834 = vpack.c.b16 %v1802, %v1802
  %v1835 = vpack.c.b16 %v1803, %v1803
  %v1836 = vpack.c.b16 %v1804, %v1804
  %v1837 = vpack.c.b16 %v1805, %v1805
  %v1838 = vpack.c.b16 %v1806, %v1806
  %v1839 = vpack.c.b16 %v1807, %v1807
  %v1840 = vpack.c.b16 %v1808, %v1808
  %v1841 = vpack.c.b16 %v1809, %v1809
  %v1842 = vpack.c.b16 %v1810, %v1810
  %v1843 = vpack.c.b16 %v1811, %v1811
  %v1844 = vpack.c.b16 %v1812, %v1812
  %v1845 = vpack.c.b16 %v1813, %v1813
  %v1846 = vpack.c.b16 %v1814, %v1814
  %v1847 = vpack.c.b16 %v1815, %v1815
  %v1848 = vpack.c.b16 %v1816, %v1816
  %v1849 = vpack.c.b16 %v1817, %v1817
  %v1850 = vpack.c.b16 %v1818, %v1818
  %v1851 = vpack.c.b16 %v1819, %v1819
  %v1852 = vpack.c.b16 %v1820, %v1820
  %v1853 = vpack.c.b16 %v1821, %v1821
  %v1854 = vpack.c.b16 %v1822, %v1822
  %v1855 = vpack.c.b16 %v1823, %v1823
  %v1856 = vpack.c.b16 %v1824, %v1824
  %v1857 = vpack.c.b16 %v1825, %v1825
  %v1858 = vpack.c.b16 %v1826, %v1826
  %v1859 = vpack.c.b16 %v1827, %v1827
  %v1860 = vpack.c.b16 %v1828, %v1828
  %v1861 = vpack.c.b16 %v1829, %v1829
  %v1862 = vpack.c.b16 %v1830, %v1830
  %v1863 = vpack.c.b16 %v1831, %v1831
  %v1864 = vpack.c.b16 %v1832, %v1832
  %s1897 = scalar_lea.vmem %s4, 384
  %1898 = vst.msk [vmem:[%s1897] sm:$0xf] %vm601, %v1833
  %1899 = vst.msk [vmem:[%s1897 + $0x4] sm:$0xf] %vm601, %v1834
  %1900 = vst.msk [vmem:[%s1897 + $0x8] sm:$0xf] %vm601, %v1835
  %1901 = vst.msk [vmem:[%s1897 + $0xc] sm:$0xf] %vm601, %v1836
  %1902 = vst.msk [vmem:[%s1897 + $0x10] sm:$0xf] %vm601, %v1837
  %1903 = vst.msk [vmem:[%s1897 + $0x14] sm:$0xf] %vm601, %v1838
  %1904 = vst.msk [vmem:[%s1897 + $0x18] sm:$0xf] %vm601, %v1839
  %1905 = vst.msk [vmem:[%s1897 + $0x1c] sm:$0xf] %vm601, %v1840
  %1906 = vst.msk [vmem:[%s1897 + $0x20] sm:$0xf] %vm601, %v1841
  %1907 = vst.msk [vmem:[%s1897 + $0x24] sm:$0xf] %vm601, %v1842
  %1908 = vst.msk [vmem:[%s1897 + $0x28] sm:$0xf] %vm601, %v1843
  %1909 = vst.msk [vmem:[%s1897 + $0x2c] sm:$0xf] %vm601, %v1844
  %1910 = vst.msk [vmem:[%s1897 + $0x30] sm:$0xf] %vm601, %v1845
  %1911 = vst.msk [vmem:[%s1897 + $0x34] sm:$0xf] %vm601, %v1846
  %1912 = vst.msk [vmem:[%s1897 + $0x38] sm:$0xf] %vm601, %v1847
  %1913 = vst.msk [vmem:[%s1897 + $0x3c] sm:$0xf] %vm601, %v1848
  %1914 = vst.msk [vmem:[%s1897 + $0x40] sm:$0xf] %vm601, %v1849
  %1915 = vst.msk [vmem:[%s1897 + $0x44] sm:$0xf] %vm601, %v1850
  %1916 = vst.msk [vmem:[%s1897 + $0x48] sm:$0xf] %vm601, %v1851
  %1917 = vst.msk [vmem:[%s1897 + $0x4c] sm:$0xf] %vm601, %v1852
  %1918 = vst.msk [vmem:[%s1897 + $0x50] sm:$0xf] %vm601, %v1853
  %1919 = vst.msk [vmem:[%s1897 + $0x54] sm:$0xf] %vm601, %v1854
  %1920 = vst.msk [vmem:[%s1897 + $0x58] sm:$0xf] %vm601, %v1855
  %1921 = vst.msk [vmem:[%s1897 + $0x5c] sm:$0xf] %vm601, %v1856
  %1922 = vst.msk [vmem:[%s1897 + $0x60] sm:$0xf] %vm601, %v1857
  %1923 = vst.msk [vmem:[%s1897 + $0x64] sm:$0xf] %vm601, %v1858
  %1924 = vst.msk [vmem:[%s1897 + $0x68] sm:$0xf] %vm601, %v1859
  %1925 = vst.msk [vmem:[%s1897 + $0x6c] sm:$0xf] %vm601, %v1860
  %1926 = vst.msk [vmem:[%s1897 + $0x70] sm:$0xf] %vm601, %v1861
  %1927 = vst.msk [vmem:[%s1897 + $0x74] sm:$0xf] %vm601, %v1862
  %1928 = vst.msk [vmem:[%s1897 + $0x78] sm:$0xf] %vm601, %v1863
  %1929 = vst.msk [vmem:[%s1897 + $0x7c] sm:$0xf] %vm601, %v1864
  // Predicated region
  $region18: #{_lambda_.15} parent=0 // pred_check
    _
  $region19: #{_lambda_.15} parent=0 // pred_check_branch
    %1931 = sbr.rel (0) target = $region21
  $region20: #{_lambda_.15} parent=0 // pred_region
    _
  $region21: #{_lambda_.15} parent=0 // pred_fallthru
    _
  // Predicated region
  $region22: #{_lambda_.15} parent=0 // pred_check
    _
  $region23: #{_lambda_.15} parent=0 // pred_check_branch
    %1933 = sbr.rel (0) target = $region25
  $region24: #{_lambda_.15} parent=0 // pred_region
    _
  $region25: #{_lambda_.15} parent=0 // pred_fallthru
    _

// kernel: _lambda_.11
$region0: #{_lambda_.11}
  #allocation0 [shape = 'u32[]', space=smem, size = 0x4, offset = 0x4, fixed_abs, tag = 'smem constant byte address 0x4 - core index']
  #allocation1 [shape = 'u32[144,128]{1,0:T(1,128)}', space=vmem, size = 0x12000, scoped, tag = 'internal scratch']
  %s0 = inlined_call_operand.vmem [shape: bf16[64,8], index: 0, kind: input, shape index: {}]
  %s1 = inlined_call_operand.vmem [shape: bf16[8,64], index: 1, kind: input, shape index: {}]
  %s2 = inlined_call_operand.vmem [shape: f32[1,64], index: 2, kind: input, shape index: {}]
  %s3 = inlined_call_operand.vmem [shape: f32[1,64], index: 3, kind: input, shape index: {}]
  %s4 = inlined_call_operand.vmem [shape: bf16[64,64], index: 4, kind: output, shape index: {}]
  %s5 = sld [smem:[#allocation0]]
  $region26: #{_lambda_.11} parent=0
    _
  %s7 = ssub.s32 1, %s5
  %s8 = scalar_select 0, %s7, %s5
  // Predicated region
  $region2: #{_lambda_.11} parent=0 // pred_check
    _
  $region3: #{_lambda_.11} parent=0 // pred_check_branch
    %10 = sbr.rel (0) target = $region5
  $region4: #{_lambda_.11} parent=0 // pred_region
    _
  $region5: #{_lambda_.11} parent=0 // pred_fallthru
    _
  // Predicated region
  $region6: #{_lambda_.11} parent=0 // pred_check
    _
  $region7: #{_lambda_.11} parent=0 // pred_check_branch
    %12 = sbr.rel (0) target = $region9
  $region8: #{_lambda_.11} parent=0 // pred_region
    _
  $region9: #{_lambda_.11} parent=0 // pred_fallthru
    _
  // Predicated region
  $region10: #{_lambda_.11} parent=0 // pred_check
    _
  $region11: #{_lambda_.11} parent=0 // pred_check_branch
    %14 = sbr.rel (0) target = $region13
  $region12: #{_lambda_.11} parent=0 // pred_region
    _
  $region13: #{_lambda_.11} parent=0 // pred_fallthru
    _
  // Predicated region
  $region14: #{_lambda_.11} parent=0 // pred_check
    _
  $region15: #{_lambda_.11} parent=0 // pred_check_branch
    %16 = sbr.rel (0) target = $region17
  $region16: #{_lambda_.11} parent=0 // pred_region
    _
  $region17: #{_lambda_.11} parent=0 // pred_fallthru
    _
  %v18 = vld [vmem:[%s0] sm:$0xf]
  %v19 = vld [vmem:[%s0 + $0x4] sm:$0xf]
  %v20 = vld [vmem:[%s0 + $0x8] sm:$0xf]
  %v21 = vld [vmem:[%s0 + $0xc] sm:$0xf]
  %v22 = vld [vmem:[%s0 + $0x10] sm:$0xf]
  %v23 = vld [vmem:[%s0 + $0x14] sm:$0xf]
  %v24 = vld [vmem:[%s0 + $0x18] sm:$0xf]
  %v25 = vld [vmem:[%s0 + $0x1c] sm:$0xf]
  %v26 = vld [vmem:[%s1] sm:$0xf]
  %v35 = vunpack.c.l.b16 %v18
  %v36 = vunpack.c.l.b16 %v19
  %v37 = vunpack.c.l.b16 %v20
  %v38 = vunpack.c.l.b16 %v21
  %v39 = vunpack.c.l.b16 %v22
  %v40 = vunpack.c.l.b16 %v23
  %v41 = vunpack.c.l.b16 %v24
  %v42 = vunpack.c.l.b16 %v25
  %v43 = vpack.c.b16 %v36, %v35
  %v44 = vpack.c.b16 %v38, %v37
  %v45 = vpack.c.b16 %v40, %v39
  %v46 = vpack.c.b16 %v42, %v41
  %vm47 = vcmask 64512
  %v49 = vsel %vm47, %v43, 0
  %v52 = vsel %vm47, %v44, 0
  %v55 = vsel %vm47, %v45, 0
  %v58 = vsel %vm47, %v46, 0
  %vm60 = vcmask 1043456
  %v62 = vsel %vm60, %v26, 0
  %64 = vmatprep.subr.bf16.mxu0 0
  %65 = vmatpush1.bf16.msra.mxu0 0
  %66 = vmatprep.subr.bf16.mxu0 0
  %67 = vmatpush1.bf16.msra.mxu0 0
  %68 = vmatprep.subr.bf16.mxu0 0
  %69 = vmatpush1.bf16.msra.mxu0 0
  %70 = vmatprep.subr.bf16.mxu0 0
  %71 = vmatpush1.bf16.msra.mxu0 0
  %72 = vmatprep.subr.bf16.mxu0 0
  %73 = vmatpush1.bf16.msra.mxu0 0
  %74 = vmatprep.subr.bf16.mxu0 0
  %75 = vmatpush1.bf16.msra.mxu0 0
  %76 = vmatprep.subr.bf16.mxu0 0
  %77 = vmatpush1.bf16.msra.mxu0 0
  %78 = vmatprep.subr.bf16.mxu0 0
  %79 = vmatpush1.bf16.msra.mxu0 %v62
  %80 = vmatprep.subr.bf16.mxu0 0
  %81 = vmatpush2.bf16.msra.mxu0 0
  %82 = vmatprep.subr.bf16.mxu0 0
  %83 = vmatpush2.bf16.msra.mxu0 0
  %84 = vmatprep.subr.bf16.mxu0 0
  %85 = vmatpush2.bf16.msra.mxu0 0
  %86 = vmatprep.subr.bf16.mxu0 0
  %87 = vmatpush2.bf16.msra.mxu0 0
  %88 = vmatprep.subr.bf16.mxu0 0
  %89 = vmatpush2.bf16.msra.mxu0 0
  %90 = vmatprep.subr.bf16.mxu0 0
  %91 = vmatpush2.bf16.msra.mxu0 0
  %92 = vmatprep.subr.bf16.mxu0 0
  %93 = vmatpush2.bf16.msra.mxu0 0
  %94 = vmatprep.subr.bf16.mxu0 0
  %95 = vmatpush2.bf16.msra.mxu0 0
  %96 = vmatprep.mubr.bf16.mxu0 0
  %97 = vmatmul.mubr.bf16.gmra.mxu0 %v49
  %v98 = vpop.f32.mrf.mxu0
  %v99 = vadd.f32 0.0, %v98
  %v100 = vpop.f32.mrf.mxu0
  %v101 = vpop.f32.mrf.mxu0
  %v102 = vadd.f32 0.0, %v101
  %v103 = vpop.f32.mrf.mxu0
  %104 = vmatprep.mubr.bf16.mxu0 0
  %105 = vmatmul.mubr.bf16.gmra.mxu0 %v52
  %v106 = vpop.f32.mrf.mxu0
  %v107 = vadd.f32 0.0, %v106
  %v108 = vpop.f32.mrf.mxu0
  %v109 = vpop.f32.mrf.mxu0
  %v110 = vadd.f32 0.0, %v109
  %v111 = vpop.f32.mrf.mxu0
  %112 = vmatprep.mubr.bf16.mxu0 0
  %113 = vmatmul.mubr.bf16.gmra.mxu0 %v55
  %v114 = vpop.f32.mrf.mxu0
  %v115 = vadd.f32 0.0, %v114
  %v116 = vpop.f32.mrf.mxu0
  %v117 = vpop.f32.mrf.mxu0
  %v118 = vadd.f32 0.0, %v117
  %v119 = vpop.f32.mrf.mxu0
  %120 = vmatprep.mubr.bf16.mxu0 0
  %121 = vmatmul.mubr.bf16.gmra.mxu0 %v58
  %v122 = vpop.f32.mrf.mxu0
  %v123 = vadd.f32 0.0, %v122
  %v124 = vpop.f32.mrf.mxu0
  %v125 = vpop.f32.mrf.mxu0
  %v126 = vadd.f32 0.0, %v125
  %v127 = vpop.f32.mrf.mxu0
  %128 = vdwg.mxu0
  %v129 = vld [vmem:[%s2] sm:$0x1]
  %v131 = vlaneseq
  %v132 = vshrl.u32 %v131, 7
  %v133 = vsub.s32 0, %v132
  %v134 = vrot.slane %v129, %v133
  %v136 = vmul.f32 %v99, %v134
  %v137 = vmul.f32 %v102, %v134
  %v138 = vmul.f32 %v107, %v134
  %v139 = vmul.f32 %v110, %v134
  %v140 = vmul.f32 %v115, %v134
  %v141 = vmul.f32 %v118, %v134
  %v142 = vmul.f32 %v123, %v134
  %v143 = vmul.f32 %v126, %v134
  %v144 = vld [vmem:[%s3] sm:$0x1]
  %v146 = vlaneseq
  %v147 = vshrl.u32 %v146, 7
  %v148 = vsub.s32 0, %v147
  %v149 = vrot.slane %v144, %v148
  %v151 = vadd.f32 %v136, %v149
  %v152 = vadd.f32 %v137, %v149
  %v153 = vadd.f32 %v138, %v149
  %v154 = vadd.f32 %v139, %v149
  %v155 = vadd.f32 %v140, %v149
  %v156 = vadd.f32 %v141, %v149
  %v157 = vadd.f32 %v142, %v149
  %v158 = vadd.f32 %v143, %v149
  %v159 = vpack.c.bf16 %v152, %v151
  %v160 = vpack.c.bf16 %v154, %v153
  %v161 = vpack.c.bf16 %v156, %v155
  %v162 = vpack.c.bf16 %v158, %v157
  %v167 = vunpack.c.l.b16 %v159
  %v168 = vunpack.c.h.b16 %v159
  %v169 = vunpack.c.l.b16 %v160
  %v170 = vunpack.c.h.b16 %v160
  %v171 = vunpack.c.l.b16 %v161
  %v172 = vunpack.c.h.b16 %v161
  %v173 = vunpack.c.l.b16 %v162
  %v174 = vunpack.c.h.b16 %v162
  %v175 = vpack.c.b16 %v167, %v167
  %v176 = vpack.c.b16 %v168, %v168
  %v177 = vpack.c.b16 %v169, %v169
  %v178 = vpack.c.b16 %v170, %v170
  %v179 = vpack.c.b16 %v171, %v171
  %v180 = vpack.c.b16 %v172, %v172
  %v181 = vpack.c.b16 %v173, %v173
  %v182 = vpack.c.b16 %v174, %v174
  %vm191 = vcmask 519168
  %192 = vst.msk [vmem:[%s4] sm:$0xf] %vm191, %v175
  %193 = vst.msk [vmem:[%s4 + $0x4] sm:$0xf] %vm191, %v176
  %194 = vst.msk [vmem:[%s4 + $0x8] sm:$0xf] %vm191, %v177
  %195 = vst.msk [vmem:[%s4 + $0xc] sm:$0xf] %vm191, %v178
  %196 = vst.msk [vmem:[%s4 + $0x10] sm:$0xf] %vm191, %v179
  %197 = vst.msk [vmem:[%s4 + $0x14] sm:$0xf] %vm191, %v180
  %198 = vst.msk [vmem:[%s4 + $0x18] sm:$0xf] %vm191, %v181
  %199 = vst.msk [vmem:[%s4 + $0x1c] sm:$0xf] %vm191, %v182
  // Predicated region
  $region18: #{_lambda_.11} parent=0 // pred_check
    _
  $region19: #{_lambda_.11} parent=0 // pred_check_branch
    %201 = sbr.rel (0) target = $region21
  $region20: #{_lambda_.11} parent=0 // pred_region
    _
  $region21: #{_lambda_.11} parent=0 // pred_fallthru
    _
  // Predicated region
  $region22: #{_lambda_.11} parent=0 // pred_check
    _
  $region23: #{_lambda_.11} parent=0 // pred_check_branch
    %203 = sbr.rel (0) target = $region25
  $region24: #{_lambda_.11} parent=0 // pred_region
    _
  $region25: #{_lambda_.11} parent=0 // pred_fallthru
    _

// kernel: _lambda_.14
$region0: #{_lambda_.14}
  #allocation0 [shape = 'u32[]', space=smem, size = 0x4, offset = 0x4, fixed_abs, tag = 'smem constant byte address 0x4 - core index']
  #allocation1 [shape = 'u32[144,128]{1,0:T(1,128)}', space=vmem, size = 0x12000, scoped, tag = 'internal scratch']
  %s0 = inlined_call_operand.vmem [shape: bf16[4,16,64], index: 0, kind: input, shape index: {}]
  %s1 = inlined_call_operand.vmem [shape: bf16[64,32], index: 1, kind: input, shape index: {}]
  %s2 = inlined_call_operand.vmem [shape: f32[1,32], index: 2, kind: input, shape index: {}]
  %s3 = inlined_call_operand.vmem [shape: bf16[256,16], index: 3, kind: input, shape index: {}]
  %s4 = inlined_call_operand.vmem [shape: bf16[4,256,32], index: 4, kind: output, shape index: {}]
  %s5 = sld [smem:[#allocation0]]
  $region26: #{_lambda_.14} parent=0
    _
  %s7 = ssub.s32 1, %s5
  %s8 = scalar_select 0, %s7, %s5
  // Predicated region
  $region2: #{_lambda_.14} parent=0 // pred_check
    _
  $region3: #{_lambda_.14} parent=0 // pred_check_branch
    %10 = sbr.rel (0) target = $region5
  $region4: #{_lambda_.14} parent=0 // pred_region
    _
  $region5: #{_lambda_.14} parent=0 // pred_fallthru
    _
  // Predicated region
  $region6: #{_lambda_.14} parent=0 // pred_check
    _
  $region7: #{_lambda_.14} parent=0 // pred_check_branch
    %12 = sbr.rel (0) target = $region9
  $region8: #{_lambda_.14} parent=0 // pred_region
    _
  $region9: #{_lambda_.14} parent=0 // pred_fallthru
    _
  // Predicated region
  $region10: #{_lambda_.14} parent=0 // pred_check
    _
  $region11: #{_lambda_.14} parent=0 // pred_check_branch
    %14 = sbr.rel (0) target = $region13
  $region12: #{_lambda_.14} parent=0 // pred_region
    _
  $region13: #{_lambda_.14} parent=0 // pred_fallthru
    _
  // Predicated region
  $region14: #{_lambda_.14} parent=0 // pred_check
    _
  $region15: #{_lambda_.14} parent=0 // pred_check_branch
    %16 = sbr.rel (0) target = $region17
  $region16: #{_lambda_.14} parent=0 // pred_region
    _
  $region17: #{_lambda_.14} parent=0 // pred_fallthru
    _
  %v18 = vld [vmem:[%s1] sm:$0xf]
  %v19 = vld [vmem:[%s1 + $0x4] sm:$0xf]
  %v20 = vld [vmem:[%s1 + $0x8] sm:$0xf]
  %v21 = vld [vmem:[%s1 + $0xc] sm:$0xf]
  %v22 = vld [vmem:[%s1 + $0x10] sm:$0xf]
  %v23 = vld [vmem:[%s1 + $0x14] sm:$0xf]
  %v24 = vld [vmem:[%s1 + $0x18] sm:$0xf]
  %v25 = vld [vmem:[%s1 + $0x1c] sm:$0xf]
  %v26 = vld [vmem:[%s2] sm:$0x1]
  %v27 = vld [vmem:[%s3] sm:$0xf]
  %v28 = vld [vmem:[%s3 + $0x4] sm:$0xf]
  %v29 = vld [vmem:[%s3 + $0x8] sm:$0xf]
  %v30 = vld [vmem:[%s3 + $0xc] sm:$0xf]
  %v31 = vld [vmem:[%s3 + $0x10] sm:$0xf]
  %v32 = vld [vmem:[%s3 + $0x14] sm:$0xf]
  %v33 = vld [vmem:[%s3 + $0x18] sm:$0xf]
  %v34 = vld [vmem:[%s3 + $0x1c] sm:$0xf]
  %v35 = vld [vmem:[%s3 + $0x20] sm:$0xf]
  %v36 = vld [vmem:[%s3 + $0x24] sm:$0xf]
  %v37 = vld [vmem:[%s3 + $0x28] sm:$0xf]
  %v38 = vld [vmem:[%s3 + $0x2c] sm:$0xf]
  %v39 = vld [vmem:[%s3 + $0x30] sm:$0xf]
  %v40 = vld [vmem:[%s3 + $0x34] sm:$0xf]
  %v41 = vld [vmem:[%s3 + $0x38] sm:$0xf]
  %v42 = vld [vmem:[%s3 + $0x3c] sm:$0xf]
  %v43 = vld [vmem:[%s3 + $0x40] sm:$0xf]
  %v44 = vld [vmem:[%s3 + $0x44] sm:$0xf]
  %v45 = vld [vmem:[%s3 + $0x48] sm:$0xf]
  %v46 = vld [vmem:[%s3 + $0x4c] sm:$0xf]
  %v47 = vld [vmem:[%s3 + $0x50] sm:$0xf]
  %v48 = vld [vmem:[%s3 + $0x54] sm:$0xf]
  %v49 = vld [vmem:[%s3 + $0x58] sm:$0xf]
  %v50 = vld [vmem:[%s3 + $0x5c] sm:$0xf]
  %v51 = vld [vmem:[%s3 + $0x60] sm:$0xf]
  %v52 = vld [vmem:[%s3 + $0x64] sm:$0xf]
  %v53 = vld [vmem:[%s3 + $0x68] sm:$0xf]
  %v54 = vld [vmem:[%s3 + $0x6c] sm:$0xf]
  %v55 = vld [vmem:[%s3 + $0x70] sm:$0xf]
  %v56 = vld [vmem:[%s3 + $0x74] sm:$0xf]
  %v57 = vld [vmem:[%s3 + $0x78] sm:$0xf]
  %v58 = vld [vmem:[%s3 + $0x7c] sm:$0xf]
  %v59 = vld [vmem:[%s0] sm:$0xf]
  %v60 = vld [vmem:[%s0 + $0x4] sm:$0xf]
  %v62 = vlaneseq
  %v63 = vshrl.u32 %v62, 7
  %v64 = vsub.s32 0, %v63
  %v65 = vrot.slane %v26, %v64
  %v69 = vunpack.c.l.b16 %v59
  %v70 = vunpack.c.l.b16 %v60
  %v71 = vpack.c.b16 %v70, %v69
  %v80 = vunpack.c.l.b16 %v18
  %v81 = vunpack.c.l.b16 %v19
  %v82 = vunpack.c.l.b16 %v20
  %v83 = vunpack.c.l.b16 %v21
  %v84 = vunpack.c.l.b16 %v22
  %v85 = vunpack.c.l.b16 %v23
  %v86 = vunpack.c.l.b16 %v24
  %v87 = vunpack.c.l.b16 %v25
  %v88 = vpack.c.b16 %v81, %v80
  %v89 = vpack.c.b16 %v83, %v82
  %v90 = vpack.c.b16 %v85, %v84
  %v91 = vpack.c.b16 %v87, %v86
  %vm96 = vcmask 523264
  %v98 = vsel %vm96, %v71, 0
  %100 = vmatprep.subr.bf16.mxu0 0
  %101 = vmatpush1.bf16.msra.mxu0 0
  %102 = vmatprep.subr.bf16.mxu0 0
  %103 = vmatpush1.bf16.msra.mxu0 0
  %104 = vmatprep.subr.bf16.mxu0 0
  %105 = vmatpush1.bf16.msra.mxu0 0
  %106 = vmatprep.subr.bf16.mxu0 0
  %107 = vmatpush1.bf16.msra.mxu0 0
  %108 = vmatprep.subr.bf16.mxu0 0
  %109 = vmatpush1.bf16.msra.mxu0 %v91
  %110 = vmatprep.subr.bf16.mxu0 0
  %111 = vmatpush1.bf16.msra.mxu0 %v90
  %112 = vmatprep.subr.bf16.mxu0 0
  %113 = vmatpush1.bf16.msra.mxu0 %v89
  %114 = vmatprep.subr.bf16.mxu0 0
  %115 = vmatpush1.bf16.msra.mxu0 %v88
  %116 = vmatprep.subr.bf16.mxu0 0
  %117 = vmatpush2.bf16.msra.mxu0 0
  %118 = vmatprep.subr.bf16.mxu0 0
  %119 = vmatpush2.bf16.msra.mxu0 0
  %120 = vmatprep.subr.bf16.mxu0 0
  %121 = vmatpush2.bf16.msra.mxu0 0
  %122 = vmatprep.subr.bf16.mxu0 0
  %123 = vmatpush2.bf16.msra.mxu0 0
  %124 = vmatprep.subr.bf16.mxu0 0
  %125 = vmatpush2.bf16.msra.mxu0 0
  %126 = vmatprep.subr.bf16.mxu0 0
  %127 = vmatpush2.bf16.msra.mxu0 0
  %128 = vmatprep.subr.bf16.mxu0 0
  %129 = vmatpush2.bf16.msra.mxu0 0
  %130 = vmatprep.subr.bf16.mxu0 0
  %131 = vmatpush2.bf16.msra.mxu0 0
  %132 = vmatprep.mubr.bf16.mxu0 0
  %133 = vmatmul.mubr.bf16.gmra.mxu0 %v98
  %v134 = vpop.f32.mrf.mxu0
  %v135 = vadd.f32 %v65, %v134
  %v136 = vpop.f32.mrf.mxu0
  %v137 = vpop.f32.mrf.mxu0
  %v138 = vadd.f32 %v65, %v137
  %v139 = vpop.f32.mrf.mxu0
  %140 = vdwg.mxu0
  %v141 = vpack.c.bf16 %v138, %v135
  %v174 = vunpack.c.l.b16 %v27
  %v175 = vunpack.c.l.b16 %v28
  %v176 = vunpack.c.l.b16 %v29
  %v177 = vunpack.c.l.b16 %v30
  %v178 = vunpack.c.l.b16 %v31
  %v179 = vunpack.c.l.b16 %v32
  %v180 = vunpack.c.l.b16 %v33
  %v181 = vunpack.c.l.b16 %v34
  %v182 = vunpack.c.l.b16 %v35
  %v183 = vunpack.c.l.b16 %v36
  %v184 = vunpack.c.l.b16 %v37
  %v185 = vunpack.c.l.b16 %v38
  %v186 = vunpack.c.l.b16 %v39
  %v187 = vunpack.c.l.b16 %v40
  %v188 = vunpack.c.l.b16 %v41
  %v189 = vunpack.c.l.b16 %v42
  %v190 = vunpack.c.l.b16 %v43
  %v191 = vunpack.c.l.b16 %v44
  %v192 = vunpack.c.l.b16 %v45
  %v193 = vunpack.c.l.b16 %v46
  %v194 = vunpack.c.l.b16 %v47
  %v195 = vunpack.c.l.b16 %v48
  %v196 = vunpack.c.l.b16 %v49
  %v197 = vunpack.c.l.b16 %v50
  %v198 = vunpack.c.l.b16 %v51
  %v199 = vunpack.c.l.b16 %v52
  %v200 = vunpack.c.l.b16 %v53
  %v201 = vunpack.c.l.b16 %v54
  %v202 = vunpack.c.l.b16 %v55
  %v203 = vunpack.c.l.b16 %v56
  %v204 = vunpack.c.l.b16 %v57
  %v205 = vunpack.c.l.b16 %v58
  %v206 = vpack.c.b16 %v175, %v174
  %v207 = vpack.c.b16 %v177, %v176
  %v208 = vpack.c.b16 %v179, %v178
  %v209 = vpack.c.b16 %v181, %v180
  %v210 = vpack.c.b16 %v183, %v182
  %v211 = vpack.c.b16 %v185, %v184
  %v212 = vpack.c.b16 %v187, %v186
  %v213 = vpack.c.b16 %v189, %v188
  %v214 = vpack.c.b16 %v191, %v190
  %v215 = vpack.c.b16 %v193, %v192
  %v216 = vpack.c.b16 %v195, %v194
  %v217 = vpack.c.b16 %v197, %v196
  %v218 = vpack.c.b16 %v199, %v198
  %v219 = vpack.c.b16 %v201, %v200
  %v220 = vpack.c.b16 %v203, %v202
  %v221 = vpack.c.b16 %v205, %v204
  %vm222 = vcmask 130048
  %v224 = vsel %vm222, %v206, 0
  %v227 = vsel %vm222, %v207, 0
  %v230 = vsel %vm222, %v208, 0
  %v233 = vsel %vm222, %v209, 0
  %v236 = vsel %vm222, %v210, 0
  %v239 = vsel %vm222, %v211, 0
  %v242 = vsel %vm222, %v212, 0
  %v245 = vsel %vm222, %v213, 0
  %v248 = vsel %vm222, %v214, 0
  %v251 = vsel %vm222, %v215, 0
  %v254 = vsel %vm222, %v216, 0
  %v257 = vsel %vm222, %v217, 0
  %v260 = vsel %vm222, %v218, 0
  %v263 = vsel %vm222, %v219, 0
  %v266 = vsel %vm222, %v220, 0
  %v269 = vsel %vm222, %v221, 0
  %271 = vmatprep.subr.bf16.mxu0 0
  %272 = vmatpush1.bf16.msra.mxu0 0
  %273 = vmatprep.subr.bf16.mxu0 0
  %274 = vmatpush1.bf16.msra.mxu0 0
  %275 = vmatprep.subr.bf16.mxu0 0
  %276 = vmatpush1.bf16.msra.mxu0 0
  %277 = vmatprep.subr.bf16.mxu0 0
  %278 = vmatpush1.bf16.msra.mxu0 0
  %279 = vmatprep.subr.bf16.mxu0 0
  %280 = vmatpush1.bf16.msra.mxu0 0
  %281 = vmatprep.subr.bf16.mxu0 0
  %282 = vmatpush1.bf16.msra.mxu0 0
  %283 = vmatprep.subr.bf16.mxu0 0
  %284 = vmatpush1.bf16.msra.mxu0 0
  %285 = vmatprep.subr.bf16.mxu0 0
  %286 = vmatpush1.bf16.msra.mxu0 %v141
  %287 = vmatprep.subr.bf16.mxu0 0
  %288 = vmatpush2.bf16.msra.mxu0 0
  %289 = vmatprep.subr.bf16.mxu0 0
  %290 = vmatpush2.bf16.msra.mxu0 0
  %291 = vmatprep.subr.bf16.mxu0 0
  %292 = vmatpush2.bf16.msra.mxu0 0
  %293 = vmatprep.subr.bf16.mxu0 0
  %294 = vmatpush2.bf16.msra.mxu0 0
  %295 = vmatprep.subr.bf16.mxu0 0
  %296 = vmatpush2.bf16.msra.mxu0 0
  %297 = vmatprep.subr.bf16.mxu0 0
  %298 = vmatpush2.bf16.msra.mxu0 0
  %299 = vmatprep.subr.bf16.mxu0 0
  %300 = vmatpush2.bf16.msra.mxu0 0
  %301 = vmatprep.subr.bf16.mxu0 0
  %302 = vmatpush2.bf16.msra.mxu0 0
  %303 = vmatprep.mubr.bf16.mxu0 0
  %304 = vmatmul.mubr.bf16.gmra.mxu0 %v224
  %v305 = vpop.f32.mrf.mxu0
  %v306 = vadd.f32 0.0, %v305
  %v307 = vpop.f32.mrf.mxu0
  %v308 = vpop.f32.mrf.mxu0
  %v309 = vadd.f32 0.0, %v308
  %v310 = vpop.f32.mrf.mxu0
  %311 = vmatprep.mubr.bf16.mxu0 0
  %312 = vmatmul.mubr.bf16.gmra.mxu0 %v227
  %v313 = vpop.f32.mrf.mxu0
  %v314 = vadd.f32 0.0, %v313
  %v315 = vpop.f32.mrf.mxu0
  %v316 = vpop.f32.mrf.mxu0
  %v317 = vadd.f32 0.0, %v316
  %v318 = vpop.f32.mrf.mxu0
  %319 = vmatprep.mubr.bf16.mxu0 0
  %320 = vmatmul.mubr.bf16.gmra.mxu0 %v230
  %v321 = vpop.f32.mrf.mxu0
  %v322 = vadd.f32 0.0, %v321
  %v323 = vpop.f32.mrf.mxu0
  %v324 = vpop.f32.mrf.mxu0
  %v325 = vadd.f32 0.0, %v324
  %v326 = vpop.f32.mrf.mxu0
  %327 = vmatprep.mubr.bf16.mxu0 0
  %328 = vmatmul.mubr.bf16.gmra.mxu0 %v233
  %v329 = vpop.f32.mrf.mxu0
  %v330 = vadd.f32 0.0, %v329
  %v331 = vpop.f32.mrf.mxu0
  %v332 = vpop.f32.mrf.mxu0
  %v333 = vadd.f32 0.0, %v332
  %v334 = vpop.f32.mrf.mxu0
  %335 = vmatprep.mubr.bf16.mxu0 0
  %336 = vmatmul.mubr.bf16.gmra.mxu0 %v236
  %v337 = vpop.f32.mrf.mxu0
  %v338 = vadd.f32 0.0, %v337
  %v339 = vpop.f32.mrf.mxu0
  %v340 = vpop.f32.mrf.mxu0
  %v341 = vadd.f32 0.0, %v340
  %v342 = vpop.f32.mrf.mxu0
  %343 = vmatprep.mubr.bf16.mxu0 0
  %344 = vmatmul.mubr.bf16.gmra.mxu0 %v239
  %v345 = vpop.f32.mrf.mxu0
  %v346 = vadd.f32 0.0, %v345
  %v347 = vpop.f32.mrf.mxu0
  %v348 = vpop.f32.mrf.mxu0
  %v349 = vadd.f32 0.0, %v348
  %v350 = vpop.f32.mrf.mxu0
  %351 = vmatprep.mubr.bf16.mxu0 0
  %352 = vmatmul.mubr.bf16.gmra.mxu0 %v242
  %v353 = vpop.f32.mrf.mxu0
  %v354 = vadd.f32 0.0, %v353
  %v355 = vpop.f32.mrf.mxu0
  %v356 = vpop.f32.mrf.mxu0
  %v357 = vadd.f32 0.0, %v356
  %v358 = vpop.f32.mrf.mxu0
  %359 = vmatprep.mubr.bf16.mxu0 0
  %360 = vmatmul.mubr.bf16.gmra.mxu0 %v245
  %v361 = vpop.f32.mrf.mxu0
  %v362 = vadd.f32 0.0, %v361
  %v363 = vpop.f32.mrf.mxu0
  %v364 = vpop.f32.mrf.mxu0
  %v365 = vadd.f32 0.0, %v364
  %v366 = vpop.f32.mrf.mxu0
  %367 = vmatprep.mubr.bf16.mxu0 0
  %368 = vmatmul.mubr.bf16.gmra.mxu0 %v248
  %v369 = vpop.f32.mrf.mxu0
  %v370 = vadd.f32 0.0, %v369
  %v371 = vpop.f32.mrf.mxu0
  %v372 = vpop.f32.mrf.mxu0
  %v373 = vadd.f32 0.0, %v372
  %v374 = vpop.f32.mrf.mxu0
  %375 = vmatprep.mubr.bf16.mxu0 0
  %376 = vmatmul.mubr.bf16.gmra.mxu0 %v251
  %v377 = vpop.f32.mrf.mxu0
  %v378 = vadd.f32 0.0, %v377
  %v379 = vpop.f32.mrf.mxu0
  %v380 = vpop.f32.mrf.mxu0
  %v381 = vadd.f32 0.0, %v380
  %v382 = vpop.f32.mrf.mxu0
  %383 = vmatprep.mubr.bf16.mxu0 0
  %384 = vmatmul.mubr.bf16.gmra.mxu0 %v254
  %v385 = vpop.f32.mrf.mxu0
  %v386 = vadd.f32 0.0, %v385
  %v387 = vpop.f32.mrf.mxu0
  %v388 = vpop.f32.mrf.mxu0
  %v389 = vadd.f32 0.0, %v388
  %v390 = vpop.f32.mrf.mxu0
  %391 = vmatprep.mubr.bf16.mxu0 0
  %392 = vmatmul.mubr.bf16.gmra.mxu0 %v257
  %v393 = vpop.f32.mrf.mxu0
  %v394 = vadd.f32 0.0, %v393
  %v395 = vpop.f32.mrf.mxu0
  %v396 = vpop.f32.mrf.mxu0
  %v397 = vadd.f32 0.0, %v396
  %v398 = vpop.f32.mrf.mxu0
  %399 = vmatprep.mubr.bf16.mxu0 0
  %400 = vmatmul.mubr.bf16.gmra.mxu0 %v260
  %v401 = vpop.f32.mrf.mxu0
  %v402 = vadd.f32 0.0, %v401
  %v403 = vpop.f32.mrf.mxu0
  %v404 = vpop.f32.mrf.mxu0
  %v405 = vadd.f32 0.0, %v404
  %v406 = vpop.f32.mrf.mxu0
  %407 = vmatprep.mubr.bf16.mxu0 0
  %408 = vmatmul.mubr.bf16.gmra.mxu0 %v263
  %v409 = vpop.f32.mrf.mxu0
  %v410 = vadd.f32 0.0, %v409
  %v411 = vpop.f32.mrf.mxu0
  %v412 = vpop.f32.mrf.mxu0
  %v413 = vadd.f32 0.0, %v412
  %v414 = vpop.f32.mrf.mxu0
  %415 = vmatprep.mubr.bf16.mxu0 0
  %416 = vmatmul.mubr.bf16.gmra.mxu0 %v266
  %v417 = vpop.f32.mrf.mxu0
  %v418 = vadd.f32 0.0, %v417
  %v419 = vpop.f32.mrf.mxu0
  %v420 = vpop.f32.mrf.mxu0
  %v421 = vadd.f32 0.0, %v420
  %v422 = vpop.f32.mrf.mxu0
  %423 = vmatprep.mubr.bf16.mxu0 0
  %424 = vmatmul.mubr.bf16.gmra.mxu0 %v269
  %v425 = vpop.f32.mrf.mxu0
  %v426 = vadd.f32 0.0, %v425
  %v427 = vpop.f32.mrf.mxu0
  %v428 = vpop.f32.mrf.mxu0
  %v429 = vadd.f32 0.0, %v428
  %v430 = vpop.f32.mrf.mxu0
  %431 = vdwg.mxu0
  %v432 = vpack.c.bf16 %v309, %v306
  %v433 = vpack.c.bf16 %v317, %v314
  %v434 = vpack.c.bf16 %v325, %v322
  %v435 = vpack.c.bf16 %v333, %v330
  %v436 = vpack.c.bf16 %v341, %v338
  %v437 = vpack.c.bf16 %v349, %v346
  %v438 = vpack.c.bf16 %v357, %v354
  %v439 = vpack.c.bf16 %v365, %v362
  %v440 = vpack.c.bf16 %v373, %v370
  %v441 = vpack.c.bf16 %v381, %v378
  %v442 = vpack.c.bf16 %v389, %v386
  %v443 = vpack.c.bf16 %v397, %v394
  %v444 = vpack.c.bf16 %v405, %v402
  %v445 = vpack.c.bf16 %v413, %v410
  %v446 = vpack.c.bf16 %v421, %v418
  %v447 = vpack.c.bf16 %v429, %v426
  %v464 = vunpack.c.l.b16 %v432
  %v465 = vunpack.c.h.b16 %v432
  %v466 = vunpack.c.l.b16 %v433
  %v467 = vunpack.c.h.b16 %v433
  %v468 = vunpack.c.l.b16 %v434
  %v469 = vunpack.c.h.b16 %v434
  %v470 = vunpack.c.l.b16 %v435
  %v471 = vunpack.c.h.b16 %v435
  %v472 = vunpack.c.l.b16 %v436
  %v473 = vunpack.c.h.b16 %v436
  %v474 = vunpack.c.l.b16 %v437
  %v475 = vunpack.c.h.b16 %v437
  %v476 = vunpack.c.l.b16 %v438
  %v477 = vunpack.c.h.b16 %v438
  %v478 = vunpack.c.l.b16 %v439
  %v479 = vunpack.c.h.b16 %v439
  %v480 = vunpack.c.l.b16 %v440
  %v481 = vunpack.c.h.b16 %v440
  %v482 = vunpack.c.l.b16 %v441
  %v483 = vunpack.c.h.b16 %v441
  %v484 = vunpack.c.l.b16 %v442
  %v485 = vunpack.c.h.b16 %v442
  %v486 = vunpack.c.l.b16 %v443
  %v487 = vunpack.c.h.b16 %v443
  %v488 = vunpack.c.l.b16 %v444
  %v489 = vunpack.c.h.b16 %v444
  %v490 = vunpack.c.l.b16 %v445
  %v491 = vunpack.c.h.b16 %v445
  %v492 = vunpack.c.l.b16 %v446
  %v493 = vunpack.c.h.b16 %v446
  %v494 = vunpack.c.l.b16 %v447
  %v495 = vunpack.c.h.b16 %v447
  %v496 = vpack.c.b16 %v464, %v464
  %v497 = vpack.c.b16 %v465, %v465
  %v498 = vpack.c.b16 %v466, %v466
  %v499 = vpack.c.b16 %v467, %v467
  %v500 = vpack.c.b16 %v468, %v468
  %v501 = vpack.c.b16 %v469, %v469
  %v502 = vpack.c.b16 %v470, %v470
  %v503 = vpack.c.b16 %v471, %v471
  %v504 = vpack.c.b16 %v472, %v472
  %v505 = vpack.c.b16 %v473, %v473
  %v506 = vpack.c.b16 %v474, %v474
  %v507 = vpack.c.b16 %v475, %v475
  %v508 = vpack.c.b16 %v476, %v476
  %v509 = vpack.c.b16 %v477, %v477
  %v510 = vpack.c.b16 %v478, %v478
  %v511 = vpack.c.b16 %v479, %v479
  %v512 = vpack.c.b16 %v480, %v480
  %v513 = vpack.c.b16 %v481, %v481
  %v514 = vpack.c.b16 %v482, %v482
  %v515 = vpack.c.b16 %v483, %v483
  %v516 = vpack.c.b16 %v484, %v484
  %v517 = vpack.c.b16 %v485, %v485
  %v518 = vpack.c.b16 %v486, %v486
  %v519 = vpack.c.b16 %v487, %v487
  %v520 = vpack.c.b16 %v488, %v488
  %v521 = vpack.c.b16 %v489, %v489
  %v522 = vpack.c.b16 %v490, %v490
  %v523 = vpack.c.b16 %v491, %v491
  %v524 = vpack.c.b16 %v492, %v492
  %v525 = vpack.c.b16 %v493, %v493
  %v526 = vpack.c.b16 %v494, %v494
  %v527 = vpack.c.b16 %v495, %v495
  %vm560 = vcmask 257024
  %561 = vst.msk [vmem:[%s4] sm:$0xf] %vm560, %v496
  %562 = vst.msk [vmem:[%s4 + $0x4] sm:$0xf] %vm560, %v497
  %563 = vst.msk [vmem:[%s4 + $0x8] sm:$0xf] %vm560, %v498
  %564 = vst.msk [vmem:[%s4 + $0xc] sm:$0xf] %vm560, %v499
  %565 = vst.msk [vmem:[%s4 + $0x10] sm:$0xf] %vm560, %v500
  %566 = vst.msk [vmem:[%s4 + $0x14] sm:$0xf] %vm560, %v501
  %567 = vst.msk [vmem:[%s4 + $0x18] sm:$0xf] %vm560, %v502
  %568 = vst.msk [vmem:[%s4 + $0x1c] sm:$0xf] %vm560, %v503
  %569 = vst.msk [vmem:[%s4 + $0x20] sm:$0xf] %vm560, %v504
  %570 = vst.msk [vmem:[%s4 + $0x24] sm:$0xf] %vm560, %v505
  %571 = vst.msk [vmem:[%s4 + $0x28] sm:$0xf] %vm560, %v506
  %572 = vst.msk [vmem:[%s4 + $0x2c] sm:$0xf] %vm560, %v507
  %573 = vst.msk [vmem:[%s4 + $0x30] sm:$0xf] %vm560, %v508
  %574 = vst.msk [vmem:[%s4 + $0x34] sm:$0xf] %vm560, %v509
  %575 = vst.msk [vmem:[%s4 + $0x38] sm:$0xf] %vm560, %v510
  %576 = vst.msk [vmem:[%s4 + $0x3c] sm:$0xf] %vm560, %v511
  %577 = vst.msk [vmem:[%s4 + $0x40] sm:$0xf] %vm560, %v512
  %578 = vst.msk [vmem:[%s4 + $0x44] sm:$0xf] %vm560, %v513
  %579 = vst.msk [vmem:[%s4 + $0x48] sm:$0xf] %vm560, %v514
  %580 = vst.msk [vmem:[%s4 + $0x4c] sm:$0xf] %vm560, %v515
  %581 = vst.msk [vmem:[%s4 + $0x50] sm:$0xf] %vm560, %v516
  %582 = vst.msk [vmem:[%s4 + $0x54] sm:$0xf] %vm560, %v517
  %583 = vst.msk [vmem:[%s4 + $0x58] sm:$0xf] %vm560, %v518
  %584 = vst.msk [vmem:[%s4 + $0x5c] sm:$0xf] %vm560, %v519
  %585 = vst.msk [vmem:[%s4 + $0x60] sm:$0xf] %vm560, %v520
  %586 = vst.msk [vmem:[%s4 + $0x64] sm:$0xf] %vm560, %v521
  %587 = vst.msk [vmem:[%s4 + $0x68] sm:$0xf] %vm560, %v522
  %588 = vst.msk [vmem:[%s4 + $0x6c] sm:$0xf] %vm560, %v523
  %589 = vst.msk [vmem:[%s4 + $0x70] sm:$0xf] %vm560, %v524
  %590 = vst.msk [vmem:[%s4 + $0x74] sm:$0xf] %vm560, %v525
  %591 = vst.msk [vmem:[%s4 + $0x78] sm:$0xf] %vm560, %v526
  %592 = vst.msk [vmem:[%s4 + $0x7c] sm:$0xf] %vm560, %v527
  %s593 = scalar_lea.vmem %s0, 8
  %v594 = vld [vmem:[%s593] sm:$0xf]
  %v595 = vld [vmem:[%s593 + $0x4] sm:$0xf]
  %v598 = vunpack.c.l.b16 %v594
  %v599 = vunpack.c.l.b16 %v595
  %v600 = vpack.c.b16 %v599, %v598
  %v602 = vsel %vm96, %v600, 0
  %604 = vmatprep.subr.bf16.mxu0 0
  %605 = vmatpush1.bf16.msra.mxu0 0
  %606 = vmatprep.subr.bf16.mxu0 0
  %607 = vmatpush1.bf16.msra.mxu0 0
  %608 = vmatprep.subr.bf16.mxu0 0
  %609 = vmatpush1.bf16.msra.mxu0 0
  %610 = vmatprep.subr.bf16.mxu0 0
  %611 = vmatpush1.bf16.msra.mxu0 0
  %612 = vmatprep.subr.bf16.mxu0 0
  %613 = vmatpush1.bf16.msra.mxu0 %v91
  %614 = vmatprep.subr.bf16.mxu0 0
  %615 = vmatpush1.bf16.msra.mxu0 %v90
  %616 = vmatprep.subr.bf16.mxu0 0
  %617 = vmatpush1.bf16.msra.mxu0 %v89
  %618 = vmatprep.subr.bf16.mxu0 0
  %619 = vmatpush1.bf16.msra.mxu0 %v88
  %620 = vmatprep.subr.bf16.mxu0 0
  %621 = vmatpush2.bf16.msra.mxu0 0
  %622 = vmatprep.subr.bf16.mxu0 0
  %623 = vmatpush2.bf16.msra.mxu0 0
  %624 = vmatprep.subr.bf16.mxu0 0
  %625 = vmatpush2.bf16.msra.mxu0 0
  %626 = vmatprep.subr.bf16.mxu0 0
  %627 = vmatpush2.bf16.msra.mxu0 0
  %628 = vmatprep.subr.bf16.mxu0 0
  %629 = vmatpush2.bf16.msra.mxu0 0
  %630 = vmatprep.subr.bf16.mxu0 0
  %631 = vmatpush2.bf16.msra.mxu0 0
  %632 = vmatprep.subr.bf16.mxu0 0
  %633 = vmatpush2.bf16.msra.mxu0 0
  %634 = vmatprep.subr.bf16.mxu0 0
  %635 = vmatpush2.bf16.msra.mxu0 0
  %636 = vmatprep.mubr.bf16.mxu0 0
  %637 = vmatmul.mubr.bf16.gmra.mxu0 %v602
  %v638 = vpop.f32.mrf.mxu0
  %v639 = vadd.f32 %v65, %v638
  %v640 = vpop.f32.mrf.mxu0
  %v641 = vpop.f32.mrf.mxu0
  %v642 = vadd.f32 %v65, %v641
  %v643 = vpop.f32.mrf.mxu0
  %644 = vdwg.mxu0
  %v645 = vpack.c.bf16 %v642, %v639
  %646 = vmatprep.subr.bf16.mxu0 0
  %647 = vmatpush1.bf16.msra.mxu0 0
  %648 = vmatprep.subr.bf16.mxu0 0
  %649 = vmatpush1.bf16.msra.mxu0 0
  %650 = vmatprep.subr.bf16.mxu0 0
  %651 = vmatpush1.bf16.msra.mxu0 0
  %652 = vmatprep.subr.bf16.mxu0 0
  %653 = vmatpush1.bf16.msra.mxu0 0
  %654 = vmatprep.subr.bf16.mxu0 0
  %655 = vmatpush1.bf16.msra.mxu0 0
  %656 = vmatprep.subr.bf16.mxu0 0
  %657 = vmatpush1.bf16.msra.mxu0 0
  %658 = vmatprep.subr.bf16.mxu0 0
  %659 = vmatpush1.bf16.msra.mxu0 0
  %660 = vmatprep.subr.bf16.mxu0 0
  %661 = vmatpush1.bf16.msra.mxu0 %v645
  %662 = vmatprep.subr.bf16.mxu0 0
  %663 = vmatpush2.bf16.msra.mxu0 0
  %664 = vmatprep.subr.bf16.mxu0 0
  %665 = vmatpush2.bf16.msra.mxu0 0
  %666 = vmatprep.subr.bf16.mxu0 0
  %667 = vmatpush2.bf16.msra.mxu0 0
  %668 = vmatprep.subr.bf16.mxu0 0
  %669 = vmatpush2.bf16.msra.mxu0 0
  %670 = vmatprep.subr.bf16.mxu0 0
  %671 = vmatpush2.bf16.msra.mxu0 0
  %672 = vmatprep.subr.bf16.mxu0 0
  %673 = vmatpush2.bf16.msra.mxu0 0
  %674 = vmatprep.subr.bf16.mxu0 0
  %675 = vmatpush2.bf16.msra.mxu0 0
  %676 = vmatprep.subr.bf16.mxu0 0
  %677 = vmatpush2.bf16.msra.mxu0 0
  %678 = vmatprep.mubr.bf16.mxu0 0
  %679 = vmatmul.mubr.bf16.gmra.mxu0 %v224
  %v680 = vpop.f32.mrf.mxu0
  %v681 = vadd.f32 0.0, %v680
  %v682 = vpop.f32.mrf.mxu0
  %v683 = vpop.f32.mrf.mxu0
  %v684 = vadd.f32 0.0, %v683
  %v685 = vpop.f32.mrf.mxu0
  %686 = vmatprep.mubr.bf16.mxu0 0
  %687 = vmatmul.mubr.bf16.gmra.mxu0 %v227
  %v688 = vpop.f32.mrf.mxu0
  %v689 = vadd.f32 0.0, %v688
  %v690 = vpop.f32.mrf.mxu0
  %v691 = vpop.f32.mrf.mxu0
  %v692 = vadd.f32 0.0, %v691
  %v693 = vpop.f32.mrf.mxu0
  %694 = vmatprep.mubr.bf16.mxu0 0
  %695 = vmatmul.mubr.bf16.gmra.mxu0 %v230
  %v696 = vpop.f32.mrf.mxu0
  %v697 = vadd.f32 0.0, %v696
  %v698 = vpop.f32.mrf.mxu0
  %v699 = vpop.f32.mrf.mxu0
  %v700 = vadd.f32 0.0, %v699
  %v701 = vpop.f32.mrf.mxu0
  %702 = vmatprep.mubr.bf16.mxu0 0
  %703 = vmatmul.mubr.bf16.gmra.mxu0 %v233
  %v704 = vpop.f32.mrf.mxu0
  %v705 = vadd.f32 0.0, %v704
  %v706 = vpop.f32.mrf.mxu0
  %v707 = vpop.f32.mrf.mxu0
  %v708 = vadd.f32 0.0, %v707
  %v709 = vpop.f32.mrf.mxu0
  %710 = vmatprep.mubr.bf16.mxu0 0
  %711 = vmatmul.mubr.bf16.gmra.mxu0 %v236
  %v712 = vpop.f32.mrf.mxu0
  %v713 = vadd.f32 0.0, %v712
  %v714 = vpop.f32.mrf.mxu0
  %v715 = vpop.f32.mrf.mxu0
  %v716 = vadd.f32 0.0, %v715
  %v717 = vpop.f32.mrf.mxu0
  %718 = vmatprep.mubr.bf16.mxu0 0
  %719 = vmatmul.mubr.bf16.gmra.mxu0 %v239
  %v720 = vpop.f32.mrf.mxu0
  %v721 = vadd.f32 0.0, %v720
  %v722 = vpop.f32.mrf.mxu0
  %v723 = vpop.f32.mrf.mxu0
  %v724 = vadd.f32 0.0, %v723
  %v725 = vpop.f32.mrf.mxu0
  %726 = vmatprep.mubr.bf16.mxu0 0
  %727 = vmatmul.mubr.bf16.gmra.mxu0 %v242
  %v728 = vpop.f32.mrf.mxu0
  %v729 = vadd.f32 0.0, %v728
  %v730 = vpop.f32.mrf.mxu0
  %v731 = vpop.f32.mrf.mxu0
  %v732 = vadd.f32 0.0, %v731
  %v733 = vpop.f32.mrf.mxu0
  %734 = vmatprep.mubr.bf16.mxu0 0
  %735 = vmatmul.mubr.bf16.gmra.mxu0 %v245
  %v736 = vpop.f32.mrf.mxu0
  %v737 = vadd.f32 0.0, %v736
  %v738 = vpop.f32.mrf.mxu0
  %v739 = vpop.f32.mrf.mxu0
  %v740 = vadd.f32 0.0, %v739
  %v741 = vpop.f32.mrf.mxu0
  %742 = vmatprep.mubr.bf16.mxu0 0
  %743 = vmatmul.mubr.bf16.gmra.mxu0 %v248
  %v744 = vpop.f32.mrf.mxu0
  %v745 = vadd.f32 0.0, %v744
  %v746 = vpop.f32.mrf.mxu0
  %v747 = vpop.f32.mrf.mxu0
  %v748 = vadd.f32 0.0, %v747
  %v749 = vpop.f32.mrf.mxu0
  %750 = vmatprep.mubr.bf16.mxu0 0
  %751 = vmatmul.mubr.bf16.gmra.mxu0 %v251
  %v752 = vpop.f32.mrf.mxu0
  %v753 = vadd.f32 0.0, %v752
  %v754 = vpop.f32.mrf.mxu0
  %v755 = vpop.f32.mrf.mxu0
  %v756 = vadd.f32 0.0, %v755
  %v757 = vpop.f32.mrf.mxu0
  %758 = vmatprep.mubr.bf16.mxu0 0
  %759 = vmatmul.mubr.bf16.gmra.mxu0 %v254
  %v760 = vpop.f32.mrf.mxu0
  %v761 = vadd.f32 0.0, %v760
  %v762 = vpop.f32.mrf.mxu0
  %v763 = vpop.f32.mrf.mxu0
  %v764 = vadd.f32 0.0, %v763
  %v765 = vpop.f32.mrf.mxu0
  %766 = vmatprep.mubr.bf16.mxu0 0
  %767 = vmatmul.mubr.bf16.gmra.mxu0 %v257
  %v768 = vpop.f32.mrf.mxu0
  %v769 = vadd.f32 0.0, %v768
  %v770 = vpop.f32.mrf.mxu0
  %v771 = vpop.f32.mrf.mxu0
  %v772 = vadd.f32 0.0, %v771
  %v773 = vpop.f32.mrf.mxu0
  %774 = vmatprep.mubr.bf16.mxu0 0
  %775 = vmatmul.mubr.bf16.gmra.mxu0 %v260
  %v776 = vpop.f32.mrf.mxu0
  %v777 = vadd.f32 0.0, %v776
  %v778 = vpop.f32.mrf.mxu0
  %v779 = vpop.f32.mrf.mxu0
  %v780 = vadd.f32 0.0, %v779
  %v781 = vpop.f32.mrf.mxu0
  %782 = vmatprep.mubr.bf16.mxu0 0
  %783 = vmatmul.mubr.bf16.gmra.mxu0 %v263
  %v784 = vpop.f32.mrf.mxu0
  %v785 = vadd.f32 0.0, %v784
  %v786 = vpop.f32.mrf.mxu0
  %v787 = vpop.f32.mrf.mxu0
  %v788 = vadd.f32 0.0, %v787
  %v789 = vpop.f32.mrf.mxu0
  %790 = vmatprep.mubr.bf16.mxu0 0
  %791 = vmatmul.mubr.bf16.gmra.mxu0 %v266
  %v792 = vpop.f32.mrf.mxu0
  %v793 = vadd.f32 0.0, %v792
  %v794 = vpop.f32.mrf.mxu0
  %v795 = vpop.f32.mrf.mxu0
  %v796 = vadd.f32 0.0, %v795
  %v797 = vpop.f32.mrf.mxu0
  %798 = vmatprep.mubr.bf16.mxu0 0
  %799 = vmatmul.mubr.bf16.gmra.mxu0 %v269
  %v800 = vpop.f32.mrf.mxu0
  %v801 = vadd.f32 0.0, %v800
  %v802 = vpop.f32.mrf.mxu0
  %v803 = vpop.f32.mrf.mxu0
  %v804 = vadd.f32 0.0, %v803
  %v805 = vpop.f32.mrf.mxu0
  %806 = vdwg.mxu0
  %v807 = vpack.c.bf16 %v684, %v681
  %v808 = vpack.c.bf16 %v692, %v689
  %v809 = vpack.c.bf16 %v700, %v697
  %v810 = vpack.c.bf16 %v708, %v705
  %v811 = vpack.c.bf16 %v716, %v713
  %v812 = vpack.c.bf16 %v724, %v721
  %v813 = vpack.c.bf16 %v732, %v729
  %v814 = vpack.c.bf16 %v740, %v737
  %v815 = vpack.c.bf16 %v748, %v745
  %v816 = vpack.c.bf16 %v756, %v753
  %v817 = vpack.c.bf16 %v764, %v761
  %v818 = vpack.c.bf16 %v772, %v769
  %v819 = vpack.c.bf16 %v780, %v777
  %v820 = vpack.c.bf16 %v788, %v785
  %v821 = vpack.c.bf16 %v796, %v793
  %v822 = vpack.c.bf16 %v804, %v801
  %v839 = vunpack.c.l.b16 %v807
  %v840 = vunpack.c.h.b16 %v807
  %v841 = vunpack.c.l.b16 %v808
  %v842 = vunpack.c.h.b16 %v808
  %v843 = vunpack.c.l.b16 %v809
  %v844 = vunpack.c.h.b16 %v809
  %v845 = vunpack.c.l.b16 %v810
  %v846 = vunpack.c.h.b16 %v810
  %v847 = vunpack.c.l.b16 %v811
  %v848 = vunpack.c.h.b16 %v811
  %v849 = vunpack.c.l.b16 %v812
  %v850 = vunpack.c.h.b16 %v812
  %v851 = vunpack.c.l.b16 %v813
  %v852 = vunpack.c.h.b16 %v813
  %v853 = vunpack.c.l.b16 %v814
  %v854 = vunpack.c.h.b16 %v814
  %v855 = vunpack.c.l.b16 %v815
  %v856 = vunpack.c.h.b16 %v815
  %v857 = vunpack.c.l.b16 %v816
  %v858 = vunpack.c.h.b16 %v816
  %v859 = vunpack.c.l.b16 %v817
  %v860 = vunpack.c.h.b16 %v817
  %v861 = vunpack.c.l.b16 %v818
  %v862 = vunpack.c.h.b16 %v818
  %v863 = vunpack.c.l.b16 %v819
  %v864 = vunpack.c.h.b16 %v819
  %v865 = vunpack.c.l.b16 %v820
  %v866 = vunpack.c.h.b16 %v820
  %v867 = vunpack.c.l.b16 %v821
  %v868 = vunpack.c.h.b16 %v821
  %v869 = vunpack.c.l.b16 %v822
  %v870 = vunpack.c.h.b16 %v822
  %v871 = vpack.c.b16 %v839, %v839
  %v872 = vpack.c.b16 %v840, %v840
  %v873 = vpack.c.b16 %v841, %v841
  %v874 = vpack.c.b16 %v842, %v842
  %v875 = vpack.c.b16 %v843, %v843
  %v876 = vpack.c.b16 %v844, %v844
  %v877 = vpack.c.b16 %v845, %v845
  %v878 = vpack.c.b16 %v846, %v846
  %v879 = vpack.c.b16 %v847, %v847
  %v880 = vpack.c.b16 %v848, %v848
  %v881 = vpack.c.b16 %v849, %v849
  %v882 = vpack.c.b16 %v850, %v850
  %v883 = vpack.c.b16 %v851, %v851
  %v884 = vpack.c.b16 %v852, %v852
  %v885 = vpack.c.b16 %v853, %v853
  %v886 = vpack.c.b16 %v854, %v854
  %v887 = vpack.c.b16 %v855, %v855
  %v888 = vpack.c.b16 %v856, %v856
  %v889 = vpack.c.b16 %v857, %v857
  %v890 = vpack.c.b16 %v858, %v858
  %v891 = vpack.c.b16 %v859, %v859
  %v892 = vpack.c.b16 %v860, %v860
  %v893 = vpack.c.b16 %v861, %v861
  %v894 = vpack.c.b16 %v862, %v862
  %v895 = vpack.c.b16 %v863, %v863
  %v896 = vpack.c.b16 %v864, %v864
  %v897 = vpack.c.b16 %v865, %v865
  %v898 = vpack.c.b16 %v866, %v866
  %v899 = vpack.c.b16 %v867, %v867
  %v900 = vpack.c.b16 %v868, %v868
  %v901 = vpack.c.b16 %v869, %v869
  %v902 = vpack.c.b16 %v870, %v870
  %s935 = scalar_lea.vmem %s4, 128
  %936 = vst.msk [vmem:[%s935] sm:$0xf] %vm560, %v871
  %937 = vst.msk [vmem:[%s935 + $0x4] sm:$0xf] %vm560, %v872
  %938 = vst.msk [vmem:[%s935 + $0x8] sm:$0xf] %vm560, %v873
  %939 = vst.msk [vmem:[%s935 + $0xc] sm:$0xf] %vm560, %v874
  %940 = vst.msk [vmem:[%s935 + $0x10] sm:$0xf] %vm560, %v875
  %941 = vst.msk [vmem:[%s935 + $0x14] sm:$0xf] %vm560, %v876
  %942 = vst.msk [vmem:[%s935 + $0x18] sm:$0xf] %vm560, %v877
  %943 = vst.msk [vmem:[%s935 + $0x1c] sm:$0xf] %vm560, %v878
  %944 = vst.msk [vmem:[%s935 + $0x20] sm:$0xf] %vm560, %v879
  %945 = vst.msk [vmem:[%s935 + $0x24] sm:$0xf] %vm560, %v880
  %946 = vst.msk [vmem:[%s935 + $0x28] sm:$0xf] %vm560, %v881
  %947 = vst.msk [vmem:[%s935 + $0x2c] sm:$0xf] %vm560, %v882
  %948 = vst.msk [vmem:[%s935 + $0x30] sm:$0xf] %vm560, %v883
  %949 = vst.msk [vmem:[%s935 + $0x34] sm:$0xf] %vm560, %v884
  %950 = vst.msk [vmem:[%s935 + $0x38] sm:$0xf] %vm560, %v885
  %951 = vst.msk [vmem:[%s935 + $0x3c] sm:$0xf] %vm560, %v886
  %952 = vst.msk [vmem:[%s935 + $0x40] sm:$0xf] %vm560, %v887
  %953 = vst.msk [vmem:[%s935 + $0x44] sm:$0xf] %vm560, %v888
  %954 = vst.msk [vmem:[%s935 + $0x48] sm:$0xf] %vm560, %v889
  %955 = vst.msk [vmem:[%s935 + $0x4c] sm:$0xf] %vm560, %v890
  %956 = vst.msk [vmem:[%s935 + $0x50] sm:$0xf] %vm560, %v891
  %957 = vst.msk [vmem:[%s935 + $0x54] sm:$0xf] %vm560, %v892
  %958 = vst.msk [vmem:[%s935 + $0x58] sm:$0xf] %vm560, %v893
  %959 = vst.msk [vmem:[%s935 + $0x5c] sm:$0xf] %vm560, %v894
  %960 = vst.msk [vmem:[%s935 + $0x60] sm:$0xf] %vm560, %v895
  %961 = vst.msk [vmem:[%s935 + $0x64] sm:$0xf] %vm560, %v896
  %962 = vst.msk [vmem:[%s935 + $0x68] sm:$0xf] %vm560, %v897
  %963 = vst.msk [vmem:[%s935 + $0x6c] sm:$0xf] %vm560, %v898
  %964 = vst.msk [vmem:[%s935 + $0x70] sm:$0xf] %vm560, %v899
  %965 = vst.msk [vmem:[%s935 + $0x74] sm:$0xf] %vm560, %v900
  %966 = vst.msk [vmem:[%s935 + $0x78] sm:$0xf] %vm560, %v901
  %967 = vst.msk [vmem:[%s935 + $0x7c] sm:$0xf] %vm560, %v902
  %s968 = scalar_lea.vmem %s0, 16
  %v969 = vld [vmem:[%s968] sm:$0xf]
  %v970 = vld [vmem:[%s968 + $0x4] sm:$0xf]
  %v973 = vunpack.c.l.b16 %v969
  %v974 = vunpack.c.l.b16 %v970
  %v975 = vpack.c.b16 %v974, %v973
  %v977 = vsel %vm96, %v975, 0
  %979 = vmatprep.subr.bf16.mxu0 0
  %980 = vmatpush1.bf16.msra.mxu0 0
  %981 = vmatprep.subr.bf16.mxu0 0
  %982 = vmatpush1.bf16.msra.mxu0 0
  %983 = vmatprep.subr.bf16.mxu0 0
  %984 = vmatpush1.bf16.msra.mxu0 0
  %985 = vmatprep.subr.bf16.mxu0 0
  %986 = vmatpush1.bf16.msra.mxu0 0
  %987 = vmatprep.subr.bf16.mxu0 0
  %988 = vmatpush1.bf16.msra.mxu0 %v91
  %989 = vmatprep.subr.bf16.mxu0 0
  %990 = vmatpush1.bf16.msra.mxu0 %v90
  %991 = vmatprep.subr.bf16.mxu0 0
  %992 = vmatpush1.bf16.msra.mxu0 %v89
  %993 = vmatprep.subr.bf16.mxu0 0
  %994 = vmatpush1.bf16.msra.mxu0 %v88
  %995 = vmatprep.subr.bf16.mxu0 0
  %996 = vmatpush2.bf16.msra.mxu0 0
  %997 = vmatprep.subr.bf16.mxu0 0
  %998 = vmatpush2.bf16.msra.mxu0 0
  %999 = vmatprep.subr.bf16.mxu0 0
  %1000 = vmatpush2.bf16.msra.mxu0 0
  %1001 = vmatprep.subr.bf16.mxu0 0
  %1002 = vmatpush2.bf16.msra.mxu0 0
  %1003 = vmatprep.subr.bf16.mxu0 0
  %1004 = vmatpush2.bf16.msra.mxu0 0
  %1005 = vmatprep.subr.bf16.mxu0 0
  %1006 = vmatpush2.bf16.msra.mxu0 0
  %1007 = vmatprep.subr.bf16.mxu0 0
  %1008 = vmatpush2.bf16.msra.mxu0 0
  %1009 = vmatprep.subr.bf16.mxu0 0
  %1010 = vmatpush2.bf16.msra.mxu0 0
  %1011 = vmatprep.mubr.bf16.mxu0 0
  %1012 = vmatmul.mubr.bf16.gmra.mxu0 %v977
  %v1013 = vpop.f32.mrf.mxu0
  %v1014 = vadd.f32 %v65, %v1013
  %v1015 = vpop.f32.mrf.mxu0
  %v1016 = vpop.f32.mrf.mxu0
  %v1017 = vadd.f32 %v65, %v1016
  %v1018 = vpop.f32.mrf.mxu0
  %1019 = vdwg.mxu0
  %v1020 = vpack.c.bf16 %v1017, %v1014
  %1021 = vmatprep.subr.bf16.mxu0 0
  %1022 = vmatpush1.bf16.msra.mxu0 0
  %1023 = vmatprep.subr.bf16.mxu0 0
  %1024 = vmatpush1.bf16.msra.mxu0 0
  %1025 = vmatprep.subr.bf16.mxu0 0
  %1026 = vmatpush1.bf16.msra.mxu0 0
  %1027 = vmatprep.subr.bf16.mxu0 0
  %1028 = vmatpush1.bf16.msra.mxu0 0
  %1029 = vmatprep.subr.bf16.mxu0 0
  %1030 = vmatpush1.bf16.msra.mxu0 0
  %1031 = vmatprep.subr.bf16.mxu0 0
  %1032 = vmatpush1.bf16.msra.mxu0 0
  %1033 = vmatprep.subr.bf16.mxu0 0
  %1034 = vmatpush1.bf16.msra.mxu0 0
  %1035 = vmatprep.subr.bf16.mxu0 0
  %1036 = vmatpush1.bf16.msra.mxu0 %v1020
  %1037 = vmatprep.subr.bf16.mxu0 0
  %1038 = vmatpush2.bf16.msra.mxu0 0
  %1039 = vmatprep.subr.bf16.mxu0 0
  %1040 = vmatpush2.bf16.msra.mxu0 0
  %1041 = vmatprep.subr.bf16.mxu0 0
  %1042 = vmatpush2.bf16.msra.mxu0 0
  %1043 = vmatprep.subr.bf16.mxu0 0
  %1044 = vmatpush2.bf16.msra.mxu0 0
  %1045 = vmatprep.subr.bf16.mxu0 0
  %1046 = vmatpush2.bf16.msra.mxu0 0
  %1047 = vmatprep.subr.bf16.mxu0 0
  %1048 = vmatpush2.bf16.msra.mxu0 0
  %1049 = vmatprep.subr.bf16.mxu0 0
  %1050 = vmatpush2.bf16.msra.mxu0 0
  %1051 = vmatprep.subr.bf16.mxu0 0
  %1052 = vmatpush2.bf16.msra.mxu0 0
  %1053 = vmatprep.mubr.bf16.mxu0 0
  %1054 = vmatmul.mubr.bf16.gmra.mxu0 %v224
  %v1055 = vpop.f32.mrf.mxu0
  %v1056 = vadd.f32 0.0, %v1055
  %v1057 = vpop.f32.mrf.mxu0
  %v1058 = vpop.f32.mrf.mxu0
  %v1059 = vadd.f32 0.0, %v1058
  %v1060 = vpop.f32.mrf.mxu0
  %1061 = vmatprep.mubr.bf16.mxu0 0
  %1062 = vmatmul.mubr.bf16.gmra.mxu0 %v227
  %v1063 = vpop.f32.mrf.mxu0
  %v1064 = vadd.f32 0.0, %v1063
  %v1065 = vpop.f32.mrf.mxu0
  %v1066 = vpop.f32.mrf.mxu0
  %v1067 = vadd.f32 0.0, %v1066
  %v1068 = vpop.f32.mrf.mxu0
  %1069 = vmatprep.mubr.bf16.mxu0 0
  %1070 = vmatmul.mubr.bf16.gmra.mxu0 %v230
  %v1071 = vpop.f32.mrf.mxu0
  %v1072 = vadd.f32 0.0, %v1071
  %v1073 = vpop.f32.mrf.mxu0
  %v1074 = vpop.f32.mrf.mxu0
  %v1075 = vadd.f32 0.0, %v1074
  %v1076 = vpop.f32.mrf.mxu0
  %1077 = vmatprep.mubr.bf16.mxu0 0
  %1078 = vmatmul.mubr.bf16.gmra.mxu0 %v233
  %v1079 = vpop.f32.mrf.mxu0
  %v1080 = vadd.f32 0.0, %v1079
  %v1081 = vpop.f32.mrf.mxu0
  %v1082 = vpop.f32.mrf.mxu0
  %v1083 = vadd.f32 0.0, %v1082
  %v1084 = vpop.f32.mrf.mxu0
  %1085 = vmatprep.mubr.bf16.mxu0 0
  %1086 = vmatmul.mubr.bf16.gmra.mxu0 %v236
  %v1087 = vpop.f32.mrf.mxu0
  %v1088 = vadd.f32 0.0, %v1087
  %v1089 = vpop.f32.mrf.mxu0
  %v1090 = vpop.f32.mrf.mxu0
  %v1091 = vadd.f32 0.0, %v1090
  %v1092 = vpop.f32.mrf.mxu0
  %1093 = vmatprep.mubr.bf16.mxu0 0
  %1094 = vmatmul.mubr.bf16.gmra.mxu0 %v239
  %v1095 = vpop.f32.mrf.mxu0
  %v1096 = vadd.f32 0.0, %v1095
  %v1097 = vpop.f32.mrf.mxu0
  %v1098 = vpop.f32.mrf.mxu0
  %v1099 = vadd.f32 0.0, %v1098
  %v1100 = vpop.f32.mrf.mxu0
  %1101 = vmatprep.mubr.bf16.mxu0 0
  %1102 = vmatmul.mubr.bf16.gmra.mxu0 %v242
  %v1103 = vpop.f32.mrf.mxu0
  %v1104 = vadd.f32 0.0, %v1103
  %v1105 = vpop.f32.mrf.mxu0
  %v1106 = vpop.f32.mrf.mxu0
  %v1107 = vadd.f32 0.0, %v1106
  %v1108 = vpop.f32.mrf.mxu0
  %1109 = vmatprep.mubr.bf16.mxu0 0
  %1110 = vmatmul.mubr.bf16.gmra.mxu0 %v245
  %v1111 = vpop.f32.mrf.mxu0
  %v1112 = vadd.f32 0.0, %v1111
  %v1113 = vpop.f32.mrf.mxu0
  %v1114 = vpop.f32.mrf.mxu0
  %v1115 = vadd.f32 0.0, %v1114
  %v1116 = vpop.f32.mrf.mxu0
  %1117 = vmatprep.mubr.bf16.mxu0 0
  %1118 = vmatmul.mubr.bf16.gmra.mxu0 %v248
  %v1119 = vpop.f32.mrf.mxu0
  %v1120 = vadd.f32 0.0, %v1119
  %v1121 = vpop.f32.mrf.mxu0
  %v1122 = vpop.f32.mrf.mxu0
  %v1123 = vadd.f32 0.0, %v1122
  %v1124 = vpop.f32.mrf.mxu0
  %1125 = vmatprep.mubr.bf16.mxu0 0
  %1126 = vmatmul.mubr.bf16.gmra.mxu0 %v251
  %v1127 = vpop.f32.mrf.mxu0
  %v1128 = vadd.f32 0.0, %v1127
  %v1129 = vpop.f32.mrf.mxu0
  %v1130 = vpop.f32.mrf.mxu0
  %v1131 = vadd.f32 0.0, %v1130
  %v1132 = vpop.f32.mrf.mxu0
  %1133 = vmatprep.mubr.bf16.mxu0 0
  %1134 = vmatmul.mubr.bf16.gmra.mxu0 %v254
  %v1135 = vpop.f32.mrf.mxu0
  %v1136 = vadd.f32 0.0, %v1135
  %v1137 = vpop.f32.mrf.mxu0
  %v1138 = vpop.f32.mrf.mxu0
  %v1139 = vadd.f32 0.0, %v1138
  %v1140 = vpop.f32.mrf.mxu0
  %1141 = vmatprep.mubr.bf16.mxu0 0
  %1142 = vmatmul.mubr.bf16.gmra.mxu0 %v257
  %v1143 = vpop.f32.mrf.mxu0
  %v1144 = vadd.f32 0.0, %v1143
  %v1145 = vpop.f32.mrf.mxu0
  %v1146 = vpop.f32.mrf.mxu0
  %v1147 = vadd.f32 0.0, %v1146
  %v1148 = vpop.f32.mrf.mxu0
  %1149 = vmatprep.mubr.bf16.mxu0 0
  %1150 = vmatmul.mubr.bf16.gmra.mxu0 %v260
  %v1151 = vpop.f32.mrf.mxu0
  %v1152 = vadd.f32 0.0, %v1151
  %v1153 = vpop.f32.mrf.mxu0
  %v1154 = vpop.f32.mrf.mxu0
  %v1155 = vadd.f32 0.0, %v1154
  %v1156 = vpop.f32.mrf.mxu0
  %1157 = vmatprep.mubr.bf16.mxu0 0
  %1158 = vmatmul.mubr.bf16.gmra.mxu0 %v263
  %v1159 = vpop.f32.mrf.mxu0
  %v1160 = vadd.f32 0.0, %v1159
  %v1161 = vpop.f32.mrf.mxu0
  %v1162 = vpop.f32.mrf.mxu0
  %v1163 = vadd.f32 0.0, %v1162
  %v1164 = vpop.f32.mrf.mxu0
  %1165 = vmatprep.mubr.bf16.mxu0 0
  %1166 = vmatmul.mubr.bf16.gmra.mxu0 %v266
  %v1167 = vpop.f32.mrf.mxu0
  %v1168 = vadd.f32 0.0, %v1167
  %v1169 = vpop.f32.mrf.mxu0
  %v1170 = vpop.f32.mrf.mxu0
  %v1171 = vadd.f32 0.0, %v1170
  %v1172 = vpop.f32.mrf.mxu0
  %1173 = vmatprep.mubr.bf16.mxu0 0
  %1174 = vmatmul.mubr.bf16.gmra.mxu0 %v269
  %v1175 = vpop.f32.mrf.mxu0
  %v1176 = vadd.f32 0.0, %v1175
  %v1177 = vpop.f32.mrf.mxu0
  %v1178 = vpop.f32.mrf.mxu0
  %v1179 = vadd.f32 0.0, %v1178
  %v1180 = vpop.f32.mrf.mxu0
  %1181 = vdwg.mxu0
  %v1182 = vpack.c.bf16 %v1059, %v1056
  %v1183 = vpack.c.bf16 %v1067, %v1064
  %v1184 = vpack.c.bf16 %v1075, %v1072
  %v1185 = vpack.c.bf16 %v1083, %v1080
  %v1186 = vpack.c.bf16 %v1091, %v1088
  %v1187 = vpack.c.bf16 %v1099, %v1096
  %v1188 = vpack.c.bf16 %v1107, %v1104
  %v1189 = vpack.c.bf16 %v1115, %v1112
  %v1190 = vpack.c.bf16 %v1123, %v1120
  %v1191 = vpack.c.bf16 %v1131, %v1128
  %v1192 = vpack.c.bf16 %v1139, %v1136
  %v1193 = vpack.c.bf16 %v1147, %v1144
  %v1194 = vpack.c.bf16 %v1155, %v1152
  %v1195 = vpack.c.bf16 %v1163, %v1160
  %v1196 = vpack.c.bf16 %v1171, %v1168
  %v1197 = vpack.c.bf16 %v1179, %v1176
  %v1214 = vunpack.c.l.b16 %v1182
  %v1215 = vunpack.c.h.b16 %v1182
  %v1216 = vunpack.c.l.b16 %v1183
  %v1217 = vunpack.c.h.b16 %v1183
  %v1218 = vunpack.c.l.b16 %v1184
  %v1219 = vunpack.c.h.b16 %v1184
  %v1220 = vunpack.c.l.b16 %v1185
  %v1221 = vunpack.c.h.b16 %v1185
  %v1222 = vunpack.c.l.b16 %v1186
  %v1223 = vunpack.c.h.b16 %v1186
  %v1224 = vunpack.c.l.b16 %v1187
  %v1225 = vunpack.c.h.b16 %v1187
  %v1226 = vunpack.c.l.b16 %v1188
  %v1227 = vunpack.c.h.b16 %v1188
  %v1228 = vunpack.c.l.b16 %v1189
  %v1229 = vunpack.c.h.b16 %v1189
  %v1230 = vunpack.c.l.b16 %v1190
  %v1231 = vunpack.c.h.b16 %v1190
  %v1232 = vunpack.c.l.b16 %v1191
  %v1233 = vunpack.c.h.b16 %v1191
  %v1234 = vunpack.c.l.b16 %v1192
  %v1235 = vunpack.c.h.b16 %v1192
  %v1236 = vunpack.c.l.b16 %v1193
  %v1237 = vunpack.c.h.b16 %v1193
  %v1238 = vunpack.c.l.b16 %v1194
  %v1239 = vunpack.c.h.b16 %v1194
  %v1240 = vunpack.c.l.b16 %v1195
  %v1241 = vunpack.c.h.b16 %v1195
  %v1242 = vunpack.c.l.b16 %v1196
  %v1243 = vunpack.c.h.b16 %v1196
  %v1244 = vunpack.c.l.b16 %v1197
  %v1245 = vunpack.c.h.b16 %v1197
  %v1246 = vpack.c.b16 %v1214, %v1214
  %v1247 = vpack.c.b16 %v1215, %v1215
  %v1248 = vpack.c.b16 %v1216, %v1216
  %v1249 = vpack.c.b16 %v1217, %v1217
  %v1250 = vpack.c.b16 %v1218, %v1218
  %v1251 = vpack.c.b16 %v1219, %v1219
  %v1252 = vpack.c.b16 %v1220, %v1220
  %v1253 = vpack.c.b16 %v1221, %v1221
  %v1254 = vpack.c.b16 %v1222, %v1222
  %v1255 = vpack.c.b16 %v1223, %v1223
  %v1256 = vpack.c.b16 %v1224, %v1224
  %v1257 = vpack.c.b16 %v1225, %v1225
  %v1258 = vpack.c.b16 %v1226, %v1226
  %v1259 = vpack.c.b16 %v1227, %v1227
  %v1260 = vpack.c.b16 %v1228, %v1228
  %v1261 = vpack.c.b16 %v1229, %v1229
  %v1262 = vpack.c.b16 %v1230, %v1230
  %v1263 = vpack.c.b16 %v1231, %v1231
  %v1264 = vpack.c.b16 %v1232, %v1232
  %v1265 = vpack.c.b16 %v1233, %v1233
  %v1266 = vpack.c.b16 %v1234, %v1234
  %v1267 = vpack.c.b16 %v1235, %v1235
  %v1268 = vpack.c.b16 %v1236, %v1236
  %v1269 = vpack.c.b16 %v1237, %v1237
  %v1270 = vpack.c.b16 %v1238, %v1238
  %v1271 = vpack.c.b16 %v1239, %v1239
  %v1272 = vpack.c.b16 %v1240, %v1240
  %v1273 = vpack.c.b16 %v1241, %v1241
  %v1274 = vpack.c.b16 %v1242, %v1242
  %v1275 = vpack.c.b16 %v1243, %v1243
  %v1276 = vpack.c.b16 %v1244, %v1244
  %v1277 = vpack.c.b16 %v1245, %v1245
  %s1310 = scalar_lea.vmem %s4, 256
  %1311 = vst.msk [vmem:[%s1310] sm:$0xf] %vm560, %v1246
  %1312 = vst.msk [vmem:[%s1310 + $0x4] sm:$0xf] %vm560, %v1247
  %1313 = vst.msk [vmem:[%s1310 + $0x8] sm:$0xf] %vm560, %v1248
  %1314 = vst.msk [vmem:[%s1310 + $0xc] sm:$0xf] %vm560, %v1249
  %1315 = vst.msk [vmem:[%s1310 + $0x10] sm:$0xf] %vm560, %v1250
  %1316 = vst.msk [vmem:[%s1310 + $0x14] sm:$0xf] %vm560, %v1251
  %1317 = vst.msk [vmem:[%s1310 + $0x18] sm:$0xf] %vm560, %v1252
  %1318 = vst.msk [vmem:[%s1310 + $0x1c] sm:$0xf] %vm560, %v1253
  %1319 = vst.msk [vmem:[%s1310 + $0x20] sm:$0xf] %vm560, %v1254
  %1320 = vst.msk [vmem:[%s1310 + $0x24] sm:$0xf] %vm560, %v1255
  %1321 = vst.msk [vmem:[%s1310 + $0x28] sm:$0xf] %vm560, %v1256
  %1322 = vst.msk [vmem:[%s1310 + $0x2c] sm:$0xf] %vm560, %v1257
  %1323 = vst.msk [vmem:[%s1310 + $0x30] sm:$0xf] %vm560, %v1258
  %1324 = vst.msk [vmem:[%s1310 + $0x34] sm:$0xf] %vm560, %v1259
  %1325 = vst.msk [vmem:[%s1310 + $0x38] sm:$0xf] %vm560, %v1260
  %1326 = vst.msk [vmem:[%s1310 + $0x3c] sm:$0xf] %vm560, %v1261
  %1327 = vst.msk [vmem:[%s1310 + $0x40] sm:$0xf] %vm560, %v1262
  %1328 = vst.msk [vmem:[%s1310 + $0x44] sm:$0xf] %vm560, %v1263
  %1329 = vst.msk [vmem:[%s1310 + $0x48] sm:$0xf] %vm560, %v1264
  %1330 = vst.msk [vmem:[%s1310 + $0x4c] sm:$0xf] %vm560, %v1265
  %1331 = vst.msk [vmem:[%s1310 + $0x50] sm:$0xf] %vm560, %v1266
  %1332 = vst.msk [vmem:[%s1310 + $0x54] sm:$0xf] %vm560, %v1267
  %1333 = vst.msk [vmem:[%s1310 + $0x58] sm:$0xf] %vm560, %v1268
  %1334 = vst.msk [vmem:[%s1310 + $0x5c] sm:$0xf] %vm560, %v1269
  %1335 = vst.msk [vmem:[%s1310 + $0x60] sm:$0xf] %vm560, %v1270
  %1336 = vst.msk [vmem:[%s1310 + $0x64] sm:$0xf] %vm560, %v1271
  %1337 = vst.msk [vmem:[%s1310 + $0x68] sm:$0xf] %vm560, %v1272
  %1338 = vst.msk [vmem:[%s1310 + $0x6c] sm:$0xf] %vm560, %v1273
  %1339 = vst.msk [vmem:[%s1310 + $0x70] sm:$0xf] %vm560, %v1274
  %1340 = vst.msk [vmem:[%s1310 + $0x74] sm:$0xf] %vm560, %v1275
  %1341 = vst.msk [vmem:[%s1310 + $0x78] sm:$0xf] %vm560, %v1276
  %1342 = vst.msk [vmem:[%s1310 + $0x7c] sm:$0xf] %vm560, %v1277
  %s1343 = scalar_lea.vmem %s0, 24
  %v1344 = vld [vmem:[%s1343] sm:$0xf]
  %v1345 = vld [vmem:[%s1343 + $0x4] sm:$0xf]
  %v1348 = vunpack.c.l.b16 %v1344
  %v1349 = vunpack.c.l.b16 %v1345
  %v1350 = vpack.c.b16 %v1349, %v1348
  %v1352 = vsel %vm96, %v1350, 0
  %1354 = vmatprep.subr.bf16.mxu0 0
  %1355 = vmatpush1.bf16.msra.mxu0 0
  %1356 = vmatprep.subr.bf16.mxu0 0
  %1357 = vmatpush1.bf16.msra.mxu0 0
  %1358 = vmatprep.subr.bf16.mxu0 0
  %1359 = vmatpush1.bf16.msra.mxu0 0
  %1360 = vmatprep.subr.bf16.mxu0 0
  %1361 = vmatpush1.bf16.msra.mxu0 0
  %1362 = vmatprep.subr.bf16.mxu0 0
  %1363 = vmatpush1.bf16.msra.mxu0 %v91
  %1364 = vmatprep.subr.bf16.mxu0 0
  %1365 = vmatpush1.bf16.msra.mxu0 %v90
  %1366 = vmatprep.subr.bf16.mxu0 0
  %1367 = vmatpush1.bf16.msra.mxu0 %v89
  %1368 = vmatprep.subr.bf16.mxu0 0
  %1369 = vmatpush1.bf16.msra.mxu0 %v88
  %1370 = vmatprep.subr.bf16.mxu0 0
  %1371 = vmatpush2.bf16.msra.mxu0 0
  %1372 = vmatprep.subr.bf16.mxu0 0
  %1373 = vmatpush2.bf16.msra.mxu0 0
  %1374 = vmatprep.subr.bf16.mxu0 0
  %1375 = vmatpush2.bf16.msra.mxu0 0
  %1376 = vmatprep.subr.bf16.mxu0 0
  %1377 = vmatpush2.bf16.msra.mxu0 0
  %1378 = vmatprep.subr.bf16.mxu0 0
  %1379 = vmatpush2.bf16.msra.mxu0 0
  %1380 = vmatprep.subr.bf16.mxu0 0
  %1381 = vmatpush2.bf16.msra.mxu0 0
  %1382 = vmatprep.subr.bf16.mxu0 0
  %1383 = vmatpush2.bf16.msra.mxu0 0
  %1384 = vmatprep.subr.bf16.mxu0 0
  %1385 = vmatpush2.bf16.msra.mxu0 0
  %1386 = vmatprep.mubr.bf16.mxu0 0
  %1387 = vmatmul.mubr.bf16.gmra.mxu0 %v1352
  %v1388 = vpop.f32.mrf.mxu0
  %v1389 = vadd.f32 %v65, %v1388
  %v1390 = vpop.f32.mrf.mxu0
  %v1391 = vpop.f32.mrf.mxu0
  %v1392 = vadd.f32 %v65, %v1391
  %v1393 = vpop.f32.mrf.mxu0
  %1394 = vdwg.mxu0
  %v1395 = vpack.c.bf16 %v1392, %v1389
  %1396 = vmatprep.subr.bf16.mxu0 0
  %1397 = vmatpush1.bf16.msra.mxu0 0
  %1398 = vmatprep.subr.bf16.mxu0 0
  %1399 = vmatpush1.bf16.msra.mxu0 0
  %1400 = vmatprep.subr.bf16.mxu0 0
  %1401 = vmatpush1.bf16.msra.mxu0 0
  %1402 = vmatprep.subr.bf16.mxu0 0
  %1403 = vmatpush1.bf16.msra.mxu0 0
  %1404 = vmatprep.subr.bf16.mxu0 0
  %1405 = vmatpush1.bf16.msra.mxu0 0
  %1406 = vmatprep.subr.bf16.mxu0 0
  %1407 = vmatpush1.bf16.msra.mxu0 0
  %1408 = vmatprep.subr.bf16.mxu0 0
  %1409 = vmatpush1.bf16.msra.mxu0 0
  %1410 = vmatprep.subr.bf16.mxu0 0
  %1411 = vmatpush1.bf16.msra.mxu0 %v1395
  %1412 = vmatprep.subr.bf16.mxu0 0
  %1413 = vmatpush2.bf16.msra.mxu0 0
  %1414 = vmatprep.subr.bf16.mxu0 0
  %1415 = vmatpush2.bf16.msra.mxu0 0
  %1416 = vmatprep.subr.bf16.mxu0 0
  %1417 = vmatpush2.bf16.msra.mxu0 0
  %1418 = vmatprep.subr.bf16.mxu0 0
  %1419 = vmatpush2.bf16.msra.mxu0 0
  %1420 = vmatprep.subr.bf16.mxu0 0
  %1421 = vmatpush2.bf16.msra.mxu0 0
  %1422 = vmatprep.subr.bf16.mxu0 0
  %1423 = vmatpush2.bf16.msra.mxu0 0
  %1424 = vmatprep.subr.bf16.mxu0 0
  %1425 = vmatpush2.bf16.msra.mxu0 0
  %1426 = vmatprep.subr.bf16.mxu0 0
  %1427 = vmatpush2.bf16.msra.mxu0 0
  %1428 = vmatprep.mubr.bf16.mxu0 0
  %1429 = vmatmul.mubr.bf16.gmra.mxu0 %v224
  %v1430 = vpop.f32.mrf.mxu0
  %v1431 = vadd.f32 0.0, %v1430
  %v1432 = vpop.f32.mrf.mxu0
  %v1433 = vpop.f32.mrf.mxu0
  %v1434 = vadd.f32 0.0, %v1433
  %v1435 = vpop.f32.mrf.mxu0
  %1436 = vmatprep.mubr.bf16.mxu0 0
  %1437 = vmatmul.mubr.bf16.gmra.mxu0 %v227
  %v1438 = vpop.f32.mrf.mxu0
  %v1439 = vadd.f32 0.0, %v1438
  %v1440 = vpop.f32.mrf.mxu0
  %v1441 = vpop.f32.mrf.mxu0
  %v1442 = vadd.f32 0.0, %v1441
  %v1443 = vpop.f32.mrf.mxu0
  %1444 = vmatprep.mubr.bf16.mxu0 0
  %1445 = vmatmul.mubr.bf16.gmra.mxu0 %v230
  %v1446 = vpop.f32.mrf.mxu0
  %v1447 = vadd.f32 0.0, %v1446
  %v1448 = vpop.f32.mrf.mxu0
  %v1449 = vpop.f32.mrf.mxu0
  %v1450 = vadd.f32 0.0, %v1449
  %v1451 = vpop.f32.mrf.mxu0
  %1452 = vmatprep.mubr.bf16.mxu0 0
  %1453 = vmatmul.mubr.bf16.gmra.mxu0 %v233
  %v1454 = vpop.f32.mrf.mxu0
  %v1455 = vadd.f32 0.0, %v1454
  %v1456 = vpop.f32.mrf.mxu0
  %v1457 = vpop.f32.mrf.mxu0
  %v1458 = vadd.f32 0.0, %v1457
  %v1459 = vpop.f32.mrf.mxu0
  %1460 = vmatprep.mubr.bf16.mxu0 0
  %1461 = vmatmul.mubr.bf16.gmra.mxu0 %v236
  %v1462 = vpop.f32.mrf.mxu0
  %v1463 = vadd.f32 0.0, %v1462
  %v1464 = vpop.f32.mrf.mxu0
  %v1465 = vpop.f32.mrf.mxu0
  %v1466 = vadd.f32 0.0, %v1465
  %v1467 = vpop.f32.mrf.mxu0
  %1468 = vmatprep.mubr.bf16.mxu0 0
  %1469 = vmatmul.mubr.bf16.gmra.mxu0 %v239
  %v1470 = vpop.f32.mrf.mxu0
  %v1471 = vadd.f32 0.0, %v1470
  %v1472 = vpop.f32.mrf.mxu0
  %v1473 = vpop.f32.mrf.mxu0
  %v1474 = vadd.f32 0.0, %v1473
  %v1475 = vpop.f32.mrf.mxu0
  %1476 = vmatprep.mubr.bf16.mxu0 0
  %1477 = vmatmul.mubr.bf16.gmra.mxu0 %v242
  %v1478 = vpop.f32.mrf.mxu0
  %v1479 = vadd.f32 0.0, %v1478
  %v1480 = vpop.f32.mrf.mxu0
  %v1481 = vpop.f32.mrf.mxu0
  %v1482 = vadd.f32 0.0, %v1481
  %v1483 = vpop.f32.mrf.mxu0
  %1484 = vmatprep.mubr.bf16.mxu0 0
  %1485 = vmatmul.mubr.bf16.gmra.mxu0 %v245
  %v1486 = vpop.f32.mrf.mxu0
  %v1487 = vadd.f32 0.0, %v1486
  %v1488 = vpop.f32.mrf.mxu0
  %v1489 = vpop.f32.mrf.mxu0
  %v1490 = vadd.f32 0.0, %v1489
  %v1491 = vpop.f32.mrf.mxu0
  %1492 = vmatprep.mubr.bf16.mxu0 0
  %1493 = vmatmul.mubr.bf16.gmra.mxu0 %v248
  %v1494 = vpop.f32.mrf.mxu0
  %v1495 = vadd.f32 0.0, %v1494
  %v1496 = vpop.f32.mrf.mxu0
  %v1497 = vpop.f32.mrf.mxu0
  %v1498 = vadd.f32 0.0, %v1497
  %v1499 = vpop.f32.mrf.mxu0
  %1500 = vmatprep.mubr.bf16.mxu0 0
  %1501 = vmatmul.mubr.bf16.gmra.mxu0 %v251
  %v1502 = vpop.f32.mrf.mxu0
  %v1503 = vadd.f32 0.0, %v1502
  %v1504 = vpop.f32.mrf.mxu0
  %v1505 = vpop.f32.mrf.mxu0
  %v1506 = vadd.f32 0.0, %v1505
  %v1507 = vpop.f32.mrf.mxu0
  %1508 = vmatprep.mubr.bf16.mxu0 0
  %1509 = vmatmul.mubr.bf16.gmra.mxu0 %v254
  %v1510 = vpop.f32.mrf.mxu0
  %v1511 = vadd.f32 0.0, %v1510
  %v1512 = vpop.f32.mrf.mxu0
  %v1513 = vpop.f32.mrf.mxu0
  %v1514 = vadd.f32 0.0, %v1513
  %v1515 = vpop.f32.mrf.mxu0
  %1516 = vmatprep.mubr.bf16.mxu0 0
  %1517 = vmatmul.mubr.bf16.gmra.mxu0 %v257
  %v1518 = vpop.f32.mrf.mxu0
  %v1519 = vadd.f32 0.0, %v1518
  %v1520 = vpop.f32.mrf.mxu0
  %v1521 = vpop.f32.mrf.mxu0
  %v1522 = vadd.f32 0.0, %v1521
  %v1523 = vpop.f32.mrf.mxu0
  %1524 = vmatprep.mubr.bf16.mxu0 0
  %1525 = vmatmul.mubr.bf16.gmra.mxu0 %v260
  %v1526 = vpop.f32.mrf.mxu0
  %v1527 = vadd.f32 0.0, %v1526
  %v1528 = vpop.f32.mrf.mxu0
  %v1529 = vpop.f32.mrf.mxu0
  %v1530 = vadd.f32 0.0, %v1529
  %v1531 = vpop.f32.mrf.mxu0
  %1532 = vmatprep.mubr.bf16.mxu0 0
  %1533 = vmatmul.mubr.bf16.gmra.mxu0 %v263
  %v1534 = vpop.f32.mrf.mxu0
  %v1535 = vadd.f32 0.0, %v1534
  %v1536 = vpop.f32.mrf.mxu0
  %v1537 = vpop.f32.mrf.mxu0
  %v1538 = vadd.f32 0.0, %v1537
  %v1539 = vpop.f32.mrf.mxu0
  %1540 = vmatprep.mubr.bf16.mxu0 0
  %1541 = vmatmul.mubr.bf16.gmra.mxu0 %v266
  %v1542 = vpop.f32.mrf.mxu0
  %v1543 = vadd.f32 0.0, %v1542
  %v1544 = vpop.f32.mrf.mxu0
  %v1545 = vpop.f32.mrf.mxu0
  %v1546 = vadd.f32 0.0, %v1545
  %v1547 = vpop.f32.mrf.mxu0
  %1548 = vmatprep.mubr.bf16.mxu0 0
  %1549 = vmatmul.mubr.bf16.gmra.mxu0 %v269
  %v1550 = vpop.f32.mrf.mxu0
  %v1551 = vadd.f32 0.0, %v1550
  %v1552 = vpop.f32.mrf.mxu0
  %v1553 = vpop.f32.mrf.mxu0
  %v1554 = vadd.f32 0.0, %v1553
  %v1555 = vpop.f32.mrf.mxu0
  %1556 = vdwg.mxu0
  %v1557 = vpack.c.bf16 %v1434, %v1431
  %v1558 = vpack.c.bf16 %v1442, %v1439
  %v1559 = vpack.c.bf16 %v1450, %v1447
  %v1560 = vpack.c.bf16 %v1458, %v1455
  %v1561 = vpack.c.bf16 %v1466, %v1463
  %v1562 = vpack.c.bf16 %v1474, %v1471
  %v1563 = vpack.c.bf16 %v1482, %v1479
  %v1564 = vpack.c.bf16 %v1490, %v1487
  %v1565 = vpack.c.bf16 %v1498, %v1495
  %v1566 = vpack.c.bf16 %v1506, %v1503
  %v1567 = vpack.c.bf16 %v1514, %v1511
  %v1568 = vpack.c.bf16 %v1522, %v1519
  %v1569 = vpack.c.bf16 %v1530, %v1527
  %v1570 = vpack.c.bf16 %v1538, %v1535
  %v1571 = vpack.c.bf16 %v1546, %v1543
  %v1572 = vpack.c.bf16 %v1554, %v1551
  %v1589 = vunpack.c.l.b16 %v1557
  %v1590 = vunpack.c.h.b16 %v1557
  %v1591 = vunpack.c.l.b16 %v1558
  %v1592 = vunpack.c.h.b16 %v1558
  %v1593 = vunpack.c.l.b16 %v1559
  %v1594 = vunpack.c.h.b16 %v1559
  %v1595 = vunpack.c.l.b16 %v1560
  %v1596 = vunpack.c.h.b16 %v1560
  %v1597 = vunpack.c.l.b16 %v1561
  %v1598 = vunpack.c.h.b16 %v1561
  %v1599 = vunpack.c.l.b16 %v1562
  %v1600 = vunpack.c.h.b16 %v1562
  %v1601 = vunpack.c.l.b16 %v1563
  %v1602 = vunpack.c.h.b16 %v1563
  %v1603 = vunpack.c.l.b16 %v1564
  %v1604 = vunpack.c.h.b16 %v1564
  %v1605 = vunpack.c.l.b16 %v1565
  %v1606 = vunpack.c.h.b16 %v1565
  %v1607 = vunpack.c.l.b16 %v1566
  %v1608 = vunpack.c.h.b16 %v1566
  %v1609 = vunpack.c.l.b16 %v1567
  %v1610 = vunpack.c.h.b16 %v1567
  %v1611 = vunpack.c.l.b16 %v1568
  %v1612 = vunpack.c.h.b16 %v1568
  %v1613 = vunpack.c.l.b16 %v1569
  %v1614 = vunpack.c.h.b16 %v1569
  %v1615 = vunpack.c.l.b16 %v1570
  %v1616 = vunpack.c.h.b16 %v1570
  %v1617 = vunpack.c.l.b16 %v1571
  %v1618 = vunpack.c.h.b16 %v1571
  %v1619 = vunpack.c.l.b16 %v1572
  %v1620 = vunpack.c.h.b16 %v1572
  %v1621 = vpack.c.b16 %v1589, %v1589
  %v1622 = vpack.c.b16 %v1590, %v1590
  %v1623 = vpack.c.b16 %v1591, %v1591
  %v1624 = vpack.c.b16 %v1592, %v1592
  %v1625 = vpack.c.b16 %v1593, %v1593
  %v1626 = vpack.c.b16 %v1594, %v1594
  %v1627 = vpack.c.b16 %v1595, %v1595
  %v1628 = vpack.c.b16 %v1596, %v1596
  %v1629 = vpack.c.b16 %v1597, %v1597
  %v1630 = vpack.c.b16 %v1598, %v1598
  %v1631 = vpack.c.b16 %v1599, %v1599
  %v1632 = vpack.c.b16 %v1600, %v1600
  %v1633 = vpack.c.b16 %v1601, %v1601
  %v1634 = vpack.c.b16 %v1602, %v1602
  %v1635 = vpack.c.b16 %v1603, %v1603
  %v1636 = vpack.c.b16 %v1604, %v1604
  %v1637 = vpack.c.b16 %v1605, %v1605
  %v1638 = vpack.c.b16 %v1606, %v1606
  %v1639 = vpack.c.b16 %v1607, %v1607
  %v1640 = vpack.c.b16 %v1608, %v1608
  %v1641 = vpack.c.b16 %v1609, %v1609
  %v1642 = vpack.c.b16 %v1610, %v1610
  %v1643 = vpack.c.b16 %v1611, %v1611
  %v1644 = vpack.c.b16 %v1612, %v1612
  %v1645 = vpack.c.b16 %v1613, %v1613
  %v1646 = vpack.c.b16 %v1614, %v1614
  %v1647 = vpack.c.b16 %v1615, %v1615
  %v1648 = vpack.c.b16 %v1616, %v1616
  %v1649 = vpack.c.b16 %v1617, %v1617
  %v1650 = vpack.c.b16 %v1618, %v1618
  %v1651 = vpack.c.b16 %v1619, %v1619
  %v1652 = vpack.c.b16 %v1620, %v1620
  %s1685 = scalar_lea.vmem %s4, 384
  %1686 = vst.msk [vmem:[%s1685] sm:$0xf] %vm560, %v1621
  %1687 = vst.msk [vmem:[%s1685 + $0x4] sm:$0xf] %vm560, %v1622
  %1688 = vst.msk [vmem:[%s1685 + $0x8] sm:$0xf] %vm560, %v1623
  %1689 = vst.msk [vmem:[%s1685 + $0xc] sm:$0xf] %vm560, %v1624
  %1690 = vst.msk [vmem:[%s1685 + $0x10] sm:$0xf] %vm560, %v1625
  %1691 = vst.msk [vmem:[%s1685 + $0x14] sm:$0xf] %vm560, %v1626
  %1692 = vst.msk [vmem:[%s1685 + $0x18] sm:$0xf] %vm560, %v1627
  %1693 = vst.msk [vmem:[%s1685 + $0x1c] sm:$0xf] %vm560, %v1628
  %1694 = vst.msk [vmem:[%s1685 + $0x20] sm:$0xf] %vm560, %v1629
  %1695 = vst.msk [vmem:[%s1685 + $0x24] sm:$0xf] %vm560, %v1630
  %1696 = vst.msk [vmem:[%s1685 + $0x28] sm:$0xf] %vm560, %v1631
  %1697 = vst.msk [vmem:[%s1685 + $0x2c] sm:$0xf] %vm560, %v1632
  %1698 = vst.msk [vmem:[%s1685 + $0x30] sm:$0xf] %vm560, %v1633
  %1699 = vst.msk [vmem:[%s1685 + $0x34] sm:$0xf] %vm560, %v1634
  %1700 = vst.msk [vmem:[%s1685 + $0x38] sm:$0xf] %vm560, %v1635
  %1701 = vst.msk [vmem:[%s1685 + $0x3c] sm:$0xf] %vm560, %v1636
  %1702 = vst.msk [vmem:[%s1685 + $0x40] sm:$0xf] %vm560, %v1637
  %1703 = vst.msk [vmem:[%s1685 + $0x44] sm:$0xf] %vm560, %v1638
  %1704 = vst.msk [vmem:[%s1685 + $0x48] sm:$0xf] %vm560, %v1639
  %1705 = vst.msk [vmem:[%s1685 + $0x4c] sm:$0xf] %vm560, %v1640
  %1706 = vst.msk [vmem:[%s1685 + $0x50] sm:$0xf] %vm560, %v1641
  %1707 = vst.msk [vmem:[%s1685 + $0x54] sm:$0xf] %vm560, %v1642
  %1708 = vst.msk [vmem:[%s1685 + $0x58] sm:$0xf] %vm560, %v1643
  %1709 = vst.msk [vmem:[%s1685 + $0x5c] sm:$0xf] %vm560, %v1644
  %1710 = vst.msk [vmem:[%s1685 + $0x60] sm:$0xf] %vm560, %v1645
  %1711 = vst.msk [vmem:[%s1685 + $0x64] sm:$0xf] %vm560, %v1646
  %1712 = vst.msk [vmem:[%s1685 + $0x68] sm:$0xf] %vm560, %v1647
  %1713 = vst.msk [vmem:[%s1685 + $0x6c] sm:$0xf] %vm560, %v1648
  %1714 = vst.msk [vmem:[%s1685 + $0x70] sm:$0xf] %vm560, %v1649
  %1715 = vst.msk [vmem:[%s1685 + $0x74] sm:$0xf] %vm560, %v1650
  %1716 = vst.msk [vmem:[%s1685 + $0x78] sm:$0xf] %vm560, %v1651
  %1717 = vst.msk [vmem:[%s1685 + $0x7c] sm:$0xf] %vm560, %v1652
  // Predicated region
  $region18: #{_lambda_.14} parent=0 // pred_check
    _
  $region19: #{_lambda_.14} parent=0 // pred_check_branch
    %1719 = sbr.rel (0) target = $region21
  $region20: #{_lambda_.14} parent=0 // pred_region
    _
  $region21: #{_lambda_.14} parent=0 // pred_fallthru
    _
  // Predicated region
  $region22: #{_lambda_.14} parent=0 // pred_check
    _
  $region23: #{_lambda_.14} parent=0 // pred_check_branch
    %1721 = sbr.rel (0) target = $region25
  $region24: #{_lambda_.14} parent=0 // pred_region
    _
  $region25: #{_lambda_.14} parent=0 // pred_fallthru
    _

// kernel: _lambda_.12
$region0: #{_lambda_.12}
  #allocation0 [shape = 'u32[]', space=smem, size = 0x4, offset = 0x4, fixed_abs, tag = 'smem constant byte address 0x4 - core index']
  #allocation1 [shape = 'u32[144,128]{1,0:T(1,128)}', space=vmem, size = 0x12000, scoped, tag = 'internal scratch']
  %s0 = inlined_call_operand.vmem [shape: bf16[16,8], index: 0, kind: input, shape index: {}]
  %s1 = inlined_call_operand.vmem [shape: bf16[8,128], index: 1, kind: input, shape index: {}]
  %s2 = inlined_call_operand.vmem [shape: f32[1,128], index: 2, kind: input, shape index: {}]
  %s3 = inlined_call_operand.vmem [shape: f32[1,128], index: 3, kind: input, shape index: {}]
  %s4 = inlined_call_operand.vmem [shape: bf16[16,128], index: 4, kind: output, shape index: {}]
  %s5 = sld [smem:[#allocation0]]
  $region26: #{_lambda_.12} parent=0
    _
  %s7 = ssub.s32 1, %s5
  %s8 = scalar_select 0, %s7, %s5
  // Predicated region
  $region2: #{_lambda_.12} parent=0 // pred_check
    _
  $region3: #{_lambda_.12} parent=0 // pred_check_branch
    %10 = sbr.rel (0) target = $region5
  $region4: #{_lambda_.12} parent=0 // pred_region
    _
  $region5: #{_lambda_.12} parent=0 // pred_fallthru
    _
  // Predicated region
  $region6: #{_lambda_.12} parent=0 // pred_check
    _
  $region7: #{_lambda_.12} parent=0 // pred_check_branch
    %12 = sbr.rel (0) target = $region9
  $region8: #{_lambda_.12} parent=0 // pred_region
    _
  $region9: #{_lambda_.12} parent=0 // pred_fallthru
    _
  // Predicated region
  $region10: #{_lambda_.12} parent=0 // pred_check
    _
  $region11: #{_lambda_.12} parent=0 // pred_check_branch
    %14 = sbr.rel (0) target = $region13
  $region12: #{_lambda_.12} parent=0 // pred_region
    _
  $region13: #{_lambda_.12} parent=0 // pred_fallthru
    _
  // Predicated region
  $region14: #{_lambda_.12} parent=0 // pred_check
    _
  $region15: #{_lambda_.12} parent=0 // pred_check_branch
    %16 = sbr.rel (0) target = $region17
  $region16: #{_lambda_.12} parent=0 // pred_region
    _
  $region17: #{_lambda_.12} parent=0 // pred_fallthru
    _
  %v18 = vld [vmem:[%s0] sm:$0xf]
  %v19 = vld [vmem:[%s0 + $0x4] sm:$0xf]
  %v20 = vld [vmem:[%s1] sm:$0xf]
  %v23 = vunpack.c.l.b16 %v18
  %v24 = vunpack.c.l.b16 %v19
  %v25 = vpack.c.b16 %v24, %v23
  %vm26 = vcmask 64512
  %v28 = vsel %vm26, %v25, 0
  %vm30 = vcmask 1043456
  %v32 = vsel %vm30, %v20, 0
  %34 = vmatprep.subr.bf16.mxu0 0
  %35 = vmatpush1.bf16.msra.mxu0 0
  %36 = vmatprep.subr.bf16.mxu0 0
  %37 = vmatpush1.bf16.msra.mxu0 0
  %38 = vmatprep.subr.bf16.mxu0 0
  %39 = vmatpush1.bf16.msra.mxu0 0
  %40 = vmatprep.subr.bf16.mxu0 0
  %41 = vmatpush1.bf16.msra.mxu0 0
  %42 = vmatprep.subr.bf16.mxu0 0
  %43 = vmatpush1.bf16.msra.mxu0 0
  %44 = vmatprep.subr.bf16.mxu0 0
  %45 = vmatpush1.bf16.msra.mxu0 0
  %46 = vmatprep.subr.bf16.mxu0 0
  %47 = vmatpush1.bf16.msra.mxu0 0
  %48 = vmatprep.subr.bf16.mxu0 0
  %49 = vmatpush1.bf16.msra.mxu0 %v32
  %50 = vmatprep.subr.bf16.mxu0 0
  %51 = vmatpush2.bf16.msra.mxu0 0
  %52 = vmatprep.subr.bf16.mxu0 0
  %53 = vmatpush2.bf16.msra.mxu0 0
  %54 = vmatprep.subr.bf16.mxu0 0
  %55 = vmatpush2.bf16.msra.mxu0 0
  %56 = vmatprep.subr.bf16.mxu0 0
  %57 = vmatpush2.bf16.msra.mxu0 0
  %58 = vmatprep.subr.bf16.mxu0 0
  %59 = vmatpush2.bf16.msra.mxu0 0
  %60 = vmatprep.subr.bf16.mxu0 0
  %61 = vmatpush2.bf16.msra.mxu0 0
  %62 = vmatprep.subr.bf16.mxu0 0
  %63 = vmatpush2.bf16.msra.mxu0 0
  %64 = vmatprep.subr.bf16.mxu0 0
  %65 = vmatpush2.bf16.msra.mxu0 0
  %66 = vmatprep.mubr.bf16.mxu0 0
  %67 = vmatmul.mubr.bf16.gmra.mxu0 %v28
  %v68 = vpop.f32.mrf.mxu0
  %v69 = vadd.f32 0.0, %v68
  %v70 = vpop.f32.mrf.mxu0
  %v71 = vpop.f32.mrf.mxu0
  %v72 = vadd.f32 0.0, %v71
  %v73 = vpop.f32.mrf.mxu0
  %74 = vdwg.mxu0
  %v75 = vld [vmem:[%s2] sm:$0x1]
  %v77 = vlaneseq
  %v78 = vshrl.u32 %v77, 7
  %v79 = vsub.s32 0, %v78
  %v80 = vrot.slane %v75, %v79
  %v82 = vmul.f32 %v69, %v80
  %v83 = vmul.f32 %v72, %v80
  %v84 = vld [vmem:[%s3] sm:$0x1]
  %v86 = vlaneseq
  %v87 = vshrl.u32 %v86, 7
  %v88 = vsub.s32 0, %v87
  %v89 = vrot.slane %v84, %v88
  %v91 = vadd.f32 %v82, %v89
  %v92 = vadd.f32 %v83, %v89
  %v93 = vpack.c.bf16 %v92, %v91
  %v95 = vunpack.c.l.b16 %v93
  %v96 = vunpack.c.h.b16 %v93
  %v97 = vpack.c.b16 %v95, %v95
  %v98 = vpack.c.b16 %v96, %v96
  %101 = vst [vmem:[%s4] sm:$0xf] %v97
  %102 = vst [vmem:[%s4 + $0x4] sm:$0xf] %v98
  // Predicated region
  $region18: #{_lambda_.12} parent=0 // pred_check
    _
  $region19: #{_lambda_.12} parent=0 // pred_check_branch
    %104 = sbr.rel (0) target = $region21
  $region20: #{_lambda_.12} parent=0 // pred_region
    _
  $region21: #{_lambda_.12} parent=0 // pred_fallthru
    _
  // Predicated region
  $region22: #{_lambda_.12} parent=0 // pred_check
    _
  $region23: #{_lambda_.12} parent=0 // pred_check_branch
    %106 = sbr.rel (0) target = $region25
  $region24: #{_lambda_.12} parent=0 // pred_region
    _
  $region25: #{_lambda_.12} parent=0 // pred_fallthru
    _

// kernel: _lambda_.13
$region0: #{_lambda_.13}
  #allocation0 [shape = 'u32[]', space=smem, size = 0x4, offset = 0x4, fixed_abs, tag = 'smem constant byte address 0x4 - core index']
  #allocation1 [shape = 'u32[144,128]{1,0:T(1,128)}', space=vmem, size = 0x12000, scoped, tag = 'internal scratch']
  %s0 = inlined_call_operand.vmem [shape: bf16[4,4,128], index: 0, kind: input, shape index: {}]
  %s1 = inlined_call_operand.vmem [shape: bf16[128,32], index: 1, kind: input, shape index: {}]
  %s2 = inlined_call_operand.vmem [shape: f32[1,32], index: 2, kind: input, shape index: {}]
  %s3 = inlined_call_operand.vmem [shape: bf16[256,4], index: 3, kind: input, shape index: {}]
  %s4 = inlined_call_operand.vmem [shape: bf16[4,256,32], index: 4, kind: output, shape index: {}]
  %s5 = sld [smem:[#allocation0]]
  $region26: #{_lambda_.13} parent=0
    _
  %s7 = ssub.s32 1, %s5
  %s8 = scalar_select 0, %s7, %s5
  // Predicated region
  $region2: #{_lambda_.13} parent=0 // pred_check
    _
  $region3: #{_lambda_.13} parent=0 // pred_check_branch
    %10 = sbr.rel (0) target = $region5
  $region4: #{_lambda_.13} parent=0 // pred_region
    _
  $region5: #{_lambda_.13} parent=0 // pred_fallthru
    _
  // Predicated region
  $region6: #{_lambda_.13} parent=0 // pred_check
    _
  $region7: #{_lambda_.13} parent=0 // pred_check_branch
    %12 = sbr.rel (0) target = $region9
  $region8: #{_lambda_.13} parent=0 // pred_region
    _
  $region9: #{_lambda_.13} parent=0 // pred_fallthru
    _
  // Predicated region
  $region10: #{_lambda_.13} parent=0 // pred_check
    _
  $region11: #{_lambda_.13} parent=0 // pred_check_branch
    %14 = sbr.rel (0) target = $region13
  $region12: #{_lambda_.13} parent=0 // pred_region
    _
  $region13: #{_lambda_.13} parent=0 // pred_fallthru
    _
  // Predicated region
  $region14: #{_lambda_.13} parent=0 // pred_check
    _
  $region15: #{_lambda_.13} parent=0 // pred_check_branch
    %16 = sbr.rel (0) target = $region17
  $region16: #{_lambda_.13} parent=0 // pred_region
    _
  $region17: #{_lambda_.13} parent=0 // pred_fallthru
    _
  %v18 = vld [vmem:[%s1] sm:$0xf]
  %v19 = vld [vmem:[%s1 + $0x4] sm:$0xf]
  %v20 = vld [vmem:[%s1 + $0x8] sm:$0xf]
  %v21 = vld [vmem:[%s1 + $0xc] sm:$0xf]
  %v22 = vld [vmem:[%s1 + $0x10] sm:$0xf]
  %v23 = vld [vmem:[%s1 + $0x14] sm:$0xf]
  %v24 = vld [vmem:[%s1 + $0x18] sm:$0xf]
  %v25 = vld [vmem:[%s1 + $0x1c] sm:$0xf]
  %v26 = vld [vmem:[%s1 + $0x20] sm:$0xf]
  %v27 = vld [vmem:[%s1 + $0x24] sm:$0xf]
  %v28 = vld [vmem:[%s1 + $0x28] sm:$0xf]
  %v29 = vld [vmem:[%s1 + $0x2c] sm:$0xf]
  %v30 = vld [vmem:[%s1 + $0x30] sm:$0xf]
  %v31 = vld [vmem:[%s1 + $0x34] sm:$0xf]
  %v32 = vld [vmem:[%s1 + $0x38] sm:$0xf]
  %v33 = vld [vmem:[%s1 + $0x3c] sm:$0xf]
  %v34 = vld [vmem:[%s2] sm:$0x1]
  %v35 = vld [vmem:[%s3] sm:$0xf]
  %v36 = vld [vmem:[%s3 + $0x4] sm:$0xf]
  %v37 = vld [vmem:[%s3 + $0x8] sm:$0xf]
  %v38 = vld [vmem:[%s3 + $0xc] sm:$0xf]
  %v39 = vld [vmem:[%s3 + $0x10] sm:$0xf]
  %v40 = vld [vmem:[%s3 + $0x14] sm:$0xf]
  %v41 = vld [vmem:[%s3 + $0x18] sm:$0xf]
  %v42 = vld [vmem:[%s3 + $0x1c] sm:$0xf]
  %v43 = vld [vmem:[%s3 + $0x20] sm:$0xf]
  %v44 = vld [vmem:[%s3 + $0x24] sm:$0xf]
  %v45 = vld [vmem:[%s3 + $0x28] sm:$0xf]
  %v46 = vld [vmem:[%s3 + $0x2c] sm:$0xf]
  %v47 = vld [vmem:[%s3 + $0x30] sm:$0xf]
  %v48 = vld [vmem:[%s3 + $0x34] sm:$0xf]
  %v49 = vld [vmem:[%s3 + $0x38] sm:$0xf]
  %v50 = vld [vmem:[%s3 + $0x3c] sm:$0xf]
  %v51 = vld [vmem:[%s3 + $0x40] sm:$0xf]
  %v52 = vld [vmem:[%s3 + $0x44] sm:$0xf]
  %v53 = vld [vmem:[%s3 + $0x48] sm:$0xf]
  %v54 = vld [vmem:[%s3 + $0x4c] sm:$0xf]
  %v55 = vld [vmem:[%s3 + $0x50] sm:$0xf]
  %v56 = vld [vmem:[%s3 + $0x54] sm:$0xf]
  %v57 = vld [vmem:[%s3 + $0x58] sm:$0xf]
  %v58 = vld [vmem:[%s3 + $0x5c] sm:$0xf]
  %v59 = vld [vmem:[%s3 + $0x60] sm:$0xf]
  %v60 = vld [vmem:[%s3 + $0x64] sm:$0xf]
  %v61 = vld [vmem:[%s3 + $0x68] sm:$0xf]
  %v62 = vld [vmem:[%s3 + $0x6c] sm:$0xf]
  %v63 = vld [vmem:[%s3 + $0x70] sm:$0xf]
  %v64 = vld [vmem:[%s3 + $0x74] sm:$0xf]
  %v65 = vld [vmem:[%s3 + $0x78] sm:$0xf]
  %v66 = vld [vmem:[%s3 + $0x7c] sm:$0xf]
  %v67 = vld [vmem:[%s0] sm:$0x3]
  %v69 = vlaneseq
  %v70 = vshrl.u32 %v69, 7
  %v71 = vsub.s32 0, %v70
  %v72 = vrot.slane %v34, %v71
  %v90 = vunpack.c.l.b16 %v18
  %v91 = vunpack.c.l.b16 %v19
  %v92 = vunpack.c.l.b16 %v20
  %v93 = vunpack.c.l.b16 %v21
  %v94 = vunpack.c.l.b16 %v22
  %v95 = vunpack.c.l.b16 %v23
  %v96 = vunpack.c.l.b16 %v24
  %v97 = vunpack.c.l.b16 %v25
  %v98 = vunpack.c.l.b16 %v26
  %v99 = vunpack.c.l.b16 %v27
  %v100 = vunpack.c.l.b16 %v28
  %v101 = vunpack.c.l.b16 %v29
  %v102 = vunpack.c.l.b16 %v30
  %v103 = vunpack.c.l.b16 %v31
  %v104 = vunpack.c.l.b16 %v32
  %v105 = vunpack.c.l.b16 %v33
  %v106 = vpack.c.b16 %v91, %v90
  %v107 = vpack.c.b16 %v93, %v92
  %v108 = vpack.c.b16 %v95, %v94
  %v109 = vpack.c.b16 %v97, %v96
  %v110 = vpack.c.b16 %v99, %v98
  %v111 = vpack.c.b16 %v101, %v100
  %v112 = vpack.c.b16 %v103, %v102
  %v113 = vpack.c.b16 %v105, %v104
  %122 = vmatprep.subr.bf16.mxu0 0
  %123 = vmatpush1.bf16.msra.mxu0 %v113
  %124 = vmatprep.subr.bf16.mxu0 0
  %125 = vmatpush1.bf16.msra.mxu0 %v112
  %126 = vmatprep.subr.bf16.mxu0 0
  %127 = vmatpush1.bf16.msra.mxu0 %v111
  %128 = vmatprep.subr.bf16.mxu0 0
  %129 = vmatpush1.bf16.msra.mxu0 %v110
  %130 = vmatprep.subr.bf16.mxu0 0
  %131 = vmatpush1.bf16.msra.mxu0 %v109
  %132 = vmatprep.subr.bf16.mxu0 0
  %133 = vmatpush1.bf16.msra.mxu0 %v108
  %134 = vmatprep.subr.bf16.mxu0 0
  %135 = vmatpush1.bf16.msra.mxu0 %v107
  %136 = vmatprep.subr.bf16.mxu0 0
  %137 = vmatpush1.bf16.msra.mxu0 %v106
  %138 = vmatprep.subr.bf16.mxu0 0
  %139 = vmatpush2.bf16.msra.mxu0 0
  %140 = vmatprep.subr.bf16.mxu0 0
  %141 = vmatpush2.bf16.msra.mxu0 0
  %142 = vmatprep.subr.bf16.mxu0 0
  %143 = vmatpush2.bf16.msra.mxu0 0
  %144 = vmatprep.subr.bf16.mxu0 0
  %145 = vmatpush2.bf16.msra.mxu0 0
  %146 = vmatprep.subr.bf16.mxu0 0
  %147 = vmatpush2.bf16.msra.mxu0 0
  %148 = vmatprep.subr.bf16.mxu0 0
  %149 = vmatpush2.bf16.msra.mxu0 0
  %150 = vmatprep.subr.bf16.mxu0 0
  %151 = vmatpush2.bf16.msra.mxu0 0
  %152 = vmatprep.subr.bf16.mxu0 0
  %153 = vmatpush2.bf16.msra.mxu0 0
  %154 = vmatprep.mubr.bf16.mxu0 0
  %155 = vmatmul.mubr.bf16.gmra.mxu0 %v67
  %v156 = vpop.f32.mrf.mxu0
  %v157 = vadd.f32 %v72, %v156
  %v158 = vpop.f32.mrf.mxu0
  %v159 = vpop.f32.mrf.mxu0
  %v160 = vpop.f32.mrf.mxu0
  %161 = vdwg.mxu0
  %v162 = vpack.c.bf16 %v157, %v157
  %v195 = vunpack.c.l.b16 %v35
  %v196 = vunpack.c.l.b16 %v36
  %v197 = vunpack.c.l.b16 %v37
  %v198 = vunpack.c.l.b16 %v38
  %v199 = vunpack.c.l.b16 %v39
  %v200 = vunpack.c.l.b16 %v40
  %v201 = vunpack.c.l.b16 %v41
  %v202 = vunpack.c.l.b16 %v42
  %v203 = vunpack.c.l.b16 %v43
  %v204 = vunpack.c.l.b16 %v44
  %v205 = vunpack.c.l.b16 %v45
  %v206 = vunpack.c.l.b16 %v46
  %v207 = vunpack.c.l.b16 %v47
  %v208 = vunpack.c.l.b16 %v48
  %v209 = vunpack.c.l.b16 %v49
  %v210 = vunpack.c.l.b16 %v50
  %v211 = vunpack.c.l.b16 %v51
  %v212 = vunpack.c.l.b16 %v52
  %v213 = vunpack.c.l.b16 %v53
  %v214 = vunpack.c.l.b16 %v54
  %v215 = vunpack.c.l.b16 %v55
  %v216 = vunpack.c.l.b16 %v56
  %v217 = vunpack.c.l.b16 %v57
  %v218 = vunpack.c.l.b16 %v58
  %v219 = vunpack.c.l.b16 %v59
  %v220 = vunpack.c.l.b16 %v60
  %v221 = vunpack.c.l.b16 %v61
  %v222 = vunpack.c.l.b16 %v62
  %v223 = vunpack.c.l.b16 %v63
  %v224 = vunpack.c.l.b16 %v64
  %v225 = vunpack.c.l.b16 %v65
  %v226 = vunpack.c.l.b16 %v66
  %v227 = vpack.c.b16 %v196, %v195
  %v228 = vpack.c.b16 %v198, %v197
  %v229 = vpack.c.b16 %v200, %v199
  %v230 = vpack.c.b16 %v202, %v201
  %v231 = vpack.c.b16 %v204, %v203
  %v232 = vpack.c.b16 %v206, %v205
  %v233 = vpack.c.b16 %v208, %v207
  %v234 = vpack.c.b16 %v210, %v209
  %v235 = vpack.c.b16 %v212, %v211
  %v236 = vpack.c.b16 %v214, %v213
  %v237 = vpack.c.b16 %v216, %v215
  %v238 = vpack.c.b16 %v218, %v217
  %v239 = vpack.c.b16 %v220, %v219
  %v240 = vpack.c.b16 %v222, %v221
  %v241 = vpack.c.b16 %v224, %v223
  %v242 = vpack.c.b16 %v226, %v225
  %vm243 = vcmask 31744
  %v245 = vsel %vm243, %v227, 0
  %v248 = vsel %vm243, %v228, 0
  %v251 = vsel %vm243, %v229, 0
  %v254 = vsel %vm243, %v230, 0
  %v257 = vsel %vm243, %v231, 0
  %v260 = vsel %vm243, %v232, 0
  %v263 = vsel %vm243, %v233, 0
  %v266 = vsel %vm243, %v234, 0
  %v269 = vsel %vm243, %v235, 0
  %v272 = vsel %vm243, %v236, 0
  %v275 = vsel %vm243, %v237, 0
  %v278 = vsel %vm243, %v238, 0
  %v281 = vsel %vm243, %v239, 0
  %v284 = vsel %vm243, %v240, 0
  %v287 = vsel %vm243, %v241, 0
  %v290 = vsel %vm243, %v242, 0
  %vm292 = vcmask 1041408
  %v294 = vsel %vm292, %v162, 0
  %296 = vmatprep.subr.bf16.mxu0 0
  %297 = vmatpush1.bf16.msra.mxu0 0
  %298 = vmatprep.subr.bf16.mxu0 0
  %299 = vmatpush1.bf16.msra.mxu0 0
  %300 = vmatprep.subr.bf16.mxu0 0
  %301 = vmatpush1.bf16.msra.mxu0 0
  %302 = vmatprep.subr.bf16.mxu0 0
  %303 = vmatpush1.bf16.msra.mxu0 0
  %304 = vmatprep.subr.bf16.mxu0 0
  %305 = vmatpush1.bf16.msra.mxu0 0
  %306 = vmatprep.subr.bf16.mxu0 0
  %307 = vmatpush1.bf16.msra.mxu0 0
  %308 = vmatprep.subr.bf16.mxu0 0
  %309 = vmatpush1.bf16.msra.mxu0 0
  %310 = vmatprep.subr.bf16.mxu0 0
  %311 = vmatpush1.bf16.msra.mxu0 %v294
  %312 = vmatprep.subr.bf16.mxu0 0
  %313 = vmatpush2.bf16.msra.mxu0 0
  %314 = vmatprep.subr.bf16.mxu0 0
  %315 = vmatpush2.bf16.msra.mxu0 0
  %316 = vmatprep.subr.bf16.mxu0 0
  %317 = vmatpush2.bf16.msra.mxu0 0
  %318 = vmatprep.subr.bf16.mxu0 0
  %319 = vmatpush2.bf16.msra.mxu0 0
  %320 = vmatprep.subr.bf16.mxu0 0
  %321 = vmatpush2.bf16.msra.mxu0 0
  %322 = vmatprep.subr.bf16.mxu0 0
  %323 = vmatpush2.bf16.msra.mxu0 0
  %324 = vmatprep.subr.bf16.mxu0 0
  %325 = vmatpush2.bf16.msra.mxu0 0
  %326 = vmatprep.subr.bf16.mxu0 0
  %327 = vmatpush2.bf16.msra.mxu0 0
  %328 = vmatprep.mubr.bf16.mxu0 0
  %329 = vmatmul.mubr.bf16.gmra.mxu0 %v245
  %v330 = vpop.f32.mrf.mxu0
  %v331 = vadd.f32 0.0, %v330
  %v332 = vpop.f32.mrf.mxu0
  %v333 = vpop.f32.mrf.mxu0
  %v334 = vadd.f32 0.0, %v333
  %v335 = vpop.f32.mrf.mxu0
  %336 = vmatprep.mubr.bf16.mxu0 0
  %337 = vmatmul.mubr.bf16.gmra.mxu0 %v248
  %v338 = vpop.f32.mrf.mxu0
  %v339 = vadd.f32 0.0, %v338
  %v340 = vpop.f32.mrf.mxu0
  %v341 = vpop.f32.mrf.mxu0
  %v342 = vadd.f32 0.0, %v341
  %v343 = vpop.f32.mrf.mxu0
  %344 = vmatprep.mubr.bf16.mxu0 0
  %345 = vmatmul.mubr.bf16.gmra.mxu0 %v251
  %v346 = vpop.f32.mrf.mxu0
  %v347 = vadd.f32 0.0, %v346
  %v348 = vpop.f32.mrf.mxu0
  %v349 = vpop.f32.mrf.mxu0
  %v350 = vadd.f32 0.0, %v349
  %v351 = vpop.f32.mrf.mxu0
  %352 = vmatprep.mubr.bf16.mxu0 0
  %353 = vmatmul.mubr.bf16.gmra.mxu0 %v254
  %v354 = vpop.f32.mrf.mxu0
  %v355 = vadd.f32 0.0, %v354
  %v356 = vpop.f32.mrf.mxu0
  %v357 = vpop.f32.mrf.mxu0
  %v358 = vadd.f32 0.0, %v357
  %v359 = vpop.f32.mrf.mxu0
  %360 = vmatprep.mubr.bf16.mxu0 0
  %361 = vmatmul.mubr.bf16.gmra.mxu0 %v257
  %v362 = vpop.f32.mrf.mxu0
  %v363 = vadd.f32 0.0, %v362
  %v364 = vpop.f32.mrf.mxu0
  %v365 = vpop.f32.mrf.mxu0
  %v366 = vadd.f32 0.0, %v365
  %v367 = vpop.f32.mrf.mxu0
  %368 = vmatprep.mubr.bf16.mxu0 0
  %369 = vmatmul.mubr.bf16.gmra.mxu0 %v260
  %v370 = vpop.f32.mrf.mxu0
  %v371 = vadd.f32 0.0, %v370
  %v372 = vpop.f32.mrf.mxu0
  %v373 = vpop.f32.mrf.mxu0
  %v374 = vadd.f32 0.0, %v373
  %v375 = vpop.f32.mrf.mxu0
  %376 = vmatprep.mubr.bf16.mxu0 0
  %377 = vmatmul.mubr.bf16.gmra.mxu0 %v263
  %v378 = vpop.f32.mrf.mxu0
  %v379 = vadd.f32 0.0, %v378
  %v380 = vpop.f32.mrf.mxu0
  %v381 = vpop.f32.mrf.mxu0
  %v382 = vadd.f32 0.0, %v381
  %v383 = vpop.f32.mrf.mxu0
  %384 = vmatprep.mubr.bf16.mxu0 0
  %385 = vmatmul.mubr.bf16.gmra.mxu0 %v266
  %v386 = vpop.f32.mrf.mxu0
  %v387 = vadd.f32 0.0, %v386
  %v388 = vpop.f32.mrf.mxu0
  %v389 = vpop.f32.mrf.mxu0
  %v390 = vadd.f32 0.0, %v389
  %v391 = vpop.f32.mrf.mxu0
  %392 = vmatprep.mubr.bf16.mxu0 0
  %393 = vmatmul.mubr.bf16.gmra.mxu0 %v269
  %v394 = vpop.f32.mrf.mxu0
  %v395 = vadd.f32 0.0, %v394
  %v396 = vpop.f32.mrf.mxu0
  %v397 = vpop.f32.mrf.mxu0
  %v398 = vadd.f32 0.0, %v397
  %v399 = vpop.f32.mrf.mxu0
  %400 = vmatprep.mubr.bf16.mxu0 0
  %401 = vmatmul.mubr.bf16.gmra.mxu0 %v272
  %v402 = vpop.f32.mrf.mxu0
  %v403 = vadd.f32 0.0, %v402
  %v404 = vpop.f32.mrf.mxu0
  %v405 = vpop.f32.mrf.mxu0
  %v406 = vadd.f32 0.0, %v405
  %v407 = vpop.f32.mrf.mxu0
  %408 = vmatprep.mubr.bf16.mxu0 0
  %409 = vmatmul.mubr.bf16.gmra.mxu0 %v275
  %v410 = vpop.f32.mrf.mxu0
  %v411 = vadd.f32 0.0, %v410
  %v412 = vpop.f32.mrf.mxu0
  %v413 = vpop.f32.mrf.mxu0
  %v414 = vadd.f32 0.0, %v413
  %v415 = vpop.f32.mrf.mxu0
  %416 = vmatprep.mubr.bf16.mxu0 0
  %417 = vmatmul.mubr.bf16.gmra.mxu0 %v278
  %v418 = vpop.f32.mrf.mxu0
  %v419 = vadd.f32 0.0, %v418
  %v420 = vpop.f32.mrf.mxu0
  %v421 = vpop.f32.mrf.mxu0
  %v422 = vadd.f32 0.0, %v421
  %v423 = vpop.f32.mrf.mxu0
  %424 = vmatprep.mubr.bf16.mxu0 0
  %425 = vmatmul.mubr.bf16.gmra.mxu0 %v281
  %v426 = vpop.f32.mrf.mxu0
  %v427 = vadd.f32 0.0, %v426
  %v428 = vpop.f32.mrf.mxu0
  %v429 = vpop.f32.mrf.mxu0
  %v430 = vadd.f32 0.0, %v429
  %v431 = vpop.f32.mrf.mxu0
  %432 = vmatprep.mubr.bf16.mxu0 0
  %433 = vmatmul.mubr.bf16.gmra.mxu0 %v284
  %v434 = vpop.f32.mrf.mxu0
  %v435 = vadd.f32 0.0, %v434
  %v436 = vpop.f32.mrf.mxu0
  %v437 = vpop.f32.mrf.mxu0
  %v438 = vadd.f32 0.0, %v437
  %v439 = vpop.f32.mrf.mxu0
  %440 = vmatprep.mubr.bf16.mxu0 0
  %441 = vmatmul.mubr.bf16.gmra.mxu0 %v287
  %v442 = vpop.f32.mrf.mxu0
  %v443 = vadd.f32 0.0, %v442
  %v444 = vpop.f32.mrf.mxu0
  %v445 = vpop.f32.mrf.mxu0
  %v446 = vadd.f32 0.0, %v445
  %v447 = vpop.f32.mrf.mxu0
  %448 = vmatprep.mubr.bf16.mxu0 0
  %449 = vmatmul.mubr.bf16.gmra.mxu0 %v290
  %v450 = vpop.f32.mrf.mxu0
  %v451 = vadd.f32 0.0, %v450
  %v452 = vpop.f32.mrf.mxu0
  %v453 = vpop.f32.mrf.mxu0
  %v454 = vadd.f32 0.0, %v453
  %v455 = vpop.f32.mrf.mxu0
  %456 = vdwg.mxu0
  %v457 = vpack.c.bf16 %v334, %v331
  %v458 = vpack.c.bf16 %v342, %v339
  %v459 = vpack.c.bf16 %v350, %v347
  %v460 = vpack.c.bf16 %v358, %v355
  %v461 = vpack.c.bf16 %v366, %v363
  %v462 = vpack.c.bf16 %v374, %v371
  %v463 = vpack.c.bf16 %v382, %v379
  %v464 = vpack.c.bf16 %v390, %v387
  %v465 = vpack.c.bf16 %v398, %v395
  %v466 = vpack.c.bf16 %v406, %v403
  %v467 = vpack.c.bf16 %v414, %v411
  %v468 = vpack.c.bf16 %v422, %v419
  %v469 = vpack.c.bf16 %v430, %v427
  %v470 = vpack.c.bf16 %v438, %v435
  %v471 = vpack.c.bf16 %v446, %v443
  %v472 = vpack.c.bf16 %v454, %v451
  %v489 = vunpack.c.l.b16 %v457
  %v490 = vunpack.c.h.b16 %v457
  %v491 = vunpack.c.l.b16 %v458
  %v492 = vunpack.c.h.b16 %v458
  %v493 = vunpack.c.l.b16 %v459
  %v494 = vunpack.c.h.b16 %v459
  %v495 = vunpack.c.l.b16 %v460
  %v496 = vunpack.c.h.b16 %v460
  %v497 = vunpack.c.l.b16 %v461
  %v498 = vunpack.c.h.b16 %v461
  %v499 = vunpack.c.l.b16 %v462
  %v500 = vunpack.c.h.b16 %v462
  %v501 = vunpack.c.l.b16 %v463
  %v502 = vunpack.c.h.b16 %v463
  %v503 = vunpack.c.l.b16 %v464
  %v504 = vunpack.c.h.b16 %v464
  %v505 = vunpack.c.l.b16 %v465
  %v506 = vunpack.c.h.b16 %v465
  %v507 = vunpack.c.l.b16 %v466
  %v508 = vunpack.c.h.b16 %v466
  %v509 = vunpack.c.l.b16 %v467
  %v510 = vunpack.c.h.b16 %v467
  %v511 = vunpack.c.l.b16 %v468
  %v512 = vunpack.c.h.b16 %v468
  %v513 = vunpack.c.l.b16 %v469
  %v514 = vunpack.c.h.b16 %v469
  %v515 = vunpack.c.l.b16 %v470
  %v516 = vunpack.c.h.b16 %v470
  %v517 = vunpack.c.l.b16 %v471
  %v518 = vunpack.c.h.b16 %v471
  %v519 = vunpack.c.l.b16 %v472
  %v520 = vunpack.c.h.b16 %v472
  %v521 = vpack.c.b16 %v489, %v489
  %v522 = vpack.c.b16 %v490, %v490
  %v523 = vpack.c.b16 %v491, %v491
  %v524 = vpack.c.b16 %v492, %v492
  %v525 = vpack.c.b16 %v493, %v493
  %v526 = vpack.c.b16 %v494, %v494
  %v527 = vpack.c.b16 %v495, %v495
  %v528 = vpack.c.b16 %v496, %v496
  %v529 = vpack.c.b16 %v497, %v497
  %v530 = vpack.c.b16 %v498, %v498
  %v531 = vpack.c.b16 %v499, %v499
  %v532 = vpack.c.b16 %v500, %v500
  %v533 = vpack.c.b16 %v501, %v501
  %v534 = vpack.c.b16 %v502, %v502
  %v535 = vpack.c.b16 %v503, %v503
  %v536 = vpack.c.b16 %v504, %v504
  %v537 = vpack.c.b16 %v505, %v505
  %v538 = vpack.c.b16 %v506, %v506
  %v539 = vpack.c.b16 %v507, %v507
  %v540 = vpack.c.b16 %v508, %v508
  %v541 = vpack.c.b16 %v509, %v509
  %v542 = vpack.c.b16 %v510, %v510
  %v543 = vpack.c.b16 %v511, %v511
  %v544 = vpack.c.b16 %v512, %v512
  %v545 = vpack.c.b16 %v513, %v513
  %v546 = vpack.c.b16 %v514, %v514
  %v547 = vpack.c.b16 %v515, %v515
  %v548 = vpack.c.b16 %v516, %v516
  %v549 = vpack.c.b16 %v517, %v517
  %v550 = vpack.c.b16 %v518, %v518
  %v551 = vpack.c.b16 %v519, %v519
  %v552 = vpack.c.b16 %v520, %v520
  %vm585 = vcmask 257024
  %586 = vst.msk [vmem:[%s4] sm:$0xf] %vm585, %v521
  %587 = vst.msk [vmem:[%s4 + $0x4] sm:$0xf] %vm585, %v522
  %588 = vst.msk [vmem:[%s4 + $0x8] sm:$0xf] %vm585, %v523
  %589 = vst.msk [vmem:[%s4 + $0xc] sm:$0xf] %vm585, %v524
  %590 = vst.msk [vmem:[%s4 + $0x10] sm:$0xf] %vm585, %v525
  %591 = vst.msk [vmem:[%s4 + $0x14] sm:$0xf] %vm585, %v526
  %592 = vst.msk [vmem:[%s4 + $0x18] sm:$0xf] %vm585, %v527
  %593 = vst.msk [vmem:[%s4 + $0x1c] sm:$0xf] %vm585, %v528
  %594 = vst.msk [vmem:[%s4 + $0x20] sm:$0xf] %vm585, %v529
  %595 = vst.msk [vmem:[%s4 + $0x24] sm:$0xf] %vm585, %v530
  %596 = vst.msk [vmem:[%s4 + $0x28] sm:$0xf] %vm585, %v531
  %597 = vst.msk [vmem:[%s4 + $0x2c] sm:$0xf] %vm585, %v532
  %598 = vst.msk [vmem:[%s4 + $0x30] sm:$0xf] %vm585, %v533
  %599 = vst.msk [vmem:[%s4 + $0x34] sm:$0xf] %vm585, %v534
  %600 = vst.msk [vmem:[%s4 + $0x38] sm:$0xf] %vm585, %v535
  %601 = vst.msk [vmem:[%s4 + $0x3c] sm:$0xf] %vm585, %v536
  %602 = vst.msk [vmem:[%s4 + $0x40] sm:$0xf] %vm585, %v537
  %603 = vst.msk [vmem:[%s4 + $0x44] sm:$0xf] %vm585, %v538
  %604 = vst.msk [vmem:[%s4 + $0x48] sm:$0xf] %vm585, %v539
  %605 = vst.msk [vmem:[%s4 + $0x4c] sm:$0xf] %vm585, %v540
  %606 = vst.msk [vmem:[%s4 + $0x50] sm:$0xf] %vm585, %v541
  %607 = vst.msk [vmem:[%s4 + $0x54] sm:$0xf] %vm585, %v542
  %608 = vst.msk [vmem:[%s4 + $0x58] sm:$0xf] %vm585, %v543
  %609 = vst.msk [vmem:[%s4 + $0x5c] sm:$0xf] %vm585, %v544
  %610 = vst.msk [vmem:[%s4 + $0x60] sm:$0xf] %vm585, %v545
  %611 = vst.msk [vmem:[%s4 + $0x64] sm:$0xf] %vm585, %v546
  %612 = vst.msk [vmem:[%s4 + $0x68] sm:$0xf] %vm585, %v547
  %613 = vst.msk [vmem:[%s4 + $0x6c] sm:$0xf] %vm585, %v548
  %614 = vst.msk [vmem:[%s4 + $0x70] sm:$0xf] %vm585, %v549
  %615 = vst.msk [vmem:[%s4 + $0x74] sm:$0xf] %vm585, %v550
  %616 = vst.msk [vmem:[%s4 + $0x78] sm:$0xf] %vm585, %v551
  %617 = vst.msk [vmem:[%s4 + $0x7c] sm:$0xf] %vm585, %v552
  %s618 = scalar_lea.vmem %s0, 2
  %v619 = vld [vmem:[%s618] sm:$0x3]
  %620 = vmatprep.subr.bf16.mxu0 0
  %621 = vmatpush1.bf16.msra.mxu0 %v113
  %622 = vmatprep.subr.bf16.mxu0 0
  %623 = vmatpush1.bf16.msra.mxu0 %v112
  %624 = vmatprep.subr.bf16.mxu0 0
  %625 = vmatpush1.bf16.msra.mxu0 %v111
  %626 = vmatprep.subr.bf16.mxu0 0
  %627 = vmatpush1.bf16.msra.mxu0 %v110
  %628 = vmatprep.subr.bf16.mxu0 0
  %629 = vmatpush1.bf16.msra.mxu0 %v109
  %630 = vmatprep.subr.bf16.mxu0 0
  %631 = vmatpush1.bf16.msra.mxu0 %v108
  %632 = vmatprep.subr.bf16.mxu0 0
  %633 = vmatpush1.bf16.msra.mxu0 %v107
  %634 = vmatprep.subr.bf16.mxu0 0
  %635 = vmatpush1.bf16.msra.mxu0 %v106
  %636 = vmatprep.subr.bf16.mxu0 0
  %637 = vmatpush2.bf16.msra.mxu0 0
  %638 = vmatprep.subr.bf16.mxu0 0
  %639 = vmatpush2.bf16.msra.mxu0 0
  %640 = vmatprep.subr.bf16.mxu0 0
  %641 = vmatpush2.bf16.msra.mxu0 0
  %642 = vmatprep.subr.bf16.mxu0 0
  %643 = vmatpush2.bf16.msra.mxu0 0
  %644 = vmatprep.subr.bf16.mxu0 0
  %645 = vmatpush2.bf16.msra.mxu0 0
  %646 = vmatprep.subr.bf16.mxu0 0
  %647 = vmatpush2.bf16.msra.mxu0 0
  %648 = vmatprep.subr.bf16.mxu0 0
  %649 = vmatpush2.bf16.msra.mxu0 0
  %650 = vmatprep.subr.bf16.mxu0 0
  %651 = vmatpush2.bf16.msra.mxu0 0
  %652 = vmatprep.mubr.bf16.mxu0 0
  %653 = vmatmul.mubr.bf16.gmra.mxu0 %v619
  %v654 = vpop.f32.mrf.mxu0
  %v655 = vadd.f32 %v72, %v654
  %v656 = vpop.f32.mrf.mxu0
  %v657 = vpop.f32.mrf.mxu0
  %v658 = vpop.f32.mrf.mxu0
  %659 = vdwg.mxu0
  %v660 = vpack.c.bf16 %v655, %v655
  %v662 = vsel %vm292, %v660, 0
  %664 = vmatprep.subr.bf16.mxu0 0
  %665 = vmatpush1.bf16.msra.mxu0 0
  %666 = vmatprep.subr.bf16.mxu0 0
  %667 = vmatpush1.bf16.msra.mxu0 0
  %668 = vmatprep.subr.bf16.mxu0 0
  %669 = vmatpush1.bf16.msra.mxu0 0
  %670 = vmatprep.subr.bf16.mxu0 0
  %671 = vmatpush1.bf16.msra.mxu0 0
  %672 = vmatprep.subr.bf16.mxu0 0
  %673 = vmatpush1.bf16.msra.mxu0 0
  %674 = vmatprep.subr.bf16.mxu0 0
  %675 = vmatpush1.bf16.msra.mxu0 0
  %676 = vmatprep.subr.bf16.mxu0 0
  %677 = vmatpush1.bf16.msra.mxu0 0
  %678 = vmatprep.subr.bf16.mxu0 0
  %679 = vmatpush1.bf16.msra.mxu0 %v662
  %680 = vmatprep.subr.bf16.mxu0 0
  %681 = vmatpush2.bf16.msra.mxu0 0
  %682 = vmatprep.subr.bf16.mxu0 0
  %683 = vmatpush2.bf16.msra.mxu0 0
  %684 = vmatprep.subr.bf16.mxu0 0
  %685 = vmatpush2.bf16.msra.mxu0 0
  %686 = vmatprep.subr.bf16.mxu0 0
  %687 = vmatpush2.bf16.msra.mxu0 0
  %688 = vmatprep.subr.bf16.mxu0 0
  %689 = vmatpush2.bf16.msra.mxu0 0
  %690 = vmatprep.subr.bf16.mxu0 0
  %691 = vmatpush2.bf16.msra.mxu0 0
  %692 = vmatprep.subr.bf16.mxu0 0
  %693 = vmatpush2.bf16.msra.mxu0 0
  %694 = vmatprep.subr.bf16.mxu0 0
  %695 = vmatpush2.bf16.msra.mxu0 0
  %696 = vmatprep.mubr.bf16.mxu0 0
  %697 = vmatmul.mubr.bf16.gmra.mxu0 %v245
  %v698 = vpop.f32.mrf.mxu0
  %v699 = vadd.f32 0.0, %v698
  %v700 = vpop.f32.mrf.mxu0
  %v701 = vpop.f32.mrf.mxu0
  %v702 = vadd.f32 0.0, %v701
  %v703 = vpop.f32.mrf.mxu0
  %704 = vmatprep.mubr.bf16.mxu0 0
  %705 = vmatmul.mubr.bf16.gmra.mxu0 %v248
  %v706 = vpop.f32.mrf.mxu0
  %v707 = vadd.f32 0.0, %v706
  %v708 = vpop.f32.mrf.mxu0
  %v709 = vpop.f32.mrf.mxu0
  %v710 = vadd.f32 0.0, %v709
  %v711 = vpop.f32.mrf.mxu0
  %712 = vmatprep.mubr.bf16.mxu0 0
  %713 = vmatmul.mubr.bf16.gmra.mxu0 %v251
  %v714 = vpop.f32.mrf.mxu0
  %v715 = vadd.f32 0.0, %v714
  %v716 = vpop.f32.mrf.mxu0
  %v717 = vpop.f32.mrf.mxu0
  %v718 = vadd.f32 0.0, %v717
  %v719 = vpop.f32.mrf.mxu0
  %720 = vmatprep.mubr.bf16.mxu0 0
  %721 = vmatmul.mubr.bf16.gmra.mxu0 %v254
  %v722 = vpop.f32.mrf.mxu0
  %v723 = vadd.f32 0.0, %v722
  %v724 = vpop.f32.mrf.mxu0
  %v725 = vpop.f32.mrf.mxu0
  %v726 = vadd.f32 0.0, %v725
  %v727 = vpop.f32.mrf.mxu0
  %728 = vmatprep.mubr.bf16.mxu0 0
  %729 = vmatmul.mubr.bf16.gmra.mxu0 %v257
  %v730 = vpop.f32.mrf.mxu0
  %v731 = vadd.f32 0.0, %v730
  %v732 = vpop.f32.mrf.mxu0
  %v733 = vpop.f32.mrf.mxu0
  %v734 = vadd.f32 0.0, %v733
  %v735 = vpop.f32.mrf.mxu0
  %736 = vmatprep.mubr.bf16.mxu0 0
  %737 = vmatmul.mubr.bf16.gmra.mxu0 %v260
  %v738 = vpop.f32.mrf.mxu0
  %v739 = vadd.f32 0.0, %v738
  %v740 = vpop.f32.mrf.mxu0
  %v741 = vpop.f32.mrf.mxu0
  %v742 = vadd.f32 0.0, %v741
  %v743 = vpop.f32.mrf.mxu0
  %744 = vmatprep.mubr.bf16.mxu0 0
  %745 = vmatmul.mubr.bf16.gmra.mxu0 %v263
  %v746 = vpop.f32.mrf.mxu0
  %v747 = vadd.f32 0.0, %v746
  %v748 = vpop.f32.mrf.mxu0
  %v749 = vpop.f32.mrf.mxu0
  %v750 = vadd.f32 0.0, %v749
  %v751 = vpop.f32.mrf.mxu0
  %752 = vmatprep.mubr.bf16.mxu0 0
  %753 = vmatmul.mubr.bf16.gmra.mxu0 %v266
  %v754 = vpop.f32.mrf.mxu0
  %v755 = vadd.f32 0.0, %v754
  %v756 = vpop.f32.mrf.mxu0
  %v757 = vpop.f32.mrf.mxu0
  %v758 = vadd.f32 0.0, %v757
  %v759 = vpop.f32.mrf.mxu0
  %760 = vmatprep.mubr.bf16.mxu0 0
  %761 = vmatmul.mubr.bf16.gmra.mxu0 %v269
  %v762 = vpop.f32.mrf.mxu0
  %v763 = vadd.f32 0.0, %v762
  %v764 = vpop.f32.mrf.mxu0
  %v765 = vpop.f32.mrf.mxu0
  %v766 = vadd.f32 0.0, %v765
  %v767 = vpop.f32.mrf.mxu0
  %768 = vmatprep.mubr.bf16.mxu0 0
  %769 = vmatmul.mubr.bf16.gmra.mxu0 %v272
  %v770 = vpop.f32.mrf.mxu0
  %v771 = vadd.f32 0.0, %v770
  %v772 = vpop.f32.mrf.mxu0
  %v773 = vpop.f32.mrf.mxu0
  %v774 = vadd.f32 0.0, %v773
  %v775 = vpop.f32.mrf.mxu0
  %776 = vmatprep.mubr.bf16.mxu0 0
  %777 = vmatmul.mubr.bf16.gmra.mxu0 %v275
  %v778 = vpop.f32.mrf.mxu0
  %v779 = vadd.f32 0.0, %v778
  %v780 = vpop.f32.mrf.mxu0
  %v781 = vpop.f32.mrf.mxu0
  %v782 = vadd.f32 0.0, %v781
  %v783 = vpop.f32.mrf.mxu0
  %784 = vmatprep.mubr.bf16.mxu0 0
  %785 = vmatmul.mubr.bf16.gmra.mxu0 %v278
  %v786 = vpop.f32.mrf.mxu0
  %v787 = vadd.f32 0.0, %v786
  %v788 = vpop.f32.mrf.mxu0
  %v789 = vpop.f32.mrf.mxu0
  %v790 = vadd.f32 0.0, %v789
  %v791 = vpop.f32.mrf.mxu0
  %792 = vmatprep.mubr.bf16.mxu0 0
  %793 = vmatmul.mubr.bf16.gmra.mxu0 %v281
  %v794 = vpop.f32.mrf.mxu0
  %v795 = vadd.f32 0.0, %v794
  %v796 = vpop.f32.mrf.mxu0
  %v797 = vpop.f32.mrf.mxu0
  %v798 = vadd.f32 0.0, %v797
  %v799 = vpop.f32.mrf.mxu0
  %800 = vmatprep.mubr.bf16.mxu0 0
  %801 = vmatmul.mubr.bf16.gmra.mxu0 %v284
  %v802 = vpop.f32.mrf.mxu0
  %v803 = vadd.f32 0.0, %v802
  %v804 = vpop.f32.mrf.mxu0
  %v805 = vpop.f32.mrf.mxu0
  %v806 = vadd.f32 0.0, %v805
  %v807 = vpop.f32.mrf.mxu0
  %808 = vmatprep.mubr.bf16.mxu0 0
  %809 = vmatmul.mubr.bf16.gmra.mxu0 %v287
  %v810 = vpop.f32.mrf.mxu0
  %v811 = vadd.f32 0.0, %v810
  %v812 = vpop.f32.mrf.mxu0
  %v813 = vpop.f32.mrf.mxu0
  %v814 = vadd.f32 0.0, %v813
  %v815 = vpop.f32.mrf.mxu0
  %816 = vmatprep.mubr.bf16.mxu0 0
  %817 = vmatmul.mubr.bf16.gmra.mxu0 %v290
  %v818 = vpop.f32.mrf.mxu0
  %v819 = vadd.f32 0.0, %v818
  %v820 = vpop.f32.mrf.mxu0
  %v821 = vpop.f32.mrf.mxu0
  %v822 = vadd.f32 0.0, %v821
  %v823 = vpop.f32.mrf.mxu0
  %824 = vdwg.mxu0
  %v825 = vpack.c.bf16 %v702, %v699
  %v826 = vpack.c.bf16 %v710, %v707
  %v827 = vpack.c.bf16 %v718, %v715
  %v828 = vpack.c.bf16 %v726, %v723
  %v829 = vpack.c.bf16 %v734, %v731
  %v830 = vpack.c.bf16 %v742, %v739
  %v831 = vpack.c.bf16 %v750, %v747
  %v832 = vpack.c.bf16 %v758, %v755
  %v833 = vpack.c.bf16 %v766, %v763
  %v834 = vpack.c.bf16 %v774, %v771
  %v835 = vpack.c.bf16 %v782, %v779
  %v836 = vpack.c.bf16 %v790, %v787
  %v837 = vpack.c.bf16 %v798, %v795
  %v838 = vpack.c.bf16 %v806, %v803
  %v839 = vpack.c.bf16 %v814, %v811
  %v840 = vpack.c.bf16 %v822, %v819
  %v857 = vunpack.c.l.b16 %v825
  %v858 = vunpack.c.h.b16 %v825
  %v859 = vunpack.c.l.b16 %v826
  %v860 = vunpack.c.h.b16 %v826
  %v861 = vunpack.c.l.b16 %v827
  %v862 = vunpack.c.h.b16 %v827
  %v863 = vunpack.c.l.b16 %v828
  %v864 = vunpack.c.h.b16 %v828
  %v865 = vunpack.c.l.b16 %v829
  %v866 = vunpack.c.h.b16 %v829
  %v867 = vunpack.c.l.b16 %v830
  %v868 = vunpack.c.h.b16 %v830
  %v869 = vunpack.c.l.b16 %v831
  %v870 = vunpack.c.h.b16 %v831
  %v871 = vunpack.c.l.b16 %v832
  %v872 = vunpack.c.h.b16 %v832
  %v873 = vunpack.c.l.b16 %v833
  %v874 = vunpack.c.h.b16 %v833
  %v875 = vunpack.c.l.b16 %v834
  %v876 = vunpack.c.h.b16 %v834
  %v877 = vunpack.c.l.b16 %v835
  %v878 = vunpack.c.h.b16 %v835
  %v879 = vunpack.c.l.b16 %v836
  %v880 = vunpack.c.h.b16 %v836
  %v881 = vunpack.c.l.b16 %v837
  %v882 = vunpack.c.h.b16 %v837
  %v883 = vunpack.c.l.b16 %v838
  %v884 = vunpack.c.h.b16 %v838
  %v885 = vunpack.c.l.b16 %v839
  %v886 = vunpack.c.h.b16 %v839
  %v887 = vunpack.c.l.b16 %v840
  %v888 = vunpack.c.h.b16 %v840
  %v889 = vpack.c.b16 %v857, %v857
  %v890 = vpack.c.b16 %v858, %v858
  %v891 = vpack.c.b16 %v859, %v859
  %v892 = vpack.c.b16 %v860, %v860
  %v893 = vpack.c.b16 %v861, %v861
  %v894 = vpack.c.b16 %v862, %v862
  %v895 = vpack.c.b16 %v863, %v863
  %v896 = vpack.c.b16 %v864, %v864
  %v897 = vpack.c.b16 %v865, %v865
  %v898 = vpack.c.b16 %v866, %v866
  %v899 = vpack.c.b16 %v867, %v867
  %v900 = vpack.c.b16 %v868, %v868
  %v901 = vpack.c.b16 %v869, %v869
  %v902 = vpack.c.b16 %v870, %v870
  %v903 = vpack.c.b16 %v871, %v871
  %v904 = vpack.c.b16 %v872, %v872
  %v905 = vpack.c.b16 %v873, %v873
  %v906 = vpack.c.b16 %v874, %v874
  %v907 = vpack.c.b16 %v875, %v875
  %v908 = vpack.c.b16 %v876, %v876
  %v909 = vpack.c.b16 %v877, %v877
  %v910 = vpack.c.b16 %v878, %v878
  %v911 = vpack.c.b16 %v879, %v879
  %v912 = vpack.c.b16 %v880, %v880
  %v913 = vpack.c.b16 %v881, %v881
  %v914 = vpack.c.b16 %v882, %v882
  %v915 = vpack.c.b16 %v883, %v883
  %v916 = vpack.c.b16 %v884, %v884
  %v917 = vpack.c.b16 %v885, %v885
  %v918 = vpack.c.b16 %v886, %v886
  %v919 = vpack.c.b16 %v887, %v887
  %v920 = vpack.c.b16 %v888, %v888
  %s953 = scalar_lea.vmem %s4, 128
  %954 = vst.msk [vmem:[%s953] sm:$0xf] %vm585, %v889
  %955 = vst.msk [vmem:[%s953 + $0x4] sm:$0xf] %vm585, %v890
  %956 = vst.msk [vmem:[%s953 + $0x8] sm:$0xf] %vm585, %v891
  %957 = vst.msk [vmem:[%s953 + $0xc] sm:$0xf] %vm585, %v892
  %958 = vst.msk [vmem:[%s953 + $0x10] sm:$0xf] %vm585, %v893
  %959 = vst.msk [vmem:[%s953 + $0x14] sm:$0xf] %vm585, %v894
  %960 = vst.msk [vmem:[%s953 + $0x18] sm:$0xf] %vm585, %v895
  %961 = vst.msk [vmem:[%s953 + $0x1c] sm:$0xf] %vm585, %v896
  %962 = vst.msk [vmem:[%s953 + $0x20] sm:$0xf] %vm585, %v897
  %963 = vst.msk [vmem:[%s953 + $0x24] sm:$0xf] %vm585, %v898
  %964 = vst.msk [vmem:[%s953 + $0x28] sm:$0xf] %vm585, %v899
  %965 = vst.msk [vmem:[%s953 + $0x2c] sm:$0xf] %vm585, %v900
  %966 = vst.msk [vmem:[%s953 + $0x30] sm:$0xf] %vm585, %v901
  %967 = vst.msk [vmem:[%s953 + $0x34] sm:$0xf] %vm585, %v902
  %968 = vst.msk [vmem:[%s953 + $0x38] sm:$0xf] %vm585, %v903
  %969 = vst.msk [vmem:[%s953 + $0x3c] sm:$0xf] %vm585, %v904
  %970 = vst.msk [vmem:[%s953 + $0x40] sm:$0xf] %vm585, %v905
  %971 = vst.msk [vmem:[%s953 + $0x44] sm:$0xf] %vm585, %v906
  %972 = vst.msk [vmem:[%s953 + $0x48] sm:$0xf] %vm585, %v907
  %973 = vst.msk [vmem:[%s953 + $0x4c] sm:$0xf] %vm585, %v908
  %974 = vst.msk [vmem:[%s953 + $0x50] sm:$0xf] %vm585, %v909
  %975 = vst.msk [vmem:[%s953 + $0x54] sm:$0xf] %vm585, %v910
  %976 = vst.msk [vmem:[%s953 + $0x58] sm:$0xf] %vm585, %v911
  %977 = vst.msk [vmem:[%s953 + $0x5c] sm:$0xf] %vm585, %v912
  %978 = vst.msk [vmem:[%s953 + $0x60] sm:$0xf] %vm585, %v913
  %979 = vst.msk [vmem:[%s953 + $0x64] sm:$0xf] %vm585, %v914
  %980 = vst.msk [vmem:[%s953 + $0x68] sm:$0xf] %vm585, %v915
  %981 = vst.msk [vmem:[%s953 + $0x6c] sm:$0xf] %vm585, %v916
  %982 = vst.msk [vmem:[%s953 + $0x70] sm:$0xf] %vm585, %v917
  %983 = vst.msk [vmem:[%s953 + $0x74] sm:$0xf] %vm585, %v918
  %984 = vst.msk [vmem:[%s953 + $0x78] sm:$0xf] %vm585, %v919
  %985 = vst.msk [vmem:[%s953 + $0x7c] sm:$0xf] %vm585, %v920
  %s986 = scalar_lea.vmem %s0, 4
  %v987 = vld [vmem:[%s986] sm:$0x3]
  %988 = vmatprep.subr.bf16.mxu0 0
  %989 = vmatpush1.bf16.msra.mxu0 %v113
  %990 = vmatprep.subr.bf16.mxu0 0
  %991 = vmatpush1.bf16.msra.mxu0 %v112
  %992 = vmatprep.subr.bf16.mxu0 0
  %993 = vmatpush1.bf16.msra.mxu0 %v111
  %994 = vmatprep.subr.bf16.mxu0 0
  %995 = vmatpush1.bf16.msra.mxu0 %v110
  %996 = vmatprep.subr.bf16.mxu0 0
  %997 = vmatpush1.bf16.msra.mxu0 %v109
  %998 = vmatprep.subr.bf16.mxu0 0
  %999 = vmatpush1.bf16.msra.mxu0 %v108
  %1000 = vmatprep.subr.bf16.mxu0 0
  %1001 = vmatpush1.bf16.msra.mxu0 %v107
  %1002 = vmatprep.subr.bf16.mxu0 0
  %1003 = vmatpush1.bf16.msra.mxu0 %v106
  %1004 = vmatprep.subr.bf16.mxu0 0
  %1005 = vmatpush2.bf16.msra.mxu0 0
  %1006 = vmatprep.subr.bf16.mxu0 0
  %1007 = vmatpush2.bf16.msra.mxu0 0
  %1008 = vmatprep.subr.bf16.mxu0 0
  %1009 = vmatpush2.bf16.msra.mxu0 0
  %1010 = vmatprep.subr.bf16.mxu0 0
  %1011 = vmatpush2.bf16.msra.mxu0 0
  %1012 = vmatprep.subr.bf16.mxu0 0
  %1013 = vmatpush2.bf16.msra.mxu0 0
  %1014 = vmatprep.subr.bf16.mxu0 0
  %1015 = vmatpush2.bf16.msra.mxu0 0
  %1016 = vmatprep.subr.bf16.mxu0 0
  %1017 = vmatpush2.bf16.msra.mxu0 0
  %1018 = vmatprep.subr.bf16.mxu0 0
  %1019 = vmatpush2.bf16.msra.mxu0 0
  %1020 = vmatprep.mubr.bf16.mxu0 0
  %1021 = vmatmul.mubr.bf16.gmra.mxu0 %v987
  %v1022 = vpop.f32.mrf.mxu0
  %v1023 = vadd.f32 %v72, %v1022
  %v1024 = vpop.f32.mrf.mxu0
  %v1025 = vpop.f32.mrf.mxu0
  %v1026 = vpop.f32.mrf.mxu0
  %1027 = vdwg.mxu0
  %v1028 = vpack.c.bf16 %v1023, %v1023
  %v1030 = vsel %vm292, %v1028, 0
  %1032 = vmatprep.subr.bf16.mxu0 0
  %1033 = vmatpush1.bf16.msra.mxu0 0
  %1034 = vmatprep.subr.bf16.mxu0 0
  %1035 = vmatpush1.bf16.msra.mxu0 0
  %1036 = vmatprep.subr.bf16.mxu0 0
  %1037 = vmatpush1.bf16.msra.mxu0 0
  %1038 = vmatprep.subr.bf16.mxu0 0
  %1039 = vmatpush1.bf16.msra.mxu0 0
  %1040 = vmatprep.subr.bf16.mxu0 0
  %1041 = vmatpush1.bf16.msra.mxu0 0
  %1042 = vmatprep.subr.bf16.mxu0 0
  %1043 = vmatpush1.bf16.msra.mxu0 0
  %1044 = vmatprep.subr.bf16.mxu0 0
  %1045 = vmatpush1.bf16.msra.mxu0 0
  %1046 = vmatprep.subr.bf16.mxu0 0
  %1047 = vmatpush1.bf16.msra.mxu0 %v1030
  %1048 = vmatprep.subr.bf16.mxu0 0
  %1049 = vmatpush2.bf16.msra.mxu0 0
  %1050 = vmatprep.subr.bf16.mxu0 0
  %1051 = vmatpush2.bf16.msra.mxu0 0
  %1052 = vmatprep.subr.bf16.mxu0 0
  %1053 = vmatpush2.bf16.msra.mxu0 0
  %1054 = vmatprep.subr.bf16.mxu0 0
  %1055 = vmatpush2.bf16.msra.mxu0 0
  %1056 = vmatprep.subr.bf16.mxu0 0
  %1057 = vmatpush2.bf16.msra.mxu0 0
  %1058 = vmatprep.subr.bf16.mxu0 0
  %1059 = vmatpush2.bf16.msra.mxu0 0
  %1060 = vmatprep.subr.bf16.mxu0 0
  %1061 = vmatpush2.bf16.msra.mxu0 0
  %1062 = vmatprep.subr.bf16.mxu0 0
  %1063 = vmatpush2.bf16.msra.mxu0 0
  %1064 = vmatprep.mubr.bf16.mxu0 0
  %1065 = vmatmul.mubr.bf16.gmra.mxu0 %v245
  %v1066 = vpop.f32.mrf.mxu0
  %v1067 = vadd.f32 0.0, %v1066
  %v1068 = vpop.f32.mrf.mxu0
  %v1069 = vpop.f32.mrf.mxu0
  %v1070 = vadd.f32 0.0, %v1069
  %v1071 = vpop.f32.mrf.mxu0
  %1072 = vmatprep.mubr.bf16.mxu0 0
  %1073 = vmatmul.mubr.bf16.gmra.mxu0 %v248
  %v1074 = vpop.f32.mrf.mxu0
  %v1075 = vadd.f32 0.0, %v1074
  %v1076 = vpop.f32.mrf.mxu0
  %v1077 = vpop.f32.mrf.mxu0
  %v1078 = vadd.f32 0.0, %v1077
  %v1079 = vpop.f32.mrf.mxu0
  %1080 = vmatprep.mubr.bf16.mxu0 0
  %1081 = vmatmul.mubr.bf16.gmra.mxu0 %v251
  %v1082 = vpop.f32.mrf.mxu0
  %v1083 = vadd.f32 0.0, %v1082
  %v1084 = vpop.f32.mrf.mxu0
  %v1085 = vpop.f32.mrf.mxu0
  %v1086 = vadd.f32 0.0, %v1085
  %v1087 = vpop.f32.mrf.mxu0
  %1088 = vmatprep.mubr.bf16.mxu0 0
  %1089 = vmatmul.mubr.bf16.gmra.mxu0 %v254
  %v1090 = vpop.f32.mrf.mxu0
  %v1091 = vadd.f32 0.0, %v1090
  %v1092 = vpop.f32.mrf.mxu0
  %v1093 = vpop.f32.mrf.mxu0
  %v1094 = vadd.f32 0.0, %v1093
  %v1095 = vpop.f32.mrf.mxu0
  %1096 = vmatprep.mubr.bf16.mxu0 0
  %1097 = vmatmul.mubr.bf16.gmra.mxu0 %v257
  %v1098 = vpop.f32.mrf.mxu0
  %v1099 = vadd.f32 0.0, %v1098
  %v1100 = vpop.f32.mrf.mxu0
  %v1101 = vpop.f32.mrf.mxu0
  %v1102 = vadd.f32 0.0, %v1101
  %v1103 = vpop.f32.mrf.mxu0
  %1104 = vmatprep.mubr.bf16.mxu0 0
  %1105 = vmatmul.mubr.bf16.gmra.mxu0 %v260
  %v1106 = vpop.f32.mrf.mxu0
  %v1107 = vadd.f32 0.0, %v1106
  %v1108 = vpop.f32.mrf.mxu0
  %v1109 = vpop.f32.mrf.mxu0
  %v1110 = vadd.f32 0.0, %v1109
  %v1111 = vpop.f32.mrf.mxu0
  %1112 = vmatprep.mubr.bf16.mxu0 0
  %1113 = vmatmul.mubr.bf16.gmra.mxu0 %v263
  %v1114 = vpop.f32.mrf.mxu0
  %v1115 = vadd.f32 0.0, %v1114
  %v1116 = vpop.f32.mrf.mxu0
  %v1117 = vpop.f32.mrf.mxu0
  %v1118 = vadd.f32 0.0, %v1117
  %v1119 = vpop.f32.mrf.mxu0
  %1120 = vmatprep.mubr.bf16.mxu0 0
  %1121 = vmatmul.mubr.bf16.gmra.mxu0 %v266
  %v1122 = vpop.f32.mrf.mxu0
  %v1123 = vadd.f32 0.0, %v1122
  %v1124 = vpop.f32.mrf.mxu0
  %v1125 = vpop.f32.mrf.mxu0
  %v1126 = vadd.f32 0.0, %v1125
  %v1127 = vpop.f32.mrf.mxu0
  %1128 = vmatprep.mubr.bf16.mxu0 0
  %1129 = vmatmul.mubr.bf16.gmra.mxu0 %v269
  %v1130 = vpop.f32.mrf.mxu0
  %v1131 = vadd.f32 0.0, %v1130
  %v1132 = vpop.f32.mrf.mxu0
  %v1133 = vpop.f32.mrf.mxu0
  %v1134 = vadd.f32 0.0, %v1133
  %v1135 = vpop.f32.mrf.mxu0
  %1136 = vmatprep.mubr.bf16.mxu0 0
  %1137 = vmatmul.mubr.bf16.gmra.mxu0 %v272
  %v1138 = vpop.f32.mrf.mxu0
  %v1139 = vadd.f32 0.0, %v1138
  %v1140 = vpop.f32.mrf.mxu0
  %v1141 = vpop.f32.mrf.mxu0
  %v1142 = vadd.f32 0.0, %v1141
  %v1143 = vpop.f32.mrf.mxu0
  %1144 = vmatprep.mubr.bf16.mxu0 0
  %1145 = vmatmul.mubr.bf16.gmra.mxu0 %v275
  %v1146 = vpop.f32.mrf.mxu0
  %v1147 = vadd.f32 0.0, %v1146
  %v1148 = vpop.f32.mrf.mxu0
  %v1149 = vpop.f32.mrf.mxu0
  %v1150 = vadd.f32 0.0, %v1149
  %v1151 = vpop.f32.mrf.mxu0
  %1152 = vmatprep.mubr.bf16.mxu0 0
  %1153 = vmatmul.mubr.bf16.gmra.mxu0 %v278
  %v1154 = vpop.f32.mrf.mxu0
  %v1155 = vadd.f32 0.0, %v1154
  %v1156 = vpop.f32.mrf.mxu0
  %v1157 = vpop.f32.mrf.mxu0
  %v1158 = vadd.f32 0.0, %v1157
  %v1159 = vpop.f32.mrf.mxu0
  %1160 = vmatprep.mubr.bf16.mxu0 0
  %1161 = vmatmul.mubr.bf16.gmra.mxu0 %v281
  %v1162 = vpop.f32.mrf.mxu0
  %v1163 = vadd.f32 0.0, %v1162
  %v1164 = vpop.f32.mrf.mxu0
  %v1165 = vpop.f32.mrf.mxu0
  %v1166 = vadd.f32 0.0, %v1165
  %v1167 = vpop.f32.mrf.mxu0
  %1168 = vmatprep.mubr.bf16.mxu0 0
  %1169 = vmatmul.mubr.bf16.gmra.mxu0 %v284
  %v1170 = vpop.f32.mrf.mxu0
  %v1171 = vadd.f32 0.0, %v1170
  %v1172 = vpop.f32.mrf.mxu0
  %v1173 = vpop.f32.mrf.mxu0
  %v1174 = vadd.f32 0.0, %v1173
  %v1175 = vpop.f32.mrf.mxu0
  %1176 = vmatprep.mubr.bf16.mxu0 0
  %1177 = vmatmul.mubr.bf16.gmra.mxu0 %v287
  %v1178 = vpop.f32.mrf.mxu0
  %v1179 = vadd.f32 0.0, %v1178
  %v1180 = vpop.f32.mrf.mxu0
  %v1181 = vpop.f32.mrf.mxu0
  %v1182 = vadd.f32 0.0, %v1181
  %v1183 = vpop.f32.mrf.mxu0
  %1184 = vmatprep.mubr.bf16.mxu0 0
  %1185 = vmatmul.mubr.bf16.gmra.mxu0 %v290
  %v1186 = vpop.f32.mrf.mxu0
  %v1187 = vadd.f32 0.0, %v1186
  %v1188 = vpop.f32.mrf.mxu0
  %v1189 = vpop.f32.mrf.mxu0
  %v1190 = vadd.f32 0.0, %v1189
  %v1191 = vpop.f32.mrf.mxu0
  %1192 = vdwg.mxu0
  %v1193 = vpack.c.bf16 %v1070, %v1067
  %v1194 = vpack.c.bf16 %v1078, %v1075
  %v1195 = vpack.c.bf16 %v1086, %v1083
  %v1196 = vpack.c.bf16 %v1094, %v1091
  %v1197 = vpack.c.bf16 %v1102, %v1099
  %v1198 = vpack.c.bf16 %v1110, %v1107
  %v1199 = vpack.c.bf16 %v1118, %v1115
  %v1200 = vpack.c.bf16 %v1126, %v1123
  %v1201 = vpack.c.bf16 %v1134, %v1131
  %v1202 = vpack.c.bf16 %v1142, %v1139
  %v1203 = vpack.c.bf16 %v1150, %v1147
  %v1204 = vpack.c.bf16 %v1158, %v1155
  %v1205 = vpack.c.bf16 %v1166, %v1163
  %v1206 = vpack.c.bf16 %v1174, %v1171
  %v1207 = vpack.c.bf16 %v1182, %v1179
  %v1208 = vpack.c.bf16 %v1190, %v1187
  %v1225 = vunpack.c.l.b16 %v1193
  %v1226 = vunpack.c.h.b16 %v1193
  %v1227 = vunpack.c.l.b16 %v1194
  %v1228 = vunpack.c.h.b16 %v1194
  %v1229 = vunpack.c.l.b16 %v1195
  %v1230 = vunpack.c.h.b16 %v1195
  %v1231 = vunpack.c.l.b16 %v1196
  %v1232 = vunpack.c.h.b16 %v1196
  %v1233 = vunpack.c.l.b16 %v1197
  %v1234 = vunpack.c.h.b16 %v1197
  %v1235 = vunpack.c.l.b16 %v1198
  %v1236 = vunpack.c.h.b16 %v1198
  %v1237 = vunpack.c.l.b16 %v1199
  %v1238 = vunpack.c.h.b16 %v1199
  %v1239 = vunpack.c.l.b16 %v1200
  %v1240 = vunpack.c.h.b16 %v1200
  %v1241 = vunpack.c.l.b16 %v1201
  %v1242 = vunpack.c.h.b16 %v1201
  %v1243 = vunpack.c.l.b16 %v1202
  %v1244 = vunpack.c.h.b16 %v1202
  %v1245 = vunpack.c.l.b16 %v1203
  %v1246 = vunpack.c.h.b16 %v1203
  %v1247 = vunpack.c.l.b16 %v1204
  %v1248 = vunpack.c.h.b16 %v1204
  %v1249 = vunpack.c.l.b16 %v1205
  %v1250 = vunpack.c.h.b16 %v1205
  %v1251 = vunpack.c.l.b16 %v1206
  %v1252 = vunpack.c.h.b16 %v1206
  %v1253 = vunpack.c.l.b16 %v1207
  %v1254 = vunpack.c.h.b16 %v1207
  %v1255 = vunpack.c.l.b16 %v1208
  %v1256 = vunpack.c.h.b16 %v1208
  %v1257 = vpack.c.b16 %v1225, %v1225
  %v1258 = vpack.c.b16 %v1226, %v1226
  %v1259 = vpack.c.b16 %v1227, %v1227
  %v1260 = vpack.c.b16 %v1228, %v1228
  %v1261 = vpack.c.b16 %v1229, %v1229
  %v1262 = vpack.c.b16 %v1230, %v1230
  %v1263 = vpack.c.b16 %v1231, %v1231
  %v1264 = vpack.c.b16 %v1232, %v1232
  %v1265 = vpack.c.b16 %v1233, %v1233
  %v1266 = vpack.c.b16 %v1234, %v1234
  %v1267 = vpack.c.b16 %v1235, %v1235
  %v1268 = vpack.c.b16 %v1236, %v1236
  %v1269 = vpack.c.b16 %v1237, %v1237
  %v1270 = vpack.c.b16 %v1238, %v1238
  %v1271 = vpack.c.b16 %v1239, %v1239
  %v1272 = vpack.c.b16 %v1240, %v1240
  %v1273 = vpack.c.b16 %v1241, %v1241
  %v1274 = vpack.c.b16 %v1242, %v1242
  %v1275 = vpack.c.b16 %v1243, %v1243
  %v1276 = vpack.c.b16 %v1244, %v1244
  %v1277 = vpack.c.b16 %v1245, %v1245
  %v1278 = vpack.c.b16 %v1246, %v1246
  %v1279 = vpack.c.b16 %v1247, %v1247
  %v1280 = vpack.c.b16 %v1248, %v1248
  %v1281 = vpack.c.b16 %v1249, %v1249
  %v1282 = vpack.c.b16 %v1250, %v1250
  %v1283 = vpack.c.b16 %v1251, %v1251
  %v1284 = vpack.c.b16 %v1252, %v1252
  %v1285 = vpack.c.b16 %v1253, %v1253
  %v1286 = vpack.c.b16 %v1254, %v1254
  %v1287 = vpack.c.b16 %v1255, %v1255
  %v1288 = vpack.c.b16 %v1256, %v1256
  %s1321 = scalar_lea.vmem %s4, 256
  %1322 = vst.msk [vmem:[%s1321] sm:$0xf] %vm585, %v1257
  %1323 = vst.msk [vmem:[%s1321 + $0x4] sm:$0xf] %vm585, %v1258
  %1324 = vst.msk [vmem:[%s1321 + $0x8] sm:$0xf] %vm585, %v1259
  %1325 = vst.msk [vmem:[%s1321 + $0xc] sm:$0xf] %vm585, %v1260
  %1326 = vst.msk [vmem:[%s1321 + $0x10] sm:$0xf] %vm585, %v1261
  %1327 = vst.msk [vmem:[%s1321 + $0x14] sm:$0xf] %vm585, %v1262
  %1328 = vst.msk [vmem:[%s1321 + $0x18] sm:$0xf] %vm585, %v1263
  %1329 = vst.msk [vmem:[%s1321 + $0x1c] sm:$0xf] %vm585, %v1264
  %1330 = vst.msk [vmem:[%s1321 + $0x20] sm:$0xf] %vm585, %v1265
  %1331 = vst.msk [vmem:[%s1321 + $0x24] sm:$0xf] %vm585, %v1266
  %1332 = vst.msk [vmem:[%s1321 + $0x28] sm:$0xf] %vm585, %v1267
  %1333 = vst.msk [vmem:[%s1321 + $0x2c] sm:$0xf] %vm585, %v1268
  %1334 = vst.msk [vmem:[%s1321 + $0x30] sm:$0xf] %vm585, %v1269
  %1335 = vst.msk [vmem:[%s1321 + $0x34] sm:$0xf] %vm585, %v1270
  %1336 = vst.msk [vmem:[%s1321 + $0x38] sm:$0xf] %vm585, %v1271
  %1337 = vst.msk [vmem:[%s1321 + $0x3c] sm:$0xf] %vm585, %v1272
  %1338 = vst.msk [vmem:[%s1321 + $0x40] sm:$0xf] %vm585, %v1273
  %1339 = vst.msk [vmem:[%s1321 + $0x44] sm:$0xf] %vm585, %v1274
  %1340 = vst.msk [vmem:[%s1321 + $0x48] sm:$0xf] %vm585, %v1275
  %1341 = vst.msk [vmem:[%s1321 + $0x4c] sm:$0xf] %vm585, %v1276
  %1342 = vst.msk [vmem:[%s1321 + $0x50] sm:$0xf] %vm585, %v1277
  %1343 = vst.msk [vmem:[%s1321 + $0x54] sm:$0xf] %vm585, %v1278
  %1344 = vst.msk [vmem:[%s1321 + $0x58] sm:$0xf] %vm585, %v1279
  %1345 = vst.msk [vmem:[%s1321 + $0x5c] sm:$0xf] %vm585, %v1280
  %1346 = vst.msk [vmem:[%s1321 + $0x60] sm:$0xf] %vm585, %v1281
  %1347 = vst.msk [vmem:[%s1321 + $0x64] sm:$0xf] %vm585, %v1282
  %1348 = vst.msk [vmem:[%s1321 + $0x68] sm:$0xf] %vm585, %v1283
  %1349 = vst.msk [vmem:[%s1321 + $0x6c] sm:$0xf] %vm585, %v1284
  %1350 = vst.msk [vmem:[%s1321 + $0x70] sm:$0xf] %vm585, %v1285
  %1351 = vst.msk [vmem:[%s1321 + $0x74] sm:$0xf] %vm585, %v1286
  %1352 = vst.msk [vmem:[%s1321 + $0x78] sm:$0xf] %vm585, %v1287
  %1353 = vst.msk [vmem:[%s1321 + $0x7c] sm:$0xf] %vm585, %v1288
  %s1354 = scalar_lea.vmem %s0, 6
  %v1355 = vld [vmem:[%s1354] sm:$0x3]
  %1356 = vmatprep.subr.bf16.mxu0 0
  %1357 = vmatpush1.bf16.msra.mxu0 %v113
  %1358 = vmatprep.subr.bf16.mxu0 0
  %1359 = vmatpush1.bf16.msra.mxu0 %v112
  %1360 = vmatprep.subr.bf16.mxu0 0
  %1361 = vmatpush1.bf16.msra.mxu0 %v111
  %1362 = vmatprep.subr.bf16.mxu0 0
  %1363 = vmatpush1.bf16.msra.mxu0 %v110
  %1364 = vmatprep.subr.bf16.mxu0 0
  %1365 = vmatpush1.bf16.msra.mxu0 %v109
  %1366 = vmatprep.subr.bf16.mxu0 0
  %1367 = vmatpush1.bf16.msra.mxu0 %v108
  %1368 = vmatprep.subr.bf16.mxu0 0
  %1369 = vmatpush1.bf16.msra.mxu0 %v107
  %1370 = vmatprep.subr.bf16.mxu0 0
  %1371 = vmatpush1.bf16.msra.mxu0 %v106
  %1372 = vmatprep.subr.bf16.mxu0 0
  %1373 = vmatpush2.bf16.msra.mxu0 0
  %1374 = vmatprep.subr.bf16.mxu0 0
  %1375 = vmatpush2.bf16.msra.mxu0 0
  %1376 = vmatprep.subr.bf16.mxu0 0
  %1377 = vmatpush2.bf16.msra.mxu0 0
  %1378 = vmatprep.subr.bf16.mxu0 0
  %1379 = vmatpush2.bf16.msra.mxu0 0
  %1380 = vmatprep.subr.bf16.mxu0 0
  %1381 = vmatpush2.bf16.msra.mxu0 0
  %1382 = vmatprep.subr.bf16.mxu0 0
  %1383 = vmatpush2.bf16.msra.mxu0 0
  %1384 = vmatprep.subr.bf16.mxu0 0
  %1385 = vmatpush2.bf16.msra.mxu0 0
  %1386 = vmatprep.subr.bf16.mxu0 0
  %1387 = vmatpush2.bf16.msra.mxu0 0
  %1388 = vmatprep.mubr.bf16.mxu0 0
  %1389 = vmatmul.mubr.bf16.gmra.mxu0 %v1355
  %v1390 = vpop.f32.mrf.mxu0
  %v1391 = vadd.f32 %v72, %v1390
  %v1392 = vpop.f32.mrf.mxu0
  %v1393 = vpop.f32.mrf.mxu0
  %v1394 = vpop.f32.mrf.mxu0
  %1395 = vdwg.mxu0
  %v1396 = vpack.c.bf16 %v1391, %v1391
  %v1398 = vsel %vm292, %v1396, 0
  %1400 = vmatprep.subr.bf16.mxu0 0
  %1401 = vmatpush1.bf16.msra.mxu0 0
  %1402 = vmatprep.subr.bf16.mxu0 0
  %1403 = vmatpush1.bf16.msra.mxu0 0
  %1404 = vmatprep.subr.bf16.mxu0 0
  %1405 = vmatpush1.bf16.msra.mxu0 0
  %1406 = vmatprep.subr.bf16.mxu0 0
  %1407 = vmatpush1.bf16.msra.mxu0 0
  %1408 = vmatprep.subr.bf16.mxu0 0
  %1409 = vmatpush1.bf16.msra.mxu0 0
  %1410 = vmatprep.subr.bf16.mxu0 0
  %1411 = vmatpush1.bf16.msra.mxu0 0
  %1412 = vmatprep.subr.bf16.mxu0 0
  %1413 = vmatpush1.bf16.msra.mxu0 0
  %1414 = vmatprep.subr.bf16.mxu0 0
  %1415 = vmatpush1.bf16.msra.mxu0 %v1398
  %1416 = vmatprep.subr.bf16.mxu0 0
  %1417 = vmatpush2.bf16.msra.mxu0 0
  %1418 = vmatprep.subr.bf16.mxu0 0
  %1419 = vmatpush2.bf16.msra.mxu0 0
  %1420 = vmatprep.subr.bf16.mxu0 0
  %1421 = vmatpush2.bf16.msra.mxu0 0
  %1422 = vmatprep.subr.bf16.mxu0 0
  %1423 = vmatpush2.bf16.msra.mxu0 0
  %1424 = vmatprep.subr.bf16.mxu0 0
  %1425 = vmatpush2.bf16.msra.mxu0 0
  %1426 = vmatprep.subr.bf16.mxu0 0
  %1427 = vmatpush2.bf16.msra.mxu0 0
  %1428 = vmatprep.subr.bf16.mxu0 0
  %1429 = vmatpush2.bf16.msra.mxu0 0
  %1430 = vmatprep.subr.bf16.mxu0 0
  %1431 = vmatpush2.bf16.msra.mxu0 0
  %1432 = vmatprep.mubr.bf16.mxu0 0
  %1433 = vmatmul.mubr.bf16.gmra.mxu0 %v245
  %v1434 = vpop.f32.mrf.mxu0
  %v1435 = vadd.f32 0.0, %v1434
  %v1436 = vpop.f32.mrf.mxu0
  %v1437 = vpop.f32.mrf.mxu0
  %v1438 = vadd.f32 0.0, %v1437
  %v1439 = vpop.f32.mrf.mxu0
  %1440 = vmatprep.mubr.bf16.mxu0 0
  %1441 = vmatmul.mubr.bf16.gmra.mxu0 %v248
  %v1442 = vpop.f32.mrf.mxu0
  %v1443 = vadd.f32 0.0, %v1442
  %v1444 = vpop.f32.mrf.mxu0
  %v1445 = vpop.f32.mrf.mxu0
  %v1446 = vadd.f32 0.0, %v1445
  %v1447 = vpop.f32.mrf.mxu0
  %1448 = vmatprep.mubr.bf16.mxu0 0
  %1449 = vmatmul.mubr.bf16.gmra.mxu0 %v251
  %v1450 = vpop.f32.mrf.mxu0
  %v1451 = vadd.f32 0.0, %v1450
  %v1452 = vpop.f32.mrf.mxu0
  %v1453 = vpop.f32.mrf.mxu0
  %v1454 = vadd.f32 0.0, %v1453
  %v1455 = vpop.f32.mrf.mxu0
  %1456 = vmatprep.mubr.bf16.mxu0 0
  %1457 = vmatmul.mubr.bf16.gmra.mxu0 %v254
  %v1458 = vpop.f32.mrf.mxu0
  %v1459 = vadd.f32 0.0, %v1458
  %v1460 = vpop.f32.mrf.mxu0
  %v1461 = vpop.f32.mrf.mxu0
  %v1462 = vadd.f32 0.0, %v1461
  %v1463 = vpop.f32.mrf.mxu0
  %1464 = vmatprep.mubr.bf16.mxu0 0
  %1465 = vmatmul.mubr.bf16.gmra.mxu0 %v257
  %v1466 = vpop.f32.mrf.mxu0
  %v1467 = vadd.f32 0.0, %v1466
  %v1468 = vpop.f32.mrf.mxu0
  %v1469 = vpop.f32.mrf.mxu0
  %v1470 = vadd.f32 0.0, %v1469
  %v1471 = vpop.f32.mrf.mxu0
  %1472 = vmatprep.mubr.bf16.mxu0 0
  %1473 = vmatmul.mubr.bf16.gmra.mxu0 %v260
  %v1474 = vpop.f32.mrf.mxu0
  %v1475 = vadd.f32 0.0, %v1474
  %v1476 = vpop.f32.mrf.mxu0
  %v1477 = vpop.f32.mrf.mxu0
  %v1478 = vadd.f32 0.0, %v1477
  %v1479 = vpop.f32.mrf.mxu0
  %1480 = vmatprep.mubr.bf16.mxu0 0
  %1481 = vmatmul.mubr.bf16.gmra.mxu0 %v263
  %v1482 = vpop.f32.mrf.mxu0
  %v1483 = vadd.f32 0.0, %v1482
  %v1484 = vpop.f32.mrf.mxu0
  %v1485 = vpop.f32.mrf.mxu0
  %v1486 = vadd.f32 0.0, %v1485
  %v1487 = vpop.f32.mrf.mxu0
  %1488 = vmatprep.mubr.bf16.mxu0 0
  %1489 = vmatmul.mubr.bf16.gmra.mxu0 %v266
  %v1490 = vpop.f32.mrf.mxu0
  %v1491 = vadd.f32 0.0, %v1490
  %v1492 = vpop.f32.mrf.mxu0
  %v1493 = vpop.f32.mrf.mxu0
  %v1494 = vadd.f32 0.0, %v1493
  %v1495 = vpop.f32.mrf.mxu0
  %1496 = vmatprep.mubr.bf16.mxu0 0
  %1497 = vmatmul.mubr.bf16.gmra.mxu0 %v269
  %v1498 = vpop.f32.mrf.mxu0
  %v1499 = vadd.f32 0.0, %v1498
  %v1500 = vpop.f32.mrf.mxu0
  %v1501 = vpop.f32.mrf.mxu0
  %v1502 = vadd.f32 0.0, %v1501
  %v1503 = vpop.f32.mrf.mxu0
  %1504 = vmatprep.mubr.bf16.mxu0 0
  %1505 = vmatmul.mubr.bf16.gmra.mxu0 %v272
  %v1506 = vpop.f32.mrf.mxu0
  %v1507 = vadd.f32 0.0, %v1506
  %v1508 = vpop.f32.mrf.mxu0
  %v1509 = vpop.f32.mrf.mxu0
  %v1510 = vadd.f32 0.0, %v1509
  %v1511 = vpop.f32.mrf.mxu0
  %1512 = vmatprep.mubr.bf16.mxu0 0
  %1513 = vmatmul.mubr.bf16.gmra.mxu0 %v275
  %v1514 = vpop.f32.mrf.mxu0
  %v1515 = vadd.f32 0.0, %v1514
  %v1516 = vpop.f32.mrf.mxu0
  %v1517 = vpop.f32.mrf.mxu0
  %v1518 = vadd.f32 0.0, %v1517
  %v1519 = vpop.f32.mrf.mxu0
  %1520 = vmatprep.mubr.bf16.mxu0 0
  %1521 = vmatmul.mubr.bf16.gmra.mxu0 %v278
  %v1522 = vpop.f32.mrf.mxu0
  %v1523 = vadd.f32 0.0, %v1522
  %v1524 = vpop.f32.mrf.mxu0
  %v1525 = vpop.f32.mrf.mxu0
  %v1526 = vadd.f32 0.0, %v1525
  %v1527 = vpop.f32.mrf.mxu0
  %1528 = vmatprep.mubr.bf16.mxu0 0
  %1529 = vmatmul.mubr.bf16.gmra.mxu0 %v281
  %v1530 = vpop.f32.mrf.mxu0
  %v1531 = vadd.f32 0.0, %v1530
  %v1532 = vpop.f32.mrf.mxu0
  %v1533 = vpop.f32.mrf.mxu0
  %v1534 = vadd.f32 0.0, %v1533
  %v1535 = vpop.f32.mrf.mxu0
  %1536 = vmatprep.mubr.bf16.mxu0 0
  %1537 = vmatmul.mubr.bf16.gmra.mxu0 %v284
  %v1538 = vpop.f32.mrf.mxu0
  %v1539 = vadd.f32 0.0, %v1538
  %v1540 = vpop.f32.mrf.mxu0
  %v1541 = vpop.f32.mrf.mxu0
  %v1542 = vadd.f32 0.0, %v1541
  %v1543 = vpop.f32.mrf.mxu0
  %1544 = vmatprep.mubr.bf16.mxu0 0
  %1545 = vmatmul.mubr.bf16.gmra.mxu0 %v287
  %v1546 = vpop.f32.mrf.mxu0
  %v1547 = vadd.f32 0.0, %v1546
  %v1548 = vpop.f32.mrf.mxu0
  %v1549 = vpop.f32.mrf.mxu0
  %v1550 = vadd.f32 0.0, %v1549
  %v1551 = vpop.f32.mrf.mxu0
  %1552 = vmatprep.mubr.bf16.mxu0 0
  %1553 = vmatmul.mubr.bf16.gmra.mxu0 %v290
  %v1554 = vpop.f32.mrf.mxu0
  %v1555 = vadd.f32 0.0, %v1554
  %v1556 = vpop.f32.mrf.mxu0
  %v1557 = vpop.f32.mrf.mxu0
  %v1558 = vadd.f32 0.0, %v1557
  %v1559 = vpop.f32.mrf.mxu0
  %1560 = vdwg.mxu0
  %v1561 = vpack.c.bf16 %v1438, %v1435
  %v1562 = vpack.c.bf16 %v1446, %v1443
  %v1563 = vpack.c.bf16 %v1454, %v1451
  %v1564 = vpack.c.bf16 %v1462, %v1459
  %v1565 = vpack.c.bf16 %v1470, %v1467
  %v1566 = vpack.c.bf16 %v1478, %v1475
  %v1567 = vpack.c.bf16 %v1486, %v1483
  %v1568 = vpack.c.bf16 %v1494, %v1491
  %v1569 = vpack.c.bf16 %v1502, %v1499
  %v1570 = vpack.c.bf16 %v1510, %v1507
  %v1571 = vpack.c.bf16 %v1518, %v1515
  %v1572 = vpack.c.bf16 %v1526, %v1523
  %v1573 = vpack.c.bf16 %v1534, %v1531
  %v1574 = vpack.c.bf16 %v1542, %v1539
  %v1575 = vpack.c.bf16 %v1550, %v1547
  %v1576 = vpack.c.bf16 %v1558, %v1555
  %v1593 = vunpack.c.l.b16 %v1561
  %v1594 = vunpack.c.h.b16 %v1561
  %v1595 = vunpack.c.l.b16 %v1562
  %v1596 = vunpack.c.h.b16 %v1562
  %v1597 = vunpack.c.l.b16 %v1563
  %v1598 = vunpack.c.h.b16 %v1563
  %v1599 = vunpack.c.l.b16 %v1564
  %v1600 = vunpack.c.h.b16 %v1564
  %v1601 = vunpack.c.l.b16 %v1565
  %v1602 = vunpack.c.h.b16 %v1565
  %v1603 = vunpack.c.l.b16 %v1566
  %v1604 = vunpack.c.h.b16 %v1566
  %v1605 = vunpack.c.l.b16 %v1567
  %v1606 = vunpack.c.h.b16 %v1567
  %v1607 = vunpack.c.l.b16 %v1568
  %v1608 = vunpack.c.h.b16 %v1568
  %v1609 = vunpack.c.l.b16 %v1569
  %v1610 = vunpack.c.h.b16 %v1569
  %v1611 = vunpack.c.l.b16 %v1570
  %v1612 = vunpack.c.h.b16 %v1570
  %v1613 = vunpack.c.l.b16 %v1571
  %v1614 = vunpack.c.h.b16 %v1571
  %v1615 = vunpack.c.l.b16 %v1572
  %v1616 = vunpack.c.h.b16 %v1572
  %v1617 = vunpack.c.l.b16 %v1573
  %v1618 = vunpack.c.h.b16 %v1573
  %v1619 = vunpack.c.l.b16 %v1574
  %v1620 = vunpack.c.h.b16 %v1574
  %v1621 = vunpack.c.l.b16 %v1575
  %v1622 = vunpack.c.h.b16 %v1575
  %v1623 = vunpack.c.l.b16 %v1576
  %v1624 = vunpack.c.h.b16 %v1576
  %v1625 = vpack.c.b16 %v1593, %v1593
  %v1626 = vpack.c.b16 %v1594, %v1594
  %v1627 = vpack.c.b16 %v1595, %v1595
  %v1628 = vpack.c.b16 %v1596, %v1596
  %v1629 = vpack.c.b16 %v1597, %v1597
  %v1630 = vpack.c.b16 %v1598, %v1598
  %v1631 = vpack.c.b16 %v1599, %v1599
  %v1632 = vpack.c.b16 %v1600, %v1600
  %v1633 = vpack.c.b16 %v1601, %v1601
  %v1634 = vpack.c.b16 %v1602, %v1602
  %v1635 = vpack.c.b16 %v1603, %v1603
  %v1636 = vpack.c.b16 %v1604, %v1604
  %v1637 = vpack.c.b16 %v1605, %v1605
  %v1638 = vpack.c.b16 %v1606, %v1606
  %v1639 = vpack.c.b16 %v1607, %v1607
  %v1640 = vpack.c.b16 %v1608, %v1608
  %v1641 = vpack.c.b16 %v1609, %v1609
  %v1642 = vpack.c.b16 %v1610, %v1610
  %v1643 = vpack.c.b16 %v1611, %v1611
  %v1644 = vpack.c.b16 %v1612, %v1612
  %v1645 = vpack.c.b16 %v1613, %v1613
  %v1646 = vpack.c.b16 %v1614, %v1614
  %v1647 = vpack.c.b16 %v1615, %v1615
  %v1648 = vpack.c.b16 %v1616, %v1616
  %v1649 = vpack.c.b16 %v1617, %v1617
  %v1650 = vpack.c.b16 %v1618, %v1618
  %v1651 = vpack.c.b16 %v1619, %v1619
  %v1652 = vpack.c.b16 %v1620, %v1620
  %v1653 = vpack.c.b16 %v1621, %v1621
  %v1654 = vpack.c.b16 %v1622, %v1622
  %v1655 = vpack.c.b16 %v1623, %v1623
  %v1656 = vpack.c.b16 %v1624, %v1624
  %s1689 = scalar_lea.vmem %s4, 384
  %1690 = vst.msk [vmem:[%s1689] sm:$0xf] %vm585, %v1625
  %1691 = vst.msk [vmem:[%s1689 + $0x4] sm:$0xf] %vm585, %v1626
  %1692 = vst.msk [vmem:[%s1689 + $0x8] sm:$0xf] %vm585, %v1627
  %1693 = vst.msk [vmem:[%s1689 + $0xc] sm:$0xf] %vm585, %v1628
  %1694 = vst.msk [vmem:[%s1689 + $0x10] sm:$0xf] %vm585, %v1629
  %1695 = vst.msk [vmem:[%s1689 + $0x14] sm:$0xf] %vm585, %v1630
  %1696 = vst.msk [vmem:[%s1689 + $0x18] sm:$0xf] %vm585, %v1631
  %1697 = vst.msk [vmem:[%s1689 + $0x1c] sm:$0xf] %vm585, %v1632
  %1698 = vst.msk [vmem:[%s1689 + $0x20] sm:$0xf] %vm585, %v1633
  %1699 = vst.msk [vmem:[%s1689 + $0x24] sm:$0xf] %vm585, %v1634
  %1700 = vst.msk [vmem:[%s1689 + $0x28] sm:$0xf] %vm585, %v1635
  %1701 = vst.msk [vmem:[%s1689 + $0x2c] sm:$0xf] %vm585, %v1636
  %1702 = vst.msk [vmem:[%s1689 + $0x30] sm:$0xf] %vm585, %v1637
  %1703 = vst.msk [vmem:[%s1689 + $0x34] sm:$0xf] %vm585, %v1638
  %1704 = vst.msk [vmem:[%s1689 + $0x38] sm:$0xf] %vm585, %v1639
  %1705 = vst.msk [vmem:[%s1689 + $0x3c] sm:$0xf] %vm585, %v1640
  %1706 = vst.msk [vmem:[%s1689 + $0x40] sm:$0xf] %vm585, %v1641
  %1707 = vst.msk [vmem:[%s1689 + $0x44] sm:$0xf] %vm585, %v1642
  %1708 = vst.msk [vmem:[%s1689 + $0x48] sm:$0xf] %vm585, %v1643
  %1709 = vst.msk [vmem:[%s1689 + $0x4c] sm:$0xf] %vm585, %v1644
  %1710 = vst.msk [vmem:[%s1689 + $0x50] sm:$0xf] %vm585, %v1645
  %1711 = vst.msk [vmem:[%s1689 + $0x54] sm:$0xf] %vm585, %v1646
  %1712 = vst.msk [vmem:[%s1689 + $0x58] sm:$0xf] %vm585, %v1647
  %1713 = vst.msk [vmem:[%s1689 + $0x5c] sm:$0xf] %vm585, %v1648
  %1714 = vst.msk [vmem:[%s1689 + $0x60] sm:$0xf] %vm585, %v1649
  %1715 = vst.msk [vmem:[%s1689 + $0x64] sm:$0xf] %vm585, %v1650
  %1716 = vst.msk [vmem:[%s1689 + $0x68] sm:$0xf] %vm585, %v1651
  %1717 = vst.msk [vmem:[%s1689 + $0x6c] sm:$0xf] %vm585, %v1652
  %1718 = vst.msk [vmem:[%s1689 + $0x70] sm:$0xf] %vm585, %v1653
  %1719 = vst.msk [vmem:[%s1689 + $0x74] sm:$0xf] %vm585, %v1654
  %1720 = vst.msk [vmem:[%s1689 + $0x78] sm:$0xf] %vm585, %v1655
  %1721 = vst.msk [vmem:[%s1689 + $0x7c] sm:$0xf] %vm585, %v1656
  // Predicated region
  $region18: #{_lambda_.13} parent=0 // pred_check
    _
  $region19: #{_lambda_.13} parent=0 // pred_check_branch
    %1723 = sbr.rel (0) target = $region21
  $region20: #{_lambda_.13} parent=0 // pred_region
    _
  $region21: #{_lambda_.13} parent=0 // pred_fallthru
    _
  // Predicated region
  $region22: #{_lambda_.13} parent=0 // pred_check
    _
  $region23: #{_lambda_.13} parent=0 // pred_check_branch
    %1725 = sbr.rel (0) target = $region25
  $region24: #{_lambda_.13} parent=0 // pred_region
    _
  $region25: #{_lambda_.13} parent=0 // pred_fallthru
    _

// kernel: _lambda_.17
$region0: #{_lambda_.17}
  #allocation0 [shape = 'u32[]', space=smem, size = 0x4, offset = 0x4, fixed_abs, tag = 'smem constant byte address 0x4 - core index']
  #allocation1 [shape = 'u32[144,128]{1,0:T(1,128)}', space=vmem, size = 0x12000, scoped, tag = 'internal scratch']
  %s0 = inlined_call_operand.vmem [shape: bf16[1024,128], index: 0, kind: input, shape index: {}]
  %s1 = inlined_call_operand.vmem [shape: bf16[128,32], index: 1, kind: input, shape index: {}]
  %s2 = inlined_call_operand.vmem [shape: f32[1,32], index: 2, kind: input, shape index: {}]
  %s3 = inlined_call_operand.vmem [shape: f32[1,32], index: 3, kind: input, shape index: {}]
  %s4 = inlined_call_operand.vmem [shape: bf16[32,128], index: 4, kind: input, shape index: {}]
  %s5 = inlined_call_operand.vmem [shape: f32[1,128], index: 5, kind: input, shape index: {}]
  %s6 = inlined_call_operand.vmem [shape: f32[1024,128], index: 6, kind: output, shape index: {}]
  %s7 = sld [smem:[#allocation0]]
  $region57: #{_lambda_.17} parent=0
    _
  %s9 = ssub.s32 1, %s7
  %s10 = scalar_select 0, %s9, %s7
  loop: start=0, step=1, limit=4
  $region2: #{_lambda_.17} parent=0 // loop_pre_header
    _
  $region3: #{_lambda_.17} parent=0 // loop_header
    %s12 = sphi 0, %s16
    %p13 = scmp.ge.s32.totalorder %s12, 4
    %s22 = sphi 0, %s24
    %s25 = sphi 0, %s22
    %s26 = sphi 0, %s25
    %s42 = sphi 0, %s26
    %s46 = sphi 0, %s46
    %s48 = sphi 0, %s46
    %s49 = sphi 0, %s48
    %s63 = sphi 0, %s49
    %s67 = sphi 0, %s67
    %s69 = sphi 0, %s67
    %s70 = sphi 0, %s69
    %s84 = sphi 0, %s70
    %s88 = sphi 0, %s88
    %s90 = sphi 0, %s88
    %s91 = sphi 0, %s90
    %s105 = sphi 0, %s91
    %s109 = sphi 0, %s109
    %s111 = sphi 0, %s109
    %s112 = sphi 0, %s111
    %s126 = sphi 0, %s112
    %s130 = sphi 0, %s130
    %s132 = sphi 0, %s130
    %s133 = sphi 0, %s132
    %s147 = sphi 0, %s133
    %s153 = sphi 0, %s155
    %s156 = sphi 0, %s153
    %s157 = sphi 0, %s156
    %s173 = sphi 0, %s157
  $region4: #{_lambda_.17} parent=0 // loop_header_branch
    %15 = sbr.rel (%p13) target = $region8
  $region5: #{_lambda_.17} parent=0 // loop_body
    %s17 = ssub.s32 %s12, 1
    %s18 = ssub.s32 %s12, 2
    %s19 = sadd.s32 %s12, 1
    %s20 = ssub.s32 %s12, %s19
    %p21 = scmp.eq.s32.totalorder %s20, 0
    %s23 = sadd.s32 %s22, 1
    %s24 = scalar_select %p21, %s22, %s23
    %p27 = pneg %p21
    %p28 = scmp.eq.s32.totalorder %s12, 1
    %p29 = por %p27, %p28
    %p30 = scmp.ne.s32.totalorder %s22, %s25
    %p31 = scmp.eq.s32.totalorder %s12, 0
    %p32 = por %p30, %p31
    %p33 = scmp.ne.s32.totalorder %s22, %s25
    %p34 = scmp.eq.s32.totalorder %s17, 1
    %p35 = por %p33, %p34
    %p36 = scmp.ne.s32.totalorder %s25, %s26
    %p37 = scmp.eq.s32.totalorder %s17, 0
    %p38 = por %p36, %p37
    %p39 = scmp.ne.s32.totalorder %s25, %s26
    %p40 = scmp.eq.s32.totalorder %s18, 1
    %p41 = por %p39, %p40
    %p43 = scmp.ne.s32.totalorder %s26, %s42
    %p44 = scmp.eq.s32.totalorder %s18, 0
    %p45 = por %p43, %p44
    %s47 = sadd.s32 %s46, 1
    %p50 = scmp.eq.s32.totalorder %s12, 1
    %p51 = scmp.ne.s32.totalorder %s46, %s48
    %p52 = scmp.eq.s32.totalorder %s12, 0
    %p53 = por %p51, %p52
    %p54 = scmp.ne.s32.totalorder %s46, %s48
    %p55 = scmp.eq.s32.totalorder %s17, 1
    %p56 = por %p54, %p55
    %p57 = scmp.ne.s32.totalorder %s48, %s49
    %p58 = scmp.eq.s32.totalorder %s17, 0
    %p59 = por %p57, %p58
    %p60 = scmp.ne.s32.totalorder %s48, %s49
    %p61 = scmp.eq.s32.totalorder %s18, 1
    %p62 = por %p60, %p61
    %p64 = scmp.ne.s32.totalorder %s49, %s63
    %p65 = scmp.eq.s32.totalorder %s18, 0
    %p66 = por %p64, %p65
    %s68 = sadd.s32 %s67, 1
    %p71 = scmp.eq.s32.totalorder %s12, 1
    %p72 = scmp.ne.s32.totalorder %s67, %s69
    %p73 = scmp.eq.s32.totalorder %s12, 0
    %p74 = por %p72, %p73
    %p75 = scmp.ne.s32.totalorder %s67, %s69
    %p76 = scmp.eq.s32.totalorder %s17, 1
    %p77 = por %p75, %p76
    %p78 = scmp.ne.s32.totalorder %s69, %s70
    %p79 = scmp.eq.s32.totalorder %s17, 0
    %p80 = por %p78, %p79
    %p81 = scmp.ne.s32.totalorder %s69, %s70
    %p82 = scmp.eq.s32.totalorder %s18, 1
    %p83 = por %p81, %p82
    %p85 = scmp.ne.s32.totalorder %s70, %s84
    %p86 = scmp.eq.s32.totalorder %s18, 0
    %p87 = por %p85, %p86
    %s89 = sadd.s32 %s88, 1
    %p92 = scmp.eq.s32.totalorder %s12, 1
    %p93 = scmp.ne.s32.totalorder %s88, %s90
    %p94 = scmp.eq.s32.totalorder %s12, 0
    %p95 = por %p93, %p94
    %p96 = scmp.ne.s32.totalorder %s88, %s90
    %p97 = scmp.eq.s32.totalorder %s17, 1
    %p98 = por %p96, %p97
    %p99 = scmp.ne.s32.totalorder %s90, %s91
    %p100 = scmp.eq.s32.totalorder %s17, 0
    %p101 = por %p99, %p100
    %p102 = scmp.ne.s32.totalorder %s90, %s91
    %p103 = scmp.eq.s32.totalorder %s18, 1
    %p104 = por %p102, %p103
    %p106 = scmp.ne.s32.totalorder %s91, %s105
    %p107 = scmp.eq.s32.totalorder %s18, 0
    %p108 = por %p106, %p107
    %s110 = sadd.s32 %s109, 1
    %p113 = scmp.eq.s32.totalorder %s12, 1
    %p114 = scmp.ne.s32.totalorder %s109, %s111
    %p115 = scmp.eq.s32.totalorder %s12, 0
    %p116 = por %p114, %p115
    %p117 = scmp.ne.s32.totalorder %s109, %s111
    %p118 = scmp.eq.s32.totalorder %s17, 1
    %p119 = por %p117, %p118
    %p120 = scmp.ne.s32.totalorder %s111, %s112
    %p121 = scmp.eq.s32.totalorder %s17, 0
    %p122 = por %p120, %p121
    %p123 = scmp.ne.s32.totalorder %s111, %s112
    %p124 = scmp.eq.s32.totalorder %s18, 1
    %p125 = por %p123, %p124
    %p127 = scmp.ne.s32.totalorder %s112, %s126
    %p128 = scmp.eq.s32.totalorder %s18, 0
    %p129 = por %p127, %p128
    %s131 = sadd.s32 %s130, 1
    %p134 = scmp.eq.s32.totalorder %s12, 1
    %p135 = scmp.ne.s32.totalorder %s130, %s132
    %p136 = scmp.eq.s32.totalorder %s12, 0
    %p137 = por %p135, %p136
    %p138 = scmp.ne.s32.totalorder %s130, %s132
    %p139 = scmp.eq.s32.totalorder %s17, 1
    %p140 = por %p138, %p139
    %p141 = scmp.ne.s32.totalorder %s132, %s133
    %p142 = scmp.eq.s32.totalorder %s17, 0
    %p143 = por %p141, %p142
    %p144 = scmp.ne.s32.totalorder %s132, %s133
    %p145 = scmp.eq.s32.totalorder %s18, 1
    %p146 = por %p144, %p145
    %p148 = scmp.ne.s32.totalorder %s133, %s147
    %p149 = scmp.eq.s32.totalorder %s18, 0
    %p150 = por %p148, %p149
    %s151 = ssub.s32 %s12, %s19
    %p152 = scmp.eq.s32.totalorder %s151, 0
    %s154 = sadd.s32 %s153, 1
    %s155 = scalar_select %p152, %s153, %s154
    %p158 = pneg %p152
    %p159 = scmp.eq.s32.totalorder %s12, 1
    %p160 = por %p158, %p159
    %p161 = scmp.ne.s32.totalorder %s153, %s156
    %p162 = scmp.eq.s32.totalorder %s12, 0
    %p163 = por %p161, %p162
    %p164 = scmp.ne.s32.totalorder %s153, %s156
    %p165 = scmp.eq.s32.totalorder %s17, 1
    %p166 = por %p164, %p165
    %p167 = scmp.ne.s32.totalorder %s156, %s157
    %p168 = scmp.eq.s32.totalorder %s17, 0
    %p169 = por %p167, %p168
    %p170 = scmp.ne.s32.totalorder %s156, %s157
    %p171 = scmp.eq.s32.totalorder %s18, 1
    %p172 = por %p170, %p171
    %p174 = scmp.ne.s32.totalorder %s157, %s173
    %p175 = scmp.eq.s32.totalorder %s18, 0
    %p176 = por %p174, %p175
    %p177 = scmp.le.s32.totalorder 1, %s12
    %p178 = scmp.lt.s32.totalorder %s12, 3
    %p179 = pnand %p177, %p178
    %p180 = pneg %p179
    // Predicated region
    $region9: #{_lambda_.17} parent=5 // pred_check
      _
    $region10: #{_lambda_.17} parent=5 // pred_check_branch
      %182 = sbr.rel (%p179) target = $region12
    $region11: #{_lambda_.17} parent=5 // pred_region
      %s183 = ssub.s32 %s12, 1
      // Predicated region
      $region13: #{_lambda_.17} parent=11 // pred_check
        %p184 = pneg %p59
      $region14: #{_lambda_.17} parent=11 // pred_check_branch
        %186 = sbr.rel (%p184) target = $region16
      $region15: #{_lambda_.17} parent=11 // pred_region
        _
      $region16: #{_lambda_.17} parent=11 // pred_fallthru
        _
      // Predicated region
      $region17: #{_lambda_.17} parent=11 // pred_check
        %p187 = pneg %p80
      $region18: #{_lambda_.17} parent=11 // pred_check_branch
        %189 = sbr.rel (%p187) target = $region20
      $region19: #{_lambda_.17} parent=11 // pred_region
        _
      $region20: #{_lambda_.17} parent=11 // pred_fallthru
        _
      // Predicated region
      $region21: #{_lambda_.17} parent=11 // pred_check
        %p190 = pneg %p101
      $region22: #{_lambda_.17} parent=11 // pred_check_branch
        %192 = sbr.rel (%p190) target = $region24
      $region23: #{_lambda_.17} parent=11 // pred_region
        _
      $region24: #{_lambda_.17} parent=11 // pred_fallthru
        _
      // Predicated region
      $region25: #{_lambda_.17} parent=11 // pred_check
        %p193 = pneg %p122
      $region26: #{_lambda_.17} parent=11 // pred_check_branch
        %195 = sbr.rel (%p193) target = $region28
      $region27: #{_lambda_.17} parent=11 // pred_region
        _
      $region28: #{_lambda_.17} parent=11 // pred_fallthru
        _
      // Predicated region
      $region29: #{_lambda_.17} parent=11 // pred_check
        %p196 = pneg %p143
      $region30: #{_lambda_.17} parent=11 // pred_check_branch
        %198 = sbr.rel (%p196) target = $region32
      $region31: #{_lambda_.17} parent=11 // pred_region
        _
      $region32: #{_lambda_.17} parent=11 // pred_fallthru
        _
    $region12: #{_lambda_.17} parent=5 // pred_fallthru
      _
    %p199 = scmp.lt.s32.totalorder %s12, 2
    // Predicated region
    $region33: #{_lambda_.17} parent=5 // pred_check
      %p200 = pneg %p199
    $region34: #{_lambda_.17} parent=5 // pred_check_branch
      %202 = sbr.rel (%p200) target = $region36
    $region35: #{_lambda_.17} parent=5 // pred_region
      // Predicated region
      $region37: #{_lambda_.17} parent=35 // pred_check
        %p203 = pneg %p32
      $region38: #{_lambda_.17} parent=35 // pred_check_branch
        %205 = sbr.rel (%p203) target = $region40
      $region39: #{_lambda_.17} parent=35 // pred_region
        %s206 = smul.u32 64, %s12
        %p207 = scmp.lt.s32.totalorder %s206, 127
        %s208 = scalar_select %p207, %s206, 127
        %s209 = smul.addr %s208, 4
        %s210 = scalar_lea.vmem %s0, %s209
        %s211 = smul.u32 64, %s12
      $region40: #{_lambda_.17} parent=35 // pred_fallthru
        _
    $region36: #{_lambda_.17} parent=5 // pred_fallthru
      _
    %p212 = scmp.le.s32.totalorder 1, %s12
    %p213 = scmp.lt.s32.totalorder %s12, 3
    %p214 = pnand %p212, %p213
    %p215 = pneg %p214
    // Predicated region
    $region41: #{_lambda_.17} parent=5 // pred_check
      _
    $region42: #{_lambda_.17} parent=5 // pred_check_branch
      %217 = sbr.rel (%p214) target = $region44
    $region43: #{_lambda_.17} parent=5 // pred_region
      %s218 = ssub.s32 %s12, 1
      %s219 = smul.u32 64, %s17
      %p220 = scmp.lt.s32.totalorder %s219, 127
      %s221 = scalar_select %p220, %s219, 127
      %s222 = smul.addr %s221, 4
      %s223 = scalar_lea.vmem %s0, %s222
      %p224 = pneg %p38
      %p225 = pneg %p35
      %p226 = pneg %p59
      %p227 = pneg %p56
      %p228 = pneg %p80
      %p229 = pneg %p77
      %p230 = pneg %p101
      %p231 = pneg %p98
      %p232 = pneg %p122
      %p233 = pneg %p119
      %p234 = pneg %p143
      %p235 = pneg %p140
      %p236 = pneg %p169
      %p237 = pneg %p166
      %s238 = smul.u32 64, %s17
      %p239 = scmp.lt.s32.totalorder %s238, 127
      %s240 = scalar_select %p239, %s238, 127
      %s241 = smul.addr %s240, 8
      %s242 = scalar_lea.vmem %s6, %s241
      %s243 = smul.u32 64, %s17
      %p244 = scmp.lt.s32.totalorder %s243, 127
      %s245 = scalar_select %p244, %s243, 127
      %s246 = smul.addr %s245, 4
      %s247 = scalar_lea.vmem %s0, %s246
      %s248 = smul.u32 64, %s17
      %s249 = smul.u32 64, %s17
      %p250 = scmp.lt.s32.totalorder %s249, 127
      %s251 = scalar_select %p250, %s249, 127
      %s252 = smul.addr %s251, 8
      %s253 = scalar_lea.vmem %s6, %s252
      %s254 = smul.u32 64, %s17
      %v256 = vld [vmem:[%s247] sm:$0xf]
      %v257 = vld [vmem:[%s247 + $0x4] sm:$0xf]
      %v258 = vld [vmem:[%s247 + $0x8] sm:$0xf]
      %v259 = vld [vmem:[%s247 + $0xc] sm:$0xf]
      %v260 = vld [vmem:[%s247 + $0x10] sm:$0xf]
      %v261 = vld [vmem:[%s247 + $0x14] sm:$0xf]
      %v262 = vld [vmem:[%s247 + $0x18] sm:$0xf]
      %v263 = vld [vmem:[%s247 + $0x1c] sm:$0xf]
      %v264 = vld [vmem:[%s247 + $0x20] sm:$0xf]
      %v265 = vld [vmem:[%s247 + $0x24] sm:$0xf]
      %v266 = vld [vmem:[%s247 + $0x28] sm:$0xf]
      %v267 = vld [vmem:[%s247 + $0x2c] sm:$0xf]
      %v268 = vld [vmem:[%s247 + $0x30] sm:$0xf]
      %v269 = vld [vmem:[%s247 + $0x34] sm:$0xf]
      %v270 = vld [vmem:[%s247 + $0x38] sm:$0xf]
      %v271 = vld [vmem:[%s247 + $0x3c] sm:$0xf]
      %v272 = vld [vmem:[%s247 + $0x40] sm:$0xf]
      %v273 = vld [vmem:[%s247 + $0x44] sm:$0xf]
      %v274 = vld [vmem:[%s247 + $0x48] sm:$0xf]
      %v275 = vld [vmem:[%s247 + $0x4c] sm:$0xf]
      %v276 = vld [vmem:[%s247 + $0x50] sm:$0xf]
      %v277 = vld [vmem:[%s247 + $0x54] sm:$0xf]
      %v278 = vld [vmem:[%s247 + $0x58] sm:$0xf]
      %v279 = vld [vmem:[%s247 + $0x5c] sm:$0xf]
      %v280 = vld [vmem:[%s247 + $0x60] sm:$0xf]
      %v281 = vld [vmem:[%s247 + $0x64] sm:$0xf]
      %v282 = vld [vmem:[%s247 + $0x68] sm:$0xf]
      %v283 = vld [vmem:[%s247 + $0x6c] sm:$0xf]
      %v284 = vld [vmem:[%s247 + $0x70] sm:$0xf]
      %v285 = vld [vmem:[%s247 + $0x74] sm:$0xf]
      %v286 = vld [vmem:[%s247 + $0x78] sm:$0xf]
      %v287 = vld [vmem:[%s247 + $0x7c] sm:$0xf]
      %v288 = vld [vmem:[%s247 + $0x80] sm:$0xf]
      %v289 = vld [vmem:[%s247 + $0x84] sm:$0xf]
      %v290 = vld [vmem:[%s247 + $0x88] sm:$0xf]
      %v291 = vld [vmem:[%s247 + $0x8c] sm:$0xf]
      %v292 = vld [vmem:[%s247 + $0x90] sm:$0xf]
      %v293 = vld [vmem:[%s247 + $0x94] sm:$0xf]
      %v294 = vld [vmem:[%s247 + $0x98] sm:$0xf]
      %v295 = vld [vmem:[%s247 + $0x9c] sm:$0xf]
      %v296 = vld [vmem:[%s247 + $0xa0] sm:$0xf]
      %v297 = vld [vmem:[%s247 + $0xa4] sm:$0xf]
      %v298 = vld [vmem:[%s247 + $0xa8] sm:$0xf]
      %v299 = vld [vmem:[%s247 + $0xac] sm:$0xf]
      %v300 = vld [vmem:[%s247 + $0xb0] sm:$0xf]
      %v301 = vld [vmem:[%s247 + $0xb4] sm:$0xf]
      %v302 = vld [vmem:[%s247 + $0xb8] sm:$0xf]
      %v303 = vld [vmem:[%s247 + $0xbc] sm:$0xf]
      %v304 = vld [vmem:[%s247 + $0xc0] sm:$0xf]
      %v305 = vld [vmem:[%s247 + $0xc4] sm:$0xf]
      %v306 = vld [vmem:[%s247 + $0xc8] sm:$0xf]
      %v307 = vld [vmem:[%s247 + $0xcc] sm:$0xf]
      %v308 = vld [vmem:[%s247 + $0xd0] sm:$0xf]
      %v309 = vld [vmem:[%s247 + $0xd4] sm:$0xf]
      %v310 = vld [vmem:[%s247 + $0xd8] sm:$0xf]
      %v311 = vld [vmem:[%s247 + $0xdc] sm:$0xf]
      %v312 = vld [vmem:[%s247 + $0xe0] sm:$0xf]
      %v313 = vld [vmem:[%s247 + $0xe4] sm:$0xf]
      %v314 = vld [vmem:[%s247 + $0xe8] sm:$0xf]
      %v315 = vld [vmem:[%s247 + $0xec] sm:$0xf]
      %v316 = vld [vmem:[%s247 + $0xf0] sm:$0xf]
      %v317 = vld [vmem:[%s247 + $0xf4] sm:$0xf]
      %v318 = vld [vmem:[%s247 + $0xf8] sm:$0xf]
      %v319 = vld [vmem:[%s247 + $0xfc] sm:$0xf]
      %v320 = vld [vmem:[%s1] sm:$0xf]
      %v321 = vld [vmem:[%s1 + $0x4] sm:$0xf]
      %v322 = vld [vmem:[%s1 + $0x8] sm:$0xf]
      %v323 = vld [vmem:[%s1 + $0xc] sm:$0xf]
      %v324 = vld [vmem:[%s1 + $0x10] sm:$0xf]
      %v325 = vld [vmem:[%s1 + $0x14] sm:$0xf]
      %v326 = vld [vmem:[%s1 + $0x18] sm:$0xf]
      %v327 = vld [vmem:[%s1 + $0x1c] sm:$0xf]
      %v328 = vld [vmem:[%s1 + $0x20] sm:$0xf]
      %v329 = vld [vmem:[%s1 + $0x24] sm:$0xf]
      %v330 = vld [vmem:[%s1 + $0x28] sm:$0xf]
      %v331 = vld [vmem:[%s1 + $0x2c] sm:$0xf]
      %v332 = vld [vmem:[%s1 + $0x30] sm:$0xf]
      %v333 = vld [vmem:[%s1 + $0x34] sm:$0xf]
      %v334 = vld [vmem:[%s1 + $0x38] sm:$0xf]
      %v335 = vld [vmem:[%s1 + $0x3c] sm:$0xf]
      %v400 = vunpack.c.l.b16 %v256
      %v401 = vunpack.c.l.b16 %v257
      %v402 = vunpack.c.l.b16 %v258
      %v403 = vunpack.c.l.b16 %v259
      %v404 = vunpack.c.l.b16 %v260
      %v405 = vunpack.c.l.b16 %v261
      %v406 = vunpack.c.l.b16 %v262
      %v407 = vunpack.c.l.b16 %v263
      %v408 = vunpack.c.l.b16 %v264
      %v409 = vunpack.c.l.b16 %v265
      %v410 = vunpack.c.l.b16 %v266
      %v411 = vunpack.c.l.b16 %v267
      %v412 = vunpack.c.l.b16 %v268
      %v413 = vunpack.c.l.b16 %v269
      %v414 = vunpack.c.l.b16 %v270
      %v415 = vunpack.c.l.b16 %v271
      %v416 = vunpack.c.l.b16 %v272
      %v417 = vunpack.c.l.b16 %v273
      %v418 = vunpack.c.l.b16 %v274
      %v419 = vunpack.c.l.b16 %v275
      %v420 = vunpack.c.l.b16 %v276
      %v421 = vunpack.c.l.b16 %v277
      %v422 = vunpack.c.l.b16 %v278
      %v423 = vunpack.c.l.b16 %v279
      %v424 = vunpack.c.l.b16 %v280
      %v425 = vunpack.c.l.b16 %v281
      %v426 = vunpack.c.l.b16 %v282
      %v427 = vunpack.c.l.b16 %v283
      %v428 = vunpack.c.l.b16 %v284
      %v429 = vunpack.c.l.b16 %v285
      %v430 = vunpack.c.l.b16 %v286
      %v431 = vunpack.c.l.b16 %v287
      %v432 = vunpack.c.l.b16 %v288
      %v433 = vunpack.c.l.b16 %v289
      %v434 = vunpack.c.l.b16 %v290
      %v435 = vunpack.c.l.b16 %v291
      %v436 = vunpack.c.l.b16 %v292
      %v437 = vunpack.c.l.b16 %v293
      %v438 = vunpack.c.l.b16 %v294
      %v439 = vunpack.c.l.b16 %v295
      %v440 = vunpack.c.l.b16 %v296
      %v441 = vunpack.c.l.b16 %v297
      %v442 = vunpack.c.l.b16 %v298
      %v443 = vunpack.c.l.b16 %v299
      %v444 = vunpack.c.l.b16 %v300
      %v445 = vunpack.c.l.b16 %v301
      %v446 = vunpack.c.l.b16 %v302
      %v447 = vunpack.c.l.b16 %v303
      %v448 = vunpack.c.l.b16 %v304
      %v449 = vunpack.c.l.b16 %v305
      %v450 = vunpack.c.l.b16 %v306
      %v451 = vunpack.c.l.b16 %v307
      %v452 = vunpack.c.l.b16 %v308
      %v453 = vunpack.c.l.b16 %v309
      %v454 = vunpack.c.l.b16 %v310
      %v455 = vunpack.c.l.b16 %v311
      %v456 = vunpack.c.l.b16 %v312
      %v457 = vunpack.c.l.b16 %v313
      %v458 = vunpack.c.l.b16 %v314
      %v459 = vunpack.c.l.b16 %v315
      %v460 = vunpack.c.l.b16 %v316
      %v461 = vunpack.c.l.b16 %v317
      %v462 = vunpack.c.l.b16 %v318
      %v463 = vunpack.c.l.b16 %v319
      %v464 = vpack.c.b16 %v401, %v400
      %v465 = vpack.c.b16 %v403, %v402
      %v466 = vpack.c.b16 %v405, %v404
      %v467 = vpack.c.b16 %v407, %v406
      %v468 = vpack.c.b16 %v409, %v408
      %v469 = vpack.c.b16 %v411, %v410
      %v470 = vpack.c.b16 %v413, %v412
      %v471 = vpack.c.b16 %v415, %v414
      %v472 = vpack.c.b16 %v417, %v416
      %v473 = vpack.c.b16 %v419, %v418
      %v474 = vpack.c.b16 %v421, %v420
      %v475 = vpack.c.b16 %v423, %v422
      %v476 = vpack.c.b16 %v425, %v424
      %v477 = vpack.c.b16 %v427, %v426
      %v478 = vpack.c.b16 %v429, %v428
      %v479 = vpack.c.b16 %v431, %v430
      %v480 = vpack.c.b16 %v433, %v432
      %v481 = vpack.c.b16 %v435, %v434
      %v482 = vpack.c.b16 %v437, %v436
      %v483 = vpack.c.b16 %v439, %v438
      %v484 = vpack.c.b16 %v441, %v440
      %v485 = vpack.c.b16 %v443, %v442
      %v486 = vpack.c.b16 %v445, %v444
      %v487 = vpack.c.b16 %v447, %v446
      %v488 = vpack.c.b16 %v449, %v448
      %v489 = vpack.c.b16 %v451, %v450
      %v490 = vpack.c.b16 %v453, %v452
      %v491 = vpack.c.b16 %v455, %v454
      %v492 = vpack.c.b16 %v457, %v456
      %v493 = vpack.c.b16 %v459, %v458
      %v494 = vpack.c.b16 %v461, %v460
      %v495 = vpack.c.b16 %v463, %v462
      %v544 = vunpack.c.l.b16 %v320
      %v545 = vunpack.c.l.b16 %v321
      %v546 = vunpack.c.l.b16 %v322
      %v547 = vunpack.c.l.b16 %v323
      %v548 = vunpack.c.l.b16 %v324
      %v549 = vunpack.c.l.b16 %v325
      %v550 = vunpack.c.l.b16 %v326
      %v551 = vunpack.c.l.b16 %v327
      %v552 = vunpack.c.l.b16 %v328
      %v553 = vunpack.c.l.b16 %v329
      %v554 = vunpack.c.l.b16 %v330
      %v555 = vunpack.c.l.b16 %v331
      %v556 = vunpack.c.l.b16 %v332
      %v557 = vunpack.c.l.b16 %v333
      %v558 = vunpack.c.l.b16 %v334
      %v559 = vunpack.c.l.b16 %v335
      %v560 = vpack.c.b16 %v545, %v544
      %v561 = vpack.c.b16 %v547, %v546
      %v562 = vpack.c.b16 %v549, %v548
      %v563 = vpack.c.b16 %v551, %v550
      %v564 = vpack.c.b16 %v553, %v552
      %v565 = vpack.c.b16 %v555, %v554
      %v566 = vpack.c.b16 %v557, %v556
      %v567 = vpack.c.b16 %v559, %v558
      %576 = vmatprep.subr.bf16.mxu0 0
      %577 = vmatpush1.bf16.msra.mxu0 %v567
      %578 = vmatprep.subr.bf16.mxu0 0
      %579 = vmatpush1.bf16.msra.mxu0 %v566
      %580 = vmatprep.subr.bf16.mxu0 0
      %581 = vmatpush1.bf16.msra.mxu0 %v565
      %582 = vmatprep.subr.bf16.mxu0 0
      %583 = vmatpush1.bf16.msra.mxu0 %v564
      %584 = vmatprep.subr.bf16.mxu0 0
      %585 = vmatpush1.bf16.msra.mxu0 %v563
      %586 = vmatprep.subr.bf16.mxu0 0
      %587 = vmatpush1.bf16.msra.mxu0 %v562
      %588 = vmatprep.subr.bf16.mxu0 0
      %589 = vmatpush1.bf16.msra.mxu0 %v561
      %590 = vmatprep.subr.bf16.mxu0 0
      %591 = vmatpush1.bf16.msra.mxu0 %v560
      %592 = vmatprep.subr.bf16.mxu0 0
      %593 = vmatpush2.bf16.msra.mxu0 0
      %594 = vmatprep.subr.bf16.mxu0 0
      %595 = vmatpush2.bf16.msra.mxu0 0
      %596 = vmatprep.subr.bf16.mxu0 0
      %597 = vmatpush2.bf16.msra.mxu0 0
      %598 = vmatprep.subr.bf16.mxu0 0
      %599 = vmatpush2.bf16.msra.mxu0 0
      %600 = vmatprep.subr.bf16.mxu0 0
      %601 = vmatpush2.bf16.msra.mxu0 0
      %602 = vmatprep.subr.bf16.mxu0 0
      %603 = vmatpush2.bf16.msra.mxu0 0
      %604 = vmatprep.subr.bf16.mxu0 0
      %605 = vmatpush2.bf16.msra.mxu0 0
      %606 = vmatprep.subr.bf16.mxu0 0
      %607 = vmatpush2.bf16.msra.mxu0 0
      %608 = vmatprep.mubr.bf16.mxu0 0
      %609 = vmatmul.mubr.bf16.gmra.mxu0 %v464
      %v610 = vpop.f32.mrf.mxu0
      %v611 = vadd.f32 0.0, %v610
      %v612 = vpop.f32.mrf.mxu0
      %v613 = vpop.f32.mrf.mxu0
      %v614 = vadd.f32 0.0, %v613
      %v615 = vpop.f32.mrf.mxu0
      %616 = vmatprep.mubr.bf16.mxu0 0
      %617 = vmatmul.mubr.bf16.gmra.mxu0 %v465
      %v618 = vpop.f32.mrf.mxu0
      %v619 = vadd.f32 0.0, %v618
      %v620 = vpop.f32.mrf.mxu0
      %v621 = vpop.f32.mrf.mxu0
      %v622 = vadd.f32 0.0, %v621
      %v623 = vpop.f32.mrf.mxu0
      %624 = vmatprep.mubr.bf16.mxu0 0
      %625 = vmatmul.mubr.bf16.gmra.mxu0 %v466
      %v626 = vpop.f32.mrf.mxu0
      %v627 = vadd.f32 0.0, %v626
      %v628 = vpop.f32.mrf.mxu0
      %v629 = vpop.f32.mrf.mxu0
      %v630 = vadd.f32 0.0, %v629
      %v631 = vpop.f32.mrf.mxu0
      %632 = vmatprep.mubr.bf16.mxu0 0
      %633 = vmatmul.mubr.bf16.gmra.mxu0 %v467
      %v634 = vpop.f32.mrf.mxu0
      %v635 = vadd.f32 0.0, %v634
      %v636 = vpop.f32.mrf.mxu0
      %v637 = vpop.f32.mrf.mxu0
      %v638 = vadd.f32 0.0, %v637
      %v639 = vpop.f32.mrf.mxu0
      %640 = vmatprep.mubr.bf16.mxu0 0
      %641 = vmatmul.mubr.bf16.gmra.mxu0 %v468
      %v642 = vpop.f32.mrf.mxu0
      %v643 = vadd.f32 0.0, %v642
      %v644 = vpop.f32.mrf.mxu0
      %v645 = vpop.f32.mrf.mxu0
      %v646 = vadd.f32 0.0, %v645
      %v647 = vpop.f32.mrf.mxu0
      %648 = vmatprep.mubr.bf16.mxu0 0
      %649 = vmatmul.mubr.bf16.gmra.mxu0 %v469
      %v650 = vpop.f32.mrf.mxu0
      %v651 = vadd.f32 0.0, %v650
      %v652 = vpop.f32.mrf.mxu0
      %v653 = vpop.f32.mrf.mxu0
      %v654 = vadd.f32 0.0, %v653
      %v655 = vpop.f32.mrf.mxu0
      %656 = vmatprep.mubr.bf16.mxu0 0
      %657 = vmatmul.mubr.bf16.gmra.mxu0 %v470
      %v658 = vpop.f32.mrf.mxu0
      %v659 = vadd.f32 0.0, %v658
      %v660 = vpop.f32.mrf.mxu0
      %v661 = vpop.f32.mrf.mxu0
      %v662 = vadd.f32 0.0, %v661
      %v663 = vpop.f32.mrf.mxu0
      %664 = vmatprep.mubr.bf16.mxu0 0
      %665 = vmatmul.mubr.bf16.gmra.mxu0 %v471
      %v666 = vpop.f32.mrf.mxu0
      %v667 = vadd.f32 0.0, %v666
      %v668 = vpop.f32.mrf.mxu0
      %v669 = vpop.f32.mrf.mxu0
      %v670 = vadd.f32 0.0, %v669
      %v671 = vpop.f32.mrf.mxu0
      %672 = vmatprep.mubr.bf16.mxu0 0
      %673 = vmatmul.mubr.bf16.gmra.mxu0 %v472
      %v674 = vpop.f32.mrf.mxu0
      %v675 = vadd.f32 0.0, %v674
      %v676 = vpop.f32.mrf.mxu0
      %v677 = vpop.f32.mrf.mxu0
      %v678 = vadd.f32 0.0, %v677
      %v679 = vpop.f32.mrf.mxu0
      %680 = vmatprep.mubr.bf16.mxu0 0
      %681 = vmatmul.mubr.bf16.gmra.mxu0 %v473
      %v682 = vpop.f32.mrf.mxu0
      %v683 = vadd.f32 0.0, %v682
      %v684 = vpop.f32.mrf.mxu0
      %v685 = vpop.f32.mrf.mxu0
      %v686 = vadd.f32 0.0, %v685
      %v687 = vpop.f32.mrf.mxu0
      %688 = vmatprep.mubr.bf16.mxu0 0
      %689 = vmatmul.mubr.bf16.gmra.mxu0 %v474
      %v690 = vpop.f32.mrf.mxu0
      %v691 = vadd.f32 0.0, %v690
      %v692 = vpop.f32.mrf.mxu0
      %v693 = vpop.f32.mrf.mxu0
      %v694 = vadd.f32 0.0, %v693
      %v695 = vpop.f32.mrf.mxu0
      %696 = vmatprep.mubr.bf16.mxu0 0
      %697 = vmatmul.mubr.bf16.gmra.mxu0 %v475
      %v698 = vpop.f32.mrf.mxu0
      %v699 = vadd.f32 0.0, %v698
      %v700 = vpop.f32.mrf.mxu0
      %v701 = vpop.f32.mrf.mxu0
      %v702 = vadd.f32 0.0, %v701
      %v703 = vpop.f32.mrf.mxu0
      %704 = vmatprep.mubr.bf16.mxu0 0
      %705 = vmatmul.mubr.bf16.gmra.mxu0 %v476
      %v706 = vpop.f32.mrf.mxu0
      %v707 = vadd.f32 0.0, %v706
      %v708 = vpop.f32.mrf.mxu0
      %v709 = vpop.f32.mrf.mxu0
      %v710 = vadd.f32 0.0, %v709
      %v711 = vpop.f32.mrf.mxu0
      %712 = vmatprep.mubr.bf16.mxu0 0
      %713 = vmatmul.mubr.bf16.gmra.mxu0 %v477
      %v714 = vpop.f32.mrf.mxu0
      %v715 = vadd.f32 0.0, %v714
      %v716 = vpop.f32.mrf.mxu0
      %v717 = vpop.f32.mrf.mxu0
      %v718 = vadd.f32 0.0, %v717
      %v719 = vpop.f32.mrf.mxu0
      %720 = vmatprep.mubr.bf16.mxu0 0
      %721 = vmatmul.mubr.bf16.gmra.mxu0 %v478
      %v722 = vpop.f32.mrf.mxu0
      %v723 = vadd.f32 0.0, %v722
      %v724 = vpop.f32.mrf.mxu0
      %v725 = vpop.f32.mrf.mxu0
      %v726 = vadd.f32 0.0, %v725
      %v727 = vpop.f32.mrf.mxu0
      %728 = vmatprep.mubr.bf16.mxu0 0
      %729 = vmatmul.mubr.bf16.gmra.mxu0 %v479
      %v730 = vpop.f32.mrf.mxu0
      %v731 = vadd.f32 0.0, %v730
      %v732 = vpop.f32.mrf.mxu0
      %v733 = vpop.f32.mrf.mxu0
      %v734 = vadd.f32 0.0, %v733
      %v735 = vpop.f32.mrf.mxu0
      %736 = vmatprep.mubr.bf16.mxu0 0
      %737 = vmatmul.mubr.bf16.gmra.mxu0 %v480
      %v738 = vpop.f32.mrf.mxu0
      %v739 = vadd.f32 0.0, %v738
      %v740 = vpop.f32.mrf.mxu0
      %v741 = vpop.f32.mrf.mxu0
      %v742 = vadd.f32 0.0, %v741
      %v743 = vpop.f32.mrf.mxu0
      %744 = vmatprep.mubr.bf16.mxu0 0
      %745 = vmatmul.mubr.bf16.gmra.mxu0 %v481
      %v746 = vpop.f32.mrf.mxu0
      %v747 = vadd.f32 0.0, %v746
      %v748 = vpop.f32.mrf.mxu0
      %v749 = vpop.f32.mrf.mxu0
      %v750 = vadd.f32 0.0, %v749
      %v751 = vpop.f32.mrf.mxu0
      %752 = vmatprep.mubr.bf16.mxu0 0
      %753 = vmatmul.mubr.bf16.gmra.mxu0 %v482
      %v754 = vpop.f32.mrf.mxu0
      %v755 = vadd.f32 0.0, %v754
      %v756 = vpop.f32.mrf.mxu0
      %v757 = vpop.f32.mrf.mxu0
      %v758 = vadd.f32 0.0, %v757
      %v759 = vpop.f32.mrf.mxu0
      %760 = vmatprep.mubr.bf16.mxu0 0
      %761 = vmatmul.mubr.bf16.gmra.mxu0 %v483
      %v762 = vpop.f32.mrf.mxu0
      %v763 = vadd.f32 0.0, %v762
      %v764 = vpop.f32.mrf.mxu0
      %v765 = vpop.f32.mrf.mxu0
      %v766 = vadd.f32 0.0, %v765
      %v767 = vpop.f32.mrf.mxu0
      %768 = vmatprep.mubr.bf16.mxu0 0
      %769 = vmatmul.mubr.bf16.gmra.mxu0 %v484
      %v770 = vpop.f32.mrf.mxu0
      %v771 = vadd.f32 0.0, %v770
      %v772 = vpop.f32.mrf.mxu0
      %v773 = vpop.f32.mrf.mxu0
      %v774 = vadd.f32 0.0, %v773
      %v775 = vpop.f32.mrf.mxu0
      %776 = vmatprep.mubr.bf16.mxu0 0
      %777 = vmatmul.mubr.bf16.gmra.mxu0 %v485
      %v778 = vpop.f32.mrf.mxu0
      %v779 = vadd.f32 0.0, %v778
      %v780 = vpop.f32.mrf.mxu0
      %v781 = vpop.f32.mrf.mxu0
      %v782 = vadd.f32 0.0, %v781
      %v783 = vpop.f32.mrf.mxu0
      %784 = vmatprep.mubr.bf16.mxu0 0
      %785 = vmatmul.mubr.bf16.gmra.mxu0 %v486
      %v786 = vpop.f32.mrf.mxu0
      %v787 = vadd.f32 0.0, %v786
      %v788 = vpop.f32.mrf.mxu0
      %v789 = vpop.f32.mrf.mxu0
      %v790 = vadd.f32 0.0, %v789
      %v791 = vpop.f32.mrf.mxu0
      %792 = vmatprep.mubr.bf16.mxu0 0
      %793 = vmatmul.mubr.bf16.gmra.mxu0 %v487
      %v794 = vpop.f32.mrf.mxu0
      %v795 = vadd.f32 0.0, %v794
      %v796 = vpop.f32.mrf.mxu0
      %v797 = vpop.f32.mrf.mxu0
      %v798 = vadd.f32 0.0, %v797
      %v799 = vpop.f32.mrf.mxu0
      %800 = vmatprep.mubr.bf16.mxu0 0
      %801 = vmatmul.mubr.bf16.gmra.mxu0 %v488
      %v802 = vpop.f32.mrf.mxu0
      %v803 = vadd.f32 0.0, %v802
      %v804 = vpop.f32.mrf.mxu0
      %v805 = vpop.f32.mrf.mxu0
      %v806 = vadd.f32 0.0, %v805
      %v807 = vpop.f32.mrf.mxu0
      %808 = vmatprep.mubr.bf16.mxu0 0
      %809 = vmatmul.mubr.bf16.gmra.mxu0 %v489
      %v810 = vpop.f32.mrf.mxu0
      %v811 = vadd.f32 0.0, %v810
      %v812 = vpop.f32.mrf.mxu0
      %v813 = vpop.f32.mrf.mxu0
      %v814 = vadd.f32 0.0, %v813
      %v815 = vpop.f32.mrf.mxu0
      %816 = vmatprep.mubr.bf16.mxu0 0
      %817 = vmatmul.mubr.bf16.gmra.mxu0 %v490
      %v818 = vpop.f32.mrf.mxu0
      %v819 = vadd.f32 0.0, %v818
      %v820 = vpop.f32.mrf.mxu0
      %v821 = vpop.f32.mrf.mxu0
      %v822 = vadd.f32 0.0, %v821
      %v823 = vpop.f32.mrf.mxu0
      %824 = vmatprep.mubr.bf16.mxu0 0
      %825 = vmatmul.mubr.bf16.gmra.mxu0 %v491
      %v826 = vpop.f32.mrf.mxu0
      %v827 = vadd.f32 0.0, %v826
      %v828 = vpop.f32.mrf.mxu0
      %v829 = vpop.f32.mrf.mxu0
      %v830 = vadd.f32 0.0, %v829
      %v831 = vpop.f32.mrf.mxu0
      %832 = vmatprep.mubr.bf16.mxu0 0
      %833 = vmatmul.mubr.bf16.gmra.mxu0 %v492
      %v834 = vpop.f32.mrf.mxu0
      %v835 = vadd.f32 0.0, %v834
      %v836 = vpop.f32.mrf.mxu0
      %v837 = vpop.f32.mrf.mxu0
      %v838 = vadd.f32 0.0, %v837
      %v839 = vpop.f32.mrf.mxu0
      %840 = vmatprep.mubr.bf16.mxu0 0
      %841 = vmatmul.mubr.bf16.gmra.mxu0 %v493
      %v842 = vpop.f32.mrf.mxu0
      %v843 = vadd.f32 0.0, %v842
      %v844 = vpop.f32.mrf.mxu0
      %v845 = vpop.f32.mrf.mxu0
      %v846 = vadd.f32 0.0, %v845
      %v847 = vpop.f32.mrf.mxu0
      %848 = vmatprep.mubr.bf16.mxu0 0
      %849 = vmatmul.mubr.bf16.gmra.mxu0 %v494
      %v850 = vpop.f32.mrf.mxu0
      %v851 = vadd.f32 0.0, %v850
      %v852 = vpop.f32.mrf.mxu0
      %v853 = vpop.f32.mrf.mxu0
      %v854 = vadd.f32 0.0, %v853
      %v855 = vpop.f32.mrf.mxu0
      %856 = vmatprep.mubr.bf16.mxu0 0
      %857 = vmatmul.mubr.bf16.gmra.mxu0 %v495
      %v858 = vpop.f32.mrf.mxu0
      %v859 = vadd.f32 0.0, %v858
      %v860 = vpop.f32.mrf.mxu0
      %v861 = vpop.f32.mrf.mxu0
      %v862 = vadd.f32 0.0, %v861
      %v863 = vpop.f32.mrf.mxu0
      %864 = vdwg.mxu0
      %v865 = vld [vmem:[%s2] sm:$0x1]
      %v867 = vlaneseq
      %v868 = vshrl.u32 %v867, 7
      %v869 = vsub.s32 0, %v868
      %v870 = vrot.slane %v865, %v869
      %v872 = vmul.f32 %v611, %v870
      %v873 = vmul.f32 %v614, %v870
      %v874 = vmul.f32 %v619, %v870
      %v875 = vmul.f32 %v622, %v870
      %v876 = vmul.f32 %v627, %v870
      %v877 = vmul.f32 %v630, %v870
      %v878 = vmul.f32 %v635, %v870
      %v879 = vmul.f32 %v638, %v870
      %v880 = vmul.f32 %v643, %v870
      %v881 = vmul.f32 %v646, %v870
      %v882 = vmul.f32 %v651, %v870
      %v883 = vmul.f32 %v654, %v870
      %v884 = vmul.f32 %v659, %v870
      %v885 = vmul.f32 %v662, %v870
      %v886 = vmul.f32 %v667, %v870
      %v887 = vmul.f32 %v670, %v870
      %v888 = vmul.f32 %v675, %v870
      %v889 = vmul.f32 %v678, %v870
      %v890 = vmul.f32 %v683, %v870
      %v891 = vmul.f32 %v686, %v870
      %v892 = vmul.f32 %v691, %v870
      %v893 = vmul.f32 %v694, %v870
      %v894 = vmul.f32 %v699, %v870
      %v895 = vmul.f32 %v702, %v870
      %v896 = vmul.f32 %v707, %v870
      %v897 = vmul.f32 %v710, %v870
      %v898 = vmul.f32 %v715, %v870
      %v899 = vmul.f32 %v718, %v870
      %v900 = vmul.f32 %v723, %v870
      %v901 = vmul.f32 %v726, %v870
      %v902 = vmul.f32 %v731, %v870
      %v903 = vmul.f32 %v734, %v870
      %v904 = vmul.f32 %v739, %v870
      %v905 = vmul.f32 %v742, %v870
      %v906 = vmul.f32 %v747, %v870
      %v907 = vmul.f32 %v750, %v870
      %v908 = vmul.f32 %v755, %v870
      %v909 = vmul.f32 %v758, %v870
      %v910 = vmul.f32 %v763, %v870
      %v911 = vmul.f32 %v766, %v870
      %v912 = vmul.f32 %v771, %v870
      %v913 = vmul.f32 %v774, %v870
      %v914 = vmul.f32 %v779, %v870
      %v915 = vmul.f32 %v782, %v870
      %v916 = vmul.f32 %v787, %v870
      %v917 = vmul.f32 %v790, %v870
      %v918 = vmul.f32 %v795, %v870
      %v919 = vmul.f32 %v798, %v870
      %v920 = vmul.f32 %v803, %v870
      %v921 = vmul.f32 %v806, %v870
      %v922 = vmul.f32 %v811, %v870
      %v923 = vmul.f32 %v814, %v870
      %v924 = vmul.f32 %v819, %v870
      %v925 = vmul.f32 %v822, %v870
      %v926 = vmul.f32 %v827, %v870
      %v927 = vmul.f32 %v830, %v870
      %v928 = vmul.f32 %v835, %v870
      %v929 = vmul.f32 %v838, %v870
      %v930 = vmul.f32 %v843, %v870
      %v931 = vmul.f32 %v846, %v870
      %v932 = vmul.f32 %v851, %v870
      %v933 = vmul.f32 %v854, %v870
      %v934 = vmul.f32 %v859, %v870
      %v935 = vmul.f32 %v862, %v870
      %v936 = vld [vmem:[%s3] sm:$0x1]
      %v938 = vlaneseq
      %v939 = vshrl.u32 %v938, 7
      %v940 = vsub.s32 0, %v939
      %v941 = vrot.slane %v936, %v940
      %v943 = vadd.f32 %v872, %v941
      %v944 = vadd.f32 %v873, %v941
      %v945 = vadd.f32 %v874, %v941
      %v946 = vadd.f32 %v875, %v941
      %v947 = vadd.f32 %v876, %v941
      %v948 = vadd.f32 %v877, %v941
      %v949 = vadd.f32 %v878, %v941
      %v950 = vadd.f32 %v879, %v941
      %v951 = vadd.f32 %v880, %v941
      %v952 = vadd.f32 %v881, %v941
      %v953 = vadd.f32 %v882, %v941
      %v954 = vadd.f32 %v883, %v941
      %v955 = vadd.f32 %v884, %v941
      %v956 = vadd.f32 %v885, %v941
      %v957 = vadd.f32 %v886, %v941
      %v958 = vadd.f32 %v887, %v941
      %v959 = vadd.f32 %v888, %v941
      %v960 = vadd.f32 %v889, %v941
      %v961 = vadd.f32 %v890, %v941
      %v962 = vadd.f32 %v891, %v941
      %v963 = vadd.f32 %v892, %v941
      %v964 = vadd.f32 %v893, %v941
      %v965 = vadd.f32 %v894, %v941
      %v966 = vadd.f32 %v895, %v941
      %v967 = vadd.f32 %v896, %v941
      %v968 = vadd.f32 %v897, %v941
      %v969 = vadd.f32 %v898, %v941
      %v970 = vadd.f32 %v899, %v941
      %v971 = vadd.f32 %v900, %v941
      %v972 = vadd.f32 %v901, %v941
      %v973 = vadd.f32 %v902, %v941
      %v974 = vadd.f32 %v903, %v941
      %v975 = vadd.f32 %v904, %v941
      %v976 = vadd.f32 %v905, %v941
      %v977 = vadd.f32 %v906, %v941
      %v978 = vadd.f32 %v907, %v941
      %v979 = vadd.f32 %v908, %v941
      %v980 = vadd.f32 %v909, %v941
      %v981 = vadd.f32 %v910, %v941
      %v982 = vadd.f32 %v911, %v941
      %v983 = vadd.f32 %v912, %v941
      %v984 = vadd.f32 %v913, %v941
      %v985 = vadd.f32 %v914, %v941
      %v986 = vadd.f32 %v915, %v941
      %v987 = vadd.f32 %v916, %v941
      %v988 = vadd.f32 %v917, %v941
      %v989 = vadd.f32 %v918, %v941
      %v990 = vadd.f32 %v919, %v941
      %v991 = vadd.f32 %v920, %v941
      %v992 = vadd.f32 %v921, %v941
      %v993 = vadd.f32 %v922, %v941
      %v994 = vadd.f32 %v923, %v941
      %v995 = vadd.f32 %v924, %v941
      %v996 = vadd.f32 %v925, %v941
      %v997 = vadd.f32 %v926, %v941
      %v998 = vadd.f32 %v927, %v941
      %v999 = vadd.f32 %v928, %v941
      %v1000 = vadd.f32 %v929, %v941
      %v1001 = vadd.f32 %v930, %v941
      %v1002 = vadd.f32 %v931, %v941
      %v1003 = vadd.f32 %v932, %v941
      %v1004 = vadd.f32 %v933, %v941
      %v1005 = vadd.f32 %v934, %v941
      %v1006 = vadd.f32 %v935, %v941
      %v1007 = vmax.f32 %v943, 0.0
      %v1008 = vmax.f32 %v944, 0.0
      %v1009 = vmax.f32 %v945, 0.0
      %v1010 = vmax.f32 %v946, 0.0
      %v1011 = vmax.f32 %v947, 0.0
      %v1012 = vmax.f32 %v948, 0.0
      %v1013 = vmax.f32 %v949, 0.0
      %v1014 = vmax.f32 %v950, 0.0
      %v1015 = vmax.f32 %v951, 0.0
      %v1016 = vmax.f32 %v952, 0.0
      %v1017 = vmax.f32 %v953, 0.0
      %v1018 = vmax.f32 %v954, 0.0
      %v1019 = vmax.f32 %v955, 0.0
      %v1020 = vmax.f32 %v956, 0.0
      %v1021 = vmax.f32 %v957, 0.0
      %v1022 = vmax.f32 %v958, 0.0
      %v1023 = vmax.f32 %v959, 0.0
      %v1024 = vmax.f32 %v960, 0.0
      %v1025 = vmax.f32 %v961, 0.0
      %v1026 = vmax.f32 %v962, 0.0
      %v1027 = vmax.f32 %v963, 0.0
      %v1028 = vmax.f32 %v964, 0.0
      %v1029 = vmax.f32 %v965, 0.0
      %v1030 = vmax.f32 %v966, 0.0
      %v1031 = vmax.f32 %v967, 0.0
      %v1032 = vmax.f32 %v968, 0.0
      %v1033 = vmax.f32 %v969, 0.0
      %v1034 = vmax.f32 %v970, 0.0
      %v1035 = vmax.f32 %v971, 0.0
      %v1036 = vmax.f32 %v972, 0.0
      %v1037 = vmax.f32 %v973, 0.0
      %v1038 = vmax.f32 %v974, 0.0
      %v1039 = vmax.f32 %v975, 0.0
      %v1040 = vmax.f32 %v976, 0.0
      %v1041 = vmax.f32 %v977, 0.0
      %v1042 = vmax.f32 %v978, 0.0
      %v1043 = vmax.f32 %v979, 0.0
      %v1044 = vmax.f32 %v980, 0.0
      %v1045 = vmax.f32 %v981, 0.0
      %v1046 = vmax.f32 %v982, 0.0
      %v1047 = vmax.f32 %v983, 0.0
      %v1048 = vmax.f32 %v984, 0.0
      %v1049 = vmax.f32 %v985, 0.0
      %v1050 = vmax.f32 %v986, 0.0
      %v1051 = vmax.f32 %v987, 0.0
      %v1052 = vmax.f32 %v988, 0.0
      %v1053 = vmax.f32 %v989, 0.0
      %v1054 = vmax.f32 %v990, 0.0
      %v1055 = vmax.f32 %v991, 0.0
      %v1056 = vmax.f32 %v992, 0.0
      %v1057 = vmax.f32 %v993, 0.0
      %v1058 = vmax.f32 %v994, 0.0
      %v1059 = vmax.f32 %v995, 0.0
      %v1060 = vmax.f32 %v996, 0.0
      %v1061 = vmax.f32 %v997, 0.0
      %v1062 = vmax.f32 %v998, 0.0
      %v1063 = vmax.f32 %v999, 0.0
      %v1064 = vmax.f32 %v1000, 0.0
      %v1065 = vmax.f32 %v1001, 0.0
      %v1066 = vmax.f32 %v1002, 0.0
      %v1067 = vmax.f32 %v1003, 0.0
      %v1068 = vmax.f32 %v1004, 0.0
      %v1069 = vmax.f32 %v1005, 0.0
      %v1070 = vmax.f32 %v1006, 0.0
      %v1071 = vpack.c.bf16 %v1008, %v1007
      %v1072 = vpack.c.bf16 %v1010, %v1009
      %v1073 = vpack.c.bf16 %v1012, %v1011
      %v1074 = vpack.c.bf16 %v1014, %v1013
      %v1075 = vpack.c.bf16 %v1016, %v1015
      %v1076 = vpack.c.bf16 %v1018, %v1017
      %v1077 = vpack.c.bf16 %v1020, %v1019
      %v1078 = vpack.c.bf16 %v1022, %v1021
      %v1079 = vpack.c.bf16 %v1024, %v1023
      %v1080 = vpack.c.bf16 %v1026, %v1025
      %v1081 = vpack.c.bf16 %v1028, %v1027
      %v1082 = vpack.c.bf16 %v1030, %v1029
      %v1083 = vpack.c.bf16 %v1032, %v1031
      %v1084 = vpack.c.bf16 %v1034, %v1033
      %v1085 = vpack.c.bf16 %v1036, %v1035
      %v1086 = vpack.c.bf16 %v1038, %v1037
      %v1087 = vpack.c.bf16 %v1040, %v1039
      %v1088 = vpack.c.bf16 %v1042, %v1041
      %v1089 = vpack.c.bf16 %v1044, %v1043
      %v1090 = vpack.c.bf16 %v1046, %v1045
      %v1091 = vpack.c.bf16 %v1048, %v1047
      %v1092 = vpack.c.bf16 %v1050, %v1049
      %v1093 = vpack.c.bf16 %v1052, %v1051
      %v1094 = vpack.c.bf16 %v1054, %v1053
      %v1095 = vpack.c.bf16 %v1056, %v1055
      %v1096 = vpack.c.bf16 %v1058, %v1057
      %v1097 = vpack.c.bf16 %v1060, %v1059
      %v1098 = vpack.c.bf16 %v1062, %v1061
      %v1099 = vpack.c.bf16 %v1064, %v1063
      %v1100 = vpack.c.bf16 %v1066, %v1065
      %v1101 = vpack.c.bf16 %v1068, %v1067
      %v1102 = vpack.c.bf16 %v1070, %v1069
      %v1103 = vld [vmem:[%s4] sm:$0xf]
      %v1104 = vld [vmem:[%s4 + $0x4] sm:$0xf]
      %v1105 = vld [vmem:[%s4 + $0x8] sm:$0xf]
      %v1106 = vld [vmem:[%s4 + $0xc] sm:$0xf]
      %v1107 = vld [vmem:[%s5] sm:$0x1]
      %v1109 = vlaneseq
      %v1110 = vshrl.u32 %v1109, 7
      %v1111 = vsub.s32 0, %v1110
      %v1112 = vrot.slane %v1107, %v1111
      %v1118 = vunpack.c.l.b16 %v1103
      %v1119 = vunpack.c.l.b16 %v1104
      %v1120 = vunpack.c.l.b16 %v1105
      %v1121 = vunpack.c.l.b16 %v1106
      %v1122 = vpack.c.b16 %v1119, %v1118
      %v1123 = vpack.c.b16 %v1121, %v1120
      %vm1126 = vcmask 261120
      %v1128 = vsel %vm1126, %v1071, 0
      %v1131 = vsel %vm1126, %v1072, 0
      %v1134 = vsel %vm1126, %v1073, 0
      %v1137 = vsel %vm1126, %v1074, 0
      %v1140 = vsel %vm1126, %v1075, 0
      %v1143 = vsel %vm1126, %v1076, 0
      %v1146 = vsel %vm1126, %v1077, 0
      %v1149 = vsel %vm1126, %v1078, 0
      %v1152 = vsel %vm1126, %v1079, 0
      %v1155 = vsel %vm1126, %v1080, 0
      %v1158 = vsel %vm1126, %v1081, 0
      %v1161 = vsel %vm1126, %v1082, 0
      %v1164 = vsel %vm1126, %v1083, 0
      %v1167 = vsel %vm1126, %v1084, 0
      %v1170 = vsel %vm1126, %v1085, 0
      %v1173 = vsel %vm1126, %v1086, 0
      %v1176 = vsel %vm1126, %v1087, 0
      %v1179 = vsel %vm1126, %v1088, 0
      %v1182 = vsel %vm1126, %v1089, 0
      %v1185 = vsel %vm1126, %v1090, 0
      %v1188 = vsel %vm1126, %v1091, 0
      %v1191 = vsel %vm1126, %v1092, 0
      %v1194 = vsel %vm1126, %v1093, 0
      %v1197 = vsel %vm1126, %v1094, 0
      %v1200 = vsel %vm1126, %v1095, 0
      %v1203 = vsel %vm1126, %v1096, 0
      %v1206 = vsel %vm1126, %v1097, 0
      %v1209 = vsel %vm1126, %v1098, 0
      %v1212 = vsel %vm1126, %v1099, 0
      %v1215 = vsel %vm1126, %v1100, 0
      %v1218 = vsel %vm1126, %v1101, 0
      %v1221 = vsel %vm1126, %v1102, 0
      %1223 = vmatprep.subr.bf16.mxu0 0
      %1224 = vmatpush1.bf16.msra.mxu0 0
      %1225 = vmatprep.subr.bf16.mxu0 0
      %1226 = vmatpush1.bf16.msra.mxu0 0
      %1227 = vmatprep.subr.bf16.mxu0 0
      %1228 = vmatpush1.bf16.msra.mxu0 0
      %1229 = vmatprep.subr.bf16.mxu0 0
      %1230 = vmatpush1.bf16.msra.mxu0 0
      %1231 = vmatprep.subr.bf16.mxu0 0
      %1232 = vmatpush1.bf16.msra.mxu0 0
      %1233 = vmatprep.subr.bf16.mxu0 0
      %1234 = vmatpush1.bf16.msra.mxu0 0
      %1235 = vmatprep.subr.bf16.mxu0 0
      %1236 = vmatpush1.bf16.msra.mxu0 %v1123
      %1237 = vmatprep.subr.bf16.mxu0 0
      %1238 = vmatpush1.bf16.msra.mxu0 %v1122
      %1239 = vmatprep.subr.bf16.mxu0 0
      %1240 = vmatpush2.bf16.msra.mxu0 0
      %1241 = vmatprep.subr.bf16.mxu0 0
      %1242 = vmatpush2.bf16.msra.mxu0 0
      %1243 = vmatprep.subr.bf16.mxu0 0
      %1244 = vmatpush2.bf16.msra.mxu0 0
      %1245 = vmatprep.subr.bf16.mxu0 0
      %1246 = vmatpush2.bf16.msra.mxu0 0
      %1247 = vmatprep.subr.bf16.mxu0 0
      %1248 = vmatpush2.bf16.msra.mxu0 0
      %1249 = vmatprep.subr.bf16.mxu0 0
      %1250 = vmatpush2.bf16.msra.mxu0 0
      %1251 = vmatprep.subr.bf16.mxu0 0
      %1252 = vmatpush2.bf16.msra.mxu0 0
      %1253 = vmatprep.subr.bf16.mxu0 0
      %1254 = vmatpush2.bf16.msra.mxu0 0
      %1255 = vmatprep.mubr.bf16.mxu0 0
      %1256 = vmatmul.mubr.bf16.gmra.mxu0 %v1128
      %v1257 = vpop.f32.mrf.mxu0
      %v1258 = vadd.f32 %v1112, %v1257
      %v1259 = vpop.f32.mrf.mxu0
      %v1260 = vpop.f32.mrf.mxu0
      %v1261 = vadd.f32 %v1112, %v1260
      %v1262 = vpop.f32.mrf.mxu0
      %1263 = vmatprep.mubr.bf16.mxu0 0
      %1264 = vmatmul.mubr.bf16.gmra.mxu0 %v1131
      %v1265 = vpop.f32.mrf.mxu0
      %v1266 = vadd.f32 %v1112, %v1265
      %v1267 = vpop.f32.mrf.mxu0
      %v1268 = vpop.f32.mrf.mxu0
      %v1269 = vadd.f32 %v1112, %v1268
      %v1270 = vpop.f32.mrf.mxu0
      %1271 = vmatprep.mubr.bf16.mxu0 0
      %1272 = vmatmul.mubr.bf16.gmra.mxu0 %v1134
      %v1273 = vpop.f32.mrf.mxu0
      %v1274 = vadd.f32 %v1112, %v1273
      %v1275 = vpop.f32.mrf.mxu0
      %v1276 = vpop.f32.mrf.mxu0
      %v1277 = vadd.f32 %v1112, %v1276
      %v1278 = vpop.f32.mrf.mxu0
      %1279 = vmatprep.mubr.bf16.mxu0 0
      %1280 = vmatmul.mubr.bf16.gmra.mxu0 %v1137
      %v1281 = vpop.f32.mrf.mxu0
      %v1282 = vadd.f32 %v1112, %v1281
      %v1283 = vpop.f32.mrf.mxu0
      %v1284 = vpop.f32.mrf.mxu0
      %v1285 = vadd.f32 %v1112, %v1284
      %v1286 = vpop.f32.mrf.mxu0
      %1287 = vmatprep.mubr.bf16.mxu0 0
      %1288 = vmatmul.mubr.bf16.gmra.mxu0 %v1140
      %v1289 = vpop.f32.mrf.mxu0
      %v1290 = vadd.f32 %v1112, %v1289
      %v1291 = vpop.f32.mrf.mxu0
      %v1292 = vpop.f32.mrf.mxu0
      %v1293 = vadd.f32 %v1112, %v1292
      %v1294 = vpop.f32.mrf.mxu0
      %1295 = vmatprep.mubr.bf16.mxu0 0
      %1296 = vmatmul.mubr.bf16.gmra.mxu0 %v1143
      %v1297 = vpop.f32.mrf.mxu0
      %v1298 = vadd.f32 %v1112, %v1297
      %v1299 = vpop.f32.mrf.mxu0
      %v1300 = vpop.f32.mrf.mxu0
      %v1301 = vadd.f32 %v1112, %v1300
      %v1302 = vpop.f32.mrf.mxu0
      %1303 = vmatprep.mubr.bf16.mxu0 0
      %1304 = vmatmul.mubr.bf16.gmra.mxu0 %v1146
      %v1305 = vpop.f32.mrf.mxu0
      %v1306 = vadd.f32 %v1112, %v1305
      %v1307 = vpop.f32.mrf.mxu0
      %v1308 = vpop.f32.mrf.mxu0
      %v1309 = vadd.f32 %v1112, %v1308
      %v1310 = vpop.f32.mrf.mxu0
      %1311 = vmatprep.mubr.bf16.mxu0 0
      %1312 = vmatmul.mubr.bf16.gmra.mxu0 %v1149
      %v1313 = vpop.f32.mrf.mxu0
      %v1314 = vadd.f32 %v1112, %v1313
      %v1315 = vpop.f32.mrf.mxu0
      %v1316 = vpop.f32.mrf.mxu0
      %v1317 = vadd.f32 %v1112, %v1316
      %v1318 = vpop.f32.mrf.mxu0
      %1319 = vmatprep.mubr.bf16.mxu0 0
      %1320 = vmatmul.mubr.bf16.gmra.mxu0 %v1152
      %v1321 = vpop.f32.mrf.mxu0
      %v1322 = vadd.f32 %v1112, %v1321
      %v1323 = vpop.f32.mrf.mxu0
      %v1324 = vpop.f32.mrf.mxu0
      %v1325 = vadd.f32 %v1112, %v1324
      %v1326 = vpop.f32.mrf.mxu0
      %1327 = vmatprep.mubr.bf16.mxu0 0
      %1328 = vmatmul.mubr.bf16.gmra.mxu0 %v1155
      %v1329 = vpop.f32.mrf.mxu0
      %v1330 = vadd.f32 %v1112, %v1329
      %v1331 = vpop.f32.mrf.mxu0
      %v1332 = vpop.f32.mrf.mxu0
      %v1333 = vadd.f32 %v1112, %v1332
      %v1334 = vpop.f32.mrf.mxu0
      %1335 = vmatprep.mubr.bf16.mxu0 0
      %1336 = vmatmul.mubr.bf16.gmra.mxu0 %v1158
      %v1337 = vpop.f32.mrf.mxu0
      %v1338 = vadd.f32 %v1112, %v1337
      %v1339 = vpop.f32.mrf.mxu0
      %v1340 = vpop.f32.mrf.mxu0
      %v1341 = vadd.f32 %v1112, %v1340
      %v1342 = vpop.f32.mrf.mxu0
      %1343 = vmatprep.mubr.bf16.mxu0 0
      %1344 = vmatmul.mubr.bf16.gmra.mxu0 %v1161
      %v1345 = vpop.f32.mrf.mxu0
      %v1346 = vadd.f32 %v1112, %v1345
      %v1347 = vpop.f32.mrf.mxu0
      %v1348 = vpop.f32.mrf.mxu0
      %v1349 = vadd.f32 %v1112, %v1348
      %v1350 = vpop.f32.mrf.mxu0
      %1351 = vmatprep.mubr.bf16.mxu0 0
      %1352 = vmatmul.mubr.bf16.gmra.mxu0 %v1164
      %v1353 = vpop.f32.mrf.mxu0
      %v1354 = vadd.f32 %v1112, %v1353
      %v1355 = vpop.f32.mrf.mxu0
      %v1356 = vpop.f32.mrf.mxu0
      %v1357 = vadd.f32 %v1112, %v1356
      %v1358 = vpop.f32.mrf.mxu0
      %1359 = vmatprep.mubr.bf16.mxu0 0
      %1360 = vmatmul.mubr.bf16.gmra.mxu0 %v1167
      %v1361 = vpop.f32.mrf.mxu0
      %v1362 = vadd.f32 %v1112, %v1361
      %v1363 = vpop.f32.mrf.mxu0
      %v1364 = vpop.f32.mrf.mxu0
      %v1365 = vadd.f32 %v1112, %v1364
      %v1366 = vpop.f32.mrf.mxu0
      %1367 = vmatprep.mubr.bf16.mxu0 0
      %1368 = vmatmul.mubr.bf16.gmra.mxu0 %v1170
      %v1369 = vpop.f32.mrf.mxu0
      %v1370 = vadd.f32 %v1112, %v1369
      %v1371 = vpop.f32.mrf.mxu0
      %v1372 = vpop.f32.mrf.mxu0
      %v1373 = vadd.f32 %v1112, %v1372
      %v1374 = vpop.f32.mrf.mxu0
      %1375 = vmatprep.mubr.bf16.mxu0 0
      %1376 = vmatmul.mubr.bf16.gmra.mxu0 %v1173
      %v1377 = vpop.f32.mrf.mxu0
      %v1378 = vadd.f32 %v1112, %v1377
      %v1379 = vpop.f32.mrf.mxu0
      %v1380 = vpop.f32.mrf.mxu0
      %v1381 = vadd.f32 %v1112, %v1380
      %v1382 = vpop.f32.mrf.mxu0
      %1383 = vmatprep.mubr.bf16.mxu0 0
      %1384 = vmatmul.mubr.bf16.gmra.mxu0 %v1176
      %v1385 = vpop.f32.mrf.mxu0
      %v1386 = vadd.f32 %v1112, %v1385
      %v1387 = vpop.f32.mrf.mxu0
      %v1388 = vpop.f32.mrf.mxu0
      %v1389 = vadd.f32 %v1112, %v1388
      %v1390 = vpop.f32.mrf.mxu0
      %1391 = vmatprep.mubr.bf16.mxu0 0
      %1392 = vmatmul.mubr.bf16.gmra.mxu0 %v1179
      %v1393 = vpop.f32.mrf.mxu0
      %v1394 = vadd.f32 %v1112, %v1393
      %v1395 = vpop.f32.mrf.mxu0
      %v1396 = vpop.f32.mrf.mxu0
      %v1397 = vadd.f32 %v1112, %v1396
      %v1398 = vpop.f32.mrf.mxu0
      %1399 = vmatprep.mubr.bf16.mxu0 0
      %1400 = vmatmul.mubr.bf16.gmra.mxu0 %v1182
      %v1401 = vpop.f32.mrf.mxu0
      %v1402 = vadd.f32 %v1112, %v1401
      %v1403 = vpop.f32.mrf.mxu0
      %v1404 = vpop.f32.mrf.mxu0
      %v1405 = vadd.f32 %v1112, %v1404
      %v1406 = vpop.f32.mrf.mxu0
      %1407 = vmatprep.mubr.bf16.mxu0 0
      %1408 = vmatmul.mubr.bf16.gmra.mxu0 %v1185
      %v1409 = vpop.f32.mrf.mxu0
      %v1410 = vadd.f32 %v1112, %v1409
      %v1411 = vpop.f32.mrf.mxu0
      %v1412 = vpop.f32.mrf.mxu0
      %v1413 = vadd.f32 %v1112, %v1412
      %v1414 = vpop.f32.mrf.mxu0
      %1415 = vmatprep.mubr.bf16.mxu0 0
      %1416 = vmatmul.mubr.bf16.gmra.mxu0 %v1188
      %v1417 = vpop.f32.mrf.mxu0
      %v1418 = vadd.f32 %v1112, %v1417
      %v1419 = vpop.f32.mrf.mxu0
      %v1420 = vpop.f32.mrf.mxu0
      %v1421 = vadd.f32 %v1112, %v1420
      %v1422 = vpop.f32.mrf.mxu0
      %1423 = vmatprep.mubr.bf16.mxu0 0
      %1424 = vmatmul.mubr.bf16.gmra.mxu0 %v1191
      %v1425 = vpop.f32.mrf.mxu0
      %v1426 = vadd.f32 %v1112, %v1425
      %v1427 = vpop.f32.mrf.mxu0
      %v1428 = vpop.f32.mrf.mxu0
      %v1429 = vadd.f32 %v1112, %v1428
      %v1430 = vpop.f32.mrf.mxu0
      %1431 = vmatprep.mubr.bf16.mxu0 0
      %1432 = vmatmul.mubr.bf16.gmra.mxu0 %v1194
      %v1433 = vpop.f32.mrf.mxu0
      %v1434 = vadd.f32 %v1112, %v1433
      %v1435 = vpop.f32.mrf.mxu0
      %v1436 = vpop.f32.mrf.mxu0
      %v1437 = vadd.f32 %v1112, %v1436
      %v1438 = vpop.f32.mrf.mxu0
      %1439 = vmatprep.mubr.bf16.mxu0 0
      %1440 = vmatmul.mubr.bf16.gmra.mxu0 %v1197
      %v1441 = vpop.f32.mrf.mxu0
      %v1442 = vadd.f32 %v1112, %v1441
      %v1443 = vpop.f32.mrf.mxu0
      %v1444 = vpop.f32.mrf.mxu0
      %v1445 = vadd.f32 %v1112, %v1444
      %v1446 = vpop.f32.mrf.mxu0
      %1447 = vmatprep.mubr.bf16.mxu0 0
      %1448 = vmatmul.mubr.bf16.gmra.mxu0 %v1200
      %v1449 = vpop.f32.mrf.mxu0
      %v1450 = vadd.f32 %v1112, %v1449
      %v1451 = vpop.f32.mrf.mxu0
      %v1452 = vpop.f32.mrf.mxu0
      %v1453 = vadd.f32 %v1112, %v1452
      %v1454 = vpop.f32.mrf.mxu0
      %1455 = vmatprep.mubr.bf16.mxu0 0
      %1456 = vmatmul.mubr.bf16.gmra.mxu0 %v1203
      %v1457 = vpop.f32.mrf.mxu0
      %v1458 = vadd.f32 %v1112, %v1457
      %v1459 = vpop.f32.mrf.mxu0
      %v1460 = vpop.f32.mrf.mxu0
      %v1461 = vadd.f32 %v1112, %v1460
      %v1462 = vpop.f32.mrf.mxu0
      %1463 = vmatprep.mubr.bf16.mxu0 0
      %1464 = vmatmul.mubr.bf16.gmra.mxu0 %v1206
      %v1465 = vpop.f32.mrf.mxu0
      %v1466 = vadd.f32 %v1112, %v1465
      %v1467 = vpop.f32.mrf.mxu0
      %v1468 = vpop.f32.mrf.mxu0
      %v1469 = vadd.f32 %v1112, %v1468
      %v1470 = vpop.f32.mrf.mxu0
      %1471 = vmatprep.mubr.bf16.mxu0 0
      %1472 = vmatmul.mubr.bf16.gmra.mxu0 %v1209
      %v1473 = vpop.f32.mrf.mxu0
      %v1474 = vadd.f32 %v1112, %v1473
      %v1475 = vpop.f32.mrf.mxu0
      %v1476 = vpop.f32.mrf.mxu0
      %v1477 = vadd.f32 %v1112, %v1476
      %v1478 = vpop.f32.mrf.mxu0
      %1479 = vmatprep.mubr.bf16.mxu0 0
      %1480 = vmatmul.mubr.bf16.gmra.mxu0 %v1212
      %v1481 = vpop.f32.mrf.mxu0
      %v1482 = vadd.f32 %v1112, %v1481
      %v1483 = vpop.f32.mrf.mxu0
      %v1484 = vpop.f32.mrf.mxu0
      %v1485 = vadd.f32 %v1112, %v1484
      %v1486 = vpop.f32.mrf.mxu0
      %1487 = vmatprep.mubr.bf16.mxu0 0
      %1488 = vmatmul.mubr.bf16.gmra.mxu0 %v1215
      %v1489 = vpop.f32.mrf.mxu0
      %v1490 = vadd.f32 %v1112, %v1489
      %v1491 = vpop.f32.mrf.mxu0
      %v1492 = vpop.f32.mrf.mxu0
      %v1493 = vadd.f32 %v1112, %v1492
      %v1494 = vpop.f32.mrf.mxu0
      %1495 = vmatprep.mubr.bf16.mxu0 0
      %1496 = vmatmul.mubr.bf16.gmra.mxu0 %v1218
      %v1497 = vpop.f32.mrf.mxu0
      %v1498 = vadd.f32 %v1112, %v1497
      %v1499 = vpop.f32.mrf.mxu0
      %v1500 = vpop.f32.mrf.mxu0
      %v1501 = vadd.f32 %v1112, %v1500
      %v1502 = vpop.f32.mrf.mxu0
      %1503 = vmatprep.mubr.bf16.mxu0 0
      %1504 = vmatmul.mubr.bf16.gmra.mxu0 %v1221
      %v1505 = vpop.f32.mrf.mxu0
      %v1506 = vadd.f32 %v1112, %v1505
      %v1507 = vpop.f32.mrf.mxu0
      %v1508 = vpop.f32.mrf.mxu0
      %v1509 = vadd.f32 %v1112, %v1508
      %v1510 = vpop.f32.mrf.mxu0
      %1511 = vdwg.mxu0
      %1512 = vst [vmem:[%s253] sm:$0xff] %v1258
      %1513 = vst [vmem:[%s253 + $0x8] sm:$0xff] %v1261
      %1514 = vst [vmem:[%s253 + $0x10] sm:$0xff] %v1266
      %1515 = vst [vmem:[%s253 + $0x18] sm:$0xff] %v1269
      %1516 = vst [vmem:[%s253 + $0x20] sm:$0xff] %v1274
      %1517 = vst [vmem:[%s253 + $0x28] sm:$0xff] %v1277
      %1518 = vst [vmem:[%s253 + $0x30] sm:$0xff] %v1282
      %1519 = vst [vmem:[%s253 + $0x38] sm:$0xff] %v1285
      %1520 = vst [vmem:[%s253 + $0x40] sm:$0xff] %v1290
      %1521 = vst [vmem:[%s253 + $0x48] sm:$0xff] %v1293
      %1522 = vst [vmem:[%s253 + $0x50] sm:$0xff] %v1298
      %1523 = vst [vmem:[%s253 + $0x58] sm:$0xff] %v1301
      %1524 = vst [vmem:[%s253 + $0x60] sm:$0xff] %v1306
      %1525 = vst [vmem:[%s253 + $0x68] sm:$0xff] %v1309
      %1526 = vst [vmem:[%s253 + $0x70] sm:$0xff] %v1314
      %1527 = vst [vmem:[%s253 + $0x78] sm:$0xff] %v1317
      %1528 = vst [vmem:[%s253 + $0x80] sm:$0xff] %v1322
      %1529 = vst [vmem:[%s253 + $0x88] sm:$0xff] %v1325
      %1530 = vst [vmem:[%s253 + $0x90] sm:$0xff] %v1330
      %1531 = vst [vmem:[%s253 + $0x98] sm:$0xff] %v1333
      %1532 = vst [vmem:[%s253 + $0xa0] sm:$0xff] %v1338
      %1533 = vst [vmem:[%s253 + $0xa8] sm:$0xff] %v1341
      %1534 = vst [vmem:[%s253 + $0xb0] sm:$0xff] %v1346
      %1535 = vst [vmem:[%s253 + $0xb8] sm:$0xff] %v1349
      %1536 = vst [vmem:[%s253 + $0xc0] sm:$0xff] %v1354
      %1537 = vst [vmem:[%s253 + $0xc8] sm:$0xff] %v1357
      %1538 = vst [vmem:[%s253 + $0xd0] sm:$0xff] %v1362
      %1539 = vst [vmem:[%s253 + $0xd8] sm:$0xff] %v1365
      %1540 = vst [vmem:[%s253 + $0xe0] sm:$0xff] %v1370
      %1541 = vst [vmem:[%s253 + $0xe8] sm:$0xff] %v1373
      %1542 = vst [vmem:[%s253 + $0xf0] sm:$0xff] %v1378
      %1543 = vst [vmem:[%s253 + $0xf8] sm:$0xff] %v1381
      %1544 = vst [vmem:[%s253 + $0x100] sm:$0xff] %v1386
      %1545 = vst [vmem:[%s253 + $0x108] sm:$0xff] %v1389
      %1546 = vst [vmem:[%s253 + $0x110] sm:$0xff] %v1394
      %1547 = vst [vmem:[%s253 + $0x118] sm:$0xff] %v1397
      %1548 = vst [vmem:[%s253 + $0x120] sm:$0xff] %v1402
      %1549 = vst [vmem:[%s253 + $0x128] sm:$0xff] %v1405
      %1550 = vst [vmem:[%s253 + $0x130] sm:$0xff] %v1410
      %1551 = vst [vmem:[%s253 + $0x138] sm:$0xff] %v1413
      %1552 = vst [vmem:[%s253 + $0x140] sm:$0xff] %v1418
      %1553 = vst [vmem:[%s253 + $0x148] sm:$0xff] %v1421
      %1554 = vst [vmem:[%s253 + $0x150] sm:$0xff] %v1426
      %1555 = vst [vmem:[%s253 + $0x158] sm:$0xff] %v1429
      %1556 = vst [vmem:[%s253 + $0x160] sm:$0xff] %v1434
      %1557 = vst [vmem:[%s253 + $0x168] sm:$0xff] %v1437
      %1558 = vst [vmem:[%s253 + $0x170] sm:$0xff] %v1442
      %1559 = vst [vmem:[%s253 + $0x178] sm:$0xff] %v1445
      %1560 = vst [vmem:[%s253 + $0x180] sm:$0xff] %v1450
      %1561 = vst [vmem:[%s253 + $0x188] sm:$0xff] %v1453
      %1562 = vst [vmem:[%s253 + $0x190] sm:$0xff] %v1458
      %1563 = vst [vmem:[%s253 + $0x198] sm:$0xff] %v1461
      %1564 = vst [vmem:[%s253 + $0x1a0] sm:$0xff] %v1466
      %1565 = vst [vmem:[%s253 + $0x1a8] sm:$0xff] %v1469
      %1566 = vst [vmem:[%s253 + $0x1b0] sm:$0xff] %v1474
      %1567 = vst [vmem:[%s253 + $0x1b8] sm:$0xff] %v1477
      %1568 = vst [vmem:[%s253 + $0x1c0] sm:$0xff] %v1482
      %1569 = vst [vmem:[%s253 + $0x1c8] sm:$0xff] %v1485
      %1570 = vst [vmem:[%s253 + $0x1d0] sm:$0xff] %v1490
      %1571 = vst [vmem:[%s253 + $0x1d8] sm:$0xff] %v1493
      %1572 = vst [vmem:[%s253 + $0x1e0] sm:$0xff] %v1498
      %1573 = vst [vmem:[%s253 + $0x1e8] sm:$0xff] %v1501
      %1574 = vst [vmem:[%s253 + $0x1f0] sm:$0xff] %v1506
      %1575 = vst [vmem:[%s253 + $0x1f8] sm:$0xff] %v1509
      %s1576 = smul.u32 64, %s17
      %p1577 = scmp.lt.s32.totalorder %s1576, 127
      %s1578 = scalar_select %p1577, %s1576, 127
      %s1579 = smul.addr %s1578, 8
      %s1580 = scalar_lea.vmem %s6, %s1579
      // Predicated region
      $region45: #{_lambda_.17} parent=43 // pred_check
        %p1581 = pneg %p166
      $region46: #{_lambda_.17} parent=43 // pred_check_branch
        %1583 = sbr.rel (%p1581) target = $region48
      $region47: #{_lambda_.17} parent=43 // pred_region
        %s1584 = smul.u32 64, %s17
      $region48: #{_lambda_.17} parent=43 // pred_fallthru
        _
    $region44: #{_lambda_.17} parent=5 // pred_fallthru
      _
    %p1585 = scmp.le.s32.totalorder 2, %s12
    // Predicated region
    $region49: #{_lambda_.17} parent=5 // pred_check
      %p1586 = pneg %p1585
    $region50: #{_lambda_.17} parent=5 // pred_check_branch
      %1588 = sbr.rel (%p1586) target = $region52
    $region51: #{_lambda_.17} parent=5 // pred_region
      %s1589 = ssub.s32 %s12, 2
      // Predicated region
      $region53: #{_lambda_.17} parent=51 // pred_check
        %p1590 = pneg %p172
      $region54: #{_lambda_.17} parent=51 // pred_check_branch
        %1592 = sbr.rel (%p1590) target = $region56
      $region55: #{_lambda_.17} parent=51 // pred_region
        %s1593 = smul.u32 64, %s18
        %p1594 = scmp.lt.s32.totalorder %s1593, 127
        %s1595 = scalar_select %p1594, %s1593, 127
        %s1596 = smul.addr %s1595, 8
        %s1597 = scalar_lea.vmem %s6, %s1596
      $region56: #{_lambda_.17} parent=51 // pred_fallthru
        _
    $region52: #{_lambda_.17} parent=5 // pred_fallthru
      _
  $region6: #{_lambda_.17} parent=0 // loop_footer
    %s16 = sadd.s32 1, %s12
  $region7: #{_lambda_.17} parent=0 // loop_footer_branch
    %11 = sbr.rel target = $region3
  $region8: #{_lambda_.17} parent=0 // loop_exit
    _

</llo_original>
